<compile_context>
chip_gen: v5e
topology: v5e:2x2
jax: 0.10.0
libtpu: 0.0.40
codegen_flags: <defaults>
</compile_context>

<pallas_src>
import functools

import jax
import jax.numpy as jnp
from jax.experimental import pallas as pl
from jax.experimental.pallas import tpu as pltpu


CHANNELS_SIZE = 3
IMG_SIZE = 32
NCLASSES = 10
LAST_KERNEL = {32: 1024, 64: 256, 128: 64, 256: 16, 512: 4}
RNN_IN = 64 * 8 * 8           # 4096 (== 1024 * 2 * 2 for IMG_SIZE=32)
RNN_HIDDEN = 128


# ----------------------------------------------------------------------------
# Pallas kernel 1: fused matmul + bias + ReLU (used for the im2col convs)
# ----------------------------------------------------------------------------
def _matmul_bias_act_kernel(x_ref, w_ref, b_ref, o_ref, *, relu):
    acc = jnp.dot(x_ref[...], w_ref[...],
                  preferred_element_type=jnp.float32) + b_ref[...]
    if relu:
        acc = jnp.maximum(acc, 0.0)
    o_ref[...] = acc.astype(o_ref.dtype)


def fused_matmul(x, w, b2d, relu, m_blocks=1):
    """y = act(x @ w + b).  Whole-M blocks (1 or 2) -- no padding, no slicing."""
    M, K = x.shape
    Kw, N = w.shape
    assert K == Kw and M % m_blocks == 0 and (M // m_blocks) % 8 == 0
    bm = M // m_blocks
    return pl.pallas_call(
        functools.partial(_matmul_bias_act_kernel, relu=relu),
        out_shape=jax.ShapeDtypeStruct((M, N), jnp.float32),
        grid=(m_blocks,),
        in_specs=[
            pl.BlockSpec((bm, K), lambda i: (i, 0)),
            pl.BlockSpec((K, N), lambda i: (0, 0)),
            pl.BlockSpec((1, N), lambda i: (0, 0)),
        ],
        out_specs=pl.BlockSpec((bm, N), lambda i: (i, 0)),
        compiler_params=pltpu.CompilerParams(
            dimension_semantics=("parallel",)),
    )(x, w, b2d)


# ----------------------------------------------------------------------------
# Pallas kernel 2: fused RNN-projection + T-step recurrence + 3 FC layers.
# All weights live in VMEM for the whole kernel; only (B, NCLASSES) hits HBM.
# ----------------------------------------------------------------------------
def _tail_kernel(feats_ref, wih_ref, brnn_ref, whh_ref,
                 fc0w_ref, fc0b_ref, fc1w_ref, fc1b_ref, fc2w_ref, fc2b_ref,
                 o_ref, *, batch, timesteps):
    # RNN input projection for ALL timesteps in one matmul:
    #   feats (T*B, 4096) @ W_ih^T (4096, H) + (b_ih + b_hh)
    xp = jnp.dot(feats_ref[...], wih_ref[...],
                 preferred_element_type=jnp.float32) + brnn_ref[...]

    # Statically unrolled Elman recurrence; rows of xp are (t, b)-ordered.
    # h0 == 0 -> step 0 is just tanh(xp_0).
    whh = whh_ref[...]
    h = jnp.tanh(xp[0:batch, :])
    for t in range(1, timesteps):
        h = jnp.tanh(xp[t * batch:(t + 1) * batch, :]
                     + jnp.dot(h, whh, preferred_element_type=jnp.float32))

    # MLP head: Linear+ReLU, Linear+ReLU, Linear.
    y = jnp.maximum(
        jnp.dot(h, fc0w_ref[...], preferred_element_type=jnp.float32)
        + fc0b_ref[...], 0.0)
    y = jnp.maximum(
        jnp.dot(y, fc1w_ref[...], preferred_element_type=jnp.float32)
        + fc1b_ref[...], 0.0)
    y = (jnp.dot(y, fc2w_ref[...], preferred_element_type=jnp.float32)
         + fc2b_ref[...])
    o_ref[...] = y.astype(o_ref.dtype)


def rnn_fc_tail(feats_tb, params, batch, timesteps):
    n_in = 10
    return pl.pallas_call(
        functools.partial(_tail_kernel, batch=batch, timesteps=timesteps),
        out_shape=jax.ShapeDtypeStruct((batch, NCLASSES), jnp.float32),
        in_specs=[pl.BlockSpec(memory_space=pltpu.MemorySpace.VMEM)
                  for _ in range(n_in)],
        out_specs=pl.BlockSpec(memory_space=pltpu.MemorySpace.VMEM),
    )(feats_tb, params["w_ih_t"], params["b_rnn"], params["w_hh_t"],
      params["fc0_w_t"], params["fc0_b"], params["fc1_w_t"], params["fc1_b"],
      params["fc2_w_t"], params["fc2_b"])


# ----------------------------------------------------------------------------
# Plain-JAX glue: im2col patch extraction (reshape/slice only, no FLOPs).
# TODO(synk): patch extraction itself stays in XLA; fusing it into the conv
#             kernel (tap-accumulation over a VMEM-resident padded input)
#             would remove the (M, 9*C) HBM intermediate.
# ----------------------------------------------------------------------------
def im2col(x_nhwc, k=3, stride=2, pad=1):
    N, H, W, C = x_nhwc.shape
    xp = jnp.pad(x_nhwc, ((0, 0), (pad, pad), (pad, pad), (0, 0)))
    Ho = (H + 2 * pad - k) // stride + 1
    Wo = (W + 2 * pad - k) // stride + 1
    patches = []
    for dy in range(k):
        for dx in range(k):
            patches.append(
                xp[:, dy:dy + stride * Ho:stride, dx:dx + stride * Wo:stride, :])
    cols = jnp.stack(patches, axis=3)            # (N, Ho, Wo, k*k, C)
    return cols.reshape(N * Ho * Wo, k * k * C), Ho, Wo


def conv2d(x_nhwc, w2, b2d, m_blocks=1):
    """Conv2d(3x3, stride=2, pad=1) + ReLU as im2col + one Pallas matmul.
    `w2` is already (9*Cin, Cout), `b2d` already (1, Cout)."""
    N = x_nhwc.shape[0]
    cols, Ho, Wo = im2col(x_nhwc, 3, 2, 1)
    O = w2.shape[1]
    y = fused_matmul(cols, w2, b2d, relu=True, m_blocks=m_blocks)
    return y.reshape(N, Ho, Wo, O)               # NHWC


# ----------------------------------------------------------------------------
# Parameters: PyTorch-like init, pre-transposed / pre-reshaped ONCE here so
# the forward pass contains no weight transposes.
# ----------------------------------------------------------------------------
def _uniform(key, shape, fan_in):
    bound = 1.0 / jnp.sqrt(jnp.float32(fan_in))
    return jax.random.uniform(key, shape, jnp.float32, -bound, bound)


def init_params(key):
    ks = jax.random.split(key, 24)
    p = {}
    conv_chans = [(CHANNELS_SIZE, 64), (64, 64), (64, 64),
                  (64, LAST_KERNEL[IMG_SIZE])]
    for i, (cin, cout) in enumerate(conv_chans):
        fan = cin * 9
        w = _uniform(ks[2 * i], (cout, cin, 3, 3), fan)      # PyTorch (O,Ci,kh,kw)
        b = _uniform(ks[2 * i + 1], (cout,), fan)
        # (O, Ci, kh, kw) -> (kh, kw, Ci, O) -> (9*Ci, O): matches the
        # im2col (dy, dx, c) patch ordering.  Done once, outside the forward.
        p[f"conv{i}_w"] = jnp.transpose(w, (2, 3, 1, 0)).reshape(9 * cin, cout)
        p[f"conv{i}_b"] = b.reshape(1, cout)
    w_ih = _uniform(ks[8], (RNN_HIDDEN, RNN_IN), RNN_HIDDEN)
    w_hh = _uniform(ks[9], (RNN_HIDDEN, RNN_HIDDEN), RNN_HIDDEN)
    b_ih = _uniform(ks[10], (RNN_HIDDEN,), RNN_HIDDEN)
    b_hh = _uniform(ks[11], (RNN_HIDDEN,), RNN_HIDDEN)
    p["w_ih_t"] = w_ih.T                                     # (4096, 128)
    p["w_hh_t"] = w_hh.T                                     # (128, 128)
    p["b_rnn"] = (b_ih + b_hh).reshape(1, RNN_HIDDEN)
    fc_dims = [(128, 64), (64, 32), (32, NCLASSES)]
    for i, (din, dout) in enumerate(fc_dims):
        w = _uniform(ks[12 + 2 * i], (dout, din), din)       # PyTorch (out, in)
        b = _uniform(ks[13 + 2 * i], (dout,), din)
        p[f"fc{i}_w_t"] = w.T                                # (in, out)
        p[f"fc{i}_b"] = b.reshape(1, dout)
    return p


# ----------------------------------------------------------------------------
# Forward pass (matches Model_X_A.forward semantics; returns a 1-tuple)
# ----------------------------------------------------------------------------
def model_forward(params, x, timesteps):
    # Reshape(-1, C, IMG, IMG): flatten (B, T) -> row index b*T + t.
    x = x.reshape(-1, CHANNELS_SIZE, IMG_SIZE, IMG_SIZE)      # NCHW
    h = jnp.transpose(x, (0, 2, 3, 1))                        # -> NHWC

    # Conv stack.  conv0 is the only layer with enough rows (M=2048) to split
    # across TensorCores -> 2 parallel M blocks; the rest use a single block.
    for i in range(4):
        h = conv2d(h, params[f"conv{i}_w"], params[f"conv{i}_b"],
                   m_blocks=2 if i == 0 else 1)

    # One combined reorder for the fused tail kernel:
    #   NHWC (B*T, Ho, Wo, C4) -> rows in (t, b) order, features flattened in
    #   PyTorch's contiguous (C, H, W) order (matches `view(-1, T, 4096)`).
    BT, Ho, Wo, C4 = h.shape
    B = BT // timesteps
    feats_tb = jnp.transpose(
        h.reshape(B, timesteps, Ho, Wo, C4), (1, 0, 4, 2, 3)
    ).reshape(timesteps * B, C4 * Ho * Wo)                    # (T*B, 4096)
    # nn.Dropout(): identity at inference.

    # Single fused Pallas kernel: RNN projection + recurrence + FC0/FC1/FC2.
    logits = rnn_fc_tail(feats_tb, params, batch=B, timesteps=timesteps)
    return (logits,)


# ----------------------------------------------------------------------------
if __name__ == "__main__":
    key = jax.random.PRNGKey(0)
    k_x, k_p = jax.random.split(key)

    BATCH, TIMESTEPS = 2, 4
    x = jax.random.normal(
        k_x, (BATCH, TIMESTEPS, CHANNELS_SIZE, IMG_SIZE, IMG_SIZE),
        dtype=jnp.float32)
    params = init_params(k_p)

    fwd = jax.jit(functools.partial(model_forward, timesteps=TIMESTEPS))
    (logits,) = fwd(params, x)
    logits = jax.block_until_ready(logits)

    assert logits.shape == (BATCH, NCLASSES), logits.shape
    assert logits.dtype == jnp.float32
    print("KERNEL_OK")
</pallas_src>

<mosaic_0001>
module attributes {stable_mosaic.version = 11 : i64} {
  func.func @_matmul_bias_act_kernel(%arg0: i32, %arg1: memref<1024x27xf32, #tpu.memory_space<vmem>>, %arg2: memref<27x64xf32, #tpu.memory_space<vmem>>, %arg3: memref<1x64xf32, #tpu.memory_space<vmem>>, %arg4: memref<1024x64xf32, #tpu.memory_space<vmem>>) attributes {dimension_semantics = [#tpu.dimension_semantics<parallel>], iteration_bounds = array<i64: 2>, scalar_prefetch = 0 : i64, scratch_operands = 0 : i64, tpu.core_type = #tpu.core_type<tc>, window_params = [{transform_indices = @transform_0, window_bounds = array<i64: 1024, 27>}, {pipeline_mode = #tpu.pipeline_mode<synchronous>, transform_indices = @transform_1, window_bounds = array<i64: 27, 64>}, {pipeline_mode = #tpu.pipeline_mode<synchronous>, transform_indices = @transform_2, window_bounds = array<i64: 1, 64>}, {transform_indices = @transform_3, window_bounds = array<i64: 1024, 64>}]} {
    %c0 = arith.constant 0 : index
    %c0_0 = arith.constant 0 : index
    %0 = vector.load %arg1[%c0, %c0_0] : memref<1024x27xf32, #tpu.memory_space<vmem>>, vector<1024x27xf32>
    %c0_1 = arith.constant 0 : index
    %c0_2 = arith.constant 0 : index
    %1 = vector.load %arg2[%c0_1, %c0_2] : memref<27x64xf32, #tpu.memory_space<vmem>>, vector<27x64xf32>
    %cst = arith.constant dense<0.000000e+00> : vector<1024x64xf32>
    %2 = tpu.matmul %0, %1, %cst {dimension_numbers = #tpu.dot_dimension_numbers<[1], [0], [0], [1], [0, 0, 1, 1], [], []>} : vector<1024x27xf32>, vector<27x64xf32>, vector<1024x64xf32> -> vector<1024x64xf32>
    %c0_3 = arith.constant 0 : index
    %c0_4 = arith.constant 0 : index
    %3 = vector.load %arg3[%c0_3, %c0_4] : memref<1x64xf32, #tpu.memory_space<vmem>>, vector<1x64xf32>
    %4 = vector.broadcast %3 : vector<1x64xf32> to vector<1024x64xf32>
    %5 = arith.addf %2, %4 : vector<1024x64xf32>
    %cst_5 = arith.constant 0.000000e+00 : f32
    %6 = vector.broadcast %cst_5 : f32 to vector<1024x64xf32>
    %7 = arith.maximumf %5, %6 : vector<1024x64xf32>
    %c0_6 = arith.constant 0 : index
    %c0_7 = arith.constant 0 : index
    %8 = vector.load %arg4[%c0_6, %c0_7] : memref<1024x64xf32, #tpu.memory_space<vmem>>, vector<1024x64xf32>
    tpu.vector_store %arg4[%c0_6, %c0_7], %7 {strides = array<i32>} : memref<1024x64xf32, #tpu.memory_space<vmem>>, vector<1024x64xf32>,
    return
  }
  func.func @transform_0(%arg0: i32) -> (i32, i32) {
    %c0_i32 = arith.constant 0 : i32
    %c0_i32_0 = arith.constant 0 : i32
    return %arg0, %c0_i32 : i32, i32
  }
  func.func @transform_1(%arg0: i32) -> (i32, i32) {
    %c0_i32 = arith.constant 0 : i32
    %c0_i32_0 = arith.constant 0 : i32
    %c0_i32_1 = arith.constant 0 : i32
    return %c0_i32, %c0_i32_0 : i32, i32
  }
  func.func @transform_2(%arg0: i32) -> (i32, i32) {
    %c0_i32 = arith.constant 0 : i32
    %c0_i32_0 = arith.constant 0 : i32
    %c0_i32_1 = arith.constant 0 : i32
    return %c0_i32, %c0_i32_0 : i32, i32
  }
  func.func @transform_3(%arg0: i32) -> (i32, i32) {
    %c0_i32 = arith.constant 0 : i32
    %c0_i32_0 = arith.constant 0 : i32
    return %arg0, %c0_i32 : i32, i32
  }
}

module attributes {stable_mosaic.version = 11 : i64} {
  func.func @_matmul_bias_act_kernel(%arg0: i32, %arg1: memref<512x576xf32, #tpu.memory_space<vmem>>, %arg2: memref<576x64xf32, #tpu.memory_space<vmem>>, %arg3: memref<1x64xf32, #tpu.memory_space<vmem>>, %arg4: memref<512x64xf32, #tpu.memory_space<vmem>>) attributes {dimension_semantics = [#tpu.dimension_semantics<parallel>], iteration_bounds = array<i64: 1>, scalar_prefetch = 0 : i64, scratch_operands = 0 : i64, tpu.core_type = #tpu.core_type<tc>, window_params = [{transform_indices = @transform_0, window_bounds = array<i64: 512, 576>}, {pipeline_mode = #tpu.pipeline_mode<synchronous>, transform_indices = @transform_1, window_bounds = array<i64: 576, 64>}, {pipeline_mode = #tpu.pipeline_mode<synchronous>, transform_indices = @transform_2, window_bounds = array<i64: 1, 64>}, {transform_indices = @transform_3, window_bounds = array<i64: 512, 64>}]} {
    %c0 = arith.constant 0 : index
    %c0_0 = arith.constant 0 : index
    %0 = vector.load %arg1[%c0, %c0_0] : memref<512x576xf32, #tpu.memory_space<vmem>>, vector<512x576xf32>
    %c0_1 = arith.constant 0 : index
    %c0_2 = arith.constant 0 : index
    %1 = vector.load %arg2[%c0_1, %c0_2] : memref<576x64xf32, #tpu.memory_space<vmem>>, vector<576x64xf32>
    %cst = arith.constant dense<0.000000e+00> : vector<512x64xf32>
    %2 = tpu.matmul %0, %1, %cst {dimension_numbers = #tpu.dot_dimension_numbers<[1], [0], [0], [1], [0, 0, 1, 1], [], []>} : vector<512x576xf32>, vector<576x64xf32>, vector<512x64xf32> -> vector<512x64xf32>
    %c0_3 = arith.constant 0 : index
    %c0_4 = arith.constant 0 : index
    %3 = vector.load %arg3[%c0_3, %c0_4] : memref<1x64xf32, #tpu.memory_space<vmem>>, vector<1x64xf32>
    %4 = vector.broadcast %3 : vector<1x64xf32> to vector<512x64xf32>
    %5 = arith.addf %2, %4 : vector<512x64xf32>
    %cst_5 = arith.constant 0.000000e+00 : f32
    %6 = vector.broadcast %cst_5 : f32 to vector<512x64xf32>
    %7 = arith.maximumf %5, %6 : vector<512x64xf32>
    %c0_6 = arith.constant 0 : index
    %c0_7 = arith.constant 0 : index
    %8 = vector.load %arg4[%c0_6, %c0_7] : memref<512x64xf32, #tpu.memory_space<vmem>>, vector<512x64xf32>
    tpu.vector_store %arg4[%c0_6, %c0_7], %7 {strides = array<i32>} : memref<512x64xf32, #tpu.memory_space<vmem>>, vector<512x64xf32>,
    return
  }
  func.func @transform_0(%arg0: i32) -> (i32, i32) {
    %c0_i32 = arith.constant 0 : i32
    %c0_i32_0 = arith.constant 0 : i32
    return %arg0, %c0_i32 : i32, i32
  }
  func.func @transform_1(%arg0: i32) -> (i32, i32) {
    %c0_i32 = arith.constant 0 : i32
    %c0_i32_0 = arith.constant 0 : i32
    %c0_i32_1 = arith.constant 0 : i32
    return %c0_i32, %c0_i32_0 : i32, i32
  }
  func.func @transform_2(%arg0: i32) -> (i32, i32) {
    %c0_i32 = arith.constant 0 : i32
    %c0_i32_0 = arith.constant 0 : i32
    %c0_i32_1 = arith.constant 0 : i32
    return %c0_i32, %c0_i32_0 : i32, i32
  }
  func.func @transform_3(%arg0: i32) -> (i32, i32) {
    %c0_i32 = arith.constant 0 : i32
    %c0_i32_0 = arith.constant 0 : i32
    return %arg0, %c0_i32 : i32, i32
  }
}

module attributes {stable_mosaic.version = 11 : i64} {
  func.func @_matmul_bias_act_kernel(%arg0: i32, %arg1: memref<128x576xf32, #tpu.memory_space<vmem>>, %arg2: memref<576x64xf32, #tpu.memory_space<vmem>>, %arg3: memref<1x64xf32, #tpu.memory_space<vmem>>, %arg4: memref<128x64xf32, #tpu.memory_space<vmem>>) attributes {dimension_semantics = [#tpu.dimension_semantics<parallel>], iteration_bounds = array<i64: 1>, scalar_prefetch = 0 : i64, scratch_operands = 0 : i64, tpu.core_type = #tpu.core_type<tc>, window_params = [{transform_indices = @transform_0, window_bounds = array<i64: 128, 576>}, {pipeline_mode = #tpu.pipeline_mode<synchronous>, transform_indices = @transform_1, window_bounds = array<i64: 576, 64>}, {pipeline_mode = #tpu.pipeline_mode<synchronous>, transform_indices = @transform_2, window_bounds = array<i64: 1, 64>}, {transform_indices = @transform_3, window_bounds = array<i64: 128, 64>}]} {
    %c0 = arith.constant 0 : index
    %c0_0 = arith.constant 0 : index
    %0 = vector.load %arg1[%c0, %c0_0] : memref<128x576xf32, #tpu.memory_space<vmem>>, vector<128x576xf32>
    %c0_1 = arith.constant 0 : index
    %c0_2 = arith.constant 0 : index
    %1 = vector.load %arg2[%c0_1, %c0_2] : memref<576x64xf32, #tpu.memory_space<vmem>>, vector<576x64xf32>
    %cst = arith.constant dense<0.000000e+00> : vector<128x64xf32>
    %2 = tpu.matmul %0, %1, %cst {dimension_numbers = #tpu.dot_dimension_numbers<[1], [0], [0], [1], [0, 0, 1, 1], [], []>} : vector<128x576xf32>, vector<576x64xf32>, vector<128x64xf32> -> vector<128x64xf32>
    %c0_3 = arith.constant 0 : index
    %c0_4 = arith.constant 0 : index
    %3 = vector.load %arg3[%c0_3, %c0_4] : memref<1x64xf32, #tpu.memory_space<vmem>>, vector<1x64xf32>
    %4 = vector.broadcast %3 : vector<1x64xf32> to vector<128x64xf32>
    %5 = arith.addf %2, %4 : vector<128x64xf32>
    %cst_5 = arith.constant 0.000000e+00 : f32
    %6 = vector.broadcast %cst_5 : f32 to vector<128x64xf32>
    %7 = arith.maximumf %5, %6 : vector<128x64xf32>
    %c0_6 = arith.constant 0 : index
    %c0_7 = arith.constant 0 : index
    %8 = vector.load %arg4[%c0_6, %c0_7] : memref<128x64xf32, #tpu.memory_space<vmem>>, vector<128x64xf32>
    tpu.vector_store %arg4[%c0_6, %c0_7], %7 {strides = array<i32>} : memref<128x64xf32, #tpu.memory_space<vmem>>, vector<128x64xf32>,
    return
  }
  func.func @transform_0(%arg0: i32) -> (i32, i32) {
    %c0_i32 = arith.constant 0 : i32
    %c0_i32_0 = arith.constant 0 : i32
    return %arg0, %c0_i32 : i32, i32
  }
  func.func @transform_1(%arg0: i32) -> (i32, i32) {
    %c0_i32 = arith.constant 0 : i32
    %c0_i32_0 = arith.constant 0 : i32
    %c0_i32_1 = arith.constant 0 : i32
    return %c0_i32, %c0_i32_0 : i32, i32
  }
  func.func @transform_2(%arg0: i32) -> (i32, i32) {
    %c0_i32 = arith.constant 0 : i32
    %c0_i32_0 = arith.constant 0 : i32
    %c0_i32_1 = arith.constant 0 : i32
    return %c0_i32, %c0_i32_0 : i32, i32
  }
  func.func @transform_3(%arg0: i32) -> (i32, i32) {
    %c0_i32 = arith.constant 0 : i32
    %c0_i32_0 = arith.constant 0 : i32
    return %arg0, %c0_i32 : i32, i32
  }
}

module attributes {stable_mosaic.version = 11 : i64} {
  func.func @_matmul_bias_act_kernel(%arg0: i32, %arg1: memref<32x576xf32, #tpu.memory_space<vmem>>, %arg2: memref<576x1024xf32, #tpu.memory_space<vmem>>, %arg3: memref<1x1024xf32, #tpu.memory_space<vmem>>, %arg4: memref<32x1024xf32, #tpu.memory_space<vmem>>) attributes {dimension_semantics = [#tpu.dimension_semantics<parallel>], iteration_bounds = array<i64: 1>, scalar_prefetch = 0 : i64, scratch_operands = 0 : i64, tpu.core_type = #tpu.core_type<tc>, window_params = [{transform_indices = @transform_0, window_bounds = array<i64: 32, 576>}, {pipeline_mode = #tpu.pipeline_mode<synchronous>, transform_indices = @transform_1, window_bounds = array<i64: 576, 1024>}, {pipeline_mode = #tpu.pipeline_mode<synchronous>, transform_indices = @transform_2, window_bounds = array<i64: 1, 1024>}, {transform_indices = @transform_3, window_bounds = array<i64: 32, 1024>}]} {
    %c0 = arith.constant 0 : index
    %c0_0 = arith.constant 0 : index
    %0 = vector.load %arg1[%c0, %c0_0] : memref<32x576xf32, #tpu.memory_space<vmem>>, vector<32x576xf32>
    %c0_1 = arith.constant 0 : index
    %c0_2 = arith.constant 0 : index
    %1 = vector.load %arg2[%c0_1, %c0_2] : memref<576x1024xf32, #tpu.memory_space<vmem>>, vector<576x1024xf32>
    %cst = arith.constant dense<0.000000e+00> : vector<32x1024xf32>
    %2 = tpu.matmul %0, %1, %cst {dimension_numbers = #tpu.dot_dimension_numbers<[1], [0], [0], [1], [0, 0, 1, 1], [], []>} : vector<32x576xf32>, vector<576x1024xf32>, vector<32x1024xf32> -> vector<32x1024xf32>
    %c0_3 = arith.constant 0 : index
    %c0_4 = arith.constant 0 : index
    %3 = vector.load %arg3[%c0_3, %c0_4] : memref<1x1024xf32, #tpu.memory_space<vmem>>, vector<1x1024xf32>
    %4 = vector.broadcast %3 : vector<1x1024xf32> to vector<32x1024xf32>
    %5 = arith.addf %2, %4 : vector<32x1024xf32>
    %cst_5 = arith.constant 0.000000e+00 : f32
    %6 = vector.broadcast %cst_5 : f32 to vector<32x1024xf32>
    %7 = arith.maximumf %5, %6 : vector<32x1024xf32>
    %c0_6 = arith.constant 0 : index
    %c0_7 = arith.constant 0 : index
    %8 = vector.load %arg4[%c0_6, %c0_7] : memref<32x1024xf32, #tpu.memory_space<vmem>>, vector<32x1024xf32>
    tpu.vector_store %arg4[%c0_6, %c0_7], %7 {strides = array<i32>} : memref<32x1024xf32, #tpu.memory_space<vmem>>, vector<32x1024xf32>,
    return
  }
  func.func @transform_0(%arg0: i32) -> (i32, i32) {
    %c0_i32 = arith.constant 0 : i32
    %c0_i32_0 = arith.constant 0 : i32
    return %arg0, %c0_i32 : i32, i32
  }
  func.func @transform_1(%arg0: i32) -> (i32, i32) {
    %c0_i32 = arith.constant 0 : i32
    %c0_i32_0 = arith.constant 0 : i32
    %c0_i32_1 = arith.constant 0 : i32
    return %c0_i32, %c0_i32_0 : i32, i32
  }
  func.func @transform_2(%arg0: i32) -> (i32, i32) {
    %c0_i32 = arith.constant 0 : i32
    %c0_i32_0 = arith.constant 0 : i32
    %c0_i32_1 = arith.constant 0 : i32
    return %c0_i32, %c0_i32_0 : i32, i32
  }
  func.func @transform_3(%arg0: i32) -> (i32, i32) {
    %c0_i32 = arith.constant 0 : i32
    %c0_i32_0 = arith.constant 0 : i32
    return %arg0, %c0_i32 : i32, i32
  }
}

module attributes {stable_mosaic.version = 11 : i64} {
  func.func @_tail_kernel(%arg0: memref<8x4096xf32, #tpu.memory_space<vmem>>, %arg1: memref<4096x128xf32, #tpu.memory_space<vmem>>, %arg2: memref<1x128xf32, #tpu.memory_space<vmem>>, %arg3: memref<128x128xf32, #tpu.memory_space<vmem>>, %arg4: memref<128x64xf32, #tpu.memory_space<vmem>>, %arg5: memref<1x64xf32, #tpu.memory_space<vmem>>, %arg6: memref<64x32xf32, #tpu.memory_space<vmem>>, %arg7: memref<1x32xf32, #tpu.memory_space<vmem>>, %arg8: memref<32x10xf32, #tpu.memory_space<vmem>>, %arg9: memref<1x10xf32, #tpu.memory_space<vmem>>, %arg10: memref<2x10xf32, #tpu.memory_space<vmem>>) attributes {dimension_semantics = [], scalar_prefetch = 0 : i64, scratch_operands = 0 : i64, tpu.core_type = #tpu.core_type<tc>} {
    %c0 = arith.constant 0 : index
    %c0_0 = arith.constant 0 : index
    %0 = vector.load %arg0[%c0, %c0_0] : memref<8x4096xf32, #tpu.memory_space<vmem>>, vector<8x4096xf32>
    %c0_1 = arith.constant 0 : index
    %c0_2 = arith.constant 0 : index
    %1 = vector.load %arg1[%c0_1, %c0_2] : memref<4096x128xf32, #tpu.memory_space<vmem>>, vector<4096x128xf32>
    %cst = arith.constant dense<0.000000e+00> : vector<8x128xf32>
    %2 = tpu.matmul %0, %1, %cst {dimension_numbers = #tpu.dot_dimension_numbers<[1], [0], [0], [1], [0, 0, 1, 1], [], []>} : vector<8x4096xf32>, vector<4096x128xf32>, vector<8x128xf32> -> vector<8x128xf32>
    %c0_3 = arith.constant 0 : index
    %c0_4 = arith.constant 0 : index
    %3 = vector.load %arg2[%c0_3, %c0_4] : memref<1x128xf32, #tpu.memory_space<vmem>>, vector<1x128xf32>
    %4 = vector.broadcast %3 : vector<1x128xf32> to vector<8x128xf32>
    %5 = arith.addf %2, %4 : vector<8x128xf32>
    %c0_5 = arith.constant 0 : index
    %c0_6 = arith.constant 0 : index
    %6 = vector.load %arg3[%c0_5, %c0_6] : memref<128x128xf32, #tpu.memory_space<vmem>>, vector<128x128xf32>
    %7 = vector.extract_strided_slice %5 {offsets = [0, 0], sizes = [2, 128], strides = [1, 1]} : vector<8x128xf32> to vector<2x128xf32>
    %8 = math.tanh %7 : vector<2x128xf32>
    %9 = vector.extract_strided_slice %5 {offsets = [2, 0], sizes = [2, 128], strides = [1, 1]} : vector<8x128xf32> to vector<2x128xf32>
    %cst_7 = arith.constant dense<0.000000e+00> : vector<2x128xf32>
    %10 = tpu.matmul %8, %6, %cst_7 {dimension_numbers = #tpu.dot_dimension_numbers<[1], [0], [0], [1], [0, 0, 1, 1], [], []>} : vector<2x128xf32>, vector<128x128xf32>, vector<2x128xf32> -> vector<2x128xf32>
    %11 = arith.addf %9, %10 : vector<2x128xf32>
    %12 = math.tanh %11 : vector<2x128xf32>
    %13 = vector.extract_strided_slice %5 {offsets = [4, 0], sizes = [2, 128], strides = [1, 1]} : vector<8x128xf32> to vector<2x128xf32>
    %cst_8 = arith.constant dense<0.000000e+00> : vector<2x128xf32>
    %14 = tpu.matmul %12, %6, %cst_8 {dimension_numbers = #tpu.dot_dimension_numbers<[1], [0], [0], [1], [0, 0, 1, 1], [], []>} : vector<2x128xf32>, vector<128x128xf32>, vector<2x128xf32> -> vector<2x128xf32>
    %15 = arith.addf %13, %14 : vector<2x128xf32>
    %16 = math.tanh %15 : vector<2x128xf32>
    %17 = vector.extract_strided_slice %5 {offsets = [6, 0], sizes = [2, 128], strides = [1, 1]} : vector<8x128xf32> to vector<2x128xf32>
    %cst_9 = arith.constant dense<0.000000e+00> : vector<2x128xf32>
    %18 = tpu.matmul %16, %6, %cst_9 {dimension_numbers = #tpu.dot_dimension_numbers<[1], [0], [0], [1], [0, 0, 1, 1], [], []>} : vector<2x128xf32>, vector<128x128xf32>, vector<2x128xf32> -> vector<2x128xf32>
    %19 = arith.addf %17, %18 : vector<2x128xf32>
    %20 = math.tanh %19 : vector<2x128xf32>
    %c0_10 = arith.constant 0 : index
    %c0_11 = arith.constant 0 : index
    %21 = vector.load %arg4[%c0_10, %c0_11] : memref<128x64xf32, #tpu.memory_space<vmem>>, vector<128x64xf32>
    %cst_12 = arith.constant dense<0.000000e+00> : vector<2x64xf32>
    %22 = tpu.matmul %20, %21, %cst_12 {dimension_numbers = #tpu.dot_dimension_numbers<[1], [0], [0], [1], [0, 0, 1, 1], [], []>} : vector<2x128xf32>, vector<128x64xf32>, vector<2x64xf32> -> vector<2x64xf32>
    %c0_13 = arith.constant 0 : index
    %c0_14 = arith.constant 0 : index
    %23 = vector.load %arg5[%c0_13, %c0_14] : memref<1x64xf32, #tpu.memory_space<vmem>>, vector<1x64xf32>
    %24 = vector.broadcast %23 : vector<1x64xf32> to vector<2x64xf32>
    %25 = arith.addf %22, %24 : vector<2x64xf32>
    %cst_15 = arith.constant 0.000000e+00 : f32
    %26 = vector.broadcast %cst_15 : f32 to vector<2x64xf32>
    %27 = arith.maximumf %25, %26 : vector<2x64xf32>
    %c0_16 = arith.constant 0 : index
    %c0_17 = arith.constant 0 : index
    %28 = vector.load %arg6[%c0_16, %c0_17] : memref<64x32xf32, #tpu.memory_space<vmem>>, vector<64x32xf32>
    %cst_18 = arith.constant dense<0.000000e+00> : vector<2x32xf32>
    %29 = tpu.matmul %27, %28, %cst_18 {dimension_numbers = #tpu.dot_dimension_numbers<[1], [0], [0], [1], [0, 0, 1, 1], [], []>} : vector<2x64xf32>, vector<64x32xf32>, vector<2x32xf32> -> vector<2x32xf32>
    %c0_19 = arith.constant 0 : index
    %c0_20 = arith.constant 0 : index
    %30 = vector.load %arg7[%c0_19, %c0_20] : memref<1x32xf32, #tpu.memory_space<vmem>>, vector<1x32xf32>
    %31 = vector.broadcast %30 : vector<1x32xf32> to vector<2x32xf32>
    %32 = arith.addf %29, %31 : vector<2x32xf32>
    %cst_21 = arith.constant 0.000000e+00 : f32
    %33 = vector.broadcast %cst_21 : f32 to vector<2x32xf32>
    %34 = arith.maximumf %32, %33 : vector<2x32xf32>
    %c0_22 = arith.constant 0 : index
    %c0_23 = arith.constant 0 : index
    %35 = vector.load %arg8[%c0_22, %c0_23] : memref<32x10xf32, #tpu.memory_space<vmem>>, vector<32x10xf32>
    %cst_24 = arith.constant dense<0.000000e+00> : vector<2x10xf32>
    %36 = tpu.matmul %34, %35, %cst_24 {dimension_numbers = #tpu.dot_dimension_numbers<[1], [0], [0], [1], [0, 0, 1, 1], [], []>} : vector<2x32xf32>, vector<32x10xf32>, vector<2x10xf32> -> vector<2x10xf32>
    %c0_25 = arith.constant 0 : index
    %c0_26 = arith.constant 0 : index
    %37 = vector.load %arg9[%c0_25, %c0_26] : memref<1x10xf32, #tpu.memory_space<vmem>>, vector<1x10xf32>
    %38 = vector.broadcast %37 : vector<1x10xf32> to vector<2x10xf32>
    %39 = arith.addf %36, %38 : vector<2x10xf32>
    %c0_27 = arith.constant 0 : index
    %c0_28 = arith.constant 0 : index
    %40 = vector.load %arg10[%c0_27, %c0_28] : memref<2x10xf32, #tpu.memory_space<vmem>>, vector<2x10xf32>
    tpu.vector_store %arg10[%c0_27, %c0_28], %39 {strides = array<i32>} : memref<2x10xf32, #tpu.memory_space<vmem>>, vector<2x10xf32>,
    return
  }
}

</mosaic_0001>

<llo_original>
// kernel: model_forward.5
$region0: #{model_forward.5}
  #allocation0 [shape = 'u32[]', space=smem, size = 0x4, offset = 0x4, fixed_abs, tag = 'smem constant byte address 0x4 - core index']
  #allocation1 [shape = 'u32[72,128]{1,0:T(1,128)}', space=vmem, size = 0x9000, scoped, tag = 'internal scratch']
  %s0 = inlined_call_operand.vmem [shape: f32[2048,27], index: 0, kind: input, shape index: {}]
  %s1 = inlined_call_operand.vmem [shape: f32[27,64], index: 1, kind: input, shape index: {}]
  %s2 = inlined_call_operand.vmem [shape: f32[1,64], index: 2, kind: input, shape index: {}]
  %s3 = inlined_call_operand.vmem [shape: f32[2048,64], index: 3, kind: output, shape index: {}]
  %s4 = sld [smem:[#allocation0]]
  $region45: #{model_forward.5} parent=0
    _
  %s6 = ssub.s32 1, %s4
  %s7 = scalar_select 0, %s6, %s4
  loop: start=0, step=1, limit=4
  $region2: #{model_forward.5} parent=0 // loop_pre_header
    _
  $region3: #{model_forward.5} parent=0 // loop_header
    %s9 = sphi 0, %s13
    %p10 = scmp.ge.s32.totalorder %s9, 4
    %s19 = sphi 0, %s21
    %s22 = sphi 0, %s19
    %s23 = sphi 0, %s22
    %s39 = sphi 0, %s23
    %s43 = sphi 0, %s43
    %s45 = sphi 0, %s43
    %s46 = sphi 0, %s45
    %s60 = sphi 0, %s46
    %s64 = sphi 0, %s64
    %s66 = sphi 0, %s64
    %s67 = sphi 0, %s66
    %s81 = sphi 0, %s67
    %s87 = sphi 0, %s89
    %s90 = sphi 0, %s87
    %s91 = sphi 0, %s90
    %s107 = sphi 0, %s91
  $region4: #{model_forward.5} parent=0 // loop_header_branch
    %12 = sbr.rel (%p10) target = $region8
  $region5: #{model_forward.5} parent=0 // loop_body
    %s14 = ssub.s32 %s9, 1
    %s15 = ssub.s32 %s9, 2
    %s16 = sadd.s32 %s9, 1
    %s17 = ssub.s32 %s9, %s16
    %p18 = scmp.eq.s32.totalorder %s17, 0
    %s20 = sadd.s32 %s19, 1
    %s21 = scalar_select %p18, %s19, %s20
    %p24 = pneg %p18
    %p25 = scmp.eq.s32.totalorder %s9, 1
    %p26 = por %p24, %p25
    %p27 = scmp.ne.s32.totalorder %s19, %s22
    %p28 = scmp.eq.s32.totalorder %s9, 0
    %p29 = por %p27, %p28
    %p30 = scmp.ne.s32.totalorder %s19, %s22
    %p31 = scmp.eq.s32.totalorder %s14, 1
    %p32 = por %p30, %p31
    %p33 = scmp.ne.s32.totalorder %s22, %s23
    %p34 = scmp.eq.s32.totalorder %s14, 0
    %p35 = por %p33, %p34
    %p36 = scmp.ne.s32.totalorder %s22, %s23
    %p37 = scmp.eq.s32.totalorder %s15, 1
    %p38 = por %p36, %p37
    %p40 = scmp.ne.s32.totalorder %s23, %s39
    %p41 = scmp.eq.s32.totalorder %s15, 0
    %p42 = por %p40, %p41
    %s44 = sadd.s32 %s43, 1
    %p47 = scmp.eq.s32.totalorder %s9, 1
    %p48 = scmp.ne.s32.totalorder %s43, %s45
    %p49 = scmp.eq.s32.totalorder %s9, 0
    %p50 = por %p48, %p49
    %p51 = scmp.ne.s32.totalorder %s43, %s45
    %p52 = scmp.eq.s32.totalorder %s14, 1
    %p53 = por %p51, %p52
    %p54 = scmp.ne.s32.totalorder %s45, %s46
    %p55 = scmp.eq.s32.totalorder %s14, 0
    %p56 = por %p54, %p55
    %p57 = scmp.ne.s32.totalorder %s45, %s46
    %p58 = scmp.eq.s32.totalorder %s15, 1
    %p59 = por %p57, %p58
    %p61 = scmp.ne.s32.totalorder %s46, %s60
    %p62 = scmp.eq.s32.totalorder %s15, 0
    %p63 = por %p61, %p62
    %s65 = sadd.s32 %s64, 1
    %p68 = scmp.eq.s32.totalorder %s9, 1
    %p69 = scmp.ne.s32.totalorder %s64, %s66
    %p70 = scmp.eq.s32.totalorder %s9, 0
    %p71 = por %p69, %p70
    %p72 = scmp.ne.s32.totalorder %s64, %s66
    %p73 = scmp.eq.s32.totalorder %s14, 1
    %p74 = por %p72, %p73
    %p75 = scmp.ne.s32.totalorder %s66, %s67
    %p76 = scmp.eq.s32.totalorder %s14, 0
    %p77 = por %p75, %p76
    %p78 = scmp.ne.s32.totalorder %s66, %s67
    %p79 = scmp.eq.s32.totalorder %s15, 1
    %p80 = por %p78, %p79
    %p82 = scmp.ne.s32.totalorder %s67, %s81
    %p83 = scmp.eq.s32.totalorder %s15, 0
    %p84 = por %p82, %p83
    %s85 = ssub.s32 %s9, %s16
    %p86 = scmp.eq.s32.totalorder %s85, 0
    %s88 = sadd.s32 %s87, 1
    %s89 = scalar_select %p86, %s87, %s88
    %p92 = pneg %p86
    %p93 = scmp.eq.s32.totalorder %s9, 1
    %p94 = por %p92, %p93
    %p95 = scmp.ne.s32.totalorder %s87, %s90
    %p96 = scmp.eq.s32.totalorder %s9, 0
    %p97 = por %p95, %p96
    %p98 = scmp.ne.s32.totalorder %s87, %s90
    %p99 = scmp.eq.s32.totalorder %s14, 1
    %p100 = por %p98, %p99
    %p101 = scmp.ne.s32.totalorder %s90, %s91
    %p102 = scmp.eq.s32.totalorder %s14, 0
    %p103 = por %p101, %p102
    %p104 = scmp.ne.s32.totalorder %s90, %s91
    %p105 = scmp.eq.s32.totalorder %s15, 1
    %p106 = por %p104, %p105
    %p108 = scmp.ne.s32.totalorder %s91, %s107
    %p109 = scmp.eq.s32.totalorder %s15, 0
    %p110 = por %p108, %p109
    %p111 = scmp.le.s32.totalorder 1, %s9
    %p112 = scmp.lt.s32.totalorder %s9, 3
    %p113 = pnand %p111, %p112
    %p114 = pneg %p113
    // Predicated region
    $region9: #{model_forward.5} parent=5 // pred_check
      _
    $region10: #{model_forward.5} parent=5 // pred_check_branch
      %116 = sbr.rel (%p113) target = $region12
    $region11: #{model_forward.5} parent=5 // pred_region
      %s117 = ssub.s32 %s9, 1
      // Predicated region
      $region13: #{model_forward.5} parent=11 // pred_check
        %p118 = pneg %p56
      $region14: #{model_forward.5} parent=11 // pred_check_branch
        %120 = sbr.rel (%p118) target = $region16
      $region15: #{model_forward.5} parent=11 // pred_region
        _
      $region16: #{model_forward.5} parent=11 // pred_fallthru
        _
      // Predicated region
      $region17: #{model_forward.5} parent=11 // pred_check
        %p121 = pneg %p77
      $region18: #{model_forward.5} parent=11 // pred_check_branch
        %123 = sbr.rel (%p121) target = $region20
      $region19: #{model_forward.5} parent=11 // pred_region
        _
      $region20: #{model_forward.5} parent=11 // pred_fallthru
        _
    $region12: #{model_forward.5} parent=5 // pred_fallthru
      _
    %p124 = scmp.lt.s32.totalorder %s9, 2
    // Predicated region
    $region21: #{model_forward.5} parent=5 // pred_check
      %p125 = pneg %p124
    $region22: #{model_forward.5} parent=5 // pred_check_branch
      %127 = sbr.rel (%p125) target = $region24
    $region23: #{model_forward.5} parent=5 // pred_region
      // Predicated region
      $region25: #{model_forward.5} parent=23 // pred_check
        %p128 = pneg %p29
      $region26: #{model_forward.5} parent=23 // pred_check_branch
        %130 = sbr.rel (%p128) target = $region28
      $region27: #{model_forward.5} parent=23 // pred_region
        %s131 = smul.u32 128, %s9
        %p132 = scmp.lt.s32.totalorder %s131, 255
        %s133 = scalar_select %p132, %s131, 255
        %s134 = smul.addr %s133, 8
        %s135 = scalar_lea.vmem %s0, %s134
        %s136 = smul.u32 128, %s9
      $region28: #{model_forward.5} parent=23 // pred_fallthru
        _
    $region24: #{model_forward.5} parent=5 // pred_fallthru
      _
    %p137 = scmp.le.s32.totalorder 1, %s9
    %p138 = scmp.lt.s32.totalorder %s9, 3
    %p139 = pnand %p137, %p138
    %p140 = pneg %p139
    // Predicated region
    $region29: #{model_forward.5} parent=5 // pred_check
      _
    $region30: #{model_forward.5} parent=5 // pred_check_branch
      %142 = sbr.rel (%p139) target = $region32
    $region31: #{model_forward.5} parent=5 // pred_region
      %s143 = ssub.s32 %s9, 1
      %s144 = smul.u32 128, %s14
      %p145 = scmp.lt.s32.totalorder %s144, 255
      %s146 = scalar_select %p145, %s144, 255
      %s147 = smul.addr %s146, 8
      %s148 = scalar_lea.vmem %s0, %s147
      %p149 = pneg %p35
      %p150 = pneg %p32
      %p151 = pneg %p56
      %p152 = pneg %p53
      %p153 = pneg %p77
      %p154 = pneg %p74
      %p155 = pneg %p103
      %p156 = pneg %p100
      %s157 = smul.u32 128, %s14
      %p158 = scmp.lt.s32.totalorder %s157, 255
      %s159 = scalar_select %p158, %s157, 255
      %s160 = smul.addr %s159, 8
      %s161 = scalar_lea.vmem %s3, %s160
      %s162 = smul.u32 128, %s14
      %p163 = scmp.lt.s32.totalorder %s162, 255
      %s164 = scalar_select %p163, %s162, 255
      %s165 = smul.addr %s164, 8
      %s166 = scalar_lea.vmem %s0, %s165
      %s167 = smul.u32 128, %s14
      %s168 = smul.u32 128, %s14
      %p169 = scmp.lt.s32.totalorder %s168, 255
      %s170 = scalar_select %p169, %s168, 255
      %s171 = smul.addr %s170, 8
      %s172 = scalar_lea.vmem %s3, %s171
      %s173 = smul.u32 128, %s14
      %v174 = vld [vmem:[%s166] sm:$0xff]
      %v175 = vld [vmem:[%s166 + $0x8] sm:$0xff]
      %v176 = vld [vmem:[%s166 + $0x10] sm:$0xff]
      %v177 = vld [vmem:[%s166 + $0x18] sm:$0xff]
      %v178 = vld [vmem:[%s166 + $0x20] sm:$0xff]
      %v179 = vld [vmem:[%s166 + $0x28] sm:$0xff]
      %v180 = vld [vmem:[%s166 + $0x30] sm:$0xff]
      %v181 = vld [vmem:[%s166 + $0x38] sm:$0xff]
      %v182 = vld [vmem:[%s166 + $0x40] sm:$0xff]
      %v183 = vld [vmem:[%s166 + $0x48] sm:$0xff]
      %v184 = vld [vmem:[%s166 + $0x50] sm:$0xff]
      %v185 = vld [vmem:[%s166 + $0x58] sm:$0xff]
      %v186 = vld [vmem:[%s166 + $0x60] sm:$0xff]
      %v187 = vld [vmem:[%s166 + $0x68] sm:$0xff]
      %v188 = vld [vmem:[%s166 + $0x70] sm:$0xff]
      %v189 = vld [vmem:[%s166 + $0x78] sm:$0xff]
      %v190 = vld [vmem:[%s166 + $0x80] sm:$0xff]
      %v191 = vld [vmem:[%s166 + $0x88] sm:$0xff]
      %v192 = vld [vmem:[%s166 + $0x90] sm:$0xff]
      %v193 = vld [vmem:[%s166 + $0x98] sm:$0xff]
      %v194 = vld [vmem:[%s166 + $0xa0] sm:$0xff]
      %v195 = vld [vmem:[%s166 + $0xa8] sm:$0xff]
      %v196 = vld [vmem:[%s166 + $0xb0] sm:$0xff]
      %v197 = vld [vmem:[%s166 + $0xb8] sm:$0xff]
      %v198 = vld [vmem:[%s166 + $0xc0] sm:$0xff]
      %v199 = vld [vmem:[%s166 + $0xc8] sm:$0xff]
      %v200 = vld [vmem:[%s166 + $0xd0] sm:$0xff]
      %v201 = vld [vmem:[%s166 + $0xd8] sm:$0xff]
      %v202 = vld [vmem:[%s166 + $0xe0] sm:$0xff]
      %v203 = vld [vmem:[%s166 + $0xe8] sm:$0xff]
      %v204 = vld [vmem:[%s166 + $0xf0] sm:$0xff]
      %v205 = vld [vmem:[%s166 + $0xf8] sm:$0xff]
      %v206 = vld [vmem:[%s166 + $0x100] sm:$0xff]
      %v207 = vld [vmem:[%s166 + $0x108] sm:$0xff]
      %v208 = vld [vmem:[%s166 + $0x110] sm:$0xff]
      %v209 = vld [vmem:[%s166 + $0x118] sm:$0xff]
      %v210 = vld [vmem:[%s166 + $0x120] sm:$0xff]
      %v211 = vld [vmem:[%s166 + $0x128] sm:$0xff]
      %v212 = vld [vmem:[%s166 + $0x130] sm:$0xff]
      %v213 = vld [vmem:[%s166 + $0x138] sm:$0xff]
      %v214 = vld [vmem:[%s166 + $0x140] sm:$0xff]
      %v215 = vld [vmem:[%s166 + $0x148] sm:$0xff]
      %v216 = vld [vmem:[%s166 + $0x150] sm:$0xff]
      %v217 = vld [vmem:[%s166 + $0x158] sm:$0xff]
      %v218 = vld [vmem:[%s166 + $0x160] sm:$0xff]
      %v219 = vld [vmem:[%s166 + $0x168] sm:$0xff]
      %v220 = vld [vmem:[%s166 + $0x170] sm:$0xff]
      %v221 = vld [vmem:[%s166 + $0x178] sm:$0xff]
      %v222 = vld [vmem:[%s166 + $0x180] sm:$0xff]
      %v223 = vld [vmem:[%s166 + $0x188] sm:$0xff]
      %v224 = vld [vmem:[%s166 + $0x190] sm:$0xff]
      %v225 = vld [vmem:[%s166 + $0x198] sm:$0xff]
      %v226 = vld [vmem:[%s166 + $0x1a0] sm:$0xff]
      %v227 = vld [vmem:[%s166 + $0x1a8] sm:$0xff]
      %v228 = vld [vmem:[%s166 + $0x1b0] sm:$0xff]
      %v229 = vld [vmem:[%s166 + $0x1b8] sm:$0xff]
      %v230 = vld [vmem:[%s166 + $0x1c0] sm:$0xff]
      %v231 = vld [vmem:[%s166 + $0x1c8] sm:$0xff]
      %v232 = vld [vmem:[%s166 + $0x1d0] sm:$0xff]
      %v233 = vld [vmem:[%s166 + $0x1d8] sm:$0xff]
      %v234 = vld [vmem:[%s166 + $0x1e0] sm:$0xff]
      %v235 = vld [vmem:[%s166 + $0x1e8] sm:$0xff]
      %v236 = vld [vmem:[%s166 + $0x1f0] sm:$0xff]
      %v237 = vld [vmem:[%s166 + $0x1f8] sm:$0xff]
      %v238 = vld [vmem:[%s166 + $0x200] sm:$0xff]
      %v239 = vld [vmem:[%s166 + $0x208] sm:$0xff]
      %v240 = vld [vmem:[%s166 + $0x210] sm:$0xff]
      %v241 = vld [vmem:[%s166 + $0x218] sm:$0xff]
      %v242 = vld [vmem:[%s166 + $0x220] sm:$0xff]
      %v243 = vld [vmem:[%s166 + $0x228] sm:$0xff]
      %v244 = vld [vmem:[%s166 + $0x230] sm:$0xff]
      %v245 = vld [vmem:[%s166 + $0x238] sm:$0xff]
      %v246 = vld [vmem:[%s166 + $0x240] sm:$0xff]
      %v247 = vld [vmem:[%s166 + $0x248] sm:$0xff]
      %v248 = vld [vmem:[%s166 + $0x250] sm:$0xff]
      %v249 = vld [vmem:[%s166 + $0x258] sm:$0xff]
      %v250 = vld [vmem:[%s166 + $0x260] sm:$0xff]
      %v251 = vld [vmem:[%s166 + $0x268] sm:$0xff]
      %v252 = vld [vmem:[%s166 + $0x270] sm:$0xff]
      %v253 = vld [vmem:[%s166 + $0x278] sm:$0xff]
      %v254 = vld [vmem:[%s166 + $0x280] sm:$0xff]
      %v255 = vld [vmem:[%s166 + $0x288] sm:$0xff]
      %v256 = vld [vmem:[%s166 + $0x290] sm:$0xff]
      %v257 = vld [vmem:[%s166 + $0x298] sm:$0xff]
      %v258 = vld [vmem:[%s166 + $0x2a0] sm:$0xff]
      %v259 = vld [vmem:[%s166 + $0x2a8] sm:$0xff]
      %v260 = vld [vmem:[%s166 + $0x2b0] sm:$0xff]
      %v261 = vld [vmem:[%s166 + $0x2b8] sm:$0xff]
      %v262 = vld [vmem:[%s166 + $0x2c0] sm:$0xff]
      %v263 = vld [vmem:[%s166 + $0x2c8] sm:$0xff]
      %v264 = vld [vmem:[%s166 + $0x2d0] sm:$0xff]
      %v265 = vld [vmem:[%s166 + $0x2d8] sm:$0xff]
      %v266 = vld [vmem:[%s166 + $0x2e0] sm:$0xff]
      %v267 = vld [vmem:[%s166 + $0x2e8] sm:$0xff]
      %v268 = vld [vmem:[%s166 + $0x2f0] sm:$0xff]
      %v269 = vld [vmem:[%s166 + $0x2f8] sm:$0xff]
      %v270 = vld [vmem:[%s166 + $0x300] sm:$0xff]
      %v271 = vld [vmem:[%s166 + $0x308] sm:$0xff]
      %v272 = vld [vmem:[%s166 + $0x310] sm:$0xff]
      %v273 = vld [vmem:[%s166 + $0x318] sm:$0xff]
      %v274 = vld [vmem:[%s166 + $0x320] sm:$0xff]
      %v275 = vld [vmem:[%s166 + $0x328] sm:$0xff]
      %v276 = vld [vmem:[%s166 + $0x330] sm:$0xff]
      %v277 = vld [vmem:[%s166 + $0x338] sm:$0xff]
      %v278 = vld [vmem:[%s166 + $0x340] sm:$0xff]
      %v279 = vld [vmem:[%s166 + $0x348] sm:$0xff]
      %v280 = vld [vmem:[%s166 + $0x350] sm:$0xff]
      %v281 = vld [vmem:[%s166 + $0x358] sm:$0xff]
      %v282 = vld [vmem:[%s166 + $0x360] sm:$0xff]
      %v283 = vld [vmem:[%s166 + $0x368] sm:$0xff]
      %v284 = vld [vmem:[%s166 + $0x370] sm:$0xff]
      %v285 = vld [vmem:[%s166 + $0x378] sm:$0xff]
      %v286 = vld [vmem:[%s166 + $0x380] sm:$0xff]
      %v287 = vld [vmem:[%s166 + $0x388] sm:$0xff]
      %v288 = vld [vmem:[%s166 + $0x390] sm:$0xff]
      %v289 = vld [vmem:[%s166 + $0x398] sm:$0xff]
      %v290 = vld [vmem:[%s166 + $0x3a0] sm:$0xff]
      %v291 = vld [vmem:[%s166 + $0x3a8] sm:$0xff]
      %v292 = vld [vmem:[%s166 + $0x3b0] sm:$0xff]
      %v293 = vld [vmem:[%s166 + $0x3b8] sm:$0xff]
      %v294 = vld [vmem:[%s166 + $0x3c0] sm:$0xff]
      %v295 = vld [vmem:[%s166 + $0x3c8] sm:$0xff]
      %v296 = vld [vmem:[%s166 + $0x3d0] sm:$0xff]
      %v297 = vld [vmem:[%s166 + $0x3d8] sm:$0xff]
      %v298 = vld [vmem:[%s166 + $0x3e0] sm:$0xff]
      %v299 = vld [vmem:[%s166 + $0x3e8] sm:$0xff]
      %v300 = vld [vmem:[%s166 + $0x3f0] sm:$0xff]
      %v301 = vld [vmem:[%s166 + $0x3f8] sm:$0xff]
      %v302 = vld [vmem:[%s1] sm:$0xff]
      %v303 = vld [vmem:[%s1 + $0x8] sm:$0xff]
      %v304 = vld [vmem:[%s1 + $0x10] sm:$0xff]
      %v305 = vld [vmem:[%s1 + $0x18] sm:$0x7]
      %v306 = vld [vmem:[%s2] sm:$0x1]
      %v308 = vperm.slane %v306, 0
      %vm310 = vcmask 220160
      %v312 = vsel %vm310, %v174, 0
      %v315 = vsel %vm310, %v175, 0
      %v318 = vsel %vm310, %v176, 0
      %v321 = vsel %vm310, %v177, 0
      %v324 = vsel %vm310, %v178, 0
      %v327 = vsel %vm310, %v179, 0
      %v330 = vsel %vm310, %v180, 0
      %v333 = vsel %vm310, %v181, 0
      %v336 = vsel %vm310, %v182, 0
      %v339 = vsel %vm310, %v183, 0
      %v342 = vsel %vm310, %v184, 0
      %v345 = vsel %vm310, %v185, 0
      %v348 = vsel %vm310, %v186, 0
      %v351 = vsel %vm310, %v187, 0
      %v354 = vsel %vm310, %v188, 0
      %v357 = vsel %vm310, %v189, 0
      %v360 = vsel %vm310, %v190, 0
      %v363 = vsel %vm310, %v191, 0
      %v366 = vsel %vm310, %v192, 0
      %v369 = vsel %vm310, %v193, 0
      %v372 = vsel %vm310, %v194, 0
      %v375 = vsel %vm310, %v195, 0
      %v378 = vsel %vm310, %v196, 0
      %v381 = vsel %vm310, %v197, 0
      %v384 = vsel %vm310, %v198, 0
      %v387 = vsel %vm310, %v199, 0
      %v390 = vsel %vm310, %v200, 0
      %v393 = vsel %vm310, %v201, 0
      %v396 = vsel %vm310, %v202, 0
      %v399 = vsel %vm310, %v203, 0
      %v402 = vsel %vm310, %v204, 0
      %v405 = vsel %vm310, %v205, 0
      %v408 = vsel %vm310, %v206, 0
      %v411 = vsel %vm310, %v207, 0
      %v414 = vsel %vm310, %v208, 0
      %v417 = vsel %vm310, %v209, 0
      %v420 = vsel %vm310, %v210, 0
      %v423 = vsel %vm310, %v211, 0
      %v426 = vsel %vm310, %v212, 0
      %v429 = vsel %vm310, %v213, 0
      %v432 = vsel %vm310, %v214, 0
      %v435 = vsel %vm310, %v215, 0
      %v438 = vsel %vm310, %v216, 0
      %v441 = vsel %vm310, %v217, 0
      %v444 = vsel %vm310, %v218, 0
      %v447 = vsel %vm310, %v219, 0
      %v450 = vsel %vm310, %v220, 0
      %v453 = vsel %vm310, %v221, 0
      %v456 = vsel %vm310, %v222, 0
      %v459 = vsel %vm310, %v223, 0
      %v462 = vsel %vm310, %v224, 0
      %v465 = vsel %vm310, %v225, 0
      %v468 = vsel %vm310, %v226, 0
      %v471 = vsel %vm310, %v227, 0
      %v474 = vsel %vm310, %v228, 0
      %v477 = vsel %vm310, %v229, 0
      %v480 = vsel %vm310, %v230, 0
      %v483 = vsel %vm310, %v231, 0
      %v486 = vsel %vm310, %v232, 0
      %v489 = vsel %vm310, %v233, 0
      %v492 = vsel %vm310, %v234, 0
      %v495 = vsel %vm310, %v235, 0
      %v498 = vsel %vm310, %v236, 0
      %v501 = vsel %vm310, %v237, 0
      %v504 = vsel %vm310, %v238, 0
      %v507 = vsel %vm310, %v239, 0
      %v510 = vsel %vm310, %v240, 0
      %v513 = vsel %vm310, %v241, 0
      %v516 = vsel %vm310, %v242, 0
      %v519 = vsel %vm310, %v243, 0
      %v522 = vsel %vm310, %v244, 0
      %v525 = vsel %vm310, %v245, 0
      %v528 = vsel %vm310, %v246, 0
      %v531 = vsel %vm310, %v247, 0
      %v534 = vsel %vm310, %v248, 0
      %v537 = vsel %vm310, %v249, 0
      %v540 = vsel %vm310, %v250, 0
      %v543 = vsel %vm310, %v251, 0
      %v546 = vsel %vm310, %v252, 0
      %v549 = vsel %vm310, %v253, 0
      %v552 = vsel %vm310, %v254, 0
      %v555 = vsel %vm310, %v255, 0
      %v558 = vsel %vm310, %v256, 0
      %v561 = vsel %vm310, %v257, 0
      %v564 = vsel %vm310, %v258, 0
      %v567 = vsel %vm310, %v259, 0
      %v570 = vsel %vm310, %v260, 0
      %v573 = vsel %vm310, %v261, 0
      %v576 = vsel %vm310, %v262, 0
      %v579 = vsel %vm310, %v263, 0
      %v582 = vsel %vm310, %v264, 0
      %v585 = vsel %vm310, %v265, 0
      %v588 = vsel %vm310, %v266, 0
      %v591 = vsel %vm310, %v267, 0
      %v594 = vsel %vm310, %v268, 0
      %v597 = vsel %vm310, %v269, 0
      %v600 = vsel %vm310, %v270, 0
      %v603 = vsel %vm310, %v271, 0
      %v606 = vsel %vm310, %v272, 0
      %v609 = vsel %vm310, %v273, 0
      %v612 = vsel %vm310, %v274, 0
      %v615 = vsel %vm310, %v275, 0
      %v618 = vsel %vm310, %v276, 0
      %v621 = vsel %vm310, %v277, 0
      %v624 = vsel %vm310, %v278, 0
      %v627 = vsel %vm310, %v279, 0
      %v630 = vsel %vm310, %v280, 0
      %v633 = vsel %vm310, %v281, 0
      %v636 = vsel %vm310, %v282, 0
      %v639 = vsel %vm310, %v283, 0
      %v642 = vsel %vm310, %v284, 0
      %v645 = vsel %vm310, %v285, 0
      %v648 = vsel %vm310, %v286, 0
      %v651 = vsel %vm310, %v287, 0
      %v654 = vsel %vm310, %v288, 0
      %v657 = vsel %vm310, %v289, 0
      %v660 = vsel %vm310, %v290, 0
      %v663 = vsel %vm310, %v291, 0
      %v666 = vsel %vm310, %v292, 0
      %v669 = vsel %vm310, %v293, 0
      %v672 = vsel %vm310, %v294, 0
      %v675 = vsel %vm310, %v295, 0
      %v678 = vsel %vm310, %v296, 0
      %v681 = vsel %vm310, %v297, 0
      %v684 = vsel %vm310, %v298, 0
      %v687 = vsel %vm310, %v299, 0
      %v690 = vsel %vm310, %v300, 0
      %v693 = vsel %vm310, %v301, 0
      %vm695 = vcmask 1042432
      %v697 = vsel %vm695, %v305, 0
      %699 = vmatpush.msra.mxu0 0.0
      %700 = vmatpush.msra.mxu0 0.0
      %701 = vmatpush.msra.mxu0 0.0
      %702 = vmatpush.msra.mxu0 0.0
      %703 = vmatpush.msra.mxu0 0.0
      %704 = vmatpush.msra.mxu0 0.0
      %705 = vmatpush.msra.mxu0 0.0
      %706 = vmatpush.msra.mxu0 0.0
      %707 = vmatpush.msra.mxu0 0.0
      %708 = vmatpush.msra.mxu0 0.0
      %709 = vmatpush.msra.mxu0 0.0
      %710 = vmatpush.msra.mxu0 0.0
      %711 = vmatpush.msra.mxu0 %v697
      %712 = vmatpush.msra.mxu0 %v304
      %713 = vmatpush.msra.mxu0 %v303
      %714 = vmatpush.msra.mxu0 %v302
      %715 = vmatmul.f32.gmra.mxu0 %v312
      %v716 = vpop.f32.mrf.mxu0
      %v717 = vadd.f32 %v308, %v716
      %718 = vmatmul.f32.gmra.mxu0 %v315
      %v719 = vpop.f32.mrf.mxu0
      %v720 = vadd.f32 %v308, %v719
      %721 = vmatmul.f32.gmra.mxu0 %v318
      %v722 = vpop.f32.mrf.mxu0
      %v723 = vadd.f32 %v308, %v722
      %724 = vmatmul.f32.gmra.mxu0 %v321
      %v725 = vpop.f32.mrf.mxu0
      %v726 = vadd.f32 %v308, %v725
      %727 = vmatmul.f32.gmra.mxu0 %v324
      %v728 = vpop.f32.mrf.mxu0
      %v729 = vadd.f32 %v308, %v728
      %730 = vmatmul.f32.gmra.mxu0 %v327
      %v731 = vpop.f32.mrf.mxu0
      %v732 = vadd.f32 %v308, %v731
      %733 = vmatmul.f32.gmra.mxu0 %v330
      %v734 = vpop.f32.mrf.mxu0
      %v735 = vadd.f32 %v308, %v734
      %736 = vmatmul.f32.gmra.mxu0 %v333
      %v737 = vpop.f32.mrf.mxu0
      %v738 = vadd.f32 %v308, %v737
      %739 = vmatmul.f32.gmra.mxu0 %v336
      %v740 = vpop.f32.mrf.mxu0
      %v741 = vadd.f32 %v308, %v740
      %742 = vmatmul.f32.gmra.mxu0 %v339
      %v743 = vpop.f32.mrf.mxu0
      %v744 = vadd.f32 %v308, %v743
      %745 = vmatmul.f32.gmra.mxu0 %v342
      %v746 = vpop.f32.mrf.mxu0
      %v747 = vadd.f32 %v308, %v746
      %748 = vmatmul.f32.gmra.mxu0 %v345
      %v749 = vpop.f32.mrf.mxu0
      %v750 = vadd.f32 %v308, %v749
      %751 = vmatmul.f32.gmra.mxu0 %v348
      %v752 = vpop.f32.mrf.mxu0
      %v753 = vadd.f32 %v308, %v752
      %754 = vmatmul.f32.gmra.mxu0 %v351
      %v755 = vpop.f32.mrf.mxu0
      %v756 = vadd.f32 %v308, %v755
      %757 = vmatmul.f32.gmra.mxu0 %v354
      %v758 = vpop.f32.mrf.mxu0
      %v759 = vadd.f32 %v308, %v758
      %760 = vmatmul.f32.gmra.mxu0 %v357
      %v761 = vpop.f32.mrf.mxu0
      %v762 = vadd.f32 %v308, %v761
      %763 = vmatmul.f32.gmra.mxu0 %v360
      %v764 = vpop.f32.mrf.mxu0
      %v765 = vadd.f32 %v308, %v764
      %766 = vmatmul.f32.gmra.mxu0 %v363
      %v767 = vpop.f32.mrf.mxu0
      %v768 = vadd.f32 %v308, %v767
      %769 = vmatmul.f32.gmra.mxu0 %v366
      %v770 = vpop.f32.mrf.mxu0
      %v771 = vadd.f32 %v308, %v770
      %772 = vmatmul.f32.gmra.mxu0 %v369
      %v773 = vpop.f32.mrf.mxu0
      %v774 = vadd.f32 %v308, %v773
      %775 = vmatmul.f32.gmra.mxu0 %v372
      %v776 = vpop.f32.mrf.mxu0
      %v777 = vadd.f32 %v308, %v776
      %778 = vmatmul.f32.gmra.mxu0 %v375
      %v779 = vpop.f32.mrf.mxu0
      %v780 = vadd.f32 %v308, %v779
      %781 = vmatmul.f32.gmra.mxu0 %v378
      %v782 = vpop.f32.mrf.mxu0
      %v783 = vadd.f32 %v308, %v782
      %784 = vmatmul.f32.gmra.mxu0 %v381
      %v785 = vpop.f32.mrf.mxu0
      %v786 = vadd.f32 %v308, %v785
      %787 = vmatmul.f32.gmra.mxu0 %v384
      %v788 = vpop.f32.mrf.mxu0
      %v789 = vadd.f32 %v308, %v788
      %790 = vmatmul.f32.gmra.mxu0 %v387
      %v791 = vpop.f32.mrf.mxu0
      %v792 = vadd.f32 %v308, %v791
      %793 = vmatmul.f32.gmra.mxu0 %v390
      %v794 = vpop.f32.mrf.mxu0
      %v795 = vadd.f32 %v308, %v794
      %796 = vmatmul.f32.gmra.mxu0 %v393
      %v797 = vpop.f32.mrf.mxu0
      %v798 = vadd.f32 %v308, %v797
      %799 = vmatmul.f32.gmra.mxu0 %v396
      %v800 = vpop.f32.mrf.mxu0
      %v801 = vadd.f32 %v308, %v800
      %802 = vmatmul.f32.gmra.mxu0 %v399
      %v803 = vpop.f32.mrf.mxu0
      %v804 = vadd.f32 %v308, %v803
      %805 = vmatmul.f32.gmra.mxu0 %v402
      %v806 = vpop.f32.mrf.mxu0
      %v807 = vadd.f32 %v308, %v806
      %808 = vmatmul.f32.gmra.mxu0 %v405
      %v809 = vpop.f32.mrf.mxu0
      %v810 = vadd.f32 %v308, %v809
      %811 = vmatmul.f32.gmra.mxu0 %v408
      %v812 = vpop.f32.mrf.mxu0
      %v813 = vadd.f32 %v308, %v812
      %814 = vmatmul.f32.gmra.mxu0 %v411
      %v815 = vpop.f32.mrf.mxu0
      %v816 = vadd.f32 %v308, %v815
      %817 = vmatmul.f32.gmra.mxu0 %v414
      %v818 = vpop.f32.mrf.mxu0
      %v819 = vadd.f32 %v308, %v818
      %820 = vmatmul.f32.gmra.mxu0 %v417
      %v821 = vpop.f32.mrf.mxu0
      %v822 = vadd.f32 %v308, %v821
      %823 = vmatmul.f32.gmra.mxu0 %v420
      %v824 = vpop.f32.mrf.mxu0
      %v825 = vadd.f32 %v308, %v824
      %826 = vmatmul.f32.gmra.mxu0 %v423
      %v827 = vpop.f32.mrf.mxu0
      %v828 = vadd.f32 %v308, %v827
      %829 = vmatmul.f32.gmra.mxu0 %v426
      %v830 = vpop.f32.mrf.mxu0
      %v831 = vadd.f32 %v308, %v830
      %832 = vmatmul.f32.gmra.mxu0 %v429
      %v833 = vpop.f32.mrf.mxu0
      %v834 = vadd.f32 %v308, %v833
      %835 = vmatmul.f32.gmra.mxu0 %v432
      %v836 = vpop.f32.mrf.mxu0
      %v837 = vadd.f32 %v308, %v836
      %838 = vmatmul.f32.gmra.mxu0 %v435
      %v839 = vpop.f32.mrf.mxu0
      %v840 = vadd.f32 %v308, %v839
      %841 = vmatmul.f32.gmra.mxu0 %v438
      %v842 = vpop.f32.mrf.mxu0
      %v843 = vadd.f32 %v308, %v842
      %844 = vmatmul.f32.gmra.mxu0 %v441
      %v845 = vpop.f32.mrf.mxu0
      %v846 = vadd.f32 %v308, %v845
      %847 = vmatmul.f32.gmra.mxu0 %v444
      %v848 = vpop.f32.mrf.mxu0
      %v849 = vadd.f32 %v308, %v848
      %850 = vmatmul.f32.gmra.mxu0 %v447
      %v851 = vpop.f32.mrf.mxu0
      %v852 = vadd.f32 %v308, %v851
      %853 = vmatmul.f32.gmra.mxu0 %v450
      %v854 = vpop.f32.mrf.mxu0
      %v855 = vadd.f32 %v308, %v854
      %856 = vmatmul.f32.gmra.mxu0 %v453
      %v857 = vpop.f32.mrf.mxu0
      %v858 = vadd.f32 %v308, %v857
      %859 = vmatmul.f32.gmra.mxu0 %v456
      %v860 = vpop.f32.mrf.mxu0
      %v861 = vadd.f32 %v308, %v860
      %862 = vmatmul.f32.gmra.mxu0 %v459
      %v863 = vpop.f32.mrf.mxu0
      %v864 = vadd.f32 %v308, %v863
      %865 = vmatmul.f32.gmra.mxu0 %v462
      %v866 = vpop.f32.mrf.mxu0
      %v867 = vadd.f32 %v308, %v866
      %868 = vmatmul.f32.gmra.mxu0 %v465
      %v869 = vpop.f32.mrf.mxu0
      %v870 = vadd.f32 %v308, %v869
      %871 = vmatmul.f32.gmra.mxu0 %v468
      %v872 = vpop.f32.mrf.mxu0
      %v873 = vadd.f32 %v308, %v872
      %874 = vmatmul.f32.gmra.mxu0 %v471
      %v875 = vpop.f32.mrf.mxu0
      %v876 = vadd.f32 %v308, %v875
      %877 = vmatmul.f32.gmra.mxu0 %v474
      %v878 = vpop.f32.mrf.mxu0
      %v879 = vadd.f32 %v308, %v878
      %880 = vmatmul.f32.gmra.mxu0 %v477
      %v881 = vpop.f32.mrf.mxu0
      %v882 = vadd.f32 %v308, %v881
      %883 = vmatmul.f32.gmra.mxu0 %v480
      %v884 = vpop.f32.mrf.mxu0
      %v885 = vadd.f32 %v308, %v884
      %886 = vmatmul.f32.gmra.mxu0 %v483
      %v887 = vpop.f32.mrf.mxu0
      %v888 = vadd.f32 %v308, %v887
      %889 = vmatmul.f32.gmra.mxu0 %v486
      %v890 = vpop.f32.mrf.mxu0
      %v891 = vadd.f32 %v308, %v890
      %892 = vmatmul.f32.gmra.mxu0 %v489
      %v893 = vpop.f32.mrf.mxu0
      %v894 = vadd.f32 %v308, %v893
      %895 = vmatmul.f32.gmra.mxu0 %v492
      %v896 = vpop.f32.mrf.mxu0
      %v897 = vadd.f32 %v308, %v896
      %898 = vmatmul.f32.gmra.mxu0 %v495
      %v899 = vpop.f32.mrf.mxu0
      %v900 = vadd.f32 %v308, %v899
      %901 = vmatmul.f32.gmra.mxu0 %v498
      %v902 = vpop.f32.mrf.mxu0
      %v903 = vadd.f32 %v308, %v902
      %904 = vmatmul.f32.gmra.mxu0 %v501
      %v905 = vpop.f32.mrf.mxu0
      %v906 = vadd.f32 %v308, %v905
      %907 = vmatmul.f32.gmra.mxu0 %v504
      %v908 = vpop.f32.mrf.mxu0
      %v909 = vadd.f32 %v308, %v908
      %910 = vmatmul.f32.gmra.mxu0 %v507
      %v911 = vpop.f32.mrf.mxu0
      %v912 = vadd.f32 %v308, %v911
      %913 = vmatmul.f32.gmra.mxu0 %v510
      %v914 = vpop.f32.mrf.mxu0
      %v915 = vadd.f32 %v308, %v914
      %916 = vmatmul.f32.gmra.mxu0 %v513
      %v917 = vpop.f32.mrf.mxu0
      %v918 = vadd.f32 %v308, %v917
      %919 = vmatmul.f32.gmra.mxu0 %v516
      %v920 = vpop.f32.mrf.mxu0
      %v921 = vadd.f32 %v308, %v920
      %922 = vmatmul.f32.gmra.mxu0 %v519
      %v923 = vpop.f32.mrf.mxu0
      %v924 = vadd.f32 %v308, %v923
      %925 = vmatmul.f32.gmra.mxu0 %v522
      %v926 = vpop.f32.mrf.mxu0
      %v927 = vadd.f32 %v308, %v926
      %928 = vmatmul.f32.gmra.mxu0 %v525
      %v929 = vpop.f32.mrf.mxu0
      %v930 = vadd.f32 %v308, %v929
      %931 = vmatmul.f32.gmra.mxu0 %v528
      %v932 = vpop.f32.mrf.mxu0
      %v933 = vadd.f32 %v308, %v932
      %934 = vmatmul.f32.gmra.mxu0 %v531
      %v935 = vpop.f32.mrf.mxu0
      %v936 = vadd.f32 %v308, %v935
      %937 = vmatmul.f32.gmra.mxu0 %v534
      %v938 = vpop.f32.mrf.mxu0
      %v939 = vadd.f32 %v308, %v938
      %940 = vmatmul.f32.gmra.mxu0 %v537
      %v941 = vpop.f32.mrf.mxu0
      %v942 = vadd.f32 %v308, %v941
      %943 = vmatmul.f32.gmra.mxu0 %v540
      %v944 = vpop.f32.mrf.mxu0
      %v945 = vadd.f32 %v308, %v944
      %946 = vmatmul.f32.gmra.mxu0 %v543
      %v947 = vpop.f32.mrf.mxu0
      %v948 = vadd.f32 %v308, %v947
      %949 = vmatmul.f32.gmra.mxu0 %v546
      %v950 = vpop.f32.mrf.mxu0
      %v951 = vadd.f32 %v308, %v950
      %952 = vmatmul.f32.gmra.mxu0 %v549
      %v953 = vpop.f32.mrf.mxu0
      %v954 = vadd.f32 %v308, %v953
      %955 = vmatmul.f32.gmra.mxu0 %v552
      %v956 = vpop.f32.mrf.mxu0
      %v957 = vadd.f32 %v308, %v956
      %958 = vmatmul.f32.gmra.mxu0 %v555
      %v959 = vpop.f32.mrf.mxu0
      %v960 = vadd.f32 %v308, %v959
      %961 = vmatmul.f32.gmra.mxu0 %v558
      %v962 = vpop.f32.mrf.mxu0
      %v963 = vadd.f32 %v308, %v962
      %964 = vmatmul.f32.gmra.mxu0 %v561
      %v965 = vpop.f32.mrf.mxu0
      %v966 = vadd.f32 %v308, %v965
      %967 = vmatmul.f32.gmra.mxu0 %v564
      %v968 = vpop.f32.mrf.mxu0
      %v969 = vadd.f32 %v308, %v968
      %970 = vmatmul.f32.gmra.mxu0 %v567
      %v971 = vpop.f32.mrf.mxu0
      %v972 = vadd.f32 %v308, %v971
      %973 = vmatmul.f32.gmra.mxu0 %v570
      %v974 = vpop.f32.mrf.mxu0
      %v975 = vadd.f32 %v308, %v974
      %976 = vmatmul.f32.gmra.mxu0 %v573
      %v977 = vpop.f32.mrf.mxu0
      %v978 = vadd.f32 %v308, %v977
      %979 = vmatmul.f32.gmra.mxu0 %v576
      %v980 = vpop.f32.mrf.mxu0
      %v981 = vadd.f32 %v308, %v980
      %982 = vmatmul.f32.gmra.mxu0 %v579
      %v983 = vpop.f32.mrf.mxu0
      %v984 = vadd.f32 %v308, %v983
      %985 = vmatmul.f32.gmra.mxu0 %v582
      %v986 = vpop.f32.mrf.mxu0
      %v987 = vadd.f32 %v308, %v986
      %988 = vmatmul.f32.gmra.mxu0 %v585
      %v989 = vpop.f32.mrf.mxu0
      %v990 = vadd.f32 %v308, %v989
      %991 = vmatmul.f32.gmra.mxu0 %v588
      %v992 = vpop.f32.mrf.mxu0
      %v993 = vadd.f32 %v308, %v992
      %994 = vmatmul.f32.gmra.mxu0 %v591
      %v995 = vpop.f32.mrf.mxu0
      %v996 = vadd.f32 %v308, %v995
      %997 = vmatmul.f32.gmra.mxu0 %v594
      %v998 = vpop.f32.mrf.mxu0
      %v999 = vadd.f32 %v308, %v998
      %1000 = vmatmul.f32.gmra.mxu0 %v597
      %v1001 = vpop.f32.mrf.mxu0
      %v1002 = vadd.f32 %v308, %v1001
      %1003 = vmatmul.f32.gmra.mxu0 %v600
      %v1004 = vpop.f32.mrf.mxu0
      %v1005 = vadd.f32 %v308, %v1004
      %1006 = vmatmul.f32.gmra.mxu0 %v603
      %v1007 = vpop.f32.mrf.mxu0
      %v1008 = vadd.f32 %v308, %v1007
      %1009 = vmatmul.f32.gmra.mxu0 %v606
      %v1010 = vpop.f32.mrf.mxu0
      %v1011 = vadd.f32 %v308, %v1010
      %1012 = vmatmul.f32.gmra.mxu0 %v609
      %v1013 = vpop.f32.mrf.mxu0
      %v1014 = vadd.f32 %v308, %v1013
      %1015 = vmatmul.f32.gmra.mxu0 %v612
      %v1016 = vpop.f32.mrf.mxu0
      %v1017 = vadd.f32 %v308, %v1016
      %1018 = vmatmul.f32.gmra.mxu0 %v615
      %v1019 = vpop.f32.mrf.mxu0
      %v1020 = vadd.f32 %v308, %v1019
      %1021 = vmatmul.f32.gmra.mxu0 %v618
      %v1022 = vpop.f32.mrf.mxu0
      %v1023 = vadd.f32 %v308, %v1022
      %1024 = vmatmul.f32.gmra.mxu0 %v621
      %v1025 = vpop.f32.mrf.mxu0
      %v1026 = vadd.f32 %v308, %v1025
      %1027 = vmatmul.f32.gmra.mxu0 %v624
      %v1028 = vpop.f32.mrf.mxu0
      %v1029 = vadd.f32 %v308, %v1028
      %1030 = vmatmul.f32.gmra.mxu0 %v627
      %v1031 = vpop.f32.mrf.mxu0
      %v1032 = vadd.f32 %v308, %v1031
      %1033 = vmatmul.f32.gmra.mxu0 %v630
      %v1034 = vpop.f32.mrf.mxu0
      %v1035 = vadd.f32 %v308, %v1034
      %1036 = vmatmul.f32.gmra.mxu0 %v633
      %v1037 = vpop.f32.mrf.mxu0
      %v1038 = vadd.f32 %v308, %v1037
      %1039 = vmatmul.f32.gmra.mxu0 %v636
      %v1040 = vpop.f32.mrf.mxu0
      %v1041 = vadd.f32 %v308, %v1040
      %1042 = vmatmul.f32.gmra.mxu0 %v639
      %v1043 = vpop.f32.mrf.mxu0
      %v1044 = vadd.f32 %v308, %v1043
      %1045 = vmatmul.f32.gmra.mxu0 %v642
      %v1046 = vpop.f32.mrf.mxu0
      %v1047 = vadd.f32 %v308, %v1046
      %1048 = vmatmul.f32.gmra.mxu0 %v645
      %v1049 = vpop.f32.mrf.mxu0
      %v1050 = vadd.f32 %v308, %v1049
      %1051 = vmatmul.f32.gmra.mxu0 %v648
      %v1052 = vpop.f32.mrf.mxu0
      %v1053 = vadd.f32 %v308, %v1052
      %1054 = vmatmul.f32.gmra.mxu0 %v651
      %v1055 = vpop.f32.mrf.mxu0
      %v1056 = vadd.f32 %v308, %v1055
      %1057 = vmatmul.f32.gmra.mxu0 %v654
      %v1058 = vpop.f32.mrf.mxu0
      %v1059 = vadd.f32 %v308, %v1058
      %1060 = vmatmul.f32.gmra.mxu0 %v657
      %v1061 = vpop.f32.mrf.mxu0
      %v1062 = vadd.f32 %v308, %v1061
      %1063 = vmatmul.f32.gmra.mxu0 %v660
      %v1064 = vpop.f32.mrf.mxu0
      %v1065 = vadd.f32 %v308, %v1064
      %1066 = vmatmul.f32.gmra.mxu0 %v663
      %v1067 = vpop.f32.mrf.mxu0
      %v1068 = vadd.f32 %v308, %v1067
      %1069 = vmatmul.f32.gmra.mxu0 %v666
      %v1070 = vpop.f32.mrf.mxu0
      %v1071 = vadd.f32 %v308, %v1070
      %1072 = vmatmul.f32.gmra.mxu0 %v669
      %v1073 = vpop.f32.mrf.mxu0
      %v1074 = vadd.f32 %v308, %v1073
      %1075 = vmatmul.f32.gmra.mxu0 %v672
      %v1076 = vpop.f32.mrf.mxu0
      %v1077 = vadd.f32 %v308, %v1076
      %1078 = vmatmul.f32.gmra.mxu0 %v675
      %v1079 = vpop.f32.mrf.mxu0
      %v1080 = vadd.f32 %v308, %v1079
      %1081 = vmatmul.f32.gmra.mxu0 %v678
      %v1082 = vpop.f32.mrf.mxu0
      %v1083 = vadd.f32 %v308, %v1082
      %1084 = vmatmul.f32.gmra.mxu0 %v681
      %v1085 = vpop.f32.mrf.mxu0
      %v1086 = vadd.f32 %v308, %v1085
      %1087 = vmatmul.f32.gmra.mxu0 %v684
      %v1088 = vpop.f32.mrf.mxu0
      %v1089 = vadd.f32 %v308, %v1088
      %1090 = vmatmul.f32.gmra.mxu0 %v687
      %v1091 = vpop.f32.mrf.mxu0
      %v1092 = vadd.f32 %v308, %v1091
      %1093 = vmatmul.f32.gmra.mxu0 %v690
      %v1094 = vpop.f32.mrf.mxu0
      %v1095 = vadd.f32 %v308, %v1094
      %1096 = vmatmul.f32.gmra.mxu0 %v693
      %v1097 = vpop.f32.mrf.mxu0
      %v1098 = vadd.f32 %v308, %v1097
      %1099 = vdwg.mxu0
      %v1100 = vmax.f32 %v717, 0.0
      %v1101 = vmax.f32 %v720, 0.0
      %v1102 = vmax.f32 %v723, 0.0
      %v1103 = vmax.f32 %v726, 0.0
      %v1104 = vmax.f32 %v729, 0.0
      %v1105 = vmax.f32 %v732, 0.0
      %v1106 = vmax.f32 %v735, 0.0
      %v1107 = vmax.f32 %v738, 0.0
      %v1108 = vmax.f32 %v741, 0.0
      %v1109 = vmax.f32 %v744, 0.0
      %v1110 = vmax.f32 %v747, 0.0
      %v1111 = vmax.f32 %v750, 0.0
      %v1112 = vmax.f32 %v753, 0.0
      %v1113 = vmax.f32 %v756, 0.0
      %v1114 = vmax.f32 %v759, 0.0
      %v1115 = vmax.f32 %v762, 0.0
      %v1116 = vmax.f32 %v765, 0.0
      %v1117 = vmax.f32 %v768, 0.0
      %v1118 = vmax.f32 %v771, 0.0
      %v1119 = vmax.f32 %v774, 0.0
      %v1120 = vmax.f32 %v777, 0.0
      %v1121 = vmax.f32 %v780, 0.0
      %v1122 = vmax.f32 %v783, 0.0
      %v1123 = vmax.f32 %v786, 0.0
      %v1124 = vmax.f32 %v789, 0.0
      %v1125 = vmax.f32 %v792, 0.0
      %v1126 = vmax.f32 %v795, 0.0
      %v1127 = vmax.f32 %v798, 0.0
      %v1128 = vmax.f32 %v801, 0.0
      %v1129 = vmax.f32 %v804, 0.0
      %v1130 = vmax.f32 %v807, 0.0
      %v1131 = vmax.f32 %v810, 0.0
      %v1132 = vmax.f32 %v813, 0.0
      %v1133 = vmax.f32 %v816, 0.0
      %v1134 = vmax.f32 %v819, 0.0
      %v1135 = vmax.f32 %v822, 0.0
      %v1136 = vmax.f32 %v825, 0.0
      %v1137 = vmax.f32 %v828, 0.0
      %v1138 = vmax.f32 %v831, 0.0
      %v1139 = vmax.f32 %v834, 0.0
      %v1140 = vmax.f32 %v837, 0.0
      %v1141 = vmax.f32 %v840, 0.0
      %v1142 = vmax.f32 %v843, 0.0
      %v1143 = vmax.f32 %v846, 0.0
      %v1144 = vmax.f32 %v849, 0.0
      %v1145 = vmax.f32 %v852, 0.0
      %v1146 = vmax.f32 %v855, 0.0
      %v1147 = vmax.f32 %v858, 0.0
      %v1148 = vmax.f32 %v861, 0.0
      %v1149 = vmax.f32 %v864, 0.0
      %v1150 = vmax.f32 %v867, 0.0
      %v1151 = vmax.f32 %v870, 0.0
      %v1152 = vmax.f32 %v873, 0.0
      %v1153 = vmax.f32 %v876, 0.0
      %v1154 = vmax.f32 %v879, 0.0
      %v1155 = vmax.f32 %v882, 0.0
      %v1156 = vmax.f32 %v885, 0.0
      %v1157 = vmax.f32 %v888, 0.0
      %v1158 = vmax.f32 %v891, 0.0
      %v1159 = vmax.f32 %v894, 0.0
      %v1160 = vmax.f32 %v897, 0.0
      %v1161 = vmax.f32 %v900, 0.0
      %v1162 = vmax.f32 %v903, 0.0
      %v1163 = vmax.f32 %v906, 0.0
      %v1164 = vmax.f32 %v909, 0.0
      %v1165 = vmax.f32 %v912, 0.0
      %v1166 = vmax.f32 %v915, 0.0
      %v1167 = vmax.f32 %v918, 0.0
      %v1168 = vmax.f32 %v921, 0.0
      %v1169 = vmax.f32 %v924, 0.0
      %v1170 = vmax.f32 %v927, 0.0
      %v1171 = vmax.f32 %v930, 0.0
      %v1172 = vmax.f32 %v933, 0.0
      %v1173 = vmax.f32 %v936, 0.0
      %v1174 = vmax.f32 %v939, 0.0
      %v1175 = vmax.f32 %v942, 0.0
      %v1176 = vmax.f32 %v945, 0.0
      %v1177 = vmax.f32 %v948, 0.0
      %v1178 = vmax.f32 %v951, 0.0
      %v1179 = vmax.f32 %v954, 0.0
      %v1180 = vmax.f32 %v957, 0.0
      %v1181 = vmax.f32 %v960, 0.0
      %v1182 = vmax.f32 %v963, 0.0
      %v1183 = vmax.f32 %v966, 0.0
      %v1184 = vmax.f32 %v969, 0.0
      %v1185 = vmax.f32 %v972, 0.0
      %v1186 = vmax.f32 %v975, 0.0
      %v1187 = vmax.f32 %v978, 0.0
      %v1188 = vmax.f32 %v981, 0.0
      %v1189 = vmax.f32 %v984, 0.0
      %v1190 = vmax.f32 %v987, 0.0
      %v1191 = vmax.f32 %v990, 0.0
      %v1192 = vmax.f32 %v993, 0.0
      %v1193 = vmax.f32 %v996, 0.0
      %v1194 = vmax.f32 %v999, 0.0
      %v1195 = vmax.f32 %v1002, 0.0
      %v1196 = vmax.f32 %v1005, 0.0
      %v1197 = vmax.f32 %v1008, 0.0
      %v1198 = vmax.f32 %v1011, 0.0
      %v1199 = vmax.f32 %v1014, 0.0
      %v1200 = vmax.f32 %v1017, 0.0
      %v1201 = vmax.f32 %v1020, 0.0
      %v1202 = vmax.f32 %v1023, 0.0
      %v1203 = vmax.f32 %v1026, 0.0
      %v1204 = vmax.f32 %v1029, 0.0
      %v1205 = vmax.f32 %v1032, 0.0
      %v1206 = vmax.f32 %v1035, 0.0
      %v1207 = vmax.f32 %v1038, 0.0
      %v1208 = vmax.f32 %v1041, 0.0
      %v1209 = vmax.f32 %v1044, 0.0
      %v1210 = vmax.f32 %v1047, 0.0
      %v1211 = vmax.f32 %v1050, 0.0
      %v1212 = vmax.f32 %v1053, 0.0
      %v1213 = vmax.f32 %v1056, 0.0
      %v1214 = vmax.f32 %v1059, 0.0
      %v1215 = vmax.f32 %v1062, 0.0
      %v1216 = vmax.f32 %v1065, 0.0
      %v1217 = vmax.f32 %v1068, 0.0
      %v1218 = vmax.f32 %v1071, 0.0
      %v1219 = vmax.f32 %v1074, 0.0
      %v1220 = vmax.f32 %v1077, 0.0
      %v1221 = vmax.f32 %v1080, 0.0
      %v1222 = vmax.f32 %v1083, 0.0
      %v1223 = vmax.f32 %v1086, 0.0
      %v1224 = vmax.f32 %v1089, 0.0
      %v1225 = vmax.f32 %v1092, 0.0
      %v1226 = vmax.f32 %v1095, 0.0
      %v1227 = vmax.f32 %v1098, 0.0
      %vm1228 = vcmask 523264
      %1229 = vst.msk [vmem:[%s172] sm:$0xff] %vm1228, %v1100
      %1230 = vst.msk [vmem:[%s172 + $0x8] sm:$0xff] %vm1228, %v1101
      %1231 = vst.msk [vmem:[%s172 + $0x10] sm:$0xff] %vm1228, %v1102
      %1232 = vst.msk [vmem:[%s172 + $0x18] sm:$0xff] %vm1228, %v1103
      %1233 = vst.msk [vmem:[%s172 + $0x20] sm:$0xff] %vm1228, %v1104
      %1234 = vst.msk [vmem:[%s172 + $0x28] sm:$0xff] %vm1228, %v1105
      %1235 = vst.msk [vmem:[%s172 + $0x30] sm:$0xff] %vm1228, %v1106
      %1236 = vst.msk [vmem:[%s172 + $0x38] sm:$0xff] %vm1228, %v1107
      %1237 = vst.msk [vmem:[%s172 + $0x40] sm:$0xff] %vm1228, %v1108
      %1238 = vst.msk [vmem:[%s172 + $0x48] sm:$0xff] %vm1228, %v1109
      %1239 = vst.msk [vmem:[%s172 + $0x50] sm:$0xff] %vm1228, %v1110
      %1240 = vst.msk [vmem:[%s172 + $0x58] sm:$0xff] %vm1228, %v1111
      %1241 = vst.msk [vmem:[%s172 + $0x60] sm:$0xff] %vm1228, %v1112
      %1242 = vst.msk [vmem:[%s172 + $0x68] sm:$0xff] %vm1228, %v1113
      %1243 = vst.msk [vmem:[%s172 + $0x70] sm:$0xff] %vm1228, %v1114
      %1244 = vst.msk [vmem:[%s172 + $0x78] sm:$0xff] %vm1228, %v1115
      %1245 = vst.msk [vmem:[%s172 + $0x80] sm:$0xff] %vm1228, %v1116
      %1246 = vst.msk [vmem:[%s172 + $0x88] sm:$0xff] %vm1228, %v1117
      %1247 = vst.msk [vmem:[%s172 + $0x90] sm:$0xff] %vm1228, %v1118
      %1248 = vst.msk [vmem:[%s172 + $0x98] sm:$0xff] %vm1228, %v1119
      %1249 = vst.msk [vmem:[%s172 + $0xa0] sm:$0xff] %vm1228, %v1120
      %1250 = vst.msk [vmem:[%s172 + $0xa8] sm:$0xff] %vm1228, %v1121
      %1251 = vst.msk [vmem:[%s172 + $0xb0] sm:$0xff] %vm1228, %v1122
      %1252 = vst.msk [vmem:[%s172 + $0xb8] sm:$0xff] %vm1228, %v1123
      %1253 = vst.msk [vmem:[%s172 + $0xc0] sm:$0xff] %vm1228, %v1124
      %1254 = vst.msk [vmem:[%s172 + $0xc8] sm:$0xff] %vm1228, %v1125
      %1255 = vst.msk [vmem:[%s172 + $0xd0] sm:$0xff] %vm1228, %v1126
      %1256 = vst.msk [vmem:[%s172 + $0xd8] sm:$0xff] %vm1228, %v1127
      %1257 = vst.msk [vmem:[%s172 + $0xe0] sm:$0xff] %vm1228, %v1128
      %1258 = vst.msk [vmem:[%s172 + $0xe8] sm:$0xff] %vm1228, %v1129
      %1259 = vst.msk [vmem:[%s172 + $0xf0] sm:$0xff] %vm1228, %v1130
      %1260 = vst.msk [vmem:[%s172 + $0xf8] sm:$0xff] %vm1228, %v1131
      %1261 = vst.msk [vmem:[%s172 + $0x100] sm:$0xff] %vm1228, %v1132
      %1262 = vst.msk [vmem:[%s172 + $0x108] sm:$0xff] %vm1228, %v1133
      %1263 = vst.msk [vmem:[%s172 + $0x110] sm:$0xff] %vm1228, %v1134
      %1264 = vst.msk [vmem:[%s172 + $0x118] sm:$0xff] %vm1228, %v1135
      %1265 = vst.msk [vmem:[%s172 + $0x120] sm:$0xff] %vm1228, %v1136
      %1266 = vst.msk [vmem:[%s172 + $0x128] sm:$0xff] %vm1228, %v1137
      %1267 = vst.msk [vmem:[%s172 + $0x130] sm:$0xff] %vm1228, %v1138
      %1268 = vst.msk [vmem:[%s172 + $0x138] sm:$0xff] %vm1228, %v1139
      %1269 = vst.msk [vmem:[%s172 + $0x140] sm:$0xff] %vm1228, %v1140
      %1270 = vst.msk [vmem:[%s172 + $0x148] sm:$0xff] %vm1228, %v1141
      %1271 = vst.msk [vmem:[%s172 + $0x150] sm:$0xff] %vm1228, %v1142
      %1272 = vst.msk [vmem:[%s172 + $0x158] sm:$0xff] %vm1228, %v1143
      %1273 = vst.msk [vmem:[%s172 + $0x160] sm:$0xff] %vm1228, %v1144
      %1274 = vst.msk [vmem:[%s172 + $0x168] sm:$0xff] %vm1228, %v1145
      %1275 = vst.msk [vmem:[%s172 + $0x170] sm:$0xff] %vm1228, %v1146
      %1276 = vst.msk [vmem:[%s172 + $0x178] sm:$0xff] %vm1228, %v1147
      %1277 = vst.msk [vmem:[%s172 + $0x180] sm:$0xff] %vm1228, %v1148
      %1278 = vst.msk [vmem:[%s172 + $0x188] sm:$0xff] %vm1228, %v1149
      %1279 = vst.msk [vmem:[%s172 + $0x190] sm:$0xff] %vm1228, %v1150
      %1280 = vst.msk [vmem:[%s172 + $0x198] sm:$0xff] %vm1228, %v1151
      %1281 = vst.msk [vmem:[%s172 + $0x1a0] sm:$0xff] %vm1228, %v1152
      %1282 = vst.msk [vmem:[%s172 + $0x1a8] sm:$0xff] %vm1228, %v1153
      %1283 = vst.msk [vmem:[%s172 + $0x1b0] sm:$0xff] %vm1228, %v1154
      %1284 = vst.msk [vmem:[%s172 + $0x1b8] sm:$0xff] %vm1228, %v1155
      %1285 = vst.msk [vmem:[%s172 + $0x1c0] sm:$0xff] %vm1228, %v1156
      %1286 = vst.msk [vmem:[%s172 + $0x1c8] sm:$0xff] %vm1228, %v1157
      %1287 = vst.msk [vmem:[%s172 + $0x1d0] sm:$0xff] %vm1228, %v1158
      %1288 = vst.msk [vmem:[%s172 + $0x1d8] sm:$0xff] %vm1228, %v1159
      %1289 = vst.msk [vmem:[%s172 + $0x1e0] sm:$0xff] %vm1228, %v1160
      %1290 = vst.msk [vmem:[%s172 + $0x1e8] sm:$0xff] %vm1228, %v1161
      %1291 = vst.msk [vmem:[%s172 + $0x1f0] sm:$0xff] %vm1228, %v1162
      %1292 = vst.msk [vmem:[%s172 + $0x1f8] sm:$0xff] %vm1228, %v1163
      %1293 = vst.msk [vmem:[%s172 + $0x200] sm:$0xff] %vm1228, %v1164
      %1294 = vst.msk [vmem:[%s172 + $0x208] sm:$0xff] %vm1228, %v1165
      %1295 = vst.msk [vmem:[%s172 + $0x210] sm:$0xff] %vm1228, %v1166
      %1296 = vst.msk [vmem:[%s172 + $0x218] sm:$0xff] %vm1228, %v1167
      %1297 = vst.msk [vmem:[%s172 + $0x220] sm:$0xff] %vm1228, %v1168
      %1298 = vst.msk [vmem:[%s172 + $0x228] sm:$0xff] %vm1228, %v1169
      %1299 = vst.msk [vmem:[%s172 + $0x230] sm:$0xff] %vm1228, %v1170
      %1300 = vst.msk [vmem:[%s172 + $0x238] sm:$0xff] %vm1228, %v1171
      %1301 = vst.msk [vmem:[%s172 + $0x240] sm:$0xff] %vm1228, %v1172
      %1302 = vst.msk [vmem:[%s172 + $0x248] sm:$0xff] %vm1228, %v1173
      %1303 = vst.msk [vmem:[%s172 + $0x250] sm:$0xff] %vm1228, %v1174
      %1304 = vst.msk [vmem:[%s172 + $0x258] sm:$0xff] %vm1228, %v1175
      %1305 = vst.msk [vmem:[%s172 + $0x260] sm:$0xff] %vm1228, %v1176
      %1306 = vst.msk [vmem:[%s172 + $0x268] sm:$0xff] %vm1228, %v1177
      %1307 = vst.msk [vmem:[%s172 + $0x270] sm:$0xff] %vm1228, %v1178
      %1308 = vst.msk [vmem:[%s172 + $0x278] sm:$0xff] %vm1228, %v1179
      %1309 = vst.msk [vmem:[%s172 + $0x280] sm:$0xff] %vm1228, %v1180
      %1310 = vst.msk [vmem:[%s172 + $0x288] sm:$0xff] %vm1228, %v1181
      %1311 = vst.msk [vmem:[%s172 + $0x290] sm:$0xff] %vm1228, %v1182
      %1312 = vst.msk [vmem:[%s172 + $0x298] sm:$0xff] %vm1228, %v1183
      %1313 = vst.msk [vmem:[%s172 + $0x2a0] sm:$0xff] %vm1228, %v1184
      %1314 = vst.msk [vmem:[%s172 + $0x2a8] sm:$0xff] %vm1228, %v1185
      %1315 = vst.msk [vmem:[%s172 + $0x2b0] sm:$0xff] %vm1228, %v1186
      %1316 = vst.msk [vmem:[%s172 + $0x2b8] sm:$0xff] %vm1228, %v1187
      %1317 = vst.msk [vmem:[%s172 + $0x2c0] sm:$0xff] %vm1228, %v1188
      %1318 = vst.msk [vmem:[%s172 + $0x2c8] sm:$0xff] %vm1228, %v1189
      %1319 = vst.msk [vmem:[%s172 + $0x2d0] sm:$0xff] %vm1228, %v1190
      %1320 = vst.msk [vmem:[%s172 + $0x2d8] sm:$0xff] %vm1228, %v1191
      %1321 = vst.msk [vmem:[%s172 + $0x2e0] sm:$0xff] %vm1228, %v1192
      %1322 = vst.msk [vmem:[%s172 + $0x2e8] sm:$0xff] %vm1228, %v1193
      %1323 = vst.msk [vmem:[%s172 + $0x2f0] sm:$0xff] %vm1228, %v1194
      %1324 = vst.msk [vmem:[%s172 + $0x2f8] sm:$0xff] %vm1228, %v1195
      %1325 = vst.msk [vmem:[%s172 + $0x300] sm:$0xff] %vm1228, %v1196
      %1326 = vst.msk [vmem:[%s172 + $0x308] sm:$0xff] %vm1228, %v1197
      %1327 = vst.msk [vmem:[%s172 + $0x310] sm:$0xff] %vm1228, %v1198
      %1328 = vst.msk [vmem:[%s172 + $0x318] sm:$0xff] %vm1228, %v1199
      %1329 = vst.msk [vmem:[%s172 + $0x320] sm:$0xff] %vm1228, %v1200
      %1330 = vst.msk [vmem:[%s172 + $0x328] sm:$0xff] %vm1228, %v1201
      %1331 = vst.msk [vmem:[%s172 + $0x330] sm:$0xff] %vm1228, %v1202
      %1332 = vst.msk [vmem:[%s172 + $0x338] sm:$0xff] %vm1228, %v1203
      %1333 = vst.msk [vmem:[%s172 + $0x340] sm:$0xff] %vm1228, %v1204
      %1334 = vst.msk [vmem:[%s172 + $0x348] sm:$0xff] %vm1228, %v1205
      %1335 = vst.msk [vmem:[%s172 + $0x350] sm:$0xff] %vm1228, %v1206
      %1336 = vst.msk [vmem:[%s172 + $0x358] sm:$0xff] %vm1228, %v1207
      %1337 = vst.msk [vmem:[%s172 + $0x360] sm:$0xff] %vm1228, %v1208
      %1338 = vst.msk [vmem:[%s172 + $0x368] sm:$0xff] %vm1228, %v1209
      %1339 = vst.msk [vmem:[%s172 + $0x370] sm:$0xff] %vm1228, %v1210
      %1340 = vst.msk [vmem:[%s172 + $0x378] sm:$0xff] %vm1228, %v1211
      %1341 = vst.msk [vmem:[%s172 + $0x380] sm:$0xff] %vm1228, %v1212
      %1342 = vst.msk [vmem:[%s172 + $0x388] sm:$0xff] %vm1228, %v1213
      %1343 = vst.msk [vmem:[%s172 + $0x390] sm:$0xff] %vm1228, %v1214
      %1344 = vst.msk [vmem:[%s172 + $0x398] sm:$0xff] %vm1228, %v1215
      %1345 = vst.msk [vmem:[%s172 + $0x3a0] sm:$0xff] %vm1228, %v1216
      %1346 = vst.msk [vmem:[%s172 + $0x3a8] sm:$0xff] %vm1228, %v1217
      %1347 = vst.msk [vmem:[%s172 + $0x3b0] sm:$0xff] %vm1228, %v1218
      %1348 = vst.msk [vmem:[%s172 + $0x3b8] sm:$0xff] %vm1228, %v1219
      %1349 = vst.msk [vmem:[%s172 + $0x3c0] sm:$0xff] %vm1228, %v1220
      %1350 = vst.msk [vmem:[%s172 + $0x3c8] sm:$0xff] %vm1228, %v1221
      %1351 = vst.msk [vmem:[%s172 + $0x3d0] sm:$0xff] %vm1228, %v1222
      %1352 = vst.msk [vmem:[%s172 + $0x3d8] sm:$0xff] %vm1228, %v1223
      %1353 = vst.msk [vmem:[%s172 + $0x3e0] sm:$0xff] %vm1228, %v1224
      %1354 = vst.msk [vmem:[%s172 + $0x3e8] sm:$0xff] %vm1228, %v1225
      %1355 = vst.msk [vmem:[%s172 + $0x3f0] sm:$0xff] %vm1228, %v1226
      %1356 = vst.msk [vmem:[%s172 + $0x3f8] sm:$0xff] %vm1228, %v1227
      %s1357 = smul.u32 128, %s14
      %p1358 = scmp.lt.s32.totalorder %s1357, 255
      %s1359 = scalar_select %p1358, %s1357, 255
      %s1360 = smul.addr %s1359, 8
      %s1361 = scalar_lea.vmem %s3, %s1360
      // Predicated region
      $region33: #{model_forward.5} parent=31 // pred_check
        %p1362 = pneg %p100
      $region34: #{model_forward.5} parent=31 // pred_check_branch
        %1364 = sbr.rel (%p1362) target = $region36
      $region35: #{model_forward.5} parent=31 // pred_region
        %s1365 = smul.u32 128, %s14
      $region36: #{model_forward.5} parent=31 // pred_fallthru
        _
    $region32: #{model_forward.5} parent=5 // pred_fallthru
      _
    %p1366 = scmp.le.s32.totalorder 2, %s9
    // Predicated region
    $region37: #{model_forward.5} parent=5 // pred_check
      %p1367 = pneg %p1366
    $region38: #{model_forward.5} parent=5 // pred_check_branch
      %1369 = sbr.rel (%p1367) target = $region40
    $region39: #{model_forward.5} parent=5 // pred_region
      %s1370 = ssub.s32 %s9, 2
      // Predicated region
      $region41: #{model_forward.5} parent=39 // pred_check
        %p1371 = pneg %p106
      $region42: #{model_forward.5} parent=39 // pred_check_branch
        %1373 = sbr.rel (%p1371) target = $region44
      $region43: #{model_forward.5} parent=39 // pred_region
        %s1374 = smul.u32 128, %s15
        %p1375 = scmp.lt.s32.totalorder %s1374, 255
        %s1376 = scalar_select %p1375, %s1374, 255
        %s1377 = smul.addr %s1376, 8
        %s1378 = scalar_lea.vmem %s3, %s1377
      $region44: #{model_forward.5} parent=39 // pred_fallthru
        _
    $region40: #{model_forward.5} parent=5 // pred_fallthru
      _
  $region6: #{model_forward.5} parent=0 // loop_footer
    %s13 = sadd.s32 1, %s9
  $region7: #{model_forward.5} parent=0 // loop_footer_branch
    %8 = sbr.rel target = $region3
  $region8: #{model_forward.5} parent=0 // loop_exit
    _

// kernel: model_forward.6
$region0: #{model_forward.6}
  #allocation0 [shape = 'u32[]', space=smem, size = 0x4, offset = 0x4, fixed_abs, tag = 'smem constant byte address 0x4 - core index']
  #allocation1 [shape = 'u32[72,128]{1,0:T(1,128)}', space=vmem, size = 0x9000, scoped, tag = 'internal scratch']
  %s0 = inlined_call_operand.vmem [shape: f32[512,576], index: 0, kind: input, shape index: {}]
  %s1 = inlined_call_operand.vmem [shape: f32[576,64], index: 1, kind: input, shape index: {}]
  %s2 = inlined_call_operand.vmem [shape: f32[1,64], index: 2, kind: input, shape index: {}]
  %s3 = inlined_call_operand.vmem [shape: f32[512,64], index: 3, kind: output, shape index: {}]
  %s4 = sld [smem:[#allocation0]]
  $region22: #{model_forward.6} parent=0
    _
  %s6 = ssub.s32 1, %s4
  %s7 = scalar_select 0, %s6, %s4
  // Predicated region
  $region2: #{model_forward.6} parent=0 // pred_check
    _
  $region3: #{model_forward.6} parent=0 // pred_check_branch
    %9 = sbr.rel (0) target = $region5
  $region4: #{model_forward.6} parent=0 // pred_region
    _
  $region5: #{model_forward.6} parent=0 // pred_fallthru
    _
  // Predicated region
  $region6: #{model_forward.6} parent=0 // pred_check
    _
  $region7: #{model_forward.6} parent=0 // pred_check_branch
    %11 = sbr.rel (0) target = $region9
  $region8: #{model_forward.6} parent=0 // pred_region
    _
  $region9: #{model_forward.6} parent=0 // pred_fallthru
    _
  // Predicated region
  $region10: #{model_forward.6} parent=0 // pred_check
    _
  $region11: #{model_forward.6} parent=0 // pred_check_branch
    %13 = sbr.rel (0) target = $region13
  $region12: #{model_forward.6} parent=0 // pred_region
    _
  $region13: #{model_forward.6} parent=0 // pred_fallthru
    _
  %v14 = vld [vmem:[%s0] sm:$0xff]
  %v15 = vld [vmem:[%s0 + $0x8] sm:$0xff]
  %v16 = vld [vmem:[%s0 + $0x10] sm:$0xff]
  %v17 = vld [vmem:[%s0 + $0x18] sm:$0xff]
  %v18 = vld [vmem:[%s0 + $0x20] sm:$0xff]
  %v19 = vld [vmem:[%s0 + $0x28] sm:$0xff]
  %v20 = vld [vmem:[%s0 + $0x30] sm:$0xff]
  %v21 = vld [vmem:[%s0 + $0x38] sm:$0xff]
  %v22 = vld [vmem:[%s0 + $0x40] sm:$0xff]
  %v23 = vld [vmem:[%s0 + $0x48] sm:$0xff]
  %v24 = vld [vmem:[%s0 + $0x50] sm:$0xff]
  %v25 = vld [vmem:[%s0 + $0x58] sm:$0xff]
  %v26 = vld [vmem:[%s0 + $0x60] sm:$0xff]
  %v27 = vld [vmem:[%s0 + $0x68] sm:$0xff]
  %v28 = vld [vmem:[%s0 + $0x70] sm:$0xff]
  %v29 = vld [vmem:[%s0 + $0x78] sm:$0xff]
  %v30 = vld [vmem:[%s0 + $0x80] sm:$0xff]
  %v31 = vld [vmem:[%s0 + $0x88] sm:$0xff]
  %v32 = vld [vmem:[%s0 + $0x90] sm:$0xff]
  %v33 = vld [vmem:[%s0 + $0x98] sm:$0xff]
  %v34 = vld [vmem:[%s0 + $0xa0] sm:$0xff]
  %v35 = vld [vmem:[%s0 + $0xa8] sm:$0xff]
  %v36 = vld [vmem:[%s0 + $0xb0] sm:$0xff]
  %v37 = vld [vmem:[%s0 + $0xb8] sm:$0xff]
  %v38 = vld [vmem:[%s0 + $0xc0] sm:$0xff]
  %v39 = vld [vmem:[%s0 + $0xc8] sm:$0xff]
  %v40 = vld [vmem:[%s0 + $0xd0] sm:$0xff]
  %v41 = vld [vmem:[%s0 + $0xd8] sm:$0xff]
  %v42 = vld [vmem:[%s0 + $0xe0] sm:$0xff]
  %v43 = vld [vmem:[%s0 + $0xe8] sm:$0xff]
  %v44 = vld [vmem:[%s0 + $0xf0] sm:$0xff]
  %v45 = vld [vmem:[%s0 + $0xf8] sm:$0xff]
  %v46 = vld [vmem:[%s0 + $0x100] sm:$0xff]
  %v47 = vld [vmem:[%s0 + $0x108] sm:$0xff]
  %v48 = vld [vmem:[%s0 + $0x110] sm:$0xff]
  %v49 = vld [vmem:[%s0 + $0x118] sm:$0xff]
  %v50 = vld [vmem:[%s0 + $0x120] sm:$0xff]
  %v51 = vld [vmem:[%s0 + $0x128] sm:$0xff]
  %v52 = vld [vmem:[%s0 + $0x130] sm:$0xff]
  %v53 = vld [vmem:[%s0 + $0x138] sm:$0xff]
  %v54 = vld [vmem:[%s0 + $0x140] sm:$0xff]
  %v55 = vld [vmem:[%s0 + $0x148] sm:$0xff]
  %v56 = vld [vmem:[%s0 + $0x150] sm:$0xff]
  %v57 = vld [vmem:[%s0 + $0x158] sm:$0xff]
  %v58 = vld [vmem:[%s0 + $0x160] sm:$0xff]
  %v59 = vld [vmem:[%s0 + $0x168] sm:$0xff]
  %v60 = vld [vmem:[%s0 + $0x170] sm:$0xff]
  %v61 = vld [vmem:[%s0 + $0x178] sm:$0xff]
  %v62 = vld [vmem:[%s0 + $0x180] sm:$0xff]
  %v63 = vld [vmem:[%s0 + $0x188] sm:$0xff]
  %v64 = vld [vmem:[%s0 + $0x190] sm:$0xff]
  %v65 = vld [vmem:[%s0 + $0x198] sm:$0xff]
  %v66 = vld [vmem:[%s0 + $0x1a0] sm:$0xff]
  %v67 = vld [vmem:[%s0 + $0x1a8] sm:$0xff]
  %v68 = vld [vmem:[%s0 + $0x1b0] sm:$0xff]
  %v69 = vld [vmem:[%s0 + $0x1b8] sm:$0xff]
  %v70 = vld [vmem:[%s0 + $0x1c0] sm:$0xff]
  %v71 = vld [vmem:[%s0 + $0x1c8] sm:$0xff]
  %v72 = vld [vmem:[%s0 + $0x1d0] sm:$0xff]
  %v73 = vld [vmem:[%s0 + $0x1d8] sm:$0xff]
  %v74 = vld [vmem:[%s0 + $0x1e0] sm:$0xff]
  %v75 = vld [vmem:[%s0 + $0x1e8] sm:$0xff]
  %v76 = vld [vmem:[%s0 + $0x1f0] sm:$0xff]
  %v77 = vld [vmem:[%s0 + $0x1f8] sm:$0xff]
  %v78 = vld [vmem:[%s0 + $0x200] sm:$0xff]
  %v79 = vld [vmem:[%s0 + $0x208] sm:$0xff]
  %v80 = vld [vmem:[%s0 + $0x210] sm:$0xff]
  %v81 = vld [vmem:[%s0 + $0x218] sm:$0xff]
  %v82 = vld [vmem:[%s0 + $0x220] sm:$0xff]
  %v83 = vld [vmem:[%s0 + $0x228] sm:$0xff]
  %v84 = vld [vmem:[%s0 + $0x230] sm:$0xff]
  %v85 = vld [vmem:[%s0 + $0x238] sm:$0xff]
  %v86 = vld [vmem:[%s0 + $0x240] sm:$0xff]
  %v87 = vld [vmem:[%s0 + $0x248] sm:$0xff]
  %v88 = vld [vmem:[%s0 + $0x250] sm:$0xff]
  %v89 = vld [vmem:[%s0 + $0x258] sm:$0xff]
  %v90 = vld [vmem:[%s0 + $0x260] sm:$0xff]
  %v91 = vld [vmem:[%s0 + $0x268] sm:$0xff]
  %v92 = vld [vmem:[%s0 + $0x270] sm:$0xff]
  %v93 = vld [vmem:[%s0 + $0x278] sm:$0xff]
  %v94 = vld [vmem:[%s0 + $0x280] sm:$0xff]
  %v95 = vld [vmem:[%s0 + $0x288] sm:$0xff]
  %v96 = vld [vmem:[%s0 + $0x290] sm:$0xff]
  %v97 = vld [vmem:[%s0 + $0x298] sm:$0xff]
  %v98 = vld [vmem:[%s0 + $0x2a0] sm:$0xff]
  %v99 = vld [vmem:[%s0 + $0x2a8] sm:$0xff]
  %v100 = vld [vmem:[%s0 + $0x2b0] sm:$0xff]
  %v101 = vld [vmem:[%s0 + $0x2b8] sm:$0xff]
  %v102 = vld [vmem:[%s0 + $0x2c0] sm:$0xff]
  %v103 = vld [vmem:[%s0 + $0x2c8] sm:$0xff]
  %v104 = vld [vmem:[%s0 + $0x2d0] sm:$0xff]
  %v105 = vld [vmem:[%s0 + $0x2d8] sm:$0xff]
  %v106 = vld [vmem:[%s0 + $0x2e0] sm:$0xff]
  %v107 = vld [vmem:[%s0 + $0x2e8] sm:$0xff]
  %v108 = vld [vmem:[%s0 + $0x2f0] sm:$0xff]
  %v109 = vld [vmem:[%s0 + $0x2f8] sm:$0xff]
  %v110 = vld [vmem:[%s0 + $0x300] sm:$0xff]
  %v111 = vld [vmem:[%s0 + $0x308] sm:$0xff]
  %v112 = vld [vmem:[%s0 + $0x310] sm:$0xff]
  %v113 = vld [vmem:[%s0 + $0x318] sm:$0xff]
  %v114 = vld [vmem:[%s0 + $0x320] sm:$0xff]
  %v115 = vld [vmem:[%s0 + $0x328] sm:$0xff]
  %v116 = vld [vmem:[%s0 + $0x330] sm:$0xff]
  %v117 = vld [vmem:[%s0 + $0x338] sm:$0xff]
  %v118 = vld [vmem:[%s0 + $0x340] sm:$0xff]
  %v119 = vld [vmem:[%s0 + $0x348] sm:$0xff]
  %v120 = vld [vmem:[%s0 + $0x350] sm:$0xff]
  %v121 = vld [vmem:[%s0 + $0x358] sm:$0xff]
  %v122 = vld [vmem:[%s0 + $0x360] sm:$0xff]
  %v123 = vld [vmem:[%s0 + $0x368] sm:$0xff]
  %v124 = vld [vmem:[%s0 + $0x370] sm:$0xff]
  %v125 = vld [vmem:[%s0 + $0x378] sm:$0xff]
  %v126 = vld [vmem:[%s0 + $0x380] sm:$0xff]
  %v127 = vld [vmem:[%s0 + $0x388] sm:$0xff]
  %v128 = vld [vmem:[%s0 + $0x390] sm:$0xff]
  %v129 = vld [vmem:[%s0 + $0x398] sm:$0xff]
  %v130 = vld [vmem:[%s0 + $0x3a0] sm:$0xff]
  %v131 = vld [vmem:[%s0 + $0x3a8] sm:$0xff]
  %v132 = vld [vmem:[%s0 + $0x3b0] sm:$0xff]
  %v133 = vld [vmem:[%s0 + $0x3b8] sm:$0xff]
  %v134 = vld [vmem:[%s0 + $0x3c0] sm:$0xff]
  %v135 = vld [vmem:[%s0 + $0x3c8] sm:$0xff]
  %v136 = vld [vmem:[%s0 + $0x3d0] sm:$0xff]
  %v137 = vld [vmem:[%s0 + $0x3d8] sm:$0xff]
  %v138 = vld [vmem:[%s0 + $0x3e0] sm:$0xff]
  %v139 = vld [vmem:[%s0 + $0x3e8] sm:$0xff]
  %v140 = vld [vmem:[%s0 + $0x3f0] sm:$0xff]
  %v141 = vld [vmem:[%s0 + $0x3f8] sm:$0xff]
  %v142 = vld [vmem:[%s0 + $0x400] sm:$0xff]
  %v143 = vld [vmem:[%s0 + $0x408] sm:$0xff]
  %v144 = vld [vmem:[%s0 + $0x410] sm:$0xff]
  %v145 = vld [vmem:[%s0 + $0x418] sm:$0xff]
  %v146 = vld [vmem:[%s0 + $0x420] sm:$0xff]
  %v147 = vld [vmem:[%s0 + $0x428] sm:$0xff]
  %v148 = vld [vmem:[%s0 + $0x430] sm:$0xff]
  %v149 = vld [vmem:[%s0 + $0x438] sm:$0xff]
  %v150 = vld [vmem:[%s0 + $0x440] sm:$0xff]
  %v151 = vld [vmem:[%s0 + $0x448] sm:$0xff]
  %v152 = vld [vmem:[%s0 + $0x450] sm:$0xff]
  %v153 = vld [vmem:[%s0 + $0x458] sm:$0xff]
  %v154 = vld [vmem:[%s0 + $0x460] sm:$0xff]
  %v155 = vld [vmem:[%s0 + $0x468] sm:$0xff]
  %v156 = vld [vmem:[%s0 + $0x470] sm:$0xff]
  %v157 = vld [vmem:[%s0 + $0x478] sm:$0xff]
  %v158 = vld [vmem:[%s0 + $0x480] sm:$0xff]
  %v159 = vld [vmem:[%s0 + $0x488] sm:$0xff]
  %v160 = vld [vmem:[%s0 + $0x490] sm:$0xff]
  %v161 = vld [vmem:[%s0 + $0x498] sm:$0xff]
  %v162 = vld [vmem:[%s0 + $0x4a0] sm:$0xff]
  %v163 = vld [vmem:[%s0 + $0x4a8] sm:$0xff]
  %v164 = vld [vmem:[%s0 + $0x4b0] sm:$0xff]
  %v165 = vld [vmem:[%s0 + $0x4b8] sm:$0xff]
  %v166 = vld [vmem:[%s0 + $0x4c0] sm:$0xff]
  %v167 = vld [vmem:[%s0 + $0x4c8] sm:$0xff]
  %v168 = vld [vmem:[%s0 + $0x4d0] sm:$0xff]
  %v169 = vld [vmem:[%s0 + $0x4d8] sm:$0xff]
  %v170 = vld [vmem:[%s0 + $0x4e0] sm:$0xff]
  %v171 = vld [vmem:[%s0 + $0x4e8] sm:$0xff]
  %v172 = vld [vmem:[%s0 + $0x4f0] sm:$0xff]
  %v173 = vld [vmem:[%s0 + $0x4f8] sm:$0xff]
  %v174 = vld [vmem:[%s0 + $0x500] sm:$0xff]
  %v175 = vld [vmem:[%s0 + $0x508] sm:$0xff]
  %v176 = vld [vmem:[%s0 + $0x510] sm:$0xff]
  %v177 = vld [vmem:[%s0 + $0x518] sm:$0xff]
  %v178 = vld [vmem:[%s0 + $0x520] sm:$0xff]
  %v179 = vld [vmem:[%s0 + $0x528] sm:$0xff]
  %v180 = vld [vmem:[%s0 + $0x530] sm:$0xff]
  %v181 = vld [vmem:[%s0 + $0x538] sm:$0xff]
  %v182 = vld [vmem:[%s0 + $0x540] sm:$0xff]
  %v183 = vld [vmem:[%s0 + $0x548] sm:$0xff]
  %v184 = vld [vmem:[%s0 + $0x550] sm:$0xff]
  %v185 = vld [vmem:[%s0 + $0x558] sm:$0xff]
  %v186 = vld [vmem:[%s0 + $0x560] sm:$0xff]
  %v187 = vld [vmem:[%s0 + $0x568] sm:$0xff]
  %v188 = vld [vmem:[%s0 + $0x570] sm:$0xff]
  %v189 = vld [vmem:[%s0 + $0x578] sm:$0xff]
  %v190 = vld [vmem:[%s0 + $0x580] sm:$0xff]
  %v191 = vld [vmem:[%s0 + $0x588] sm:$0xff]
  %v192 = vld [vmem:[%s0 + $0x590] sm:$0xff]
  %v193 = vld [vmem:[%s0 + $0x598] sm:$0xff]
  %v194 = vld [vmem:[%s0 + $0x5a0] sm:$0xff]
  %v195 = vld [vmem:[%s0 + $0x5a8] sm:$0xff]
  %v196 = vld [vmem:[%s0 + $0x5b0] sm:$0xff]
  %v197 = vld [vmem:[%s0 + $0x5b8] sm:$0xff]
  %v198 = vld [vmem:[%s0 + $0x5c0] sm:$0xff]
  %v199 = vld [vmem:[%s0 + $0x5c8] sm:$0xff]
  %v200 = vld [vmem:[%s0 + $0x5d0] sm:$0xff]
  %v201 = vld [vmem:[%s0 + $0x5d8] sm:$0xff]
  %v202 = vld [vmem:[%s0 + $0x5e0] sm:$0xff]
  %v203 = vld [vmem:[%s0 + $0x5e8] sm:$0xff]
  %v204 = vld [vmem:[%s0 + $0x5f0] sm:$0xff]
  %v205 = vld [vmem:[%s0 + $0x5f8] sm:$0xff]
  %v206 = vld [vmem:[%s0 + $0x600] sm:$0xff]
  %v207 = vld [vmem:[%s0 + $0x608] sm:$0xff]
  %v208 = vld [vmem:[%s0 + $0x610] sm:$0xff]
  %v209 = vld [vmem:[%s0 + $0x618] sm:$0xff]
  %v210 = vld [vmem:[%s0 + $0x620] sm:$0xff]
  %v211 = vld [vmem:[%s0 + $0x628] sm:$0xff]
  %v212 = vld [vmem:[%s0 + $0x630] sm:$0xff]
  %v213 = vld [vmem:[%s0 + $0x638] sm:$0xff]
  %v214 = vld [vmem:[%s0 + $0x640] sm:$0xff]
  %v215 = vld [vmem:[%s0 + $0x648] sm:$0xff]
  %v216 = vld [vmem:[%s0 + $0x650] sm:$0xff]
  %v217 = vld [vmem:[%s0 + $0x658] sm:$0xff]
  %v218 = vld [vmem:[%s0 + $0x660] sm:$0xff]
  %v219 = vld [vmem:[%s0 + $0x668] sm:$0xff]
  %v220 = vld [vmem:[%s0 + $0x670] sm:$0xff]
  %v221 = vld [vmem:[%s0 + $0x678] sm:$0xff]
  %v222 = vld [vmem:[%s0 + $0x680] sm:$0xff]
  %v223 = vld [vmem:[%s0 + $0x688] sm:$0xff]
  %v224 = vld [vmem:[%s0 + $0x690] sm:$0xff]
  %v225 = vld [vmem:[%s0 + $0x698] sm:$0xff]
  %v226 = vld [vmem:[%s0 + $0x6a0] sm:$0xff]
  %v227 = vld [vmem:[%s0 + $0x6a8] sm:$0xff]
  %v228 = vld [vmem:[%s0 + $0x6b0] sm:$0xff]
  %v229 = vld [vmem:[%s0 + $0x6b8] sm:$0xff]
  %v230 = vld [vmem:[%s0 + $0x6c0] sm:$0xff]
  %v231 = vld [vmem:[%s0 + $0x6c8] sm:$0xff]
  %v232 = vld [vmem:[%s0 + $0x6d0] sm:$0xff]
  %v233 = vld [vmem:[%s0 + $0x6d8] sm:$0xff]
  %v234 = vld [vmem:[%s0 + $0x6e0] sm:$0xff]
  %v235 = vld [vmem:[%s0 + $0x6e8] sm:$0xff]
  %v236 = vld [vmem:[%s0 + $0x6f0] sm:$0xff]
  %v237 = vld [vmem:[%s0 + $0x6f8] sm:$0xff]
  %v238 = vld [vmem:[%s0 + $0x700] sm:$0xff]
  %v239 = vld [vmem:[%s0 + $0x708] sm:$0xff]
  %v240 = vld [vmem:[%s0 + $0x710] sm:$0xff]
  %v241 = vld [vmem:[%s0 + $0x718] sm:$0xff]
  %v242 = vld [vmem:[%s0 + $0x720] sm:$0xff]
  %v243 = vld [vmem:[%s0 + $0x728] sm:$0xff]
  %v244 = vld [vmem:[%s0 + $0x730] sm:$0xff]
  %v245 = vld [vmem:[%s0 + $0x738] sm:$0xff]
  %v246 = vld [vmem:[%s0 + $0x740] sm:$0xff]
  %v247 = vld [vmem:[%s0 + $0x748] sm:$0xff]
  %v248 = vld [vmem:[%s0 + $0x750] sm:$0xff]
  %v249 = vld [vmem:[%s0 + $0x758] sm:$0xff]
  %v250 = vld [vmem:[%s0 + $0x760] sm:$0xff]
  %v251 = vld [vmem:[%s0 + $0x768] sm:$0xff]
  %v252 = vld [vmem:[%s0 + $0x770] sm:$0xff]
  %v253 = vld [vmem:[%s0 + $0x778] sm:$0xff]
  %v254 = vld [vmem:[%s0 + $0x780] sm:$0xff]
  %v255 = vld [vmem:[%s0 + $0x788] sm:$0xff]
  %v256 = vld [vmem:[%s0 + $0x790] sm:$0xff]
  %v257 = vld [vmem:[%s0 + $0x798] sm:$0xff]
  %v258 = vld [vmem:[%s0 + $0x7a0] sm:$0xff]
  %v259 = vld [vmem:[%s0 + $0x7a8] sm:$0xff]
  %v260 = vld [vmem:[%s0 + $0x7b0] sm:$0xff]
  %v261 = vld [vmem:[%s0 + $0x7b8] sm:$0xff]
  %v262 = vld [vmem:[%s0 + $0x7c0] sm:$0xff]
  %v263 = vld [vmem:[%s0 + $0x7c8] sm:$0xff]
  %v264 = vld [vmem:[%s0 + $0x7d0] sm:$0xff]
  %v265 = vld [vmem:[%s0 + $0x7d8] sm:$0xff]
  %v266 = vld [vmem:[%s0 + $0x7e0] sm:$0xff]
  %v267 = vld [vmem:[%s0 + $0x7e8] sm:$0xff]
  %v268 = vld [vmem:[%s0 + $0x7f0] sm:$0xff]
  %v269 = vld [vmem:[%s0 + $0x7f8] sm:$0xff]
  %v270 = vld [vmem:[%s0 + $0x800] sm:$0xff]
  %v271 = vld [vmem:[%s0 + $0x808] sm:$0xff]
  %v272 = vld [vmem:[%s0 + $0x810] sm:$0xff]
  %v273 = vld [vmem:[%s0 + $0x818] sm:$0xff]
  %v274 = vld [vmem:[%s0 + $0x820] sm:$0xff]
  %v275 = vld [vmem:[%s0 + $0x828] sm:$0xff]
  %v276 = vld [vmem:[%s0 + $0x830] sm:$0xff]
  %v277 = vld [vmem:[%s0 + $0x838] sm:$0xff]
  %v278 = vld [vmem:[%s0 + $0x840] sm:$0xff]
  %v279 = vld [vmem:[%s0 + $0x848] sm:$0xff]
  %v280 = vld [vmem:[%s0 + $0x850] sm:$0xff]
  %v281 = vld [vmem:[%s0 + $0x858] sm:$0xff]
  %v282 = vld [vmem:[%s0 + $0x860] sm:$0xff]
  %v283 = vld [vmem:[%s0 + $0x868] sm:$0xff]
  %v284 = vld [vmem:[%s0 + $0x870] sm:$0xff]
  %v285 = vld [vmem:[%s0 + $0x878] sm:$0xff]
  %v286 = vld [vmem:[%s0 + $0x880] sm:$0xff]
  %v287 = vld [vmem:[%s0 + $0x888] sm:$0xff]
  %v288 = vld [vmem:[%s0 + $0x890] sm:$0xff]
  %v289 = vld [vmem:[%s0 + $0x898] sm:$0xff]
  %v290 = vld [vmem:[%s0 + $0x8a0] sm:$0xff]
  %v291 = vld [vmem:[%s0 + $0x8a8] sm:$0xff]
  %v292 = vld [vmem:[%s0 + $0x8b0] sm:$0xff]
  %v293 = vld [vmem:[%s0 + $0x8b8] sm:$0xff]
  %v294 = vld [vmem:[%s0 + $0x8c0] sm:$0xff]
  %v295 = vld [vmem:[%s0 + $0x8c8] sm:$0xff]
  %v296 = vld [vmem:[%s0 + $0x8d0] sm:$0xff]
  %v297 = vld [vmem:[%s0 + $0x8d8] sm:$0xff]
  %v298 = vld [vmem:[%s0 + $0x8e0] sm:$0xff]
  %v299 = vld [vmem:[%s0 + $0x8e8] sm:$0xff]
  %v300 = vld [vmem:[%s0 + $0x8f0] sm:$0xff]
  %v301 = vld [vmem:[%s0 + $0x8f8] sm:$0xff]
  %v302 = vld [vmem:[%s0 + $0x900] sm:$0xff]
  %v303 = vld [vmem:[%s0 + $0x908] sm:$0xff]
  %v304 = vld [vmem:[%s0 + $0x910] sm:$0xff]
  %v305 = vld [vmem:[%s0 + $0x918] sm:$0xff]
  %v306 = vld [vmem:[%s0 + $0x920] sm:$0xff]
  %v307 = vld [vmem:[%s0 + $0x928] sm:$0xff]
  %v308 = vld [vmem:[%s0 + $0x930] sm:$0xff]
  %v309 = vld [vmem:[%s0 + $0x938] sm:$0xff]
  %v310 = vld [vmem:[%s0 + $0x940] sm:$0xff]
  %v311 = vld [vmem:[%s0 + $0x948] sm:$0xff]
  %v312 = vld [vmem:[%s0 + $0x950] sm:$0xff]
  %v313 = vld [vmem:[%s0 + $0x958] sm:$0xff]
  %v314 = vld [vmem:[%s0 + $0x960] sm:$0xff]
  %v315 = vld [vmem:[%s0 + $0x968] sm:$0xff]
  %v316 = vld [vmem:[%s0 + $0x970] sm:$0xff]
  %v317 = vld [vmem:[%s0 + $0x978] sm:$0xff]
  %v318 = vld [vmem:[%s0 + $0x980] sm:$0xff]
  %v319 = vld [vmem:[%s0 + $0x988] sm:$0xff]
  %v320 = vld [vmem:[%s0 + $0x990] sm:$0xff]
  %v321 = vld [vmem:[%s0 + $0x998] sm:$0xff]
  %v322 = vld [vmem:[%s0 + $0x9a0] sm:$0xff]
  %v323 = vld [vmem:[%s0 + $0x9a8] sm:$0xff]
  %v324 = vld [vmem:[%s0 + $0x9b0] sm:$0xff]
  %v325 = vld [vmem:[%s0 + $0x9b8] sm:$0xff]
  %v326 = vld [vmem:[%s0 + $0x9c0] sm:$0xff]
  %v327 = vld [vmem:[%s0 + $0x9c8] sm:$0xff]
  %v328 = vld [vmem:[%s0 + $0x9d0] sm:$0xff]
  %v329 = vld [vmem:[%s0 + $0x9d8] sm:$0xff]
  %v330 = vld [vmem:[%s0 + $0x9e0] sm:$0xff]
  %v331 = vld [vmem:[%s0 + $0x9e8] sm:$0xff]
  %v332 = vld [vmem:[%s0 + $0x9f0] sm:$0xff]
  %v333 = vld [vmem:[%s0 + $0x9f8] sm:$0xff]
  %v334 = vld [vmem:[%s1] sm:$0xff]
  %v335 = vld [vmem:[%s1 + $0x8] sm:$0xff]
  %v336 = vld [vmem:[%s1 + $0x10] sm:$0xff]
  %v337 = vld [vmem:[%s1 + $0x18] sm:$0xff]
  %v338 = vld [vmem:[%s1 + $0x20] sm:$0xff]
  %v339 = vld [vmem:[%s1 + $0x28] sm:$0xff]
  %v340 = vld [vmem:[%s1 + $0x30] sm:$0xff]
  %v341 = vld [vmem:[%s1 + $0x38] sm:$0xff]
  %v342 = vld [vmem:[%s1 + $0x40] sm:$0xff]
  %v343 = vld [vmem:[%s1 + $0x48] sm:$0xff]
  %v344 = vld [vmem:[%s1 + $0x50] sm:$0xff]
  %v345 = vld [vmem:[%s1 + $0x58] sm:$0xff]
  %v346 = vld [vmem:[%s1 + $0x60] sm:$0xff]
  %v347 = vld [vmem:[%s1 + $0x68] sm:$0xff]
  %v348 = vld [vmem:[%s1 + $0x70] sm:$0xff]
  %v349 = vld [vmem:[%s1 + $0x78] sm:$0xff]
  %v350 = vld [vmem:[%s1 + $0x80] sm:$0xff]
  %v351 = vld [vmem:[%s1 + $0x88] sm:$0xff]
  %v352 = vld [vmem:[%s1 + $0x90] sm:$0xff]
  %v353 = vld [vmem:[%s1 + $0x98] sm:$0xff]
  %v354 = vld [vmem:[%s1 + $0xa0] sm:$0xff]
  %v355 = vld [vmem:[%s1 + $0xa8] sm:$0xff]
  %v356 = vld [vmem:[%s1 + $0xb0] sm:$0xff]
  %v357 = vld [vmem:[%s1 + $0xb8] sm:$0xff]
  %v358 = vld [vmem:[%s1 + $0xc0] sm:$0xff]
  %v359 = vld [vmem:[%s1 + $0xc8] sm:$0xff]
  %v360 = vld [vmem:[%s1 + $0xd0] sm:$0xff]
  %v361 = vld [vmem:[%s1 + $0xd8] sm:$0xff]
  %v362 = vld [vmem:[%s1 + $0xe0] sm:$0xff]
  %v363 = vld [vmem:[%s1 + $0xe8] sm:$0xff]
  %v364 = vld [vmem:[%s1 + $0xf0] sm:$0xff]
  %v365 = vld [vmem:[%s1 + $0xf8] sm:$0xff]
  %v366 = vld [vmem:[%s1 + $0x100] sm:$0xff]
  %v367 = vld [vmem:[%s1 + $0x108] sm:$0xff]
  %v368 = vld [vmem:[%s1 + $0x110] sm:$0xff]
  %v369 = vld [vmem:[%s1 + $0x118] sm:$0xff]
  %v370 = vld [vmem:[%s1 + $0x120] sm:$0xff]
  %v371 = vld [vmem:[%s1 + $0x128] sm:$0xff]
  %v372 = vld [vmem:[%s1 + $0x130] sm:$0xff]
  %v373 = vld [vmem:[%s1 + $0x138] sm:$0xff]
  %v374 = vld [vmem:[%s1 + $0x140] sm:$0xff]
  %v375 = vld [vmem:[%s1 + $0x148] sm:$0xff]
  %v376 = vld [vmem:[%s1 + $0x150] sm:$0xff]
  %v377 = vld [vmem:[%s1 + $0x158] sm:$0xff]
  %v378 = vld [vmem:[%s1 + $0x160] sm:$0xff]
  %v379 = vld [vmem:[%s1 + $0x168] sm:$0xff]
  %v380 = vld [vmem:[%s1 + $0x170] sm:$0xff]
  %v381 = vld [vmem:[%s1 + $0x178] sm:$0xff]
  %v382 = vld [vmem:[%s1 + $0x180] sm:$0xff]
  %v383 = vld [vmem:[%s1 + $0x188] sm:$0xff]
  %v384 = vld [vmem:[%s1 + $0x190] sm:$0xff]
  %v385 = vld [vmem:[%s1 + $0x198] sm:$0xff]
  %v386 = vld [vmem:[%s1 + $0x1a0] sm:$0xff]
  %v387 = vld [vmem:[%s1 + $0x1a8] sm:$0xff]
  %v388 = vld [vmem:[%s1 + $0x1b0] sm:$0xff]
  %v389 = vld [vmem:[%s1 + $0x1b8] sm:$0xff]
  %v390 = vld [vmem:[%s1 + $0x1c0] sm:$0xff]
  %v391 = vld [vmem:[%s1 + $0x1c8] sm:$0xff]
  %v392 = vld [vmem:[%s1 + $0x1d0] sm:$0xff]
  %v393 = vld [vmem:[%s1 + $0x1d8] sm:$0xff]
  %v394 = vld [vmem:[%s1 + $0x1e0] sm:$0xff]
  %v395 = vld [vmem:[%s1 + $0x1e8] sm:$0xff]
  %v396 = vld [vmem:[%s1 + $0x1f0] sm:$0xff]
  %v397 = vld [vmem:[%s1 + $0x1f8] sm:$0xff]
  %v398 = vld [vmem:[%s1 + $0x200] sm:$0xff]
  %v399 = vld [vmem:[%s1 + $0x208] sm:$0xff]
  %v400 = vld [vmem:[%s1 + $0x210] sm:$0xff]
  %v401 = vld [vmem:[%s1 + $0x218] sm:$0xff]
  %v402 = vld [vmem:[%s1 + $0x220] sm:$0xff]
  %v403 = vld [vmem:[%s1 + $0x228] sm:$0xff]
  %v404 = vld [vmem:[%s1 + $0x230] sm:$0xff]
  %v405 = vld [vmem:[%s1 + $0x238] sm:$0xff]
  %v406 = vld [vmem:[%s2] sm:$0x1]
  %v408 = vperm.slane %v406, 0
  %vm410 = vcmask 523264
  %v412 = vsel %vm410, %v18, 0
  %v415 = vsel %vm410, %v23, 0
  %v418 = vsel %vm410, %v28, 0
  %v421 = vsel %vm410, %v33, 0
  %v424 = vsel %vm410, %v38, 0
  %v427 = vsel %vm410, %v43, 0
  %v430 = vsel %vm410, %v48, 0
  %v433 = vsel %vm410, %v53, 0
  %v436 = vsel %vm410, %v58, 0
  %v439 = vsel %vm410, %v63, 0
  %v442 = vsel %vm410, %v68, 0
  %v445 = vsel %vm410, %v73, 0
  %v448 = vsel %vm410, %v78, 0
  %v451 = vsel %vm410, %v83, 0
  %v454 = vsel %vm410, %v88, 0
  %v457 = vsel %vm410, %v93, 0
  %v460 = vsel %vm410, %v98, 0
  %v463 = vsel %vm410, %v103, 0
  %v466 = vsel %vm410, %v108, 0
  %v469 = vsel %vm410, %v113, 0
  %v472 = vsel %vm410, %v118, 0
  %v475 = vsel %vm410, %v123, 0
  %v478 = vsel %vm410, %v128, 0
  %v481 = vsel %vm410, %v133, 0
  %v484 = vsel %vm410, %v138, 0
  %v487 = vsel %vm410, %v143, 0
  %v490 = vsel %vm410, %v148, 0
  %v493 = vsel %vm410, %v153, 0
  %v496 = vsel %vm410, %v158, 0
  %v499 = vsel %vm410, %v163, 0
  %v502 = vsel %vm410, %v168, 0
  %v505 = vsel %vm410, %v173, 0
  %v508 = vsel %vm410, %v178, 0
  %v511 = vsel %vm410, %v183, 0
  %v514 = vsel %vm410, %v188, 0
  %v517 = vsel %vm410, %v193, 0
  %v520 = vsel %vm410, %v198, 0
  %v523 = vsel %vm410, %v203, 0
  %v526 = vsel %vm410, %v208, 0
  %v529 = vsel %vm410, %v213, 0
  %v532 = vsel %vm410, %v218, 0
  %v535 = vsel %vm410, %v223, 0
  %v538 = vsel %vm410, %v228, 0
  %v541 = vsel %vm410, %v233, 0
  %v544 = vsel %vm410, %v238, 0
  %v547 = vsel %vm410, %v243, 0
  %v550 = vsel %vm410, %v248, 0
  %v553 = vsel %vm410, %v253, 0
  %v556 = vsel %vm410, %v258, 0
  %v559 = vsel %vm410, %v263, 0
  %v562 = vsel %vm410, %v268, 0
  %v565 = vsel %vm410, %v273, 0
  %v568 = vsel %vm410, %v278, 0
  %v571 = vsel %vm410, %v283, 0
  %v574 = vsel %vm410, %v288, 0
  %v577 = vsel %vm410, %v293, 0
  %v580 = vsel %vm410, %v298, 0
  %v583 = vsel %vm410, %v303, 0
  %v586 = vsel %vm410, %v308, 0
  %v589 = vsel %vm410, %v313, 0
  %v592 = vsel %vm410, %v318, 0
  %v595 = vsel %vm410, %v323, 0
  %v598 = vsel %vm410, %v328, 0
  %v601 = vsel %vm410, %v333, 0
  %603 = vmatpush.msra.mxu0 %v349
  %604 = vmatpush.msra.mxu0 %v348
  %605 = vmatpush.msra.mxu0 %v347
  %606 = vmatpush.msra.mxu0 %v346
  %607 = vmatpush.msra.mxu0 %v345
  %608 = vmatpush.msra.mxu0 %v344
  %609 = vmatpush.msra.mxu0 %v343
  %610 = vmatpush.msra.mxu0 %v342
  %611 = vmatpush.msra.mxu0 %v341
  %612 = vmatpush.msra.mxu0 %v340
  %613 = vmatpush.msra.mxu0 %v339
  %614 = vmatpush.msra.mxu0 %v338
  %615 = vmatpush.msra.mxu0 %v337
  %616 = vmatpush.msra.mxu0 %v336
  %617 = vmatpush.msra.mxu0 %v335
  %618 = vmatpush.msra.mxu0 %v334
  %619 = vmatmul.f32.gmra.mxu0 %v14
  %v620 = vpop.f32.mrf.mxu0
  %v621 = vadd.f32 %v408, %v620
  %622 = vmatmul.f32.gmra.mxu0 %v19
  %v623 = vpop.f32.mrf.mxu0
  %v624 = vadd.f32 %v408, %v623
  %625 = vmatmul.f32.gmra.mxu0 %v24
  %v626 = vpop.f32.mrf.mxu0
  %v627 = vadd.f32 %v408, %v626
  %628 = vmatmul.f32.gmra.mxu0 %v29
  %v629 = vpop.f32.mrf.mxu0
  %v630 = vadd.f32 %v408, %v629
  %631 = vmatmul.f32.gmra.mxu0 %v34
  %v632 = vpop.f32.mrf.mxu0
  %v633 = vadd.f32 %v408, %v632
  %634 = vmatmul.f32.gmra.mxu0 %v39
  %v635 = vpop.f32.mrf.mxu0
  %v636 = vadd.f32 %v408, %v635
  %637 = vmatmul.f32.gmra.mxu0 %v44
  %v638 = vpop.f32.mrf.mxu0
  %v639 = vadd.f32 %v408, %v638
  %640 = vmatmul.f32.gmra.mxu0 %v49
  %v641 = vpop.f32.mrf.mxu0
  %v642 = vadd.f32 %v408, %v641
  %643 = vmatmul.f32.gmra.mxu0 %v54
  %v644 = vpop.f32.mrf.mxu0
  %v645 = vadd.f32 %v408, %v644
  %646 = vmatmul.f32.gmra.mxu0 %v59
  %v647 = vpop.f32.mrf.mxu0
  %v648 = vadd.f32 %v408, %v647
  %649 = vmatmul.f32.gmra.mxu0 %v64
  %v650 = vpop.f32.mrf.mxu0
  %v651 = vadd.f32 %v408, %v650
  %652 = vmatmul.f32.gmra.mxu0 %v69
  %v653 = vpop.f32.mrf.mxu0
  %v654 = vadd.f32 %v408, %v653
  %655 = vmatmul.f32.gmra.mxu0 %v74
  %v656 = vpop.f32.mrf.mxu0
  %v657 = vadd.f32 %v408, %v656
  %658 = vmatmul.f32.gmra.mxu0 %v79
  %v659 = vpop.f32.mrf.mxu0
  %v660 = vadd.f32 %v408, %v659
  %661 = vmatmul.f32.gmra.mxu0 %v84
  %v662 = vpop.f32.mrf.mxu0
  %v663 = vadd.f32 %v408, %v662
  %664 = vmatmul.f32.gmra.mxu0 %v89
  %v665 = vpop.f32.mrf.mxu0
  %v666 = vadd.f32 %v408, %v665
  %667 = vmatmul.f32.gmra.mxu0 %v94
  %v668 = vpop.f32.mrf.mxu0
  %v669 = vadd.f32 %v408, %v668
  %670 = vmatmul.f32.gmra.mxu0 %v99
  %v671 = vpop.f32.mrf.mxu0
  %v672 = vadd.f32 %v408, %v671
  %673 = vmatmul.f32.gmra.mxu0 %v104
  %v674 = vpop.f32.mrf.mxu0
  %v675 = vadd.f32 %v408, %v674
  %676 = vmatmul.f32.gmra.mxu0 %v109
  %v677 = vpop.f32.mrf.mxu0
  %v678 = vadd.f32 %v408, %v677
  %679 = vmatmul.f32.gmra.mxu0 %v114
  %v680 = vpop.f32.mrf.mxu0
  %v681 = vadd.f32 %v408, %v680
  %682 = vmatmul.f32.gmra.mxu0 %v119
  %v683 = vpop.f32.mrf.mxu0
  %v684 = vadd.f32 %v408, %v683
  %685 = vmatmul.f32.gmra.mxu0 %v124
  %v686 = vpop.f32.mrf.mxu0
  %v687 = vadd.f32 %v408, %v686
  %688 = vmatmul.f32.gmra.mxu0 %v129
  %v689 = vpop.f32.mrf.mxu0
  %v690 = vadd.f32 %v408, %v689
  %691 = vmatmul.f32.gmra.mxu0 %v134
  %v692 = vpop.f32.mrf.mxu0
  %v693 = vadd.f32 %v408, %v692
  %694 = vmatmul.f32.gmra.mxu0 %v139
  %v695 = vpop.f32.mrf.mxu0
  %v696 = vadd.f32 %v408, %v695
  %697 = vmatmul.f32.gmra.mxu0 %v144
  %v698 = vpop.f32.mrf.mxu0
  %v699 = vadd.f32 %v408, %v698
  %700 = vmatmul.f32.gmra.mxu0 %v149
  %v701 = vpop.f32.mrf.mxu0
  %v702 = vadd.f32 %v408, %v701
  %703 = vmatmul.f32.gmra.mxu0 %v154
  %v704 = vpop.f32.mrf.mxu0
  %v705 = vadd.f32 %v408, %v704
  %706 = vmatmul.f32.gmra.mxu0 %v159
  %v707 = vpop.f32.mrf.mxu0
  %v708 = vadd.f32 %v408, %v707
  %709 = vmatmul.f32.gmra.mxu0 %v164
  %v710 = vpop.f32.mrf.mxu0
  %v711 = vadd.f32 %v408, %v710
  %712 = vmatmul.f32.gmra.mxu0 %v169
  %v713 = vpop.f32.mrf.mxu0
  %v714 = vadd.f32 %v408, %v713
  %715 = vmatmul.f32.gmra.mxu0 %v174
  %v716 = vpop.f32.mrf.mxu0
  %v717 = vadd.f32 %v408, %v716
  %718 = vmatmul.f32.gmra.mxu0 %v179
  %v719 = vpop.f32.mrf.mxu0
  %v720 = vadd.f32 %v408, %v719
  %721 = vmatmul.f32.gmra.mxu0 %v184
  %v722 = vpop.f32.mrf.mxu0
  %v723 = vadd.f32 %v408, %v722
  %724 = vmatmul.f32.gmra.mxu0 %v189
  %v725 = vpop.f32.mrf.mxu0
  %v726 = vadd.f32 %v408, %v725
  %727 = vmatmul.f32.gmra.mxu0 %v194
  %v728 = vpop.f32.mrf.mxu0
  %v729 = vadd.f32 %v408, %v728
  %730 = vmatmul.f32.gmra.mxu0 %v199
  %v731 = vpop.f32.mrf.mxu0
  %v732 = vadd.f32 %v408, %v731
  %733 = vmatmul.f32.gmra.mxu0 %v204
  %v734 = vpop.f32.mrf.mxu0
  %v735 = vadd.f32 %v408, %v734
  %736 = vmatmul.f32.gmra.mxu0 %v209
  %v737 = vpop.f32.mrf.mxu0
  %v738 = vadd.f32 %v408, %v737
  %739 = vmatmul.f32.gmra.mxu0 %v214
  %v740 = vpop.f32.mrf.mxu0
  %v741 = vadd.f32 %v408, %v740
  %742 = vmatmul.f32.gmra.mxu0 %v219
  %v743 = vpop.f32.mrf.mxu0
  %v744 = vadd.f32 %v408, %v743
  %745 = vmatmul.f32.gmra.mxu0 %v224
  %v746 = vpop.f32.mrf.mxu0
  %v747 = vadd.f32 %v408, %v746
  %748 = vmatmul.f32.gmra.mxu0 %v229
  %v749 = vpop.f32.mrf.mxu0
  %v750 = vadd.f32 %v408, %v749
  %751 = vmatmul.f32.gmra.mxu0 %v234
  %v752 = vpop.f32.mrf.mxu0
  %v753 = vadd.f32 %v408, %v752
  %754 = vmatmul.f32.gmra.mxu0 %v239
  %v755 = vpop.f32.mrf.mxu0
  %v756 = vadd.f32 %v408, %v755
  %757 = vmatmul.f32.gmra.mxu0 %v244
  %v758 = vpop.f32.mrf.mxu0
  %v759 = vadd.f32 %v408, %v758
  %760 = vmatmul.f32.gmra.mxu0 %v249
  %v761 = vpop.f32.mrf.mxu0
  %v762 = vadd.f32 %v408, %v761
  %763 = vmatmul.f32.gmra.mxu0 %v254
  %v764 = vpop.f32.mrf.mxu0
  %v765 = vadd.f32 %v408, %v764
  %766 = vmatmul.f32.gmra.mxu0 %v259
  %v767 = vpop.f32.mrf.mxu0
  %v768 = vadd.f32 %v408, %v767
  %769 = vmatmul.f32.gmra.mxu0 %v264
  %v770 = vpop.f32.mrf.mxu0
  %v771 = vadd.f32 %v408, %v770
  %772 = vmatmul.f32.gmra.mxu0 %v269
  %v773 = vpop.f32.mrf.mxu0
  %v774 = vadd.f32 %v408, %v773
  %775 = vmatmul.f32.gmra.mxu0 %v274
  %v776 = vpop.f32.mrf.mxu0
  %v777 = vadd.f32 %v408, %v776
  %778 = vmatmul.f32.gmra.mxu0 %v279
  %v779 = vpop.f32.mrf.mxu0
  %v780 = vadd.f32 %v408, %v779
  %781 = vmatmul.f32.gmra.mxu0 %v284
  %v782 = vpop.f32.mrf.mxu0
  %v783 = vadd.f32 %v408, %v782
  %784 = vmatmul.f32.gmra.mxu0 %v289
  %v785 = vpop.f32.mrf.mxu0
  %v786 = vadd.f32 %v408, %v785
  %787 = vmatmul.f32.gmra.mxu0 %v294
  %v788 = vpop.f32.mrf.mxu0
  %v789 = vadd.f32 %v408, %v788
  %790 = vmatmul.f32.gmra.mxu0 %v299
  %v791 = vpop.f32.mrf.mxu0
  %v792 = vadd.f32 %v408, %v791
  %793 = vmatmul.f32.gmra.mxu0 %v304
  %v794 = vpop.f32.mrf.mxu0
  %v795 = vadd.f32 %v408, %v794
  %796 = vmatmul.f32.gmra.mxu0 %v309
  %v797 = vpop.f32.mrf.mxu0
  %v798 = vadd.f32 %v408, %v797
  %799 = vmatmul.f32.gmra.mxu0 %v314
  %v800 = vpop.f32.mrf.mxu0
  %v801 = vadd.f32 %v408, %v800
  %802 = vmatmul.f32.gmra.mxu0 %v319
  %v803 = vpop.f32.mrf.mxu0
  %v804 = vadd.f32 %v408, %v803
  %805 = vmatmul.f32.gmra.mxu0 %v324
  %v806 = vpop.f32.mrf.mxu0
  %v807 = vadd.f32 %v408, %v806
  %808 = vmatmul.f32.gmra.mxu0 %v329
  %v809 = vpop.f32.mrf.mxu0
  %v810 = vadd.f32 %v408, %v809
  %811 = vdwg.mxu0
  %812 = vmatpush.msra.mxu0 %v365
  %813 = vmatpush.msra.mxu0 %v364
  %814 = vmatpush.msra.mxu0 %v363
  %815 = vmatpush.msra.mxu0 %v362
  %816 = vmatpush.msra.mxu0 %v361
  %817 = vmatpush.msra.mxu0 %v360
  %818 = vmatpush.msra.mxu0 %v359
  %819 = vmatpush.msra.mxu0 %v358
  %820 = vmatpush.msra.mxu0 %v357
  %821 = vmatpush.msra.mxu0 %v356
  %822 = vmatpush.msra.mxu0 %v355
  %823 = vmatpush.msra.mxu0 %v354
  %824 = vmatpush.msra.mxu0 %v353
  %825 = vmatpush.msra.mxu0 %v352
  %826 = vmatpush.msra.mxu0 %v351
  %827 = vmatpush.msra.mxu0 %v350
  %828 = vmatmul.f32.gmra.mxu0 %v15
  %v829 = vpop.f32.mrf.mxu0
  %v830 = vadd.f32 %v621, %v829
  %831 = vmatmul.f32.gmra.mxu0 %v20
  %v832 = vpop.f32.mrf.mxu0
  %v833 = vadd.f32 %v624, %v832
  %834 = vmatmul.f32.gmra.mxu0 %v25
  %v835 = vpop.f32.mrf.mxu0
  %v836 = vadd.f32 %v627, %v835
  %837 = vmatmul.f32.gmra.mxu0 %v30
  %v838 = vpop.f32.mrf.mxu0
  %v839 = vadd.f32 %v630, %v838
  %840 = vmatmul.f32.gmra.mxu0 %v35
  %v841 = vpop.f32.mrf.mxu0
  %v842 = vadd.f32 %v633, %v841
  %843 = vmatmul.f32.gmra.mxu0 %v40
  %v844 = vpop.f32.mrf.mxu0
  %v845 = vadd.f32 %v636, %v844
  %846 = vmatmul.f32.gmra.mxu0 %v45
  %v847 = vpop.f32.mrf.mxu0
  %v848 = vadd.f32 %v639, %v847
  %849 = vmatmul.f32.gmra.mxu0 %v50
  %v850 = vpop.f32.mrf.mxu0
  %v851 = vadd.f32 %v642, %v850
  %852 = vmatmul.f32.gmra.mxu0 %v55
  %v853 = vpop.f32.mrf.mxu0
  %v854 = vadd.f32 %v645, %v853
  %855 = vmatmul.f32.gmra.mxu0 %v60
  %v856 = vpop.f32.mrf.mxu0
  %v857 = vadd.f32 %v648, %v856
  %858 = vmatmul.f32.gmra.mxu0 %v65
  %v859 = vpop.f32.mrf.mxu0
  %v860 = vadd.f32 %v651, %v859
  %861 = vmatmul.f32.gmra.mxu0 %v70
  %v862 = vpop.f32.mrf.mxu0
  %v863 = vadd.f32 %v654, %v862
  %864 = vmatmul.f32.gmra.mxu0 %v75
  %v865 = vpop.f32.mrf.mxu0
  %v866 = vadd.f32 %v657, %v865
  %867 = vmatmul.f32.gmra.mxu0 %v80
  %v868 = vpop.f32.mrf.mxu0
  %v869 = vadd.f32 %v660, %v868
  %870 = vmatmul.f32.gmra.mxu0 %v85
  %v871 = vpop.f32.mrf.mxu0
  %v872 = vadd.f32 %v663, %v871
  %873 = vmatmul.f32.gmra.mxu0 %v90
  %v874 = vpop.f32.mrf.mxu0
  %v875 = vadd.f32 %v666, %v874
  %876 = vmatmul.f32.gmra.mxu0 %v95
  %v877 = vpop.f32.mrf.mxu0
  %v878 = vadd.f32 %v669, %v877
  %879 = vmatmul.f32.gmra.mxu0 %v100
  %v880 = vpop.f32.mrf.mxu0
  %v881 = vadd.f32 %v672, %v880
  %882 = vmatmul.f32.gmra.mxu0 %v105
  %v883 = vpop.f32.mrf.mxu0
  %v884 = vadd.f32 %v675, %v883
  %885 = vmatmul.f32.gmra.mxu0 %v110
  %v886 = vpop.f32.mrf.mxu0
  %v887 = vadd.f32 %v678, %v886
  %888 = vmatmul.f32.gmra.mxu0 %v115
  %v889 = vpop.f32.mrf.mxu0
  %v890 = vadd.f32 %v681, %v889
  %891 = vmatmul.f32.gmra.mxu0 %v120
  %v892 = vpop.f32.mrf.mxu0
  %v893 = vadd.f32 %v684, %v892
  %894 = vmatmul.f32.gmra.mxu0 %v125
  %v895 = vpop.f32.mrf.mxu0
  %v896 = vadd.f32 %v687, %v895
  %897 = vmatmul.f32.gmra.mxu0 %v130
  %v898 = vpop.f32.mrf.mxu0
  %v899 = vadd.f32 %v690, %v898
  %900 = vmatmul.f32.gmra.mxu0 %v135
  %v901 = vpop.f32.mrf.mxu0
  %v902 = vadd.f32 %v693, %v901
  %903 = vmatmul.f32.gmra.mxu0 %v140
  %v904 = vpop.f32.mrf.mxu0
  %v905 = vadd.f32 %v696, %v904
  %906 = vmatmul.f32.gmra.mxu0 %v145
  %v907 = vpop.f32.mrf.mxu0
  %v908 = vadd.f32 %v699, %v907
  %909 = vmatmul.f32.gmra.mxu0 %v150
  %v910 = vpop.f32.mrf.mxu0
  %v911 = vadd.f32 %v702, %v910
  %912 = vmatmul.f32.gmra.mxu0 %v155
  %v913 = vpop.f32.mrf.mxu0
  %v914 = vadd.f32 %v705, %v913
  %915 = vmatmul.f32.gmra.mxu0 %v160
  %v916 = vpop.f32.mrf.mxu0
  %v917 = vadd.f32 %v708, %v916
  %918 = vmatmul.f32.gmra.mxu0 %v165
  %v919 = vpop.f32.mrf.mxu0
  %v920 = vadd.f32 %v711, %v919
  %921 = vmatmul.f32.gmra.mxu0 %v170
  %v922 = vpop.f32.mrf.mxu0
  %v923 = vadd.f32 %v714, %v922
  %924 = vmatmul.f32.gmra.mxu0 %v175
  %v925 = vpop.f32.mrf.mxu0
  %v926 = vadd.f32 %v717, %v925
  %927 = vmatmul.f32.gmra.mxu0 %v180
  %v928 = vpop.f32.mrf.mxu0
  %v929 = vadd.f32 %v720, %v928
  %930 = vmatmul.f32.gmra.mxu0 %v185
  %v931 = vpop.f32.mrf.mxu0
  %v932 = vadd.f32 %v723, %v931
  %933 = vmatmul.f32.gmra.mxu0 %v190
  %v934 = vpop.f32.mrf.mxu0
  %v935 = vadd.f32 %v726, %v934
  %936 = vmatmul.f32.gmra.mxu0 %v195
  %v937 = vpop.f32.mrf.mxu0
  %v938 = vadd.f32 %v729, %v937
  %939 = vmatmul.f32.gmra.mxu0 %v200
  %v940 = vpop.f32.mrf.mxu0
  %v941 = vadd.f32 %v732, %v940
  %942 = vmatmul.f32.gmra.mxu0 %v205
  %v943 = vpop.f32.mrf.mxu0
  %v944 = vadd.f32 %v735, %v943
  %945 = vmatmul.f32.gmra.mxu0 %v210
  %v946 = vpop.f32.mrf.mxu0
  %v947 = vadd.f32 %v738, %v946
  %948 = vmatmul.f32.gmra.mxu0 %v215
  %v949 = vpop.f32.mrf.mxu0
  %v950 = vadd.f32 %v741, %v949
  %951 = vmatmul.f32.gmra.mxu0 %v220
  %v952 = vpop.f32.mrf.mxu0
  %v953 = vadd.f32 %v744, %v952
  %954 = vmatmul.f32.gmra.mxu0 %v225
  %v955 = vpop.f32.mrf.mxu0
  %v956 = vadd.f32 %v747, %v955
  %957 = vmatmul.f32.gmra.mxu0 %v230
  %v958 = vpop.f32.mrf.mxu0
  %v959 = vadd.f32 %v750, %v958
  %960 = vmatmul.f32.gmra.mxu0 %v235
  %v961 = vpop.f32.mrf.mxu0
  %v962 = vadd.f32 %v753, %v961
  %963 = vmatmul.f32.gmra.mxu0 %v240
  %v964 = vpop.f32.mrf.mxu0
  %v965 = vadd.f32 %v756, %v964
  %966 = vmatmul.f32.gmra.mxu0 %v245
  %v967 = vpop.f32.mrf.mxu0
  %v968 = vadd.f32 %v759, %v967
  %969 = vmatmul.f32.gmra.mxu0 %v250
  %v970 = vpop.f32.mrf.mxu0
  %v971 = vadd.f32 %v762, %v970
  %972 = vmatmul.f32.gmra.mxu0 %v255
  %v973 = vpop.f32.mrf.mxu0
  %v974 = vadd.f32 %v765, %v973
  %975 = vmatmul.f32.gmra.mxu0 %v260
  %v976 = vpop.f32.mrf.mxu0
  %v977 = vadd.f32 %v768, %v976
  %978 = vmatmul.f32.gmra.mxu0 %v265
  %v979 = vpop.f32.mrf.mxu0
  %v980 = vadd.f32 %v771, %v979
  %981 = vmatmul.f32.gmra.mxu0 %v270
  %v982 = vpop.f32.mrf.mxu0
  %v983 = vadd.f32 %v774, %v982
  %984 = vmatmul.f32.gmra.mxu0 %v275
  %v985 = vpop.f32.mrf.mxu0
  %v986 = vadd.f32 %v777, %v985
  %987 = vmatmul.f32.gmra.mxu0 %v280
  %v988 = vpop.f32.mrf.mxu0
  %v989 = vadd.f32 %v780, %v988
  %990 = vmatmul.f32.gmra.mxu0 %v285
  %v991 = vpop.f32.mrf.mxu0
  %v992 = vadd.f32 %v783, %v991
  %993 = vmatmul.f32.gmra.mxu0 %v290
  %v994 = vpop.f32.mrf.mxu0
  %v995 = vadd.f32 %v786, %v994
  %996 = vmatmul.f32.gmra.mxu0 %v295
  %v997 = vpop.f32.mrf.mxu0
  %v998 = vadd.f32 %v789, %v997
  %999 = vmatmul.f32.gmra.mxu0 %v300
  %v1000 = vpop.f32.mrf.mxu0
  %v1001 = vadd.f32 %v792, %v1000
  %1002 = vmatmul.f32.gmra.mxu0 %v305
  %v1003 = vpop.f32.mrf.mxu0
  %v1004 = vadd.f32 %v795, %v1003
  %1005 = vmatmul.f32.gmra.mxu0 %v310
  %v1006 = vpop.f32.mrf.mxu0
  %v1007 = vadd.f32 %v798, %v1006
  %1008 = vmatmul.f32.gmra.mxu0 %v315
  %v1009 = vpop.f32.mrf.mxu0
  %v1010 = vadd.f32 %v801, %v1009
  %1011 = vmatmul.f32.gmra.mxu0 %v320
  %v1012 = vpop.f32.mrf.mxu0
  %v1013 = vadd.f32 %v804, %v1012
  %1014 = vmatmul.f32.gmra.mxu0 %v325
  %v1015 = vpop.f32.mrf.mxu0
  %v1016 = vadd.f32 %v807, %v1015
  %1017 = vmatmul.f32.gmra.mxu0 %v330
  %v1018 = vpop.f32.mrf.mxu0
  %v1019 = vadd.f32 %v810, %v1018
  %1020 = vdwg.mxu0
  %1021 = vmatpush.msra.mxu0 %v381
  %1022 = vmatpush.msra.mxu0 %v380
  %1023 = vmatpush.msra.mxu0 %v379
  %1024 = vmatpush.msra.mxu0 %v378
  %1025 = vmatpush.msra.mxu0 %v377
  %1026 = vmatpush.msra.mxu0 %v376
  %1027 = vmatpush.msra.mxu0 %v375
  %1028 = vmatpush.msra.mxu0 %v374
  %1029 = vmatpush.msra.mxu0 %v373
  %1030 = vmatpush.msra.mxu0 %v372
  %1031 = vmatpush.msra.mxu0 %v371
  %1032 = vmatpush.msra.mxu0 %v370
  %1033 = vmatpush.msra.mxu0 %v369
  %1034 = vmatpush.msra.mxu0 %v368
  %1035 = vmatpush.msra.mxu0 %v367
  %1036 = vmatpush.msra.mxu0 %v366
  %1037 = vmatmul.f32.gmra.mxu0 %v16
  %v1038 = vpop.f32.mrf.mxu0
  %v1039 = vadd.f32 %v830, %v1038
  %1040 = vmatmul.f32.gmra.mxu0 %v21
  %v1041 = vpop.f32.mrf.mxu0
  %v1042 = vadd.f32 %v833, %v1041
  %1043 = vmatmul.f32.gmra.mxu0 %v26
  %v1044 = vpop.f32.mrf.mxu0
  %v1045 = vadd.f32 %v836, %v1044
  %1046 = vmatmul.f32.gmra.mxu0 %v31
  %v1047 = vpop.f32.mrf.mxu0
  %v1048 = vadd.f32 %v839, %v1047
  %1049 = vmatmul.f32.gmra.mxu0 %v36
  %v1050 = vpop.f32.mrf.mxu0
  %v1051 = vadd.f32 %v842, %v1050
  %1052 = vmatmul.f32.gmra.mxu0 %v41
  %v1053 = vpop.f32.mrf.mxu0
  %v1054 = vadd.f32 %v845, %v1053
  %1055 = vmatmul.f32.gmra.mxu0 %v46
  %v1056 = vpop.f32.mrf.mxu0
  %v1057 = vadd.f32 %v848, %v1056
  %1058 = vmatmul.f32.gmra.mxu0 %v51
  %v1059 = vpop.f32.mrf.mxu0
  %v1060 = vadd.f32 %v851, %v1059
  %1061 = vmatmul.f32.gmra.mxu0 %v56
  %v1062 = vpop.f32.mrf.mxu0
  %v1063 = vadd.f32 %v854, %v1062
  %1064 = vmatmul.f32.gmra.mxu0 %v61
  %v1065 = vpop.f32.mrf.mxu0
  %v1066 = vadd.f32 %v857, %v1065
  %1067 = vmatmul.f32.gmra.mxu0 %v66
  %v1068 = vpop.f32.mrf.mxu0
  %v1069 = vadd.f32 %v860, %v1068
  %1070 = vmatmul.f32.gmra.mxu0 %v71
  %v1071 = vpop.f32.mrf.mxu0
  %v1072 = vadd.f32 %v863, %v1071
  %1073 = vmatmul.f32.gmra.mxu0 %v76
  %v1074 = vpop.f32.mrf.mxu0
  %v1075 = vadd.f32 %v866, %v1074
  %1076 = vmatmul.f32.gmra.mxu0 %v81
  %v1077 = vpop.f32.mrf.mxu0
  %v1078 = vadd.f32 %v869, %v1077
  %1079 = vmatmul.f32.gmra.mxu0 %v86
  %v1080 = vpop.f32.mrf.mxu0
  %v1081 = vadd.f32 %v872, %v1080
  %1082 = vmatmul.f32.gmra.mxu0 %v91
  %v1083 = vpop.f32.mrf.mxu0
  %v1084 = vadd.f32 %v875, %v1083
  %1085 = vmatmul.f32.gmra.mxu0 %v96
  %v1086 = vpop.f32.mrf.mxu0
  %v1087 = vadd.f32 %v878, %v1086
  %1088 = vmatmul.f32.gmra.mxu0 %v101
  %v1089 = vpop.f32.mrf.mxu0
  %v1090 = vadd.f32 %v881, %v1089
  %1091 = vmatmul.f32.gmra.mxu0 %v106
  %v1092 = vpop.f32.mrf.mxu0
  %v1093 = vadd.f32 %v884, %v1092
  %1094 = vmatmul.f32.gmra.mxu0 %v111
  %v1095 = vpop.f32.mrf.mxu0
  %v1096 = vadd.f32 %v887, %v1095
  %1097 = vmatmul.f32.gmra.mxu0 %v116
  %v1098 = vpop.f32.mrf.mxu0
  %v1099 = vadd.f32 %v890, %v1098
  %1100 = vmatmul.f32.gmra.mxu0 %v121
  %v1101 = vpop.f32.mrf.mxu0
  %v1102 = vadd.f32 %v893, %v1101
  %1103 = vmatmul.f32.gmra.mxu0 %v126
  %v1104 = vpop.f32.mrf.mxu0
  %v1105 = vadd.f32 %v896, %v1104
  %1106 = vmatmul.f32.gmra.mxu0 %v131
  %v1107 = vpop.f32.mrf.mxu0
  %v1108 = vadd.f32 %v899, %v1107
  %1109 = vmatmul.f32.gmra.mxu0 %v136
  %v1110 = vpop.f32.mrf.mxu0
  %v1111 = vadd.f32 %v902, %v1110
  %1112 = vmatmul.f32.gmra.mxu0 %v141
  %v1113 = vpop.f32.mrf.mxu0
  %v1114 = vadd.f32 %v905, %v1113
  %1115 = vmatmul.f32.gmra.mxu0 %v146
  %v1116 = vpop.f32.mrf.mxu0
  %v1117 = vadd.f32 %v908, %v1116
  %1118 = vmatmul.f32.gmra.mxu0 %v151
  %v1119 = vpop.f32.mrf.mxu0
  %v1120 = vadd.f32 %v911, %v1119
  %1121 = vmatmul.f32.gmra.mxu0 %v156
  %v1122 = vpop.f32.mrf.mxu0
  %v1123 = vadd.f32 %v914, %v1122
  %1124 = vmatmul.f32.gmra.mxu0 %v161
  %v1125 = vpop.f32.mrf.mxu0
  %v1126 = vadd.f32 %v917, %v1125
  %1127 = vmatmul.f32.gmra.mxu0 %v166
  %v1128 = vpop.f32.mrf.mxu0
  %v1129 = vadd.f32 %v920, %v1128
  %1130 = vmatmul.f32.gmra.mxu0 %v171
  %v1131 = vpop.f32.mrf.mxu0
  %v1132 = vadd.f32 %v923, %v1131
  %1133 = vmatmul.f32.gmra.mxu0 %v176
  %v1134 = vpop.f32.mrf.mxu0
  %v1135 = vadd.f32 %v926, %v1134
  %1136 = vmatmul.f32.gmra.mxu0 %v181
  %v1137 = vpop.f32.mrf.mxu0
  %v1138 = vadd.f32 %v929, %v1137
  %1139 = vmatmul.f32.gmra.mxu0 %v186
  %v1140 = vpop.f32.mrf.mxu0
  %v1141 = vadd.f32 %v932, %v1140
  %1142 = vmatmul.f32.gmra.mxu0 %v191
  %v1143 = vpop.f32.mrf.mxu0
  %v1144 = vadd.f32 %v935, %v1143
  %1145 = vmatmul.f32.gmra.mxu0 %v196
  %v1146 = vpop.f32.mrf.mxu0
  %v1147 = vadd.f32 %v938, %v1146
  %1148 = vmatmul.f32.gmra.mxu0 %v201
  %v1149 = vpop.f32.mrf.mxu0
  %v1150 = vadd.f32 %v941, %v1149
  %1151 = vmatmul.f32.gmra.mxu0 %v206
  %v1152 = vpop.f32.mrf.mxu0
  %v1153 = vadd.f32 %v944, %v1152
  %1154 = vmatmul.f32.gmra.mxu0 %v211
  %v1155 = vpop.f32.mrf.mxu0
  %v1156 = vadd.f32 %v947, %v1155
  %1157 = vmatmul.f32.gmra.mxu0 %v216
  %v1158 = vpop.f32.mrf.mxu0
  %v1159 = vadd.f32 %v950, %v1158
  %1160 = vmatmul.f32.gmra.mxu0 %v221
  %v1161 = vpop.f32.mrf.mxu0
  %v1162 = vadd.f32 %v953, %v1161
  %1163 = vmatmul.f32.gmra.mxu0 %v226
  %v1164 = vpop.f32.mrf.mxu0
  %v1165 = vadd.f32 %v956, %v1164
  %1166 = vmatmul.f32.gmra.mxu0 %v231
  %v1167 = vpop.f32.mrf.mxu0
  %v1168 = vadd.f32 %v959, %v1167
  %1169 = vmatmul.f32.gmra.mxu0 %v236
  %v1170 = vpop.f32.mrf.mxu0
  %v1171 = vadd.f32 %v962, %v1170
  %1172 = vmatmul.f32.gmra.mxu0 %v241
  %v1173 = vpop.f32.mrf.mxu0
  %v1174 = vadd.f32 %v965, %v1173
  %1175 = vmatmul.f32.gmra.mxu0 %v246
  %v1176 = vpop.f32.mrf.mxu0
  %v1177 = vadd.f32 %v968, %v1176
  %1178 = vmatmul.f32.gmra.mxu0 %v251
  %v1179 = vpop.f32.mrf.mxu0
  %v1180 = vadd.f32 %v971, %v1179
  %1181 = vmatmul.f32.gmra.mxu0 %v256
  %v1182 = vpop.f32.mrf.mxu0
  %v1183 = vadd.f32 %v974, %v1182
  %1184 = vmatmul.f32.gmra.mxu0 %v261
  %v1185 = vpop.f32.mrf.mxu0
  %v1186 = vadd.f32 %v977, %v1185
  %1187 = vmatmul.f32.gmra.mxu0 %v266
  %v1188 = vpop.f32.mrf.mxu0
  %v1189 = vadd.f32 %v980, %v1188
  %1190 = vmatmul.f32.gmra.mxu0 %v271
  %v1191 = vpop.f32.mrf.mxu0
  %v1192 = vadd.f32 %v983, %v1191
  %1193 = vmatmul.f32.gmra.mxu0 %v276
  %v1194 = vpop.f32.mrf.mxu0
  %v1195 = vadd.f32 %v986, %v1194
  %1196 = vmatmul.f32.gmra.mxu0 %v281
  %v1197 = vpop.f32.mrf.mxu0
  %v1198 = vadd.f32 %v989, %v1197
  %1199 = vmatmul.f32.gmra.mxu0 %v286
  %v1200 = vpop.f32.mrf.mxu0
  %v1201 = vadd.f32 %v992, %v1200
  %1202 = vmatmul.f32.gmra.mxu0 %v291
  %v1203 = vpop.f32.mrf.mxu0
  %v1204 = vadd.f32 %v995, %v1203
  %1205 = vmatmul.f32.gmra.mxu0 %v296
  %v1206 = vpop.f32.mrf.mxu0
  %v1207 = vadd.f32 %v998, %v1206
  %1208 = vmatmul.f32.gmra.mxu0 %v301
  %v1209 = vpop.f32.mrf.mxu0
  %v1210 = vadd.f32 %v1001, %v1209
  %1211 = vmatmul.f32.gmra.mxu0 %v306
  %v1212 = vpop.f32.mrf.mxu0
  %v1213 = vadd.f32 %v1004, %v1212
  %1214 = vmatmul.f32.gmra.mxu0 %v311
  %v1215 = vpop.f32.mrf.mxu0
  %v1216 = vadd.f32 %v1007, %v1215
  %1217 = vmatmul.f32.gmra.mxu0 %v316
  %v1218 = vpop.f32.mrf.mxu0
  %v1219 = vadd.f32 %v1010, %v1218
  %1220 = vmatmul.f32.gmra.mxu0 %v321
  %v1221 = vpop.f32.mrf.mxu0
  %v1222 = vadd.f32 %v1013, %v1221
  %1223 = vmatmul.f32.gmra.mxu0 %v326
  %v1224 = vpop.f32.mrf.mxu0
  %v1225 = vadd.f32 %v1016, %v1224
  %1226 = vmatmul.f32.gmra.mxu0 %v331
  %v1227 = vpop.f32.mrf.mxu0
  %v1228 = vadd.f32 %v1019, %v1227
  %1229 = vdwg.mxu0
  %1230 = vmatpush.msra.mxu0 %v397
  %1231 = vmatpush.msra.mxu0 %v396
  %1232 = vmatpush.msra.mxu0 %v395
  %1233 = vmatpush.msra.mxu0 %v394
  %1234 = vmatpush.msra.mxu0 %v393
  %1235 = vmatpush.msra.mxu0 %v392
  %1236 = vmatpush.msra.mxu0 %v391
  %1237 = vmatpush.msra.mxu0 %v390
  %1238 = vmatpush.msra.mxu0 %v389
  %1239 = vmatpush.msra.mxu0 %v388
  %1240 = vmatpush.msra.mxu0 %v387
  %1241 = vmatpush.msra.mxu0 %v386
  %1242 = vmatpush.msra.mxu0 %v385
  %1243 = vmatpush.msra.mxu0 %v384
  %1244 = vmatpush.msra.mxu0 %v383
  %1245 = vmatpush.msra.mxu0 %v382
  %1246 = vmatmul.f32.gmra.mxu0 %v17
  %v1247 = vpop.f32.mrf.mxu0
  %v1248 = vadd.f32 %v1039, %v1247
  %1249 = vmatmul.f32.gmra.mxu0 %v22
  %v1250 = vpop.f32.mrf.mxu0
  %v1251 = vadd.f32 %v1042, %v1250
  %1252 = vmatmul.f32.gmra.mxu0 %v27
  %v1253 = vpop.f32.mrf.mxu0
  %v1254 = vadd.f32 %v1045, %v1253
  %1255 = vmatmul.f32.gmra.mxu0 %v32
  %v1256 = vpop.f32.mrf.mxu0
  %v1257 = vadd.f32 %v1048, %v1256
  %1258 = vmatmul.f32.gmra.mxu0 %v37
  %v1259 = vpop.f32.mrf.mxu0
  %v1260 = vadd.f32 %v1051, %v1259
  %1261 = vmatmul.f32.gmra.mxu0 %v42
  %v1262 = vpop.f32.mrf.mxu0
  %v1263 = vadd.f32 %v1054, %v1262
  %1264 = vmatmul.f32.gmra.mxu0 %v47
  %v1265 = vpop.f32.mrf.mxu0
  %v1266 = vadd.f32 %v1057, %v1265
  %1267 = vmatmul.f32.gmra.mxu0 %v52
  %v1268 = vpop.f32.mrf.mxu0
  %v1269 = vadd.f32 %v1060, %v1268
  %1270 = vmatmul.f32.gmra.mxu0 %v57
  %v1271 = vpop.f32.mrf.mxu0
  %v1272 = vadd.f32 %v1063, %v1271
  %1273 = vmatmul.f32.gmra.mxu0 %v62
  %v1274 = vpop.f32.mrf.mxu0
  %v1275 = vadd.f32 %v1066, %v1274
  %1276 = vmatmul.f32.gmra.mxu0 %v67
  %v1277 = vpop.f32.mrf.mxu0
  %v1278 = vadd.f32 %v1069, %v1277
  %1279 = vmatmul.f32.gmra.mxu0 %v72
  %v1280 = vpop.f32.mrf.mxu0
  %v1281 = vadd.f32 %v1072, %v1280
  %1282 = vmatmul.f32.gmra.mxu0 %v77
  %v1283 = vpop.f32.mrf.mxu0
  %v1284 = vadd.f32 %v1075, %v1283
  %1285 = vmatmul.f32.gmra.mxu0 %v82
  %v1286 = vpop.f32.mrf.mxu0
  %v1287 = vadd.f32 %v1078, %v1286
  %1288 = vmatmul.f32.gmra.mxu0 %v87
  %v1289 = vpop.f32.mrf.mxu0
  %v1290 = vadd.f32 %v1081, %v1289
  %1291 = vmatmul.f32.gmra.mxu0 %v92
  %v1292 = vpop.f32.mrf.mxu0
  %v1293 = vadd.f32 %v1084, %v1292
  %1294 = vmatmul.f32.gmra.mxu0 %v97
  %v1295 = vpop.f32.mrf.mxu0
  %v1296 = vadd.f32 %v1087, %v1295
  %1297 = vmatmul.f32.gmra.mxu0 %v102
  %v1298 = vpop.f32.mrf.mxu0
  %v1299 = vadd.f32 %v1090, %v1298
  %1300 = vmatmul.f32.gmra.mxu0 %v107
  %v1301 = vpop.f32.mrf.mxu0
  %v1302 = vadd.f32 %v1093, %v1301
  %1303 = vmatmul.f32.gmra.mxu0 %v112
  %v1304 = vpop.f32.mrf.mxu0
  %v1305 = vadd.f32 %v1096, %v1304
  %1306 = vmatmul.f32.gmra.mxu0 %v117
  %v1307 = vpop.f32.mrf.mxu0
  %v1308 = vadd.f32 %v1099, %v1307
  %1309 = vmatmul.f32.gmra.mxu0 %v122
  %v1310 = vpop.f32.mrf.mxu0
  %v1311 = vadd.f32 %v1102, %v1310
  %1312 = vmatmul.f32.gmra.mxu0 %v127
  %v1313 = vpop.f32.mrf.mxu0
  %v1314 = vadd.f32 %v1105, %v1313
  %1315 = vmatmul.f32.gmra.mxu0 %v132
  %v1316 = vpop.f32.mrf.mxu0
  %v1317 = vadd.f32 %v1108, %v1316
  %1318 = vmatmul.f32.gmra.mxu0 %v137
  %v1319 = vpop.f32.mrf.mxu0
  %v1320 = vadd.f32 %v1111, %v1319
  %1321 = vmatmul.f32.gmra.mxu0 %v142
  %v1322 = vpop.f32.mrf.mxu0
  %v1323 = vadd.f32 %v1114, %v1322
  %1324 = vmatmul.f32.gmra.mxu0 %v147
  %v1325 = vpop.f32.mrf.mxu0
  %v1326 = vadd.f32 %v1117, %v1325
  %1327 = vmatmul.f32.gmra.mxu0 %v152
  %v1328 = vpop.f32.mrf.mxu0
  %v1329 = vadd.f32 %v1120, %v1328
  %1330 = vmatmul.f32.gmra.mxu0 %v157
  %v1331 = vpop.f32.mrf.mxu0
  %v1332 = vadd.f32 %v1123, %v1331
  %1333 = vmatmul.f32.gmra.mxu0 %v162
  %v1334 = vpop.f32.mrf.mxu0
  %v1335 = vadd.f32 %v1126, %v1334
  %1336 = vmatmul.f32.gmra.mxu0 %v167
  %v1337 = vpop.f32.mrf.mxu0
  %v1338 = vadd.f32 %v1129, %v1337
  %1339 = vmatmul.f32.gmra.mxu0 %v172
  %v1340 = vpop.f32.mrf.mxu0
  %v1341 = vadd.f32 %v1132, %v1340
  %1342 = vmatmul.f32.gmra.mxu0 %v177
  %v1343 = vpop.f32.mrf.mxu0
  %v1344 = vadd.f32 %v1135, %v1343
  %1345 = vmatmul.f32.gmra.mxu0 %v182
  %v1346 = vpop.f32.mrf.mxu0
  %v1347 = vadd.f32 %v1138, %v1346
  %1348 = vmatmul.f32.gmra.mxu0 %v187
  %v1349 = vpop.f32.mrf.mxu0
  %v1350 = vadd.f32 %v1141, %v1349
  %1351 = vmatmul.f32.gmra.mxu0 %v192
  %v1352 = vpop.f32.mrf.mxu0
  %v1353 = vadd.f32 %v1144, %v1352
  %1354 = vmatmul.f32.gmra.mxu0 %v197
  %v1355 = vpop.f32.mrf.mxu0
  %v1356 = vadd.f32 %v1147, %v1355
  %1357 = vmatmul.f32.gmra.mxu0 %v202
  %v1358 = vpop.f32.mrf.mxu0
  %v1359 = vadd.f32 %v1150, %v1358
  %1360 = vmatmul.f32.gmra.mxu0 %v207
  %v1361 = vpop.f32.mrf.mxu0
  %v1362 = vadd.f32 %v1153, %v1361
  %1363 = vmatmul.f32.gmra.mxu0 %v212
  %v1364 = vpop.f32.mrf.mxu0
  %v1365 = vadd.f32 %v1156, %v1364
  %1366 = vmatmul.f32.gmra.mxu0 %v217
  %v1367 = vpop.f32.mrf.mxu0
  %v1368 = vadd.f32 %v1159, %v1367
  %1369 = vmatmul.f32.gmra.mxu0 %v222
  %v1370 = vpop.f32.mrf.mxu0
  %v1371 = vadd.f32 %v1162, %v1370
  %1372 = vmatmul.f32.gmra.mxu0 %v227
  %v1373 = vpop.f32.mrf.mxu0
  %v1374 = vadd.f32 %v1165, %v1373
  %1375 = vmatmul.f32.gmra.mxu0 %v232
  %v1376 = vpop.f32.mrf.mxu0
  %v1377 = vadd.f32 %v1168, %v1376
  %1378 = vmatmul.f32.gmra.mxu0 %v237
  %v1379 = vpop.f32.mrf.mxu0
  %v1380 = vadd.f32 %v1171, %v1379
  %1381 = vmatmul.f32.gmra.mxu0 %v242
  %v1382 = vpop.f32.mrf.mxu0
  %v1383 = vadd.f32 %v1174, %v1382
  %1384 = vmatmul.f32.gmra.mxu0 %v247
  %v1385 = vpop.f32.mrf.mxu0
  %v1386 = vadd.f32 %v1177, %v1385
  %1387 = vmatmul.f32.gmra.mxu0 %v252
  %v1388 = vpop.f32.mrf.mxu0
  %v1389 = vadd.f32 %v1180, %v1388
  %1390 = vmatmul.f32.gmra.mxu0 %v257
  %v1391 = vpop.f32.mrf.mxu0
  %v1392 = vadd.f32 %v1183, %v1391
  %1393 = vmatmul.f32.gmra.mxu0 %v262
  %v1394 = vpop.f32.mrf.mxu0
  %v1395 = vadd.f32 %v1186, %v1394
  %1396 = vmatmul.f32.gmra.mxu0 %v267
  %v1397 = vpop.f32.mrf.mxu0
  %v1398 = vadd.f32 %v1189, %v1397
  %1399 = vmatmul.f32.gmra.mxu0 %v272
  %v1400 = vpop.f32.mrf.mxu0
  %v1401 = vadd.f32 %v1192, %v1400
  %1402 = vmatmul.f32.gmra.mxu0 %v277
  %v1403 = vpop.f32.mrf.mxu0
  %v1404 = vadd.f32 %v1195, %v1403
  %1405 = vmatmul.f32.gmra.mxu0 %v282
  %v1406 = vpop.f32.mrf.mxu0
  %v1407 = vadd.f32 %v1198, %v1406
  %1408 = vmatmul.f32.gmra.mxu0 %v287
  %v1409 = vpop.f32.mrf.mxu0
  %v1410 = vadd.f32 %v1201, %v1409
  %1411 = vmatmul.f32.gmra.mxu0 %v292
  %v1412 = vpop.f32.mrf.mxu0
  %v1413 = vadd.f32 %v1204, %v1412
  %1414 = vmatmul.f32.gmra.mxu0 %v297
  %v1415 = vpop.f32.mrf.mxu0
  %v1416 = vadd.f32 %v1207, %v1415
  %1417 = vmatmul.f32.gmra.mxu0 %v302
  %v1418 = vpop.f32.mrf.mxu0
  %v1419 = vadd.f32 %v1210, %v1418
  %1420 = vmatmul.f32.gmra.mxu0 %v307
  %v1421 = vpop.f32.mrf.mxu0
  %v1422 = vadd.f32 %v1213, %v1421
  %1423 = vmatmul.f32.gmra.mxu0 %v312
  %v1424 = vpop.f32.mrf.mxu0
  %v1425 = vadd.f32 %v1216, %v1424
  %1426 = vmatmul.f32.gmra.mxu0 %v317
  %v1427 = vpop.f32.mrf.mxu0
  %v1428 = vadd.f32 %v1219, %v1427
  %1429 = vmatmul.f32.gmra.mxu0 %v322
  %v1430 = vpop.f32.mrf.mxu0
  %v1431 = vadd.f32 %v1222, %v1430
  %1432 = vmatmul.f32.gmra.mxu0 %v327
  %v1433 = vpop.f32.mrf.mxu0
  %v1434 = vadd.f32 %v1225, %v1433
  %1435 = vmatmul.f32.gmra.mxu0 %v332
  %v1436 = vpop.f32.mrf.mxu0
  %v1437 = vadd.f32 %v1228, %v1436
  %1438 = vdwg.mxu0
  %1439 = vmatpush.msra.mxu0 0.0
  %1440 = vmatpush.msra.mxu0 0.0
  %1441 = vmatpush.msra.mxu0 0.0
  %1442 = vmatpush.msra.mxu0 0.0
  %1443 = vmatpush.msra.mxu0 0.0
  %1444 = vmatpush.msra.mxu0 0.0
  %1445 = vmatpush.msra.mxu0 0.0
  %1446 = vmatpush.msra.mxu0 0.0
  %1447 = vmatpush.msra.mxu0 %v405
  %1448 = vmatpush.msra.mxu0 %v404
  %1449 = vmatpush.msra.mxu0 %v403
  %1450 = vmatpush.msra.mxu0 %v402
  %1451 = vmatpush.msra.mxu0 %v401
  %1452 = vmatpush.msra.mxu0 %v400
  %1453 = vmatpush.msra.mxu0 %v399
  %1454 = vmatpush.msra.mxu0 %v398
  %1455 = vmatmul.f32.gmra.mxu0 %v412
  %v1456 = vpop.f32.mrf.mxu0
  %v1457 = vadd.f32 %v1248, %v1456
  %1458 = vmatmul.f32.gmra.mxu0 %v415
  %v1459 = vpop.f32.mrf.mxu0
  %v1460 = vadd.f32 %v1251, %v1459
  %1461 = vmatmul.f32.gmra.mxu0 %v418
  %v1462 = vpop.f32.mrf.mxu0
  %v1463 = vadd.f32 %v1254, %v1462
  %1464 = vmatmul.f32.gmra.mxu0 %v421
  %v1465 = vpop.f32.mrf.mxu0
  %v1466 = vadd.f32 %v1257, %v1465
  %1467 = vmatmul.f32.gmra.mxu0 %v424
  %v1468 = vpop.f32.mrf.mxu0
  %v1469 = vadd.f32 %v1260, %v1468
  %1470 = vmatmul.f32.gmra.mxu0 %v427
  %v1471 = vpop.f32.mrf.mxu0
  %v1472 = vadd.f32 %v1263, %v1471
  %1473 = vmatmul.f32.gmra.mxu0 %v430
  %v1474 = vpop.f32.mrf.mxu0
  %v1475 = vadd.f32 %v1266, %v1474
  %1476 = vmatmul.f32.gmra.mxu0 %v433
  %v1477 = vpop.f32.mrf.mxu0
  %v1478 = vadd.f32 %v1269, %v1477
  %1479 = vmatmul.f32.gmra.mxu0 %v436
  %v1480 = vpop.f32.mrf.mxu0
  %v1481 = vadd.f32 %v1272, %v1480
  %1482 = vmatmul.f32.gmra.mxu0 %v439
  %v1483 = vpop.f32.mrf.mxu0
  %v1484 = vadd.f32 %v1275, %v1483
  %1485 = vmatmul.f32.gmra.mxu0 %v442
  %v1486 = vpop.f32.mrf.mxu0
  %v1487 = vadd.f32 %v1278, %v1486
  %1488 = vmatmul.f32.gmra.mxu0 %v445
  %v1489 = vpop.f32.mrf.mxu0
  %v1490 = vadd.f32 %v1281, %v1489
  %1491 = vmatmul.f32.gmra.mxu0 %v448
  %v1492 = vpop.f32.mrf.mxu0
  %v1493 = vadd.f32 %v1284, %v1492
  %1494 = vmatmul.f32.gmra.mxu0 %v451
  %v1495 = vpop.f32.mrf.mxu0
  %v1496 = vadd.f32 %v1287, %v1495
  %1497 = vmatmul.f32.gmra.mxu0 %v454
  %v1498 = vpop.f32.mrf.mxu0
  %v1499 = vadd.f32 %v1290, %v1498
  %1500 = vmatmul.f32.gmra.mxu0 %v457
  %v1501 = vpop.f32.mrf.mxu0
  %v1502 = vadd.f32 %v1293, %v1501
  %1503 = vmatmul.f32.gmra.mxu0 %v460
  %v1504 = vpop.f32.mrf.mxu0
  %v1505 = vadd.f32 %v1296, %v1504
  %1506 = vmatmul.f32.gmra.mxu0 %v463
  %v1507 = vpop.f32.mrf.mxu0
  %v1508 = vadd.f32 %v1299, %v1507
  %1509 = vmatmul.f32.gmra.mxu0 %v466
  %v1510 = vpop.f32.mrf.mxu0
  %v1511 = vadd.f32 %v1302, %v1510
  %1512 = vmatmul.f32.gmra.mxu0 %v469
  %v1513 = vpop.f32.mrf.mxu0
  %v1514 = vadd.f32 %v1305, %v1513
  %1515 = vmatmul.f32.gmra.mxu0 %v472
  %v1516 = vpop.f32.mrf.mxu0
  %v1517 = vadd.f32 %v1308, %v1516
  %1518 = vmatmul.f32.gmra.mxu0 %v475
  %v1519 = vpop.f32.mrf.mxu0
  %v1520 = vadd.f32 %v1311, %v1519
  %1521 = vmatmul.f32.gmra.mxu0 %v478
  %v1522 = vpop.f32.mrf.mxu0
  %v1523 = vadd.f32 %v1314, %v1522
  %1524 = vmatmul.f32.gmra.mxu0 %v481
  %v1525 = vpop.f32.mrf.mxu0
  %v1526 = vadd.f32 %v1317, %v1525
  %1527 = vmatmul.f32.gmra.mxu0 %v484
  %v1528 = vpop.f32.mrf.mxu0
  %v1529 = vadd.f32 %v1320, %v1528
  %1530 = vmatmul.f32.gmra.mxu0 %v487
  %v1531 = vpop.f32.mrf.mxu0
  %v1532 = vadd.f32 %v1323, %v1531
  %1533 = vmatmul.f32.gmra.mxu0 %v490
  %v1534 = vpop.f32.mrf.mxu0
  %v1535 = vadd.f32 %v1326, %v1534
  %1536 = vmatmul.f32.gmra.mxu0 %v493
  %v1537 = vpop.f32.mrf.mxu0
  %v1538 = vadd.f32 %v1329, %v1537
  %1539 = vmatmul.f32.gmra.mxu0 %v496
  %v1540 = vpop.f32.mrf.mxu0
  %v1541 = vadd.f32 %v1332, %v1540
  %1542 = vmatmul.f32.gmra.mxu0 %v499
  %v1543 = vpop.f32.mrf.mxu0
  %v1544 = vadd.f32 %v1335, %v1543
  %1545 = vmatmul.f32.gmra.mxu0 %v502
  %v1546 = vpop.f32.mrf.mxu0
  %v1547 = vadd.f32 %v1338, %v1546
  %1548 = vmatmul.f32.gmra.mxu0 %v505
  %v1549 = vpop.f32.mrf.mxu0
  %v1550 = vadd.f32 %v1341, %v1549
  %1551 = vmatmul.f32.gmra.mxu0 %v508
  %v1552 = vpop.f32.mrf.mxu0
  %v1553 = vadd.f32 %v1344, %v1552
  %1554 = vmatmul.f32.gmra.mxu0 %v511
  %v1555 = vpop.f32.mrf.mxu0
  %v1556 = vadd.f32 %v1347, %v1555
  %1557 = vmatmul.f32.gmra.mxu0 %v514
  %v1558 = vpop.f32.mrf.mxu0
  %v1559 = vadd.f32 %v1350, %v1558
  %1560 = vmatmul.f32.gmra.mxu0 %v517
  %v1561 = vpop.f32.mrf.mxu0
  %v1562 = vadd.f32 %v1353, %v1561
  %1563 = vmatmul.f32.gmra.mxu0 %v520
  %v1564 = vpop.f32.mrf.mxu0
  %v1565 = vadd.f32 %v1356, %v1564
  %1566 = vmatmul.f32.gmra.mxu0 %v523
  %v1567 = vpop.f32.mrf.mxu0
  %v1568 = vadd.f32 %v1359, %v1567
  %1569 = vmatmul.f32.gmra.mxu0 %v526
  %v1570 = vpop.f32.mrf.mxu0
  %v1571 = vadd.f32 %v1362, %v1570
  %1572 = vmatmul.f32.gmra.mxu0 %v529
  %v1573 = vpop.f32.mrf.mxu0
  %v1574 = vadd.f32 %v1365, %v1573
  %1575 = vmatmul.f32.gmra.mxu0 %v532
  %v1576 = vpop.f32.mrf.mxu0
  %v1577 = vadd.f32 %v1368, %v1576
  %1578 = vmatmul.f32.gmra.mxu0 %v535
  %v1579 = vpop.f32.mrf.mxu0
  %v1580 = vadd.f32 %v1371, %v1579
  %1581 = vmatmul.f32.gmra.mxu0 %v538
  %v1582 = vpop.f32.mrf.mxu0
  %v1583 = vadd.f32 %v1374, %v1582
  %1584 = vmatmul.f32.gmra.mxu0 %v541
  %v1585 = vpop.f32.mrf.mxu0
  %v1586 = vadd.f32 %v1377, %v1585
  %1587 = vmatmul.f32.gmra.mxu0 %v544
  %v1588 = vpop.f32.mrf.mxu0
  %v1589 = vadd.f32 %v1380, %v1588
  %1590 = vmatmul.f32.gmra.mxu0 %v547
  %v1591 = vpop.f32.mrf.mxu0
  %v1592 = vadd.f32 %v1383, %v1591
  %1593 = vmatmul.f32.gmra.mxu0 %v550
  %v1594 = vpop.f32.mrf.mxu0
  %v1595 = vadd.f32 %v1386, %v1594
  %1596 = vmatmul.f32.gmra.mxu0 %v553
  %v1597 = vpop.f32.mrf.mxu0
  %v1598 = vadd.f32 %v1389, %v1597
  %1599 = vmatmul.f32.gmra.mxu0 %v556
  %v1600 = vpop.f32.mrf.mxu0
  %v1601 = vadd.f32 %v1392, %v1600
  %1602 = vmatmul.f32.gmra.mxu0 %v559
  %v1603 = vpop.f32.mrf.mxu0
  %v1604 = vadd.f32 %v1395, %v1603
  %1605 = vmatmul.f32.gmra.mxu0 %v562
  %v1606 = vpop.f32.mrf.mxu0
  %v1607 = vadd.f32 %v1398, %v1606
  %1608 = vmatmul.f32.gmra.mxu0 %v565
  %v1609 = vpop.f32.mrf.mxu0
  %v1610 = vadd.f32 %v1401, %v1609
  %1611 = vmatmul.f32.gmra.mxu0 %v568
  %v1612 = vpop.f32.mrf.mxu0
  %v1613 = vadd.f32 %v1404, %v1612
  %1614 = vmatmul.f32.gmra.mxu0 %v571
  %v1615 = vpop.f32.mrf.mxu0
  %v1616 = vadd.f32 %v1407, %v1615
  %1617 = vmatmul.f32.gmra.mxu0 %v574
  %v1618 = vpop.f32.mrf.mxu0
  %v1619 = vadd.f32 %v1410, %v1618
  %1620 = vmatmul.f32.gmra.mxu0 %v577
  %v1621 = vpop.f32.mrf.mxu0
  %v1622 = vadd.f32 %v1413, %v1621
  %1623 = vmatmul.f32.gmra.mxu0 %v580
  %v1624 = vpop.f32.mrf.mxu0
  %v1625 = vadd.f32 %v1416, %v1624
  %1626 = vmatmul.f32.gmra.mxu0 %v583
  %v1627 = vpop.f32.mrf.mxu0
  %v1628 = vadd.f32 %v1419, %v1627
  %1629 = vmatmul.f32.gmra.mxu0 %v586
  %v1630 = vpop.f32.mrf.mxu0
  %v1631 = vadd.f32 %v1422, %v1630
  %1632 = vmatmul.f32.gmra.mxu0 %v589
  %v1633 = vpop.f32.mrf.mxu0
  %v1634 = vadd.f32 %v1425, %v1633
  %1635 = vmatmul.f32.gmra.mxu0 %v592
  %v1636 = vpop.f32.mrf.mxu0
  %v1637 = vadd.f32 %v1428, %v1636
  %1638 = vmatmul.f32.gmra.mxu0 %v595
  %v1639 = vpop.f32.mrf.mxu0
  %v1640 = vadd.f32 %v1431, %v1639
  %1641 = vmatmul.f32.gmra.mxu0 %v598
  %v1642 = vpop.f32.mrf.mxu0
  %v1643 = vadd.f32 %v1434, %v1642
  %1644 = vmatmul.f32.gmra.mxu0 %v601
  %v1645 = vpop.f32.mrf.mxu0
  %v1646 = vadd.f32 %v1437, %v1645
  %1647 = vdwg.mxu0
  %v1648 = vmax.f32 %v1457, 0.0
  %v1649 = vmax.f32 %v1460, 0.0
  %v1650 = vmax.f32 %v1463, 0.0
  %v1651 = vmax.f32 %v1466, 0.0
  %v1652 = vmax.f32 %v1469, 0.0
  %v1653 = vmax.f32 %v1472, 0.0
  %v1654 = vmax.f32 %v1475, 0.0
  %v1655 = vmax.f32 %v1478, 0.0
  %v1656 = vmax.f32 %v1481, 0.0
  %v1657 = vmax.f32 %v1484, 0.0
  %v1658 = vmax.f32 %v1487, 0.0
  %v1659 = vmax.f32 %v1490, 0.0
  %v1660 = vmax.f32 %v1493, 0.0
  %v1661 = vmax.f32 %v1496, 0.0
  %v1662 = vmax.f32 %v1499, 0.0
  %v1663 = vmax.f32 %v1502, 0.0
  %v1664 = vmax.f32 %v1505, 0.0
  %v1665 = vmax.f32 %v1508, 0.0
  %v1666 = vmax.f32 %v1511, 0.0
  %v1667 = vmax.f32 %v1514, 0.0
  %v1668 = vmax.f32 %v1517, 0.0
  %v1669 = vmax.f32 %v1520, 0.0
  %v1670 = vmax.f32 %v1523, 0.0
  %v1671 = vmax.f32 %v1526, 0.0
  %v1672 = vmax.f32 %v1529, 0.0
  %v1673 = vmax.f32 %v1532, 0.0
  %v1674 = vmax.f32 %v1535, 0.0
  %v1675 = vmax.f32 %v1538, 0.0
  %v1676 = vmax.f32 %v1541, 0.0
  %v1677 = vmax.f32 %v1544, 0.0
  %v1678 = vmax.f32 %v1547, 0.0
  %v1679 = vmax.f32 %v1550, 0.0
  %v1680 = vmax.f32 %v1553, 0.0
  %v1681 = vmax.f32 %v1556, 0.0
  %v1682 = vmax.f32 %v1559, 0.0
  %v1683 = vmax.f32 %v1562, 0.0
  %v1684 = vmax.f32 %v1565, 0.0
  %v1685 = vmax.f32 %v1568, 0.0
  %v1686 = vmax.f32 %v1571, 0.0
  %v1687 = vmax.f32 %v1574, 0.0
  %v1688 = vmax.f32 %v1577, 0.0
  %v1689 = vmax.f32 %v1580, 0.0
  %v1690 = vmax.f32 %v1583, 0.0
  %v1691 = vmax.f32 %v1586, 0.0
  %v1692 = vmax.f32 %v1589, 0.0
  %v1693 = vmax.f32 %v1592, 0.0
  %v1694 = vmax.f32 %v1595, 0.0
  %v1695 = vmax.f32 %v1598, 0.0
  %v1696 = vmax.f32 %v1601, 0.0
  %v1697 = vmax.f32 %v1604, 0.0
  %v1698 = vmax.f32 %v1607, 0.0
  %v1699 = vmax.f32 %v1610, 0.0
  %v1700 = vmax.f32 %v1613, 0.0
  %v1701 = vmax.f32 %v1616, 0.0
  %v1702 = vmax.f32 %v1619, 0.0
  %v1703 = vmax.f32 %v1622, 0.0
  %v1704 = vmax.f32 %v1625, 0.0
  %v1705 = vmax.f32 %v1628, 0.0
  %v1706 = vmax.f32 %v1631, 0.0
  %v1707 = vmax.f32 %v1634, 0.0
  %v1708 = vmax.f32 %v1637, 0.0
  %v1709 = vmax.f32 %v1640, 0.0
  %v1710 = vmax.f32 %v1643, 0.0
  %v1711 = vmax.f32 %v1646, 0.0
  %1712 = vst.msk [vmem:[%s3] sm:$0xff] %vm410, %v1648
  %1713 = vst.msk [vmem:[%s3 + $0x8] sm:$0xff] %vm410, %v1649
  %1714 = vst.msk [vmem:[%s3 + $0x10] sm:$0xff] %vm410, %v1650
  %1715 = vst.msk [vmem:[%s3 + $0x18] sm:$0xff] %vm410, %v1651
  %1716 = vst.msk [vmem:[%s3 + $0x20] sm:$0xff] %vm410, %v1652
  %1717 = vst.msk [vmem:[%s3 + $0x28] sm:$0xff] %vm410, %v1653
  %1718 = vst.msk [vmem:[%s3 + $0x30] sm:$0xff] %vm410, %v1654
  %1719 = vst.msk [vmem:[%s3 + $0x38] sm:$0xff] %vm410, %v1655
  %1720 = vst.msk [vmem:[%s3 + $0x40] sm:$0xff] %vm410, %v1656
  %1721 = vst.msk [vmem:[%s3 + $0x48] sm:$0xff] %vm410, %v1657
  %1722 = vst.msk [vmem:[%s3 + $0x50] sm:$0xff] %vm410, %v1658
  %1723 = vst.msk [vmem:[%s3 + $0x58] sm:$0xff] %vm410, %v1659
  %1724 = vst.msk [vmem:[%s3 + $0x60] sm:$0xff] %vm410, %v1660
  %1725 = vst.msk [vmem:[%s3 + $0x68] sm:$0xff] %vm410, %v1661
  %1726 = vst.msk [vmem:[%s3 + $0x70] sm:$0xff] %vm410, %v1662
  %1727 = vst.msk [vmem:[%s3 + $0x78] sm:$0xff] %vm410, %v1663
  %1728 = vst.msk [vmem:[%s3 + $0x80] sm:$0xff] %vm410, %v1664
  %1729 = vst.msk [vmem:[%s3 + $0x88] sm:$0xff] %vm410, %v1665
  %1730 = vst.msk [vmem:[%s3 + $0x90] sm:$0xff] %vm410, %v1666
  %1731 = vst.msk [vmem:[%s3 + $0x98] sm:$0xff] %vm410, %v1667
  %1732 = vst.msk [vmem:[%s3 + $0xa0] sm:$0xff] %vm410, %v1668
  %1733 = vst.msk [vmem:[%s3 + $0xa8] sm:$0xff] %vm410, %v1669
  %1734 = vst.msk [vmem:[%s3 + $0xb0] sm:$0xff] %vm410, %v1670
  %1735 = vst.msk [vmem:[%s3 + $0xb8] sm:$0xff] %vm410, %v1671
  %1736 = vst.msk [vmem:[%s3 + $0xc0] sm:$0xff] %vm410, %v1672
  %1737 = vst.msk [vmem:[%s3 + $0xc8] sm:$0xff] %vm410, %v1673
  %1738 = vst.msk [vmem:[%s3 + $0xd0] sm:$0xff] %vm410, %v1674
  %1739 = vst.msk [vmem:[%s3 + $0xd8] sm:$0xff] %vm410, %v1675
  %1740 = vst.msk [vmem:[%s3 + $0xe0] sm:$0xff] %vm410, %v1676
  %1741 = vst.msk [vmem:[%s3 + $0xe8] sm:$0xff] %vm410, %v1677
  %1742 = vst.msk [vmem:[%s3 + $0xf0] sm:$0xff] %vm410, %v1678
  %1743 = vst.msk [vmem:[%s3 + $0xf8] sm:$0xff] %vm410, %v1679
  %1744 = vst.msk [vmem:[%s3 + $0x100] sm:$0xff] %vm410, %v1680
  %1745 = vst.msk [vmem:[%s3 + $0x108] sm:$0xff] %vm410, %v1681
  %1746 = vst.msk [vmem:[%s3 + $0x110] sm:$0xff] %vm410, %v1682
  %1747 = vst.msk [vmem:[%s3 + $0x118] sm:$0xff] %vm410, %v1683
  %1748 = vst.msk [vmem:[%s3 + $0x120] sm:$0xff] %vm410, %v1684
  %1749 = vst.msk [vmem:[%s3 + $0x128] sm:$0xff] %vm410, %v1685
  %1750 = vst.msk [vmem:[%s3 + $0x130] sm:$0xff] %vm410, %v1686
  %1751 = vst.msk [vmem:[%s3 + $0x138] sm:$0xff] %vm410, %v1687
  %1752 = vst.msk [vmem:[%s3 + $0x140] sm:$0xff] %vm410, %v1688
  %1753 = vst.msk [vmem:[%s3 + $0x148] sm:$0xff] %vm410, %v1689
  %1754 = vst.msk [vmem:[%s3 + $0x150] sm:$0xff] %vm410, %v1690
  %1755 = vst.msk [vmem:[%s3 + $0x158] sm:$0xff] %vm410, %v1691
  %1756 = vst.msk [vmem:[%s3 + $0x160] sm:$0xff] %vm410, %v1692
  %1757 = vst.msk [vmem:[%s3 + $0x168] sm:$0xff] %vm410, %v1693
  %1758 = vst.msk [vmem:[%s3 + $0x170] sm:$0xff] %vm410, %v1694
  %1759 = vst.msk [vmem:[%s3 + $0x178] sm:$0xff] %vm410, %v1695
  %1760 = vst.msk [vmem:[%s3 + $0x180] sm:$0xff] %vm410, %v1696
  %1761 = vst.msk [vmem:[%s3 + $0x188] sm:$0xff] %vm410, %v1697
  %1762 = vst.msk [vmem:[%s3 + $0x190] sm:$0xff] %vm410, %v1698
  %1763 = vst.msk [vmem:[%s3 + $0x198] sm:$0xff] %vm410, %v1699
  %1764 = vst.msk [vmem:[%s3 + $0x1a0] sm:$0xff] %vm410, %v1700
  %1765 = vst.msk [vmem:[%s3 + $0x1a8] sm:$0xff] %vm410, %v1701
  %1766 = vst.msk [vmem:[%s3 + $0x1b0] sm:$0xff] %vm410, %v1702
  %1767 = vst.msk [vmem:[%s3 + $0x1b8] sm:$0xff] %vm410, %v1703
  %1768 = vst.msk [vmem:[%s3 + $0x1c0] sm:$0xff] %vm410, %v1704
  %1769 = vst.msk [vmem:[%s3 + $0x1c8] sm:$0xff] %vm410, %v1705
  %1770 = vst.msk [vmem:[%s3 + $0x1d0] sm:$0xff] %vm410, %v1706
  %1771 = vst.msk [vmem:[%s3 + $0x1d8] sm:$0xff] %vm410, %v1707
  %1772 = vst.msk [vmem:[%s3 + $0x1e0] sm:$0xff] %vm410, %v1708
  %1773 = vst.msk [vmem:[%s3 + $0x1e8] sm:$0xff] %vm410, %v1709
  %1774 = vst.msk [vmem:[%s3 + $0x1f0] sm:$0xff] %vm410, %v1710
  %1775 = vst.msk [vmem:[%s3 + $0x1f8] sm:$0xff] %vm410, %v1711
  // Predicated region
  $region14: #{model_forward.6} parent=0 // pred_check
    _
  $region15: #{model_forward.6} parent=0 // pred_check_branch
    %1777 = sbr.rel (0) target = $region17
  $region16: #{model_forward.6} parent=0 // pred_region
    _
  $region17: #{model_forward.6} parent=0 // pred_fallthru
    _
  // Predicated region
  $region18: #{model_forward.6} parent=0 // pred_check
    _
  $region19: #{model_forward.6} parent=0 // pred_check_branch
    %1779 = sbr.rel (0) target = $region21
  $region20: #{model_forward.6} parent=0 // pred_region
    _
  $region21: #{model_forward.6} parent=0 // pred_fallthru
    _

// kernel: model_forward.7
$region0: #{model_forward.7}
  #allocation0 [shape = 'u32[]', space=smem, size = 0x4, offset = 0x4, fixed_abs, tag = 'smem constant byte address 0x4 - core index']
  #allocation1 [shape = 'u32[72,128]{1,0:T(1,128)}', space=vmem, size = 0x9000, scoped, tag = 'internal scratch']
  %s0 = inlined_call_operand.vmem [shape: f32[128,576], index: 0, kind: input, shape index: {}]
  %s1 = inlined_call_operand.vmem [shape: f32[576,64], index: 1, kind: input, shape index: {}]
  %s2 = inlined_call_operand.vmem [shape: f32[1,64], index: 2, kind: input, shape index: {}]
  %s3 = inlined_call_operand.vmem [shape: f32[128,64], index: 3, kind: output, shape index: {}]
  %s4 = sld [smem:[#allocation0]]
  $region22: #{model_forward.7} parent=0
    _
  %s6 = ssub.s32 1, %s4
  %s7 = scalar_select 0, %s6, %s4
  // Predicated region
  $region2: #{model_forward.7} parent=0 // pred_check
    _
  $region3: #{model_forward.7} parent=0 // pred_check_branch
    %9 = sbr.rel (0) target = $region5
  $region4: #{model_forward.7} parent=0 // pred_region
    _
  $region5: #{model_forward.7} parent=0 // pred_fallthru
    _
  // Predicated region
  $region6: #{model_forward.7} parent=0 // pred_check
    _
  $region7: #{model_forward.7} parent=0 // pred_check_branch
    %11 = sbr.rel (0) target = $region9
  $region8: #{model_forward.7} parent=0 // pred_region
    _
  $region9: #{model_forward.7} parent=0 // pred_fallthru
    _
  // Predicated region
  $region10: #{model_forward.7} parent=0 // pred_check
    _
  $region11: #{model_forward.7} parent=0 // pred_check_branch
    %13 = sbr.rel (0) target = $region13
  $region12: #{model_forward.7} parent=0 // pred_region
    _
  $region13: #{model_forward.7} parent=0 // pred_fallthru
    _
  %v14 = vld [vmem:[%s0] sm:$0xff]
  %v15 = vld [vmem:[%s0 + $0x8] sm:$0xff]
  %v16 = vld [vmem:[%s0 + $0x10] sm:$0xff]
  %v17 = vld [vmem:[%s0 + $0x18] sm:$0xff]
  %v18 = vld [vmem:[%s0 + $0x20] sm:$0xff]
  %v19 = vld [vmem:[%s0 + $0x28] sm:$0xff]
  %v20 = vld [vmem:[%s0 + $0x30] sm:$0xff]
  %v21 = vld [vmem:[%s0 + $0x38] sm:$0xff]
  %v22 = vld [vmem:[%s0 + $0x40] sm:$0xff]
  %v23 = vld [vmem:[%s0 + $0x48] sm:$0xff]
  %v24 = vld [vmem:[%s0 + $0x50] sm:$0xff]
  %v25 = vld [vmem:[%s0 + $0x58] sm:$0xff]
  %v26 = vld [vmem:[%s0 + $0x60] sm:$0xff]
  %v27 = vld [vmem:[%s0 + $0x68] sm:$0xff]
  %v28 = vld [vmem:[%s0 + $0x70] sm:$0xff]
  %v29 = vld [vmem:[%s0 + $0x78] sm:$0xff]
  %v30 = vld [vmem:[%s0 + $0x80] sm:$0xff]
  %v31 = vld [vmem:[%s0 + $0x88] sm:$0xff]
  %v32 = vld [vmem:[%s0 + $0x90] sm:$0xff]
  %v33 = vld [vmem:[%s0 + $0x98] sm:$0xff]
  %v34 = vld [vmem:[%s0 + $0xa0] sm:$0xff]
  %v35 = vld [vmem:[%s0 + $0xa8] sm:$0xff]
  %v36 = vld [vmem:[%s0 + $0xb0] sm:$0xff]
  %v37 = vld [vmem:[%s0 + $0xb8] sm:$0xff]
  %v38 = vld [vmem:[%s0 + $0xc0] sm:$0xff]
  %v39 = vld [vmem:[%s0 + $0xc8] sm:$0xff]
  %v40 = vld [vmem:[%s0 + $0xd0] sm:$0xff]
  %v41 = vld [vmem:[%s0 + $0xd8] sm:$0xff]
  %v42 = vld [vmem:[%s0 + $0xe0] sm:$0xff]
  %v43 = vld [vmem:[%s0 + $0xe8] sm:$0xff]
  %v44 = vld [vmem:[%s0 + $0xf0] sm:$0xff]
  %v45 = vld [vmem:[%s0 + $0xf8] sm:$0xff]
  %v46 = vld [vmem:[%s0 + $0x100] sm:$0xff]
  %v47 = vld [vmem:[%s0 + $0x108] sm:$0xff]
  %v48 = vld [vmem:[%s0 + $0x110] sm:$0xff]
  %v49 = vld [vmem:[%s0 + $0x118] sm:$0xff]
  %v50 = vld [vmem:[%s0 + $0x120] sm:$0xff]
  %v51 = vld [vmem:[%s0 + $0x128] sm:$0xff]
  %v52 = vld [vmem:[%s0 + $0x130] sm:$0xff]
  %v53 = vld [vmem:[%s0 + $0x138] sm:$0xff]
  %v54 = vld [vmem:[%s0 + $0x140] sm:$0xff]
  %v55 = vld [vmem:[%s0 + $0x148] sm:$0xff]
  %v56 = vld [vmem:[%s0 + $0x150] sm:$0xff]
  %v57 = vld [vmem:[%s0 + $0x158] sm:$0xff]
  %v58 = vld [vmem:[%s0 + $0x160] sm:$0xff]
  %v59 = vld [vmem:[%s0 + $0x168] sm:$0xff]
  %v60 = vld [vmem:[%s0 + $0x170] sm:$0xff]
  %v61 = vld [vmem:[%s0 + $0x178] sm:$0xff]
  %v62 = vld [vmem:[%s0 + $0x180] sm:$0xff]
  %v63 = vld [vmem:[%s0 + $0x188] sm:$0xff]
  %v64 = vld [vmem:[%s0 + $0x190] sm:$0xff]
  %v65 = vld [vmem:[%s0 + $0x198] sm:$0xff]
  %v66 = vld [vmem:[%s0 + $0x1a0] sm:$0xff]
  %v67 = vld [vmem:[%s0 + $0x1a8] sm:$0xff]
  %v68 = vld [vmem:[%s0 + $0x1b0] sm:$0xff]
  %v69 = vld [vmem:[%s0 + $0x1b8] sm:$0xff]
  %v70 = vld [vmem:[%s0 + $0x1c0] sm:$0xff]
  %v71 = vld [vmem:[%s0 + $0x1c8] sm:$0xff]
  %v72 = vld [vmem:[%s0 + $0x1d0] sm:$0xff]
  %v73 = vld [vmem:[%s0 + $0x1d8] sm:$0xff]
  %v74 = vld [vmem:[%s0 + $0x1e0] sm:$0xff]
  %v75 = vld [vmem:[%s0 + $0x1e8] sm:$0xff]
  %v76 = vld [vmem:[%s0 + $0x1f0] sm:$0xff]
  %v77 = vld [vmem:[%s0 + $0x1f8] sm:$0xff]
  %v78 = vld [vmem:[%s0 + $0x200] sm:$0xff]
  %v79 = vld [vmem:[%s0 + $0x208] sm:$0xff]
  %v80 = vld [vmem:[%s0 + $0x210] sm:$0xff]
  %v81 = vld [vmem:[%s0 + $0x218] sm:$0xff]
  %v82 = vld [vmem:[%s0 + $0x220] sm:$0xff]
  %v83 = vld [vmem:[%s0 + $0x228] sm:$0xff]
  %v84 = vld [vmem:[%s0 + $0x230] sm:$0xff]
  %v85 = vld [vmem:[%s0 + $0x238] sm:$0xff]
  %v86 = vld [vmem:[%s0 + $0x240] sm:$0xff]
  %v87 = vld [vmem:[%s0 + $0x248] sm:$0xff]
  %v88 = vld [vmem:[%s0 + $0x250] sm:$0xff]
  %v89 = vld [vmem:[%s0 + $0x258] sm:$0xff]
  %v90 = vld [vmem:[%s0 + $0x260] sm:$0xff]
  %v91 = vld [vmem:[%s0 + $0x268] sm:$0xff]
  %v92 = vld [vmem:[%s0 + $0x270] sm:$0xff]
  %v93 = vld [vmem:[%s0 + $0x278] sm:$0xff]
  %v94 = vld [vmem:[%s1] sm:$0xff]
  %v95 = vld [vmem:[%s1 + $0x8] sm:$0xff]
  %v96 = vld [vmem:[%s1 + $0x10] sm:$0xff]
  %v97 = vld [vmem:[%s1 + $0x18] sm:$0xff]
  %v98 = vld [vmem:[%s1 + $0x20] sm:$0xff]
  %v99 = vld [vmem:[%s1 + $0x28] sm:$0xff]
  %v100 = vld [vmem:[%s1 + $0x30] sm:$0xff]
  %v101 = vld [vmem:[%s1 + $0x38] sm:$0xff]
  %v102 = vld [vmem:[%s1 + $0x40] sm:$0xff]
  %v103 = vld [vmem:[%s1 + $0x48] sm:$0xff]
  %v104 = vld [vmem:[%s1 + $0x50] sm:$0xff]
  %v105 = vld [vmem:[%s1 + $0x58] sm:$0xff]
  %v106 = vld [vmem:[%s1 + $0x60] sm:$0xff]
  %v107 = vld [vmem:[%s1 + $0x68] sm:$0xff]
  %v108 = vld [vmem:[%s1 + $0x70] sm:$0xff]
  %v109 = vld [vmem:[%s1 + $0x78] sm:$0xff]
  %v110 = vld [vmem:[%s1 + $0x80] sm:$0xff]
  %v111 = vld [vmem:[%s1 + $0x88] sm:$0xff]
  %v112 = vld [vmem:[%s1 + $0x90] sm:$0xff]
  %v113 = vld [vmem:[%s1 + $0x98] sm:$0xff]
  %v114 = vld [vmem:[%s1 + $0xa0] sm:$0xff]
  %v115 = vld [vmem:[%s1 + $0xa8] sm:$0xff]
  %v116 = vld [vmem:[%s1 + $0xb0] sm:$0xff]
  %v117 = vld [vmem:[%s1 + $0xb8] sm:$0xff]
  %v118 = vld [vmem:[%s1 + $0xc0] sm:$0xff]
  %v119 = vld [vmem:[%s1 + $0xc8] sm:$0xff]
  %v120 = vld [vmem:[%s1 + $0xd0] sm:$0xff]
  %v121 = vld [vmem:[%s1 + $0xd8] sm:$0xff]
  %v122 = vld [vmem:[%s1 + $0xe0] sm:$0xff]
  %v123 = vld [vmem:[%s1 + $0xe8] sm:$0xff]
  %v124 = vld [vmem:[%s1 + $0xf0] sm:$0xff]
  %v125 = vld [vmem:[%s1 + $0xf8] sm:$0xff]
  %v126 = vld [vmem:[%s1 + $0x100] sm:$0xff]
  %v127 = vld [vmem:[%s1 + $0x108] sm:$0xff]
  %v128 = vld [vmem:[%s1 + $0x110] sm:$0xff]
  %v129 = vld [vmem:[%s1 + $0x118] sm:$0xff]
  %v130 = vld [vmem:[%s1 + $0x120] sm:$0xff]
  %v131 = vld [vmem:[%s1 + $0x128] sm:$0xff]
  %v132 = vld [vmem:[%s1 + $0x130] sm:$0xff]
  %v133 = vld [vmem:[%s1 + $0x138] sm:$0xff]
  %v134 = vld [vmem:[%s1 + $0x140] sm:$0xff]
  %v135 = vld [vmem:[%s1 + $0x148] sm:$0xff]
  %v136 = vld [vmem:[%s1 + $0x150] sm:$0xff]
  %v137 = vld [vmem:[%s1 + $0x158] sm:$0xff]
  %v138 = vld [vmem:[%s1 + $0x160] sm:$0xff]
  %v139 = vld [vmem:[%s1 + $0x168] sm:$0xff]
  %v140 = vld [vmem:[%s1 + $0x170] sm:$0xff]
  %v141 = vld [vmem:[%s1 + $0x178] sm:$0xff]
  %v142 = vld [vmem:[%s1 + $0x180] sm:$0xff]
  %v143 = vld [vmem:[%s1 + $0x188] sm:$0xff]
  %v144 = vld [vmem:[%s1 + $0x190] sm:$0xff]
  %v145 = vld [vmem:[%s1 + $0x198] sm:$0xff]
  %v146 = vld [vmem:[%s1 + $0x1a0] sm:$0xff]
  %v147 = vld [vmem:[%s1 + $0x1a8] sm:$0xff]
  %v148 = vld [vmem:[%s1 + $0x1b0] sm:$0xff]
  %v149 = vld [vmem:[%s1 + $0x1b8] sm:$0xff]
  %v150 = vld [vmem:[%s1 + $0x1c0] sm:$0xff]
  %v151 = vld [vmem:[%s1 + $0x1c8] sm:$0xff]
  %v152 = vld [vmem:[%s1 + $0x1d0] sm:$0xff]
  %v153 = vld [vmem:[%s1 + $0x1d8] sm:$0xff]
  %v154 = vld [vmem:[%s1 + $0x1e0] sm:$0xff]
  %v155 = vld [vmem:[%s1 + $0x1e8] sm:$0xff]
  %v156 = vld [vmem:[%s1 + $0x1f0] sm:$0xff]
  %v157 = vld [vmem:[%s1 + $0x1f8] sm:$0xff]
  %v158 = vld [vmem:[%s1 + $0x200] sm:$0xff]
  %v159 = vld [vmem:[%s1 + $0x208] sm:$0xff]
  %v160 = vld [vmem:[%s1 + $0x210] sm:$0xff]
  %v161 = vld [vmem:[%s1 + $0x218] sm:$0xff]
  %v162 = vld [vmem:[%s1 + $0x220] sm:$0xff]
  %v163 = vld [vmem:[%s1 + $0x228] sm:$0xff]
  %v164 = vld [vmem:[%s1 + $0x230] sm:$0xff]
  %v165 = vld [vmem:[%s1 + $0x238] sm:$0xff]
  %v166 = vld [vmem:[%s2] sm:$0x1]
  %v168 = vperm.slane %v166, 0
  %vm170 = vcmask 523264
  %v172 = vsel %vm170, %v18, 0
  %v175 = vsel %vm170, %v23, 0
  %v178 = vsel %vm170, %v28, 0
  %v181 = vsel %vm170, %v33, 0
  %v184 = vsel %vm170, %v38, 0
  %v187 = vsel %vm170, %v43, 0
  %v190 = vsel %vm170, %v48, 0
  %v193 = vsel %vm170, %v53, 0
  %v196 = vsel %vm170, %v58, 0
  %v199 = vsel %vm170, %v63, 0
  %v202 = vsel %vm170, %v68, 0
  %v205 = vsel %vm170, %v73, 0
  %v208 = vsel %vm170, %v78, 0
  %v211 = vsel %vm170, %v83, 0
  %v214 = vsel %vm170, %v88, 0
  %v217 = vsel %vm170, %v93, 0
  %219 = vmatpush.msra.mxu0 %v109
  %220 = vmatpush.msra.mxu0 %v108
  %221 = vmatpush.msra.mxu0 %v107
  %222 = vmatpush.msra.mxu0 %v106
  %223 = vmatpush.msra.mxu0 %v105
  %224 = vmatpush.msra.mxu0 %v104
  %225 = vmatpush.msra.mxu0 %v103
  %226 = vmatpush.msra.mxu0 %v102
  %227 = vmatpush.msra.mxu0 %v101
  %228 = vmatpush.msra.mxu0 %v100
  %229 = vmatpush.msra.mxu0 %v99
  %230 = vmatpush.msra.mxu0 %v98
  %231 = vmatpush.msra.mxu0 %v97
  %232 = vmatpush.msra.mxu0 %v96
  %233 = vmatpush.msra.mxu0 %v95
  %234 = vmatpush.msra.mxu0 %v94
  %235 = vmatmul.f32.gmra.mxu0 %v14
  %v236 = vpop.f32.mrf.mxu0
  %v237 = vadd.f32 %v168, %v236
  %238 = vmatmul.f32.gmra.mxu0 %v19
  %v239 = vpop.f32.mrf.mxu0
  %v240 = vadd.f32 %v168, %v239
  %241 = vmatmul.f32.gmra.mxu0 %v24
  %v242 = vpop.f32.mrf.mxu0
  %v243 = vadd.f32 %v168, %v242
  %244 = vmatmul.f32.gmra.mxu0 %v29
  %v245 = vpop.f32.mrf.mxu0
  %v246 = vadd.f32 %v168, %v245
  %247 = vmatmul.f32.gmra.mxu0 %v34
  %v248 = vpop.f32.mrf.mxu0
  %v249 = vadd.f32 %v168, %v248
  %250 = vmatmul.f32.gmra.mxu0 %v39
  %v251 = vpop.f32.mrf.mxu0
  %v252 = vadd.f32 %v168, %v251
  %253 = vmatmul.f32.gmra.mxu0 %v44
  %v254 = vpop.f32.mrf.mxu0
  %v255 = vadd.f32 %v168, %v254
  %256 = vmatmul.f32.gmra.mxu0 %v49
  %v257 = vpop.f32.mrf.mxu0
  %v258 = vadd.f32 %v168, %v257
  %259 = vmatmul.f32.gmra.mxu0 %v54
  %v260 = vpop.f32.mrf.mxu0
  %v261 = vadd.f32 %v168, %v260
  %262 = vmatmul.f32.gmra.mxu0 %v59
  %v263 = vpop.f32.mrf.mxu0
  %v264 = vadd.f32 %v168, %v263
  %265 = vmatmul.f32.gmra.mxu0 %v64
  %v266 = vpop.f32.mrf.mxu0
  %v267 = vadd.f32 %v168, %v266
  %268 = vmatmul.f32.gmra.mxu0 %v69
  %v269 = vpop.f32.mrf.mxu0
  %v270 = vadd.f32 %v168, %v269
  %271 = vmatmul.f32.gmra.mxu0 %v74
  %v272 = vpop.f32.mrf.mxu0
  %v273 = vadd.f32 %v168, %v272
  %274 = vmatmul.f32.gmra.mxu0 %v79
  %v275 = vpop.f32.mrf.mxu0
  %v276 = vadd.f32 %v168, %v275
  %277 = vmatmul.f32.gmra.mxu0 %v84
  %v278 = vpop.f32.mrf.mxu0
  %v279 = vadd.f32 %v168, %v278
  %280 = vmatmul.f32.gmra.mxu0 %v89
  %v281 = vpop.f32.mrf.mxu0
  %v282 = vadd.f32 %v168, %v281
  %283 = vdwg.mxu0
  %284 = vmatpush.msra.mxu0 %v125
  %285 = vmatpush.msra.mxu0 %v124
  %286 = vmatpush.msra.mxu0 %v123
  %287 = vmatpush.msra.mxu0 %v122
  %288 = vmatpush.msra.mxu0 %v121
  %289 = vmatpush.msra.mxu0 %v120
  %290 = vmatpush.msra.mxu0 %v119
  %291 = vmatpush.msra.mxu0 %v118
  %292 = vmatpush.msra.mxu0 %v117
  %293 = vmatpush.msra.mxu0 %v116
  %294 = vmatpush.msra.mxu0 %v115
  %295 = vmatpush.msra.mxu0 %v114
  %296 = vmatpush.msra.mxu0 %v113
  %297 = vmatpush.msra.mxu0 %v112
  %298 = vmatpush.msra.mxu0 %v111
  %299 = vmatpush.msra.mxu0 %v110
  %300 = vmatmul.f32.gmra.mxu0 %v15
  %v301 = vpop.f32.mrf.mxu0
  %v302 = vadd.f32 %v237, %v301
  %303 = vmatmul.f32.gmra.mxu0 %v20
  %v304 = vpop.f32.mrf.mxu0
  %v305 = vadd.f32 %v240, %v304
  %306 = vmatmul.f32.gmra.mxu0 %v25
  %v307 = vpop.f32.mrf.mxu0
  %v308 = vadd.f32 %v243, %v307
  %309 = vmatmul.f32.gmra.mxu0 %v30
  %v310 = vpop.f32.mrf.mxu0
  %v311 = vadd.f32 %v246, %v310
  %312 = vmatmul.f32.gmra.mxu0 %v35
  %v313 = vpop.f32.mrf.mxu0
  %v314 = vadd.f32 %v249, %v313
  %315 = vmatmul.f32.gmra.mxu0 %v40
  %v316 = vpop.f32.mrf.mxu0
  %v317 = vadd.f32 %v252, %v316
  %318 = vmatmul.f32.gmra.mxu0 %v45
  %v319 = vpop.f32.mrf.mxu0
  %v320 = vadd.f32 %v255, %v319
  %321 = vmatmul.f32.gmra.mxu0 %v50
  %v322 = vpop.f32.mrf.mxu0
  %v323 = vadd.f32 %v258, %v322
  %324 = vmatmul.f32.gmra.mxu0 %v55
  %v325 = vpop.f32.mrf.mxu0
  %v326 = vadd.f32 %v261, %v325
  %327 = vmatmul.f32.gmra.mxu0 %v60
  %v328 = vpop.f32.mrf.mxu0
  %v329 = vadd.f32 %v264, %v328
  %330 = vmatmul.f32.gmra.mxu0 %v65
  %v331 = vpop.f32.mrf.mxu0
  %v332 = vadd.f32 %v267, %v331
  %333 = vmatmul.f32.gmra.mxu0 %v70
  %v334 = vpop.f32.mrf.mxu0
  %v335 = vadd.f32 %v270, %v334
  %336 = vmatmul.f32.gmra.mxu0 %v75
  %v337 = vpop.f32.mrf.mxu0
  %v338 = vadd.f32 %v273, %v337
  %339 = vmatmul.f32.gmra.mxu0 %v80
  %v340 = vpop.f32.mrf.mxu0
  %v341 = vadd.f32 %v276, %v340
  %342 = vmatmul.f32.gmra.mxu0 %v85
  %v343 = vpop.f32.mrf.mxu0
  %v344 = vadd.f32 %v279, %v343
  %345 = vmatmul.f32.gmra.mxu0 %v90
  %v346 = vpop.f32.mrf.mxu0
  %v347 = vadd.f32 %v282, %v346
  %348 = vdwg.mxu0
  %349 = vmatpush.msra.mxu0 %v141
  %350 = vmatpush.msra.mxu0 %v140
  %351 = vmatpush.msra.mxu0 %v139
  %352 = vmatpush.msra.mxu0 %v138
  %353 = vmatpush.msra.mxu0 %v137
  %354 = vmatpush.msra.mxu0 %v136
  %355 = vmatpush.msra.mxu0 %v135
  %356 = vmatpush.msra.mxu0 %v134
  %357 = vmatpush.msra.mxu0 %v133
  %358 = vmatpush.msra.mxu0 %v132
  %359 = vmatpush.msra.mxu0 %v131
  %360 = vmatpush.msra.mxu0 %v130
  %361 = vmatpush.msra.mxu0 %v129
  %362 = vmatpush.msra.mxu0 %v128
  %363 = vmatpush.msra.mxu0 %v127
  %364 = vmatpush.msra.mxu0 %v126
  %365 = vmatmul.f32.gmra.mxu0 %v16
  %v366 = vpop.f32.mrf.mxu0
  %v367 = vadd.f32 %v302, %v366
  %368 = vmatmul.f32.gmra.mxu0 %v21
  %v369 = vpop.f32.mrf.mxu0
  %v370 = vadd.f32 %v305, %v369
  %371 = vmatmul.f32.gmra.mxu0 %v26
  %v372 = vpop.f32.mrf.mxu0
  %v373 = vadd.f32 %v308, %v372
  %374 = vmatmul.f32.gmra.mxu0 %v31
  %v375 = vpop.f32.mrf.mxu0
  %v376 = vadd.f32 %v311, %v375
  %377 = vmatmul.f32.gmra.mxu0 %v36
  %v378 = vpop.f32.mrf.mxu0
  %v379 = vadd.f32 %v314, %v378
  %380 = vmatmul.f32.gmra.mxu0 %v41
  %v381 = vpop.f32.mrf.mxu0
  %v382 = vadd.f32 %v317, %v381
  %383 = vmatmul.f32.gmra.mxu0 %v46
  %v384 = vpop.f32.mrf.mxu0
  %v385 = vadd.f32 %v320, %v384
  %386 = vmatmul.f32.gmra.mxu0 %v51
  %v387 = vpop.f32.mrf.mxu0
  %v388 = vadd.f32 %v323, %v387
  %389 = vmatmul.f32.gmra.mxu0 %v56
  %v390 = vpop.f32.mrf.mxu0
  %v391 = vadd.f32 %v326, %v390
  %392 = vmatmul.f32.gmra.mxu0 %v61
  %v393 = vpop.f32.mrf.mxu0
  %v394 = vadd.f32 %v329, %v393
  %395 = vmatmul.f32.gmra.mxu0 %v66
  %v396 = vpop.f32.mrf.mxu0
  %v397 = vadd.f32 %v332, %v396
  %398 = vmatmul.f32.gmra.mxu0 %v71
  %v399 = vpop.f32.mrf.mxu0
  %v400 = vadd.f32 %v335, %v399
  %401 = vmatmul.f32.gmra.mxu0 %v76
  %v402 = vpop.f32.mrf.mxu0
  %v403 = vadd.f32 %v338, %v402
  %404 = vmatmul.f32.gmra.mxu0 %v81
  %v405 = vpop.f32.mrf.mxu0
  %v406 = vadd.f32 %v341, %v405
  %407 = vmatmul.f32.gmra.mxu0 %v86
  %v408 = vpop.f32.mrf.mxu0
  %v409 = vadd.f32 %v344, %v408
  %410 = vmatmul.f32.gmra.mxu0 %v91
  %v411 = vpop.f32.mrf.mxu0
  %v412 = vadd.f32 %v347, %v411
  %413 = vdwg.mxu0
  %414 = vmatpush.msra.mxu0 %v157
  %415 = vmatpush.msra.mxu0 %v156
  %416 = vmatpush.msra.mxu0 %v155
  %417 = vmatpush.msra.mxu0 %v154
  %418 = vmatpush.msra.mxu0 %v153
  %419 = vmatpush.msra.mxu0 %v152
  %420 = vmatpush.msra.mxu0 %v151
  %421 = vmatpush.msra.mxu0 %v150
  %422 = vmatpush.msra.mxu0 %v149
  %423 = vmatpush.msra.mxu0 %v148
  %424 = vmatpush.msra.mxu0 %v147
  %425 = vmatpush.msra.mxu0 %v146
  %426 = vmatpush.msra.mxu0 %v145
  %427 = vmatpush.msra.mxu0 %v144
  %428 = vmatpush.msra.mxu0 %v143
  %429 = vmatpush.msra.mxu0 %v142
  %430 = vmatmul.f32.gmra.mxu0 %v17
  %v431 = vpop.f32.mrf.mxu0
  %v432 = vadd.f32 %v367, %v431
  %433 = vmatmul.f32.gmra.mxu0 %v22
  %v434 = vpop.f32.mrf.mxu0
  %v435 = vadd.f32 %v370, %v434
  %436 = vmatmul.f32.gmra.mxu0 %v27
  %v437 = vpop.f32.mrf.mxu0
  %v438 = vadd.f32 %v373, %v437
  %439 = vmatmul.f32.gmra.mxu0 %v32
  %v440 = vpop.f32.mrf.mxu0
  %v441 = vadd.f32 %v376, %v440
  %442 = vmatmul.f32.gmra.mxu0 %v37
  %v443 = vpop.f32.mrf.mxu0
  %v444 = vadd.f32 %v379, %v443
  %445 = vmatmul.f32.gmra.mxu0 %v42
  %v446 = vpop.f32.mrf.mxu0
  %v447 = vadd.f32 %v382, %v446
  %448 = vmatmul.f32.gmra.mxu0 %v47
  %v449 = vpop.f32.mrf.mxu0
  %v450 = vadd.f32 %v385, %v449
  %451 = vmatmul.f32.gmra.mxu0 %v52
  %v452 = vpop.f32.mrf.mxu0
  %v453 = vadd.f32 %v388, %v452
  %454 = vmatmul.f32.gmra.mxu0 %v57
  %v455 = vpop.f32.mrf.mxu0
  %v456 = vadd.f32 %v391, %v455
  %457 = vmatmul.f32.gmra.mxu0 %v62
  %v458 = vpop.f32.mrf.mxu0
  %v459 = vadd.f32 %v394, %v458
  %460 = vmatmul.f32.gmra.mxu0 %v67
  %v461 = vpop.f32.mrf.mxu0
  %v462 = vadd.f32 %v397, %v461
  %463 = vmatmul.f32.gmra.mxu0 %v72
  %v464 = vpop.f32.mrf.mxu0
  %v465 = vadd.f32 %v400, %v464
  %466 = vmatmul.f32.gmra.mxu0 %v77
  %v467 = vpop.f32.mrf.mxu0
  %v468 = vadd.f32 %v403, %v467
  %469 = vmatmul.f32.gmra.mxu0 %v82
  %v470 = vpop.f32.mrf.mxu0
  %v471 = vadd.f32 %v406, %v470
  %472 = vmatmul.f32.gmra.mxu0 %v87
  %v473 = vpop.f32.mrf.mxu0
  %v474 = vadd.f32 %v409, %v473
  %475 = vmatmul.f32.gmra.mxu0 %v92
  %v476 = vpop.f32.mrf.mxu0
  %v477 = vadd.f32 %v412, %v476
  %478 = vdwg.mxu0
  %479 = vmatpush.msra.mxu0 0.0
  %480 = vmatpush.msra.mxu0 0.0
  %481 = vmatpush.msra.mxu0 0.0
  %482 = vmatpush.msra.mxu0 0.0
  %483 = vmatpush.msra.mxu0 0.0
  %484 = vmatpush.msra.mxu0 0.0
  %485 = vmatpush.msra.mxu0 0.0
  %486 = vmatpush.msra.mxu0 0.0
  %487 = vmatpush.msra.mxu0 %v165
  %488 = vmatpush.msra.mxu0 %v164
  %489 = vmatpush.msra.mxu0 %v163
  %490 = vmatpush.msra.mxu0 %v162
  %491 = vmatpush.msra.mxu0 %v161
  %492 = vmatpush.msra.mxu0 %v160
  %493 = vmatpush.msra.mxu0 %v159
  %494 = vmatpush.msra.mxu0 %v158
  %495 = vmatmul.f32.gmra.mxu0 %v172
  %v496 = vpop.f32.mrf.mxu0
  %v497 = vadd.f32 %v432, %v496
  %498 = vmatmul.f32.gmra.mxu0 %v175
  %v499 = vpop.f32.mrf.mxu0
  %v500 = vadd.f32 %v435, %v499
  %501 = vmatmul.f32.gmra.mxu0 %v178
  %v502 = vpop.f32.mrf.mxu0
  %v503 = vadd.f32 %v438, %v502
  %504 = vmatmul.f32.gmra.mxu0 %v181
  %v505 = vpop.f32.mrf.mxu0
  %v506 = vadd.f32 %v441, %v505
  %507 = vmatmul.f32.gmra.mxu0 %v184
  %v508 = vpop.f32.mrf.mxu0
  %v509 = vadd.f32 %v444, %v508
  %510 = vmatmul.f32.gmra.mxu0 %v187
  %v511 = vpop.f32.mrf.mxu0
  %v512 = vadd.f32 %v447, %v511
  %513 = vmatmul.f32.gmra.mxu0 %v190
  %v514 = vpop.f32.mrf.mxu0
  %v515 = vadd.f32 %v450, %v514
  %516 = vmatmul.f32.gmra.mxu0 %v193
  %v517 = vpop.f32.mrf.mxu0
  %v518 = vadd.f32 %v453, %v517
  %519 = vmatmul.f32.gmra.mxu0 %v196
  %v520 = vpop.f32.mrf.mxu0
  %v521 = vadd.f32 %v456, %v520
  %522 = vmatmul.f32.gmra.mxu0 %v199
  %v523 = vpop.f32.mrf.mxu0
  %v524 = vadd.f32 %v459, %v523
  %525 = vmatmul.f32.gmra.mxu0 %v202
  %v526 = vpop.f32.mrf.mxu0
  %v527 = vadd.f32 %v462, %v526
  %528 = vmatmul.f32.gmra.mxu0 %v205
  %v529 = vpop.f32.mrf.mxu0
  %v530 = vadd.f32 %v465, %v529
  %531 = vmatmul.f32.gmra.mxu0 %v208
  %v532 = vpop.f32.mrf.mxu0
  %v533 = vadd.f32 %v468, %v532
  %534 = vmatmul.f32.gmra.mxu0 %v211
  %v535 = vpop.f32.mrf.mxu0
  %v536 = vadd.f32 %v471, %v535
  %537 = vmatmul.f32.gmra.mxu0 %v214
  %v538 = vpop.f32.mrf.mxu0
  %v539 = vadd.f32 %v474, %v538
  %540 = vmatmul.f32.gmra.mxu0 %v217
  %v541 = vpop.f32.mrf.mxu0
  %v542 = vadd.f32 %v477, %v541
  %543 = vdwg.mxu0
  %v544 = vmax.f32 %v497, 0.0
  %v545 = vmax.f32 %v500, 0.0
  %v546 = vmax.f32 %v503, 0.0
  %v547 = vmax.f32 %v506, 0.0
  %v548 = vmax.f32 %v509, 0.0
  %v549 = vmax.f32 %v512, 0.0
  %v550 = vmax.f32 %v515, 0.0
  %v551 = vmax.f32 %v518, 0.0
  %v552 = vmax.f32 %v521, 0.0
  %v553 = vmax.f32 %v524, 0.0
  %v554 = vmax.f32 %v527, 0.0
  %v555 = vmax.f32 %v530, 0.0
  %v556 = vmax.f32 %v533, 0.0
  %v557 = vmax.f32 %v536, 0.0
  %v558 = vmax.f32 %v539, 0.0
  %v559 = vmax.f32 %v542, 0.0
  %560 = vst.msk [vmem:[%s3] sm:$0xff] %vm170, %v544
  %561 = vst.msk [vmem:[%s3 + $0x8] sm:$0xff] %vm170, %v545
  %562 = vst.msk [vmem:[%s3 + $0x10] sm:$0xff] %vm170, %v546
  %563 = vst.msk [vmem:[%s3 + $0x18] sm:$0xff] %vm170, %v547
  %564 = vst.msk [vmem:[%s3 + $0x20] sm:$0xff] %vm170, %v548
  %565 = vst.msk [vmem:[%s3 + $0x28] sm:$0xff] %vm170, %v549
  %566 = vst.msk [vmem:[%s3 + $0x30] sm:$0xff] %vm170, %v550
  %567 = vst.msk [vmem:[%s3 + $0x38] sm:$0xff] %vm170, %v551
  %568 = vst.msk [vmem:[%s3 + $0x40] sm:$0xff] %vm170, %v552
  %569 = vst.msk [vmem:[%s3 + $0x48] sm:$0xff] %vm170, %v553
  %570 = vst.msk [vmem:[%s3 + $0x50] sm:$0xff] %vm170, %v554
  %571 = vst.msk [vmem:[%s3 + $0x58] sm:$0xff] %vm170, %v555
  %572 = vst.msk [vmem:[%s3 + $0x60] sm:$0xff] %vm170, %v556
  %573 = vst.msk [vmem:[%s3 + $0x68] sm:$0xff] %vm170, %v557
  %574 = vst.msk [vmem:[%s3 + $0x70] sm:$0xff] %vm170, %v558
  %575 = vst.msk [vmem:[%s3 + $0x78] sm:$0xff] %vm170, %v559
  // Predicated region
  $region14: #{model_forward.7} parent=0 // pred_check
    _
  $region15: #{model_forward.7} parent=0 // pred_check_branch
    %577 = sbr.rel (0) target = $region17
  $region16: #{model_forward.7} parent=0 // pred_region
    _
  $region17: #{model_forward.7} parent=0 // pred_fallthru
    _
  // Predicated region
  $region18: #{model_forward.7} parent=0 // pred_check
    _
  $region19: #{model_forward.7} parent=0 // pred_check_branch
    %579 = sbr.rel (0) target = $region21
  $region20: #{model_forward.7} parent=0 // pred_region
    _
  $region21: #{model_forward.7} parent=0 // pred_fallthru
    _

// kernel: model_forward.8
$region0: #{model_forward.8}
  #allocation0 [shape = 'u32[]', space=smem, size = 0x4, offset = 0x4, fixed_abs, tag = 'smem constant byte address 0x4 - core index']
  #allocation1 [shape = 'u32[72,128]{1,0:T(1,128)}', space=vmem, size = 0x9000, scoped, tag = 'internal scratch']
  %s0 = inlined_call_operand.vmem [shape: f32[32,576], index: 0, kind: input, shape index: {}]
  %s1 = inlined_call_operand.vmem [shape: f32[576,1024], index: 1, kind: input, shape index: {}]
  %s2 = inlined_call_operand.vmem [shape: f32[1,1024], index: 2, kind: input, shape index: {}]
  %s3 = inlined_call_operand.vmem [shape: f32[32,1024], index: 3, kind: output, shape index: {}]
  %s4 = sld [smem:[#allocation0]]
  $region22: #{model_forward.8} parent=0
    _
  %s6 = ssub.s32 1, %s4
  %s7 = scalar_select 0, %s6, %s4
  // Predicated region
  $region2: #{model_forward.8} parent=0 // pred_check
    _
  $region3: #{model_forward.8} parent=0 // pred_check_branch
    %9 = sbr.rel (0) target = $region5
  $region4: #{model_forward.8} parent=0 // pred_region
    _
  $region5: #{model_forward.8} parent=0 // pred_fallthru
    _
  // Predicated region
  $region6: #{model_forward.8} parent=0 // pred_check
    _
  $region7: #{model_forward.8} parent=0 // pred_check_branch
    %11 = sbr.rel (0) target = $region9
  $region8: #{model_forward.8} parent=0 // pred_region
    _
  $region9: #{model_forward.8} parent=0 // pred_fallthru
    _
  // Predicated region
  $region10: #{model_forward.8} parent=0 // pred_check
    _
  $region11: #{model_forward.8} parent=0 // pred_check_branch
    %13 = sbr.rel (0) target = $region13
  $region12: #{model_forward.8} parent=0 // pred_region
    _
  $region13: #{model_forward.8} parent=0 // pred_fallthru
    _
  %v14 = vld [vmem:[%s0] sm:$0xff]
  %v15 = vld [vmem:[%s0 + $0x8] sm:$0xff]
  %v16 = vld [vmem:[%s0 + $0x10] sm:$0xff]
  %v17 = vld [vmem:[%s0 + $0x18] sm:$0xff]
  %v18 = vld [vmem:[%s0 + $0x20] sm:$0xff]
  %v19 = vld [vmem:[%s0 + $0x28] sm:$0xff]
  %v20 = vld [vmem:[%s0 + $0x30] sm:$0xff]
  %v21 = vld [vmem:[%s0 + $0x38] sm:$0xff]
  %v22 = vld [vmem:[%s0 + $0x40] sm:$0xff]
  %v23 = vld [vmem:[%s0 + $0x48] sm:$0xff]
  %v24 = vld [vmem:[%s0 + $0x50] sm:$0xff]
  %v25 = vld [vmem:[%s0 + $0x58] sm:$0xff]
  %v26 = vld [vmem:[%s0 + $0x60] sm:$0xff]
  %v27 = vld [vmem:[%s0 + $0x68] sm:$0xff]
  %v28 = vld [vmem:[%s0 + $0x70] sm:$0xff]
  %v29 = vld [vmem:[%s0 + $0x78] sm:$0xff]
  %v30 = vld [vmem:[%s0 + $0x80] sm:$0xff]
  %v31 = vld [vmem:[%s0 + $0x88] sm:$0xff]
  %v32 = vld [vmem:[%s0 + $0x90] sm:$0xff]
  %v33 = vld [vmem:[%s0 + $0x98] sm:$0xff]
  %v34 = vld [vmem:[%s1] sm:$0xff]
  %v35 = vld [vmem:[%s1 + $0x8] sm:$0xff]
  %v36 = vld [vmem:[%s1 + $0x10] sm:$0xff]
  %v37 = vld [vmem:[%s1 + $0x18] sm:$0xff]
  %v38 = vld [vmem:[%s1 + $0x20] sm:$0xff]
  %v39 = vld [vmem:[%s1 + $0x28] sm:$0xff]
  %v40 = vld [vmem:[%s1 + $0x30] sm:$0xff]
  %v41 = vld [vmem:[%s1 + $0x38] sm:$0xff]
  %v42 = vld [vmem:[%s1 + $0x40] sm:$0xff]
  %v43 = vld [vmem:[%s1 + $0x48] sm:$0xff]
  %v44 = vld [vmem:[%s1 + $0x50] sm:$0xff]
  %v45 = vld [vmem:[%s1 + $0x58] sm:$0xff]
  %v46 = vld [vmem:[%s1 + $0x60] sm:$0xff]
  %v47 = vld [vmem:[%s1 + $0x68] sm:$0xff]
  %v48 = vld [vmem:[%s1 + $0x70] sm:$0xff]
  %v49 = vld [vmem:[%s1 + $0x78] sm:$0xff]
  %v50 = vld [vmem:[%s1 + $0x80] sm:$0xff]
  %v51 = vld [vmem:[%s1 + $0x88] sm:$0xff]
  %v52 = vld [vmem:[%s1 + $0x90] sm:$0xff]
  %v53 = vld [vmem:[%s1 + $0x98] sm:$0xff]
  %v54 = vld [vmem:[%s1 + $0xa0] sm:$0xff]
  %v55 = vld [vmem:[%s1 + $0xa8] sm:$0xff]
  %v56 = vld [vmem:[%s1 + $0xb0] sm:$0xff]
  %v57 = vld [vmem:[%s1 + $0xb8] sm:$0xff]
  %v58 = vld [vmem:[%s1 + $0xc0] sm:$0xff]
  %v59 = vld [vmem:[%s1 + $0xc8] sm:$0xff]
  %v60 = vld [vmem:[%s1 + $0xd0] sm:$0xff]
  %v61 = vld [vmem:[%s1 + $0xd8] sm:$0xff]
  %v62 = vld [vmem:[%s1 + $0xe0] sm:$0xff]
  %v63 = vld [vmem:[%s1 + $0xe8] sm:$0xff]
  %v64 = vld [vmem:[%s1 + $0xf0] sm:$0xff]
  %v65 = vld [vmem:[%s1 + $0xf8] sm:$0xff]
  %v66 = vld [vmem:[%s1 + $0x100] sm:$0xff]
  %v67 = vld [vmem:[%s1 + $0x108] sm:$0xff]
  %v68 = vld [vmem:[%s1 + $0x110] sm:$0xff]
  %v69 = vld [vmem:[%s1 + $0x118] sm:$0xff]
  %v70 = vld [vmem:[%s1 + $0x120] sm:$0xff]
  %v71 = vld [vmem:[%s1 + $0x128] sm:$0xff]
  %v72 = vld [vmem:[%s1 + $0x130] sm:$0xff]
  %v73 = vld [vmem:[%s1 + $0x138] sm:$0xff]
  %v74 = vld [vmem:[%s1 + $0x140] sm:$0xff]
  %v75 = vld [vmem:[%s1 + $0x148] sm:$0xff]
  %v76 = vld [vmem:[%s1 + $0x150] sm:$0xff]
  %v77 = vld [vmem:[%s1 + $0x158] sm:$0xff]
  %v78 = vld [vmem:[%s1 + $0x160] sm:$0xff]
  %v79 = vld [vmem:[%s1 + $0x168] sm:$0xff]
  %v80 = vld [vmem:[%s1 + $0x170] sm:$0xff]
  %v81 = vld [vmem:[%s1 + $0x178] sm:$0xff]
  %v82 = vld [vmem:[%s1 + $0x180] sm:$0xff]
  %v83 = vld [vmem:[%s1 + $0x188] sm:$0xff]
  %v84 = vld [vmem:[%s1 + $0x190] sm:$0xff]
  %v85 = vld [vmem:[%s1 + $0x198] sm:$0xff]
  %v86 = vld [vmem:[%s1 + $0x1a0] sm:$0xff]
  %v87 = vld [vmem:[%s1 + $0x1a8] sm:$0xff]
  %v88 = vld [vmem:[%s1 + $0x1b0] sm:$0xff]
  %v89 = vld [vmem:[%s1 + $0x1b8] sm:$0xff]
  %v90 = vld [vmem:[%s1 + $0x1c0] sm:$0xff]
  %v91 = vld [vmem:[%s1 + $0x1c8] sm:$0xff]
  %v92 = vld [vmem:[%s1 + $0x1d0] sm:$0xff]
  %v93 = vld [vmem:[%s1 + $0x1d8] sm:$0xff]
  %v94 = vld [vmem:[%s1 + $0x1e0] sm:$0xff]
  %v95 = vld [vmem:[%s1 + $0x1e8] sm:$0xff]
  %v96 = vld [vmem:[%s1 + $0x1f0] sm:$0xff]
  %v97 = vld [vmem:[%s1 + $0x1f8] sm:$0xff]
  %v98 = vld [vmem:[%s1 + $0x200] sm:$0xff]
  %v99 = vld [vmem:[%s1 + $0x208] sm:$0xff]
  %v100 = vld [vmem:[%s1 + $0x210] sm:$0xff]
  %v101 = vld [vmem:[%s1 + $0x218] sm:$0xff]
  %v102 = vld [vmem:[%s1 + $0x220] sm:$0xff]
  %v103 = vld [vmem:[%s1 + $0x228] sm:$0xff]
  %v104 = vld [vmem:[%s1 + $0x230] sm:$0xff]
  %v105 = vld [vmem:[%s1 + $0x238] sm:$0xff]
  %v106 = vld [vmem:[%s1 + $0x240] sm:$0xff]
  %v107 = vld [vmem:[%s1 + $0x248] sm:$0xff]
  %v108 = vld [vmem:[%s1 + $0x250] sm:$0xff]
  %v109 = vld [vmem:[%s1 + $0x258] sm:$0xff]
  %v110 = vld [vmem:[%s1 + $0x260] sm:$0xff]
  %v111 = vld [vmem:[%s1 + $0x268] sm:$0xff]
  %v112 = vld [vmem:[%s1 + $0x270] sm:$0xff]
  %v113 = vld [vmem:[%s1 + $0x278] sm:$0xff]
  %v114 = vld [vmem:[%s1 + $0x280] sm:$0xff]
  %v115 = vld [vmem:[%s1 + $0x288] sm:$0xff]
  %v116 = vld [vmem:[%s1 + $0x290] sm:$0xff]
  %v117 = vld [vmem:[%s1 + $0x298] sm:$0xff]
  %v118 = vld [vmem:[%s1 + $0x2a0] sm:$0xff]
  %v119 = vld [vmem:[%s1 + $0x2a8] sm:$0xff]
  %v120 = vld [vmem:[%s1 + $0x2b0] sm:$0xff]
  %v121 = vld [vmem:[%s1 + $0x2b8] sm:$0xff]
  %v122 = vld [vmem:[%s1 + $0x2c0] sm:$0xff]
  %v123 = vld [vmem:[%s1 + $0x2c8] sm:$0xff]
  %v124 = vld [vmem:[%s1 + $0x2d0] sm:$0xff]
  %v125 = vld [vmem:[%s1 + $0x2d8] sm:$0xff]
  %v126 = vld [vmem:[%s1 + $0x2e0] sm:$0xff]
  %v127 = vld [vmem:[%s1 + $0x2e8] sm:$0xff]
  %v128 = vld [vmem:[%s1 + $0x2f0] sm:$0xff]
  %v129 = vld [vmem:[%s1 + $0x2f8] sm:$0xff]
  %v130 = vld [vmem:[%s1 + $0x300] sm:$0xff]
  %v131 = vld [vmem:[%s1 + $0x308] sm:$0xff]
  %v132 = vld [vmem:[%s1 + $0x310] sm:$0xff]
  %v133 = vld [vmem:[%s1 + $0x318] sm:$0xff]
  %v134 = vld [vmem:[%s1 + $0x320] sm:$0xff]
  %v135 = vld [vmem:[%s1 + $0x328] sm:$0xff]
  %v136 = vld [vmem:[%s1 + $0x330] sm:$0xff]
  %v137 = vld [vmem:[%s1 + $0x338] sm:$0xff]
  %v138 = vld [vmem:[%s1 + $0x340] sm:$0xff]
  %v139 = vld [vmem:[%s1 + $0x348] sm:$0xff]
  %v140 = vld [vmem:[%s1 + $0x350] sm:$0xff]
  %v141 = vld [vmem:[%s1 + $0x358] sm:$0xff]
  %v142 = vld [vmem:[%s1 + $0x360] sm:$0xff]
  %v143 = vld [vmem:[%s1 + $0x368] sm:$0xff]
  %v144 = vld [vmem:[%s1 + $0x370] sm:$0xff]
  %v145 = vld [vmem:[%s1 + $0x378] sm:$0xff]
  %v146 = vld [vmem:[%s1 + $0x380] sm:$0xff]
  %v147 = vld [vmem:[%s1 + $0x388] sm:$0xff]
  %v148 = vld [vmem:[%s1 + $0x390] sm:$0xff]
  %v149 = vld [vmem:[%s1 + $0x398] sm:$0xff]
  %v150 = vld [vmem:[%s1 + $0x3a0] sm:$0xff]
  %v151 = vld [vmem:[%s1 + $0x3a8] sm:$0xff]
  %v152 = vld [vmem:[%s1 + $0x3b0] sm:$0xff]
  %v153 = vld [vmem:[%s1 + $0x3b8] sm:$0xff]
  %v154 = vld [vmem:[%s1 + $0x3c0] sm:$0xff]
  %v155 = vld [vmem:[%s1 + $0x3c8] sm:$0xff]
  %v156 = vld [vmem:[%s1 + $0x3d0] sm:$0xff]
  %v157 = vld [vmem:[%s1 + $0x3d8] sm:$0xff]
  %v158 = vld [vmem:[%s1 + $0x3e0] sm:$0xff]
  %v159 = vld [vmem:[%s1 + $0x3e8] sm:$0xff]
  %v160 = vld [vmem:[%s1 + $0x3f0] sm:$0xff]
  %v161 = vld [vmem:[%s1 + $0x3f8] sm:$0xff]
  %v162 = vld [vmem:[%s1 + $0x400] sm:$0xff]
  %v163 = vld [vmem:[%s1 + $0x408] sm:$0xff]
  %v164 = vld [vmem:[%s1 + $0x410] sm:$0xff]
  %v165 = vld [vmem:[%s1 + $0x418] sm:$0xff]
  %v166 = vld [vmem:[%s1 + $0x420] sm:$0xff]
  %v167 = vld [vmem:[%s1 + $0x428] sm:$0xff]
  %v168 = vld [vmem:[%s1 + $0x430] sm:$0xff]
  %v169 = vld [vmem:[%s1 + $0x438] sm:$0xff]
  %v170 = vld [vmem:[%s1 + $0x440] sm:$0xff]
  %v171 = vld [vmem:[%s1 + $0x448] sm:$0xff]
  %v172 = vld [vmem:[%s1 + $0x450] sm:$0xff]
  %v173 = vld [vmem:[%s1 + $0x458] sm:$0xff]
  %v174 = vld [vmem:[%s1 + $0x460] sm:$0xff]
  %v175 = vld [vmem:[%s1 + $0x468] sm:$0xff]
  %v176 = vld [vmem:[%s1 + $0x470] sm:$0xff]
  %v177 = vld [vmem:[%s1 + $0x478] sm:$0xff]
  %v178 = vld [vmem:[%s1 + $0x480] sm:$0xff]
  %v179 = vld [vmem:[%s1 + $0x488] sm:$0xff]
  %v180 = vld [vmem:[%s1 + $0x490] sm:$0xff]
  %v181 = vld [vmem:[%s1 + $0x498] sm:$0xff]
  %v182 = vld [vmem:[%s1 + $0x4a0] sm:$0xff]
  %v183 = vld [vmem:[%s1 + $0x4a8] sm:$0xff]
  %v184 = vld [vmem:[%s1 + $0x4b0] sm:$0xff]
  %v185 = vld [vmem:[%s1 + $0x4b8] sm:$0xff]
  %v186 = vld [vmem:[%s1 + $0x4c0] sm:$0xff]
  %v187 = vld [vmem:[%s1 + $0x4c8] sm:$0xff]
  %v188 = vld [vmem:[%s1 + $0x4d0] sm:$0xff]
  %v189 = vld [vmem:[%s1 + $0x4d8] sm:$0xff]
  %v190 = vld [vmem:[%s1 + $0x4e0] sm:$0xff]
  %v191 = vld [vmem:[%s1 + $0x4e8] sm:$0xff]
  %v192 = vld [vmem:[%s1 + $0x4f0] sm:$0xff]
  %v193 = vld [vmem:[%s1 + $0x4f8] sm:$0xff]
  %v194 = vld [vmem:[%s1 + $0x500] sm:$0xff]
  %v195 = vld [vmem:[%s1 + $0x508] sm:$0xff]
  %v196 = vld [vmem:[%s1 + $0x510] sm:$0xff]
  %v197 = vld [vmem:[%s1 + $0x518] sm:$0xff]
  %v198 = vld [vmem:[%s1 + $0x520] sm:$0xff]
  %v199 = vld [vmem:[%s1 + $0x528] sm:$0xff]
  %v200 = vld [vmem:[%s1 + $0x530] sm:$0xff]
  %v201 = vld [vmem:[%s1 + $0x538] sm:$0xff]
  %v202 = vld [vmem:[%s1 + $0x540] sm:$0xff]
  %v203 = vld [vmem:[%s1 + $0x548] sm:$0xff]
  %v204 = vld [vmem:[%s1 + $0x550] sm:$0xff]
  %v205 = vld [vmem:[%s1 + $0x558] sm:$0xff]
  %v206 = vld [vmem:[%s1 + $0x560] sm:$0xff]
  %v207 = vld [vmem:[%s1 + $0x568] sm:$0xff]
  %v208 = vld [vmem:[%s1 + $0x570] sm:$0xff]
  %v209 = vld [vmem:[%s1 + $0x578] sm:$0xff]
  %v210 = vld [vmem:[%s1 + $0x580] sm:$0xff]
  %v211 = vld [vmem:[%s1 + $0x588] sm:$0xff]
  %v212 = vld [vmem:[%s1 + $0x590] sm:$0xff]
  %v213 = vld [vmem:[%s1 + $0x598] sm:$0xff]
  %v214 = vld [vmem:[%s1 + $0x5a0] sm:$0xff]
  %v215 = vld [vmem:[%s1 + $0x5a8] sm:$0xff]
  %v216 = vld [vmem:[%s1 + $0x5b0] sm:$0xff]
  %v217 = vld [vmem:[%s1 + $0x5b8] sm:$0xff]
  %v218 = vld [vmem:[%s1 + $0x5c0] sm:$0xff]
  %v219 = vld [vmem:[%s1 + $0x5c8] sm:$0xff]
  %v220 = vld [vmem:[%s1 + $0x5d0] sm:$0xff]
  %v221 = vld [vmem:[%s1 + $0x5d8] sm:$0xff]
  %v222 = vld [vmem:[%s1 + $0x5e0] sm:$0xff]
  %v223 = vld [vmem:[%s1 + $0x5e8] sm:$0xff]
  %v224 = vld [vmem:[%s1 + $0x5f0] sm:$0xff]
  %v225 = vld [vmem:[%s1 + $0x5f8] sm:$0xff]
  %v226 = vld [vmem:[%s1 + $0x600] sm:$0xff]
  %v227 = vld [vmem:[%s1 + $0x608] sm:$0xff]
  %v228 = vld [vmem:[%s1 + $0x610] sm:$0xff]
  %v229 = vld [vmem:[%s1 + $0x618] sm:$0xff]
  %v230 = vld [vmem:[%s1 + $0x620] sm:$0xff]
  %v231 = vld [vmem:[%s1 + $0x628] sm:$0xff]
  %v232 = vld [vmem:[%s1 + $0x630] sm:$0xff]
  %v233 = vld [vmem:[%s1 + $0x638] sm:$0xff]
  %v234 = vld [vmem:[%s1 + $0x640] sm:$0xff]
  %v235 = vld [vmem:[%s1 + $0x648] sm:$0xff]
  %v236 = vld [vmem:[%s1 + $0x650] sm:$0xff]
  %v237 = vld [vmem:[%s1 + $0x658] sm:$0xff]
  %v238 = vld [vmem:[%s1 + $0x660] sm:$0xff]
  %v239 = vld [vmem:[%s1 + $0x668] sm:$0xff]
  %v240 = vld [vmem:[%s1 + $0x670] sm:$0xff]
  %v241 = vld [vmem:[%s1 + $0x678] sm:$0xff]
  %v242 = vld [vmem:[%s1 + $0x680] sm:$0xff]
  %v243 = vld [vmem:[%s1 + $0x688] sm:$0xff]
  %v244 = vld [vmem:[%s1 + $0x690] sm:$0xff]
  %v245 = vld [vmem:[%s1 + $0x698] sm:$0xff]
  %v246 = vld [vmem:[%s1 + $0x6a0] sm:$0xff]
  %v247 = vld [vmem:[%s1 + $0x6a8] sm:$0xff]
  %v248 = vld [vmem:[%s1 + $0x6b0] sm:$0xff]
  %v249 = vld [vmem:[%s1 + $0x6b8] sm:$0xff]
  %v250 = vld [vmem:[%s1 + $0x6c0] sm:$0xff]
  %v251 = vld [vmem:[%s1 + $0x6c8] sm:$0xff]
  %v252 = vld [vmem:[%s1 + $0x6d0] sm:$0xff]
  %v253 = vld [vmem:[%s1 + $0x6d8] sm:$0xff]
  %v254 = vld [vmem:[%s1 + $0x6e0] sm:$0xff]
  %v255 = vld [vmem:[%s1 + $0x6e8] sm:$0xff]
  %v256 = vld [vmem:[%s1 + $0x6f0] sm:$0xff]
  %v257 = vld [vmem:[%s1 + $0x6f8] sm:$0xff]
  %v258 = vld [vmem:[%s1 + $0x700] sm:$0xff]
  %v259 = vld [vmem:[%s1 + $0x708] sm:$0xff]
  %v260 = vld [vmem:[%s1 + $0x710] sm:$0xff]
  %v261 = vld [vmem:[%s1 + $0x718] sm:$0xff]
  %v262 = vld [vmem:[%s1 + $0x720] sm:$0xff]
  %v263 = vld [vmem:[%s1 + $0x728] sm:$0xff]
  %v264 = vld [vmem:[%s1 + $0x730] sm:$0xff]
  %v265 = vld [vmem:[%s1 + $0x738] sm:$0xff]
  %v266 = vld [vmem:[%s1 + $0x740] sm:$0xff]
  %v267 = vld [vmem:[%s1 + $0x748] sm:$0xff]
  %v268 = vld [vmem:[%s1 + $0x750] sm:$0xff]
  %v269 = vld [vmem:[%s1 + $0x758] sm:$0xff]
  %v270 = vld [vmem:[%s1 + $0x760] sm:$0xff]
  %v271 = vld [vmem:[%s1 + $0x768] sm:$0xff]
  %v272 = vld [vmem:[%s1 + $0x770] sm:$0xff]
  %v273 = vld [vmem:[%s1 + $0x778] sm:$0xff]
  %v274 = vld [vmem:[%s1 + $0x780] sm:$0xff]
  %v275 = vld [vmem:[%s1 + $0x788] sm:$0xff]
  %v276 = vld [vmem:[%s1 + $0x790] sm:$0xff]
  %v277 = vld [vmem:[%s1 + $0x798] sm:$0xff]
  %v278 = vld [vmem:[%s1 + $0x7a0] sm:$0xff]
  %v279 = vld [vmem:[%s1 + $0x7a8] sm:$0xff]
  %v280 = vld [vmem:[%s1 + $0x7b0] sm:$0xff]
  %v281 = vld [vmem:[%s1 + $0x7b8] sm:$0xff]
  %v282 = vld [vmem:[%s1 + $0x7c0] sm:$0xff]
  %v283 = vld [vmem:[%s1 + $0x7c8] sm:$0xff]
  %v284 = vld [vmem:[%s1 + $0x7d0] sm:$0xff]
  %v285 = vld [vmem:[%s1 + $0x7d8] sm:$0xff]
  %v286 = vld [vmem:[%s1 + $0x7e0] sm:$0xff]
  %v287 = vld [vmem:[%s1 + $0x7e8] sm:$0xff]
  %v288 = vld [vmem:[%s1 + $0x7f0] sm:$0xff]
  %v289 = vld [vmem:[%s1 + $0x7f8] sm:$0xff]
  %v290 = vld [vmem:[%s1 + $0x800] sm:$0xff]
  %v291 = vld [vmem:[%s1 + $0x808] sm:$0xff]
  %v292 = vld [vmem:[%s1 + $0x810] sm:$0xff]
  %v293 = vld [vmem:[%s1 + $0x818] sm:$0xff]
  %v294 = vld [vmem:[%s1 + $0x820] sm:$0xff]
  %v295 = vld [vmem:[%s1 + $0x828] sm:$0xff]
  %v296 = vld [vmem:[%s1 + $0x830] sm:$0xff]
  %v297 = vld [vmem:[%s1 + $0x838] sm:$0xff]
  %v298 = vld [vmem:[%s1 + $0x840] sm:$0xff]
  %v299 = vld [vmem:[%s1 + $0x848] sm:$0xff]
  %v300 = vld [vmem:[%s1 + $0x850] sm:$0xff]
  %v301 = vld [vmem:[%s1 + $0x858] sm:$0xff]
  %v302 = vld [vmem:[%s1 + $0x860] sm:$0xff]
  %v303 = vld [vmem:[%s1 + $0x868] sm:$0xff]
  %v304 = vld [vmem:[%s1 + $0x870] sm:$0xff]
  %v305 = vld [vmem:[%s1 + $0x878] sm:$0xff]
  %v306 = vld [vmem:[%s1 + $0x880] sm:$0xff]
  %v307 = vld [vmem:[%s1 + $0x888] sm:$0xff]
  %v308 = vld [vmem:[%s1 + $0x890] sm:$0xff]
  %v309 = vld [vmem:[%s1 + $0x898] sm:$0xff]
  %v310 = vld [vmem:[%s1 + $0x8a0] sm:$0xff]
  %v311 = vld [vmem:[%s1 + $0x8a8] sm:$0xff]
  %v312 = vld [vmem:[%s1 + $0x8b0] sm:$0xff]
  %v313 = vld [vmem:[%s1 + $0x8b8] sm:$0xff]
  %v314 = vld [vmem:[%s1 + $0x8c0] sm:$0xff]
  %v315 = vld [vmem:[%s1 + $0x8c8] sm:$0xff]
  %v316 = vld [vmem:[%s1 + $0x8d0] sm:$0xff]
  %v317 = vld [vmem:[%s1 + $0x8d8] sm:$0xff]
  %v318 = vld [vmem:[%s1 + $0x8e0] sm:$0xff]
  %v319 = vld [vmem:[%s1 + $0x8e8] sm:$0xff]
  %v320 = vld [vmem:[%s1 + $0x8f0] sm:$0xff]
  %v321 = vld [vmem:[%s1 + $0x8f8] sm:$0xff]
  %v322 = vld [vmem:[%s1 + $0x900] sm:$0xff]
  %v323 = vld [vmem:[%s1 + $0x908] sm:$0xff]
  %v324 = vld [vmem:[%s1 + $0x910] sm:$0xff]
  %v325 = vld [vmem:[%s1 + $0x918] sm:$0xff]
  %v326 = vld [vmem:[%s1 + $0x920] sm:$0xff]
  %v327 = vld [vmem:[%s1 + $0x928] sm:$0xff]
  %v328 = vld [vmem:[%s1 + $0x930] sm:$0xff]
  %v329 = vld [vmem:[%s1 + $0x938] sm:$0xff]
  %v330 = vld [vmem:[%s1 + $0x940] sm:$0xff]
  %v331 = vld [vmem:[%s1 + $0x948] sm:$0xff]
  %v332 = vld [vmem:[%s1 + $0x950] sm:$0xff]
  %v333 = vld [vmem:[%s1 + $0x958] sm:$0xff]
  %v334 = vld [vmem:[%s1 + $0x960] sm:$0xff]
  %v335 = vld [vmem:[%s1 + $0x968] sm:$0xff]
  %v336 = vld [vmem:[%s1 + $0x970] sm:$0xff]
  %v337 = vld [vmem:[%s1 + $0x978] sm:$0xff]
  %v338 = vld [vmem:[%s1 + $0x980] sm:$0xff]
  %v339 = vld [vmem:[%s1 + $0x988] sm:$0xff]
  %v340 = vld [vmem:[%s1 + $0x990] sm:$0xff]
  %v341 = vld [vmem:[%s1 + $0x998] sm:$0xff]
  %v342 = vld [vmem:[%s1 + $0x9a0] sm:$0xff]
  %v343 = vld [vmem:[%s1 + $0x9a8] sm:$0xff]
  %v344 = vld [vmem:[%s1 + $0x9b0] sm:$0xff]
  %v345 = vld [vmem:[%s1 + $0x9b8] sm:$0xff]
  %v346 = vld [vmem:[%s1 + $0x9c0] sm:$0xff]
  %v347 = vld [vmem:[%s1 + $0x9c8] sm:$0xff]
  %v348 = vld [vmem:[%s1 + $0x9d0] sm:$0xff]
  %v349 = vld [vmem:[%s1 + $0x9d8] sm:$0xff]
  %v350 = vld [vmem:[%s1 + $0x9e0] sm:$0xff]
  %v351 = vld [vmem:[%s1 + $0x9e8] sm:$0xff]
  %v352 = vld [vmem:[%s1 + $0x9f0] sm:$0xff]
  %v353 = vld [vmem:[%s1 + $0x9f8] sm:$0xff]
  %v354 = vld [vmem:[%s1 + $0xa00] sm:$0xff]
  %v355 = vld [vmem:[%s1 + $0xa08] sm:$0xff]
  %v356 = vld [vmem:[%s1 + $0xa10] sm:$0xff]
  %v357 = vld [vmem:[%s1 + $0xa18] sm:$0xff]
  %v358 = vld [vmem:[%s1 + $0xa20] sm:$0xff]
  %v359 = vld [vmem:[%s1 + $0xa28] sm:$0xff]
  %v360 = vld [vmem:[%s1 + $0xa30] sm:$0xff]
  %v361 = vld [vmem:[%s1 + $0xa38] sm:$0xff]
  %v362 = vld [vmem:[%s1 + $0xa40] sm:$0xff]
  %v363 = vld [vmem:[%s1 + $0xa48] sm:$0xff]
  %v364 = vld [vmem:[%s1 + $0xa50] sm:$0xff]
  %v365 = vld [vmem:[%s1 + $0xa58] sm:$0xff]
  %v366 = vld [vmem:[%s1 + $0xa60] sm:$0xff]
  %v367 = vld [vmem:[%s1 + $0xa68] sm:$0xff]
  %v368 = vld [vmem:[%s1 + $0xa70] sm:$0xff]
  %v369 = vld [vmem:[%s1 + $0xa78] sm:$0xff]
  %v370 = vld [vmem:[%s1 + $0xa80] sm:$0xff]
  %v371 = vld [vmem:[%s1 + $0xa88] sm:$0xff]
  %v372 = vld [vmem:[%s1 + $0xa90] sm:$0xff]
  %v373 = vld [vmem:[%s1 + $0xa98] sm:$0xff]
  %v374 = vld [vmem:[%s1 + $0xaa0] sm:$0xff]
  %v375 = vld [vmem:[%s1 + $0xaa8] sm:$0xff]
  %v376 = vld [vmem:[%s1 + $0xab0] sm:$0xff]
  %v377 = vld [vmem:[%s1 + $0xab8] sm:$0xff]
  %v378 = vld [vmem:[%s1 + $0xac0] sm:$0xff]
  %v379 = vld [vmem:[%s1 + $0xac8] sm:$0xff]
  %v380 = vld [vmem:[%s1 + $0xad0] sm:$0xff]
  %v381 = vld [vmem:[%s1 + $0xad8] sm:$0xff]
  %v382 = vld [vmem:[%s1 + $0xae0] sm:$0xff]
  %v383 = vld [vmem:[%s1 + $0xae8] sm:$0xff]
  %v384 = vld [vmem:[%s1 + $0xaf0] sm:$0xff]
  %v385 = vld [vmem:[%s1 + $0xaf8] sm:$0xff]
  %v386 = vld [vmem:[%s1 + $0xb00] sm:$0xff]
  %v387 = vld [vmem:[%s1 + $0xb08] sm:$0xff]
  %v388 = vld [vmem:[%s1 + $0xb10] sm:$0xff]
  %v389 = vld [vmem:[%s1 + $0xb18] sm:$0xff]
  %v390 = vld [vmem:[%s1 + $0xb20] sm:$0xff]
  %v391 = vld [vmem:[%s1 + $0xb28] sm:$0xff]
  %v392 = vld [vmem:[%s1 + $0xb30] sm:$0xff]
  %v393 = vld [vmem:[%s1 + $0xb38] sm:$0xff]
  %v394 = vld [vmem:[%s1 + $0xb40] sm:$0xff]
  %v395 = vld [vmem:[%s1 + $0xb48] sm:$0xff]
  %v396 = vld [vmem:[%s1 + $0xb50] sm:$0xff]
  %v397 = vld [vmem:[%s1 + $0xb58] sm:$0xff]
  %v398 = vld [vmem:[%s1 + $0xb60] sm:$0xff]
  %v399 = vld [vmem:[%s1 + $0xb68] sm:$0xff]
  %v400 = vld [vmem:[%s1 + $0xb70] sm:$0xff]
  %v401 = vld [vmem:[%s1 + $0xb78] sm:$0xff]
  %v402 = vld [vmem:[%s1 + $0xb80] sm:$0xff]
  %v403 = vld [vmem:[%s1 + $0xb88] sm:$0xff]
  %v404 = vld [vmem:[%s1 + $0xb90] sm:$0xff]
  %v405 = vld [vmem:[%s1 + $0xb98] sm:$0xff]
  %v406 = vld [vmem:[%s1 + $0xba0] sm:$0xff]
  %v407 = vld [vmem:[%s1 + $0xba8] sm:$0xff]
  %v408 = vld [vmem:[%s1 + $0xbb0] sm:$0xff]
  %v409 = vld [vmem:[%s1 + $0xbb8] sm:$0xff]
  %v410 = vld [vmem:[%s1 + $0xbc0] sm:$0xff]
  %v411 = vld [vmem:[%s1 + $0xbc8] sm:$0xff]
  %v412 = vld [vmem:[%s1 + $0xbd0] sm:$0xff]
  %v413 = vld [vmem:[%s1 + $0xbd8] sm:$0xff]
  %v414 = vld [vmem:[%s1 + $0xbe0] sm:$0xff]
  %v415 = vld [vmem:[%s1 + $0xbe8] sm:$0xff]
  %v416 = vld [vmem:[%s1 + $0xbf0] sm:$0xff]
  %v417 = vld [vmem:[%s1 + $0xbf8] sm:$0xff]
  %v418 = vld [vmem:[%s1 + $0xc00] sm:$0xff]
  %v419 = vld [vmem:[%s1 + $0xc08] sm:$0xff]
  %v420 = vld [vmem:[%s1 + $0xc10] sm:$0xff]
  %v421 = vld [vmem:[%s1 + $0xc18] sm:$0xff]
  %v422 = vld [vmem:[%s1 + $0xc20] sm:$0xff]
  %v423 = vld [vmem:[%s1 + $0xc28] sm:$0xff]
  %v424 = vld [vmem:[%s1 + $0xc30] sm:$0xff]
  %v425 = vld [vmem:[%s1 + $0xc38] sm:$0xff]
  %v426 = vld [vmem:[%s1 + $0xc40] sm:$0xff]
  %v427 = vld [vmem:[%s1 + $0xc48] sm:$0xff]
  %v428 = vld [vmem:[%s1 + $0xc50] sm:$0xff]
  %v429 = vld [vmem:[%s1 + $0xc58] sm:$0xff]
  %v430 = vld [vmem:[%s1 + $0xc60] sm:$0xff]
  %v431 = vld [vmem:[%s1 + $0xc68] sm:$0xff]
  %v432 = vld [vmem:[%s1 + $0xc70] sm:$0xff]
  %v433 = vld [vmem:[%s1 + $0xc78] sm:$0xff]
  %v434 = vld [vmem:[%s1 + $0xc80] sm:$0xff]
  %v435 = vld [vmem:[%s1 + $0xc88] sm:$0xff]
  %v436 = vld [vmem:[%s1 + $0xc90] sm:$0xff]
  %v437 = vld [vmem:[%s1 + $0xc98] sm:$0xff]
  %v438 = vld [vmem:[%s1 + $0xca0] sm:$0xff]
  %v439 = vld [vmem:[%s1 + $0xca8] sm:$0xff]
  %v440 = vld [vmem:[%s1 + $0xcb0] sm:$0xff]
  %v441 = vld [vmem:[%s1 + $0xcb8] sm:$0xff]
  %v442 = vld [vmem:[%s1 + $0xcc0] sm:$0xff]
  %v443 = vld [vmem:[%s1 + $0xcc8] sm:$0xff]
  %v444 = vld [vmem:[%s1 + $0xcd0] sm:$0xff]
  %v445 = vld [vmem:[%s1 + $0xcd8] sm:$0xff]
  %v446 = vld [vmem:[%s1 + $0xce0] sm:$0xff]
  %v447 = vld [vmem:[%s1 + $0xce8] sm:$0xff]
  %v448 = vld [vmem:[%s1 + $0xcf0] sm:$0xff]
  %v449 = vld [vmem:[%s1 + $0xcf8] sm:$0xff]
  %v450 = vld [vmem:[%s1 + $0xd00] sm:$0xff]
  %v451 = vld [vmem:[%s1 + $0xd08] sm:$0xff]
  %v452 = vld [vmem:[%s1 + $0xd10] sm:$0xff]
  %v453 = vld [vmem:[%s1 + $0xd18] sm:$0xff]
  %v454 = vld [vmem:[%s1 + $0xd20] sm:$0xff]
  %v455 = vld [vmem:[%s1 + $0xd28] sm:$0xff]
  %v456 = vld [vmem:[%s1 + $0xd30] sm:$0xff]
  %v457 = vld [vmem:[%s1 + $0xd38] sm:$0xff]
  %v458 = vld [vmem:[%s1 + $0xd40] sm:$0xff]
  %v459 = vld [vmem:[%s1 + $0xd48] sm:$0xff]
  %v460 = vld [vmem:[%s1 + $0xd50] sm:$0xff]
  %v461 = vld [vmem:[%s1 + $0xd58] sm:$0xff]
  %v462 = vld [vmem:[%s1 + $0xd60] sm:$0xff]
  %v463 = vld [vmem:[%s1 + $0xd68] sm:$0xff]
  %v464 = vld [vmem:[%s1 + $0xd70] sm:$0xff]
  %v465 = vld [vmem:[%s1 + $0xd78] sm:$0xff]
  %v466 = vld [vmem:[%s1 + $0xd80] sm:$0xff]
  %v467 = vld [vmem:[%s1 + $0xd88] sm:$0xff]
  %v468 = vld [vmem:[%s1 + $0xd90] sm:$0xff]
  %v469 = vld [vmem:[%s1 + $0xd98] sm:$0xff]
  %v470 = vld [vmem:[%s1 + $0xda0] sm:$0xff]
  %v471 = vld [vmem:[%s1 + $0xda8] sm:$0xff]
  %v472 = vld [vmem:[%s1 + $0xdb0] sm:$0xff]
  %v473 = vld [vmem:[%s1 + $0xdb8] sm:$0xff]
  %v474 = vld [vmem:[%s1 + $0xdc0] sm:$0xff]
  %v475 = vld [vmem:[%s1 + $0xdc8] sm:$0xff]
  %v476 = vld [vmem:[%s1 + $0xdd0] sm:$0xff]
  %v477 = vld [vmem:[%s1 + $0xdd8] sm:$0xff]
  %v478 = vld [vmem:[%s1 + $0xde0] sm:$0xff]
  %v479 = vld [vmem:[%s1 + $0xde8] sm:$0xff]
  %v480 = vld [vmem:[%s1 + $0xdf0] sm:$0xff]
  %v481 = vld [vmem:[%s1 + $0xdf8] sm:$0xff]
  %v482 = vld [vmem:[%s1 + $0xe00] sm:$0xff]
  %v483 = vld [vmem:[%s1 + $0xe08] sm:$0xff]
  %v484 = vld [vmem:[%s1 + $0xe10] sm:$0xff]
  %v485 = vld [vmem:[%s1 + $0xe18] sm:$0xff]
  %v486 = vld [vmem:[%s1 + $0xe20] sm:$0xff]
  %v487 = vld [vmem:[%s1 + $0xe28] sm:$0xff]
  %v488 = vld [vmem:[%s1 + $0xe30] sm:$0xff]
  %v489 = vld [vmem:[%s1 + $0xe38] sm:$0xff]
  %v490 = vld [vmem:[%s1 + $0xe40] sm:$0xff]
  %v491 = vld [vmem:[%s1 + $0xe48] sm:$0xff]
  %v492 = vld [vmem:[%s1 + $0xe50] sm:$0xff]
  %v493 = vld [vmem:[%s1 + $0xe58] sm:$0xff]
  %v494 = vld [vmem:[%s1 + $0xe60] sm:$0xff]
  %v495 = vld [vmem:[%s1 + $0xe68] sm:$0xff]
  %v496 = vld [vmem:[%s1 + $0xe70] sm:$0xff]
  %v497 = vld [vmem:[%s1 + $0xe78] sm:$0xff]
  %v498 = vld [vmem:[%s1 + $0xe80] sm:$0xff]
  %v499 = vld [vmem:[%s1 + $0xe88] sm:$0xff]
  %v500 = vld [vmem:[%s1 + $0xe90] sm:$0xff]
  %v501 = vld [vmem:[%s1 + $0xe98] sm:$0xff]
  %v502 = vld [vmem:[%s1 + $0xea0] sm:$0xff]
  %v503 = vld [vmem:[%s1 + $0xea8] sm:$0xff]
  %v504 = vld [vmem:[%s1 + $0xeb0] sm:$0xff]
  %v505 = vld [vmem:[%s1 + $0xeb8] sm:$0xff]
  %v506 = vld [vmem:[%s1 + $0xec0] sm:$0xff]
  %v507 = vld [vmem:[%s1 + $0xec8] sm:$0xff]
  %v508 = vld [vmem:[%s1 + $0xed0] sm:$0xff]
  %v509 = vld [vmem:[%s1 + $0xed8] sm:$0xff]
  %v510 = vld [vmem:[%s1 + $0xee0] sm:$0xff]
  %v511 = vld [vmem:[%s1 + $0xee8] sm:$0xff]
  %v512 = vld [vmem:[%s1 + $0xef0] sm:$0xff]
  %v513 = vld [vmem:[%s1 + $0xef8] sm:$0xff]
  %v514 = vld [vmem:[%s1 + $0xf00] sm:$0xff]
  %v515 = vld [vmem:[%s1 + $0xf08] sm:$0xff]
  %v516 = vld [vmem:[%s1 + $0xf10] sm:$0xff]
  %v517 = vld [vmem:[%s1 + $0xf18] sm:$0xff]
  %v518 = vld [vmem:[%s1 + $0xf20] sm:$0xff]
  %v519 = vld [vmem:[%s1 + $0xf28] sm:$0xff]
  %v520 = vld [vmem:[%s1 + $0xf30] sm:$0xff]
  %v521 = vld [vmem:[%s1 + $0xf38] sm:$0xff]
  %v522 = vld [vmem:[%s1 + $0xf40] sm:$0xff]
  %v523 = vld [vmem:[%s1 + $0xf48] sm:$0xff]
  %v524 = vld [vmem:[%s1 + $0xf50] sm:$0xff]
  %v525 = vld [vmem:[%s1 + $0xf58] sm:$0xff]
  %v526 = vld [vmem:[%s1 + $0xf60] sm:$0xff]
  %v527 = vld [vmem:[%s1 + $0xf68] sm:$0xff]
  %v528 = vld [vmem:[%s1 + $0xf70] sm:$0xff]
  %v529 = vld [vmem:[%s1 + $0xf78] sm:$0xff]
  %v530 = vld [vmem:[%s1 + $0xf80] sm:$0xff]
  %v531 = vld [vmem:[%s1 + $0xf88] sm:$0xff]
  %v532 = vld [vmem:[%s1 + $0xf90] sm:$0xff]
  %v533 = vld [vmem:[%s1 + $0xf98] sm:$0xff]
  %v534 = vld [vmem:[%s1 + $0xfa0] sm:$0xff]
  %v535 = vld [vmem:[%s1 + $0xfa8] sm:$0xff]
  %v536 = vld [vmem:[%s1 + $0xfb0] sm:$0xff]
  %v537 = vld [vmem:[%s1 + $0xfb8] sm:$0xff]
  %v538 = vld [vmem:[%s1 + $0xfc0] sm:$0xff]
  %v539 = vld [vmem:[%s1 + $0xfc8] sm:$0xff]
  %v540 = vld [vmem:[%s1 + $0xfd0] sm:$0xff]
  %v541 = vld [vmem:[%s1 + $0xfd8] sm:$0xff]
  %v542 = vld [vmem:[%s1 + $0xfe0] sm:$0xff]
  %v543 = vld [vmem:[%s1 + $0xfe8] sm:$0xff]
  %v544 = vld [vmem:[%s1 + $0xff0] sm:$0xff]
  %v545 = vld [vmem:[%s1 + $0xff8] sm:$0xff]
  %v546 = vld [vmem:[%s1 + $0x1000] sm:$0xff]
  %v547 = vld [vmem:[%s1 + $0x1008] sm:$0xff]
  %v548 = vld [vmem:[%s1 + $0x1010] sm:$0xff]
  %v549 = vld [vmem:[%s1 + $0x1018] sm:$0xff]
  %v550 = vld [vmem:[%s1 + $0x1020] sm:$0xff]
  %v551 = vld [vmem:[%s1 + $0x1028] sm:$0xff]
  %v552 = vld [vmem:[%s1 + $0x1030] sm:$0xff]
  %v553 = vld [vmem:[%s1 + $0x1038] sm:$0xff]
  %v554 = vld [vmem:[%s1 + $0x1040] sm:$0xff]
  %v555 = vld [vmem:[%s1 + $0x1048] sm:$0xff]
  %v556 = vld [vmem:[%s1 + $0x1050] sm:$0xff]
  %v557 = vld [vmem:[%s1 + $0x1058] sm:$0xff]
  %v558 = vld [vmem:[%s1 + $0x1060] sm:$0xff]
  %v559 = vld [vmem:[%s1 + $0x1068] sm:$0xff]
  %v560 = vld [vmem:[%s1 + $0x1070] sm:$0xff]
  %v561 = vld [vmem:[%s1 + $0x1078] sm:$0xff]
  %v562 = vld [vmem:[%s1 + $0x1080] sm:$0xff]
  %v563 = vld [vmem:[%s1 + $0x1088] sm:$0xff]
  %v564 = vld [vmem:[%s1 + $0x1090] sm:$0xff]
  %v565 = vld [vmem:[%s1 + $0x1098] sm:$0xff]
  %v566 = vld [vmem:[%s1 + $0x10a0] sm:$0xff]
  %v567 = vld [vmem:[%s1 + $0x10a8] sm:$0xff]
  %v568 = vld [vmem:[%s1 + $0x10b0] sm:$0xff]
  %v569 = vld [vmem:[%s1 + $0x10b8] sm:$0xff]
  %v570 = vld [vmem:[%s1 + $0x10c0] sm:$0xff]
  %v571 = vld [vmem:[%s1 + $0x10c8] sm:$0xff]
  %v572 = vld [vmem:[%s1 + $0x10d0] sm:$0xff]
  %v573 = vld [vmem:[%s1 + $0x10d8] sm:$0xff]
  %v574 = vld [vmem:[%s1 + $0x10e0] sm:$0xff]
  %v575 = vld [vmem:[%s1 + $0x10e8] sm:$0xff]
  %v576 = vld [vmem:[%s1 + $0x10f0] sm:$0xff]
  %v577 = vld [vmem:[%s1 + $0x10f8] sm:$0xff]
  %v578 = vld [vmem:[%s1 + $0x1100] sm:$0xff]
  %v579 = vld [vmem:[%s1 + $0x1108] sm:$0xff]
  %v580 = vld [vmem:[%s1 + $0x1110] sm:$0xff]
  %v581 = vld [vmem:[%s1 + $0x1118] sm:$0xff]
  %v582 = vld [vmem:[%s1 + $0x1120] sm:$0xff]
  %v583 = vld [vmem:[%s1 + $0x1128] sm:$0xff]
  %v584 = vld [vmem:[%s1 + $0x1130] sm:$0xff]
  %v585 = vld [vmem:[%s1 + $0x1138] sm:$0xff]
  %v586 = vld [vmem:[%s1 + $0x1140] sm:$0xff]
  %v587 = vld [vmem:[%s1 + $0x1148] sm:$0xff]
  %v588 = vld [vmem:[%s1 + $0x1150] sm:$0xff]
  %v589 = vld [vmem:[%s1 + $0x1158] sm:$0xff]
  %v590 = vld [vmem:[%s1 + $0x1160] sm:$0xff]
  %v591 = vld [vmem:[%s1 + $0x1168] sm:$0xff]
  %v592 = vld [vmem:[%s1 + $0x1170] sm:$0xff]
  %v593 = vld [vmem:[%s1 + $0x1178] sm:$0xff]
  %v594 = vld [vmem:[%s1 + $0x1180] sm:$0xff]
  %v595 = vld [vmem:[%s1 + $0x1188] sm:$0xff]
  %v596 = vld [vmem:[%s1 + $0x1190] sm:$0xff]
  %v597 = vld [vmem:[%s1 + $0x1198] sm:$0xff]
  %v598 = vld [vmem:[%s1 + $0x11a0] sm:$0xff]
  %v599 = vld [vmem:[%s1 + $0x11a8] sm:$0xff]
  %v600 = vld [vmem:[%s1 + $0x11b0] sm:$0xff]
  %v601 = vld [vmem:[%s1 + $0x11b8] sm:$0xff]
  %v602 = vld [vmem:[%s1 + $0x11c0] sm:$0xff]
  %v603 = vld [vmem:[%s1 + $0x11c8] sm:$0xff]
  %v604 = vld [vmem:[%s1 + $0x11d0] sm:$0xff]
  %v605 = vld [vmem:[%s1 + $0x11d8] sm:$0xff]
  %v606 = vld [vmem:[%s1 + $0x11e0] sm:$0xff]
  %v607 = vld [vmem:[%s1 + $0x11e8] sm:$0xff]
  %v608 = vld [vmem:[%s1 + $0x11f0] sm:$0xff]
  %v609 = vld [vmem:[%s1 + $0x11f8] sm:$0xff]
  %v610 = vld [vmem:[%s2] sm:$0xff]
  %v612 = vperm.slane %v610, 0
  %v613 = vperm.slane %v610, 1
  %v614 = vperm.slane %v610, 2
  %v615 = vperm.slane %v610, 3
  %v616 = vperm.slane %v610, 4
  %v617 = vperm.slane %v610, 5
  %v618 = vperm.slane %v610, 6
  %v619 = vperm.slane %v610, 7
  %vm628 = vcmask 523264
  %v630 = vsel %vm628, %v18, 0
  %v633 = vsel %vm628, %v23, 0
  %v636 = vsel %vm628, %v28, 0
  %v639 = vsel %vm628, %v33, 0
  %641 = vmatpush.msra.mxu0 %v154
  %642 = vmatpush.msra.mxu0 %v146
  %643 = vmatpush.msra.mxu0 %v138
  %644 = vmatpush.msra.mxu0 %v130
  %645 = vmatpush.msra.mxu0 %v122
  %646 = vmatpush.msra.mxu0 %v114
  %647 = vmatpush.msra.mxu0 %v106
  %648 = vmatpush.msra.mxu0 %v98
  %649 = vmatpush.msra.mxu0 %v90
  %650 = vmatpush.msra.mxu0 %v82
  %651 = vmatpush.msra.mxu0 %v74
  %652 = vmatpush.msra.mxu0 %v66
  %653 = vmatpush.msra.mxu0 %v58
  %654 = vmatpush.msra.mxu0 %v50
  %655 = vmatpush.msra.mxu0 %v42
  %656 = vmatpush.msra.mxu0 %v34
  %657 = vmatmul.f32.gmra.mxu0 %v14
  %v658 = vpop.f32.mrf.mxu0
  %v659 = vadd.f32 %v612, %v658
  %660 = vmatmul.f32.gmra.mxu0 %v19
  %v661 = vpop.f32.mrf.mxu0
  %v662 = vadd.f32 %v612, %v661
  %663 = vmatmul.f32.gmra.mxu0 %v24
  %v664 = vpop.f32.mrf.mxu0
  %v665 = vadd.f32 %v612, %v664
  %666 = vmatmul.f32.gmra.mxu0 %v29
  %v667 = vpop.f32.mrf.mxu0
  %v668 = vadd.f32 %v612, %v667
  %669 = vdwg.mxu0
  %670 = vmatpush.msra.mxu0 %v282
  %671 = vmatpush.msra.mxu0 %v274
  %672 = vmatpush.msra.mxu0 %v266
  %673 = vmatpush.msra.mxu0 %v258
  %674 = vmatpush.msra.mxu0 %v250
  %675 = vmatpush.msra.mxu0 %v242
  %676 = vmatpush.msra.mxu0 %v234
  %677 = vmatpush.msra.mxu0 %v226
  %678 = vmatpush.msra.mxu0 %v218
  %679 = vmatpush.msra.mxu0 %v210
  %680 = vmatpush.msra.mxu0 %v202
  %681 = vmatpush.msra.mxu0 %v194
  %682 = vmatpush.msra.mxu0 %v186
  %683 = vmatpush.msra.mxu0 %v178
  %684 = vmatpush.msra.mxu0 %v170
  %685 = vmatpush.msra.mxu0 %v162
  %686 = vmatmul.f32.gmra.mxu0 %v15
  %v687 = vpop.f32.mrf.mxu0
  %v688 = vadd.f32 %v659, %v687
  %689 = vmatmul.f32.gmra.mxu0 %v20
  %v690 = vpop.f32.mrf.mxu0
  %v691 = vadd.f32 %v662, %v690
  %692 = vmatmul.f32.gmra.mxu0 %v25
  %v693 = vpop.f32.mrf.mxu0
  %v694 = vadd.f32 %v665, %v693
  %695 = vmatmul.f32.gmra.mxu0 %v30
  %v696 = vpop.f32.mrf.mxu0
  %v697 = vadd.f32 %v668, %v696
  %698 = vdwg.mxu0
  %699 = vmatpush.msra.mxu0 %v410
  %700 = vmatpush.msra.mxu0 %v402
  %701 = vmatpush.msra.mxu0 %v394
  %702 = vmatpush.msra.mxu0 %v386
  %703 = vmatpush.msra.mxu0 %v378
  %704 = vmatpush.msra.mxu0 %v370
  %705 = vmatpush.msra.mxu0 %v362
  %706 = vmatpush.msra.mxu0 %v354
  %707 = vmatpush.msra.mxu0 %v346
  %708 = vmatpush.msra.mxu0 %v338
  %709 = vmatpush.msra.mxu0 %v330
  %710 = vmatpush.msra.mxu0 %v322
  %711 = vmatpush.msra.mxu0 %v314
  %712 = vmatpush.msra.mxu0 %v306
  %713 = vmatpush.msra.mxu0 %v298
  %714 = vmatpush.msra.mxu0 %v290
  %715 = vmatmul.f32.gmra.mxu0 %v16
  %v716 = vpop.f32.mrf.mxu0
  %v717 = vadd.f32 %v688, %v716
  %718 = vmatmul.f32.gmra.mxu0 %v21
  %v719 = vpop.f32.mrf.mxu0
  %v720 = vadd.f32 %v691, %v719
  %721 = vmatmul.f32.gmra.mxu0 %v26
  %v722 = vpop.f32.mrf.mxu0
  %v723 = vadd.f32 %v694, %v722
  %724 = vmatmul.f32.gmra.mxu0 %v31
  %v725 = vpop.f32.mrf.mxu0
  %v726 = vadd.f32 %v697, %v725
  %727 = vdwg.mxu0
  %728 = vmatpush.msra.mxu0 %v538
  %729 = vmatpush.msra.mxu0 %v530
  %730 = vmatpush.msra.mxu0 %v522
  %731 = vmatpush.msra.mxu0 %v514
  %732 = vmatpush.msra.mxu0 %v506
  %733 = vmatpush.msra.mxu0 %v498
  %734 = vmatpush.msra.mxu0 %v490
  %735 = vmatpush.msra.mxu0 %v482
  %736 = vmatpush.msra.mxu0 %v474
  %737 = vmatpush.msra.mxu0 %v466
  %738 = vmatpush.msra.mxu0 %v458
  %739 = vmatpush.msra.mxu0 %v450
  %740 = vmatpush.msra.mxu0 %v442
  %741 = vmatpush.msra.mxu0 %v434
  %742 = vmatpush.msra.mxu0 %v426
  %743 = vmatpush.msra.mxu0 %v418
  %744 = vmatmul.f32.gmra.mxu0 %v17
  %v745 = vpop.f32.mrf.mxu0
  %v746 = vadd.f32 %v717, %v745
  %747 = vmatmul.f32.gmra.mxu0 %v22
  %v748 = vpop.f32.mrf.mxu0
  %v749 = vadd.f32 %v720, %v748
  %750 = vmatmul.f32.gmra.mxu0 %v27
  %v751 = vpop.f32.mrf.mxu0
  %v752 = vadd.f32 %v723, %v751
  %753 = vmatmul.f32.gmra.mxu0 %v32
  %v754 = vpop.f32.mrf.mxu0
  %v755 = vadd.f32 %v726, %v754
  %756 = vdwg.mxu0
  %757 = vmatpush.msra.mxu0 0.0
  %758 = vmatpush.msra.mxu0 0.0
  %759 = vmatpush.msra.mxu0 0.0
  %760 = vmatpush.msra.mxu0 0.0
  %761 = vmatpush.msra.mxu0 0.0
  %762 = vmatpush.msra.mxu0 0.0
  %763 = vmatpush.msra.mxu0 0.0
  %764 = vmatpush.msra.mxu0 0.0
  %765 = vmatpush.msra.mxu0 %v602
  %766 = vmatpush.msra.mxu0 %v594
  %767 = vmatpush.msra.mxu0 %v586
  %768 = vmatpush.msra.mxu0 %v578
  %769 = vmatpush.msra.mxu0 %v570
  %770 = vmatpush.msra.mxu0 %v562
  %771 = vmatpush.msra.mxu0 %v554
  %772 = vmatpush.msra.mxu0 %v546
  %773 = vmatmul.f32.gmra.mxu0 %v630
  %v774 = vpop.f32.mrf.mxu0
  %v775 = vadd.f32 %v746, %v774
  %776 = vmatmul.f32.gmra.mxu0 %v633
  %v777 = vpop.f32.mrf.mxu0
  %v778 = vadd.f32 %v749, %v777
  %779 = vmatmul.f32.gmra.mxu0 %v636
  %v780 = vpop.f32.mrf.mxu0
  %v781 = vadd.f32 %v752, %v780
  %782 = vmatmul.f32.gmra.mxu0 %v639
  %v783 = vpop.f32.mrf.mxu0
  %v784 = vadd.f32 %v755, %v783
  %785 = vdwg.mxu0
  %786 = vmatpush.msra.mxu0 %v155
  %787 = vmatpush.msra.mxu0 %v147
  %788 = vmatpush.msra.mxu0 %v139
  %789 = vmatpush.msra.mxu0 %v131
  %790 = vmatpush.msra.mxu0 %v123
  %791 = vmatpush.msra.mxu0 %v115
  %792 = vmatpush.msra.mxu0 %v107
  %793 = vmatpush.msra.mxu0 %v99
  %794 = vmatpush.msra.mxu0 %v91
  %795 = vmatpush.msra.mxu0 %v83
  %796 = vmatpush.msra.mxu0 %v75
  %797 = vmatpush.msra.mxu0 %v67
  %798 = vmatpush.msra.mxu0 %v59
  %799 = vmatpush.msra.mxu0 %v51
  %800 = vmatpush.msra.mxu0 %v43
  %801 = vmatpush.msra.mxu0 %v35
  %802 = vmatmul.f32.gmra.mxu0 %v14
  %v803 = vpop.f32.mrf.mxu0
  %v804 = vadd.f32 %v613, %v803
  %805 = vmatmul.f32.gmra.mxu0 %v19
  %v806 = vpop.f32.mrf.mxu0
  %v807 = vadd.f32 %v613, %v806
  %808 = vmatmul.f32.gmra.mxu0 %v24
  %v809 = vpop.f32.mrf.mxu0
  %v810 = vadd.f32 %v613, %v809
  %811 = vmatmul.f32.gmra.mxu0 %v29
  %v812 = vpop.f32.mrf.mxu0
  %v813 = vadd.f32 %v613, %v812
  %814 = vdwg.mxu0
  %815 = vmatpush.msra.mxu0 %v283
  %816 = vmatpush.msra.mxu0 %v275
  %817 = vmatpush.msra.mxu0 %v267
  %818 = vmatpush.msra.mxu0 %v259
  %819 = vmatpush.msra.mxu0 %v251
  %820 = vmatpush.msra.mxu0 %v243
  %821 = vmatpush.msra.mxu0 %v235
  %822 = vmatpush.msra.mxu0 %v227
  %823 = vmatpush.msra.mxu0 %v219
  %824 = vmatpush.msra.mxu0 %v211
  %825 = vmatpush.msra.mxu0 %v203
  %826 = vmatpush.msra.mxu0 %v195
  %827 = vmatpush.msra.mxu0 %v187
  %828 = vmatpush.msra.mxu0 %v179
  %829 = vmatpush.msra.mxu0 %v171
  %830 = vmatpush.msra.mxu0 %v163
  %831 = vmatmul.f32.gmra.mxu0 %v15
  %v832 = vpop.f32.mrf.mxu0
  %v833 = vadd.f32 %v804, %v832
  %834 = vmatmul.f32.gmra.mxu0 %v20
  %v835 = vpop.f32.mrf.mxu0
  %v836 = vadd.f32 %v807, %v835
  %837 = vmatmul.f32.gmra.mxu0 %v25
  %v838 = vpop.f32.mrf.mxu0
  %v839 = vadd.f32 %v810, %v838
  %840 = vmatmul.f32.gmra.mxu0 %v30
  %v841 = vpop.f32.mrf.mxu0
  %v842 = vadd.f32 %v813, %v841
  %843 = vdwg.mxu0
  %844 = vmatpush.msra.mxu0 %v411
  %845 = vmatpush.msra.mxu0 %v403
  %846 = vmatpush.msra.mxu0 %v395
  %847 = vmatpush.msra.mxu0 %v387
  %848 = vmatpush.msra.mxu0 %v379
  %849 = vmatpush.msra.mxu0 %v371
  %850 = vmatpush.msra.mxu0 %v363
  %851 = vmatpush.msra.mxu0 %v355
  %852 = vmatpush.msra.mxu0 %v347
  %853 = vmatpush.msra.mxu0 %v339
  %854 = vmatpush.msra.mxu0 %v331
  %855 = vmatpush.msra.mxu0 %v323
  %856 = vmatpush.msra.mxu0 %v315
  %857 = vmatpush.msra.mxu0 %v307
  %858 = vmatpush.msra.mxu0 %v299
  %859 = vmatpush.msra.mxu0 %v291
  %860 = vmatmul.f32.gmra.mxu0 %v16
  %v861 = vpop.f32.mrf.mxu0
  %v862 = vadd.f32 %v833, %v861
  %863 = vmatmul.f32.gmra.mxu0 %v21
  %v864 = vpop.f32.mrf.mxu0
  %v865 = vadd.f32 %v836, %v864
  %866 = vmatmul.f32.gmra.mxu0 %v26
  %v867 = vpop.f32.mrf.mxu0
  %v868 = vadd.f32 %v839, %v867
  %869 = vmatmul.f32.gmra.mxu0 %v31
  %v870 = vpop.f32.mrf.mxu0
  %v871 = vadd.f32 %v842, %v870
  %872 = vdwg.mxu0
  %873 = vmatpush.msra.mxu0 %v539
  %874 = vmatpush.msra.mxu0 %v531
  %875 = vmatpush.msra.mxu0 %v523
  %876 = vmatpush.msra.mxu0 %v515
  %877 = vmatpush.msra.mxu0 %v507
  %878 = vmatpush.msra.mxu0 %v499
  %879 = vmatpush.msra.mxu0 %v491
  %880 = vmatpush.msra.mxu0 %v483
  %881 = vmatpush.msra.mxu0 %v475
  %882 = vmatpush.msra.mxu0 %v467
  %883 = vmatpush.msra.mxu0 %v459
  %884 = vmatpush.msra.mxu0 %v451
  %885 = vmatpush.msra.mxu0 %v443
  %886 = vmatpush.msra.mxu0 %v435
  %887 = vmatpush.msra.mxu0 %v427
  %888 = vmatpush.msra.mxu0 %v419
  %889 = vmatmul.f32.gmra.mxu0 %v17
  %v890 = vpop.f32.mrf.mxu0
  %v891 = vadd.f32 %v862, %v890
  %892 = vmatmul.f32.gmra.mxu0 %v22
  %v893 = vpop.f32.mrf.mxu0
  %v894 = vadd.f32 %v865, %v893
  %895 = vmatmul.f32.gmra.mxu0 %v27
  %v896 = vpop.f32.mrf.mxu0
  %v897 = vadd.f32 %v868, %v896
  %898 = vmatmul.f32.gmra.mxu0 %v32
  %v899 = vpop.f32.mrf.mxu0
  %v900 = vadd.f32 %v871, %v899
  %901 = vdwg.mxu0
  %902 = vmatpush.msra.mxu0 0.0
  %903 = vmatpush.msra.mxu0 0.0
  %904 = vmatpush.msra.mxu0 0.0
  %905 = vmatpush.msra.mxu0 0.0
  %906 = vmatpush.msra.mxu0 0.0
  %907 = vmatpush.msra.mxu0 0.0
  %908 = vmatpush.msra.mxu0 0.0
  %909 = vmatpush.msra.mxu0 0.0
  %910 = vmatpush.msra.mxu0 %v603
  %911 = vmatpush.msra.mxu0 %v595
  %912 = vmatpush.msra.mxu0 %v587
  %913 = vmatpush.msra.mxu0 %v579
  %914 = vmatpush.msra.mxu0 %v571
  %915 = vmatpush.msra.mxu0 %v563
  %916 = vmatpush.msra.mxu0 %v555
  %917 = vmatpush.msra.mxu0 %v547
  %918 = vmatmul.f32.gmra.mxu0 %v630
  %v919 = vpop.f32.mrf.mxu0
  %v920 = vadd.f32 %v891, %v919
  %921 = vmatmul.f32.gmra.mxu0 %v633
  %v922 = vpop.f32.mrf.mxu0
  %v923 = vadd.f32 %v894, %v922
  %924 = vmatmul.f32.gmra.mxu0 %v636
  %v925 = vpop.f32.mrf.mxu0
  %v926 = vadd.f32 %v897, %v925
  %927 = vmatmul.f32.gmra.mxu0 %v639
  %v928 = vpop.f32.mrf.mxu0
  %v929 = vadd.f32 %v900, %v928
  %930 = vdwg.mxu0
  %931 = vmatpush.msra.mxu0 %v156
  %932 = vmatpush.msra.mxu0 %v148
  %933 = vmatpush.msra.mxu0 %v140
  %934 = vmatpush.msra.mxu0 %v132
  %935 = vmatpush.msra.mxu0 %v124
  %936 = vmatpush.msra.mxu0 %v116
  %937 = vmatpush.msra.mxu0 %v108
  %938 = vmatpush.msra.mxu0 %v100
  %939 = vmatpush.msra.mxu0 %v92
  %940 = vmatpush.msra.mxu0 %v84
  %941 = vmatpush.msra.mxu0 %v76
  %942 = vmatpush.msra.mxu0 %v68
  %943 = vmatpush.msra.mxu0 %v60
  %944 = vmatpush.msra.mxu0 %v52
  %945 = vmatpush.msra.mxu0 %v44
  %946 = vmatpush.msra.mxu0 %v36
  %947 = vmatmul.f32.gmra.mxu0 %v14
  %v948 = vpop.f32.mrf.mxu0
  %v949 = vadd.f32 %v614, %v948
  %950 = vmatmul.f32.gmra.mxu0 %v19
  %v951 = vpop.f32.mrf.mxu0
  %v952 = vadd.f32 %v614, %v951
  %953 = vmatmul.f32.gmra.mxu0 %v24
  %v954 = vpop.f32.mrf.mxu0
  %v955 = vadd.f32 %v614, %v954
  %956 = vmatmul.f32.gmra.mxu0 %v29
  %v957 = vpop.f32.mrf.mxu0
  %v958 = vadd.f32 %v614, %v957
  %959 = vdwg.mxu0
  %960 = vmatpush.msra.mxu0 %v284
  %961 = vmatpush.msra.mxu0 %v276
  %962 = vmatpush.msra.mxu0 %v268
  %963 = vmatpush.msra.mxu0 %v260
  %964 = vmatpush.msra.mxu0 %v252
  %965 = vmatpush.msra.mxu0 %v244
  %966 = vmatpush.msra.mxu0 %v236
  %967 = vmatpush.msra.mxu0 %v228
  %968 = vmatpush.msra.mxu0 %v220
  %969 = vmatpush.msra.mxu0 %v212
  %970 = vmatpush.msra.mxu0 %v204
  %971 = vmatpush.msra.mxu0 %v196
  %972 = vmatpush.msra.mxu0 %v188
  %973 = vmatpush.msra.mxu0 %v180
  %974 = vmatpush.msra.mxu0 %v172
  %975 = vmatpush.msra.mxu0 %v164
  %976 = vmatmul.f32.gmra.mxu0 %v15
  %v977 = vpop.f32.mrf.mxu0
  %v978 = vadd.f32 %v949, %v977
  %979 = vmatmul.f32.gmra.mxu0 %v20
  %v980 = vpop.f32.mrf.mxu0
  %v981 = vadd.f32 %v952, %v980
  %982 = vmatmul.f32.gmra.mxu0 %v25
  %v983 = vpop.f32.mrf.mxu0
  %v984 = vadd.f32 %v955, %v983
  %985 = vmatmul.f32.gmra.mxu0 %v30
  %v986 = vpop.f32.mrf.mxu0
  %v987 = vadd.f32 %v958, %v986
  %988 = vdwg.mxu0
  %989 = vmatpush.msra.mxu0 %v412
  %990 = vmatpush.msra.mxu0 %v404
  %991 = vmatpush.msra.mxu0 %v396
  %992 = vmatpush.msra.mxu0 %v388
  %993 = vmatpush.msra.mxu0 %v380
  %994 = vmatpush.msra.mxu0 %v372
  %995 = vmatpush.msra.mxu0 %v364
  %996 = vmatpush.msra.mxu0 %v356
  %997 = vmatpush.msra.mxu0 %v348
  %998 = vmatpush.msra.mxu0 %v340
  %999 = vmatpush.msra.mxu0 %v332
  %1000 = vmatpush.msra.mxu0 %v324
  %1001 = vmatpush.msra.mxu0 %v316
  %1002 = vmatpush.msra.mxu0 %v308
  %1003 = vmatpush.msra.mxu0 %v300
  %1004 = vmatpush.msra.mxu0 %v292
  %1005 = vmatmul.f32.gmra.mxu0 %v16
  %v1006 = vpop.f32.mrf.mxu0
  %v1007 = vadd.f32 %v978, %v1006
  %1008 = vmatmul.f32.gmra.mxu0 %v21
  %v1009 = vpop.f32.mrf.mxu0
  %v1010 = vadd.f32 %v981, %v1009
  %1011 = vmatmul.f32.gmra.mxu0 %v26
  %v1012 = vpop.f32.mrf.mxu0
  %v1013 = vadd.f32 %v984, %v1012
  %1014 = vmatmul.f32.gmra.mxu0 %v31
  %v1015 = vpop.f32.mrf.mxu0
  %v1016 = vadd.f32 %v987, %v1015
  %1017 = vdwg.mxu0
  %1018 = vmatpush.msra.mxu0 %v540
  %1019 = vmatpush.msra.mxu0 %v532
  %1020 = vmatpush.msra.mxu0 %v524
  %1021 = vmatpush.msra.mxu0 %v516
  %1022 = vmatpush.msra.mxu0 %v508
  %1023 = vmatpush.msra.mxu0 %v500
  %1024 = vmatpush.msra.mxu0 %v492
  %1025 = vmatpush.msra.mxu0 %v484
  %1026 = vmatpush.msra.mxu0 %v476
  %1027 = vmatpush.msra.mxu0 %v468
  %1028 = vmatpush.msra.mxu0 %v460
  %1029 = vmatpush.msra.mxu0 %v452
  %1030 = vmatpush.msra.mxu0 %v444
  %1031 = vmatpush.msra.mxu0 %v436
  %1032 = vmatpush.msra.mxu0 %v428
  %1033 = vmatpush.msra.mxu0 %v420
  %1034 = vmatmul.f32.gmra.mxu0 %v17
  %v1035 = vpop.f32.mrf.mxu0
  %v1036 = vadd.f32 %v1007, %v1035
  %1037 = vmatmul.f32.gmra.mxu0 %v22
  %v1038 = vpop.f32.mrf.mxu0
  %v1039 = vadd.f32 %v1010, %v1038
  %1040 = vmatmul.f32.gmra.mxu0 %v27
  %v1041 = vpop.f32.mrf.mxu0
  %v1042 = vadd.f32 %v1013, %v1041
  %1043 = vmatmul.f32.gmra.mxu0 %v32
  %v1044 = vpop.f32.mrf.mxu0
  %v1045 = vadd.f32 %v1016, %v1044
  %1046 = vdwg.mxu0
  %1047 = vmatpush.msra.mxu0 0.0
  %1048 = vmatpush.msra.mxu0 0.0
  %1049 = vmatpush.msra.mxu0 0.0
  %1050 = vmatpush.msra.mxu0 0.0
  %1051 = vmatpush.msra.mxu0 0.0
  %1052 = vmatpush.msra.mxu0 0.0
  %1053 = vmatpush.msra.mxu0 0.0
  %1054 = vmatpush.msra.mxu0 0.0
  %1055 = vmatpush.msra.mxu0 %v604
  %1056 = vmatpush.msra.mxu0 %v596
  %1057 = vmatpush.msra.mxu0 %v588
  %1058 = vmatpush.msra.mxu0 %v580
  %1059 = vmatpush.msra.mxu0 %v572
  %1060 = vmatpush.msra.mxu0 %v564
  %1061 = vmatpush.msra.mxu0 %v556
  %1062 = vmatpush.msra.mxu0 %v548
  %1063 = vmatmul.f32.gmra.mxu0 %v630
  %v1064 = vpop.f32.mrf.mxu0
  %v1065 = vadd.f32 %v1036, %v1064
  %1066 = vmatmul.f32.gmra.mxu0 %v633
  %v1067 = vpop.f32.mrf.mxu0
  %v1068 = vadd.f32 %v1039, %v1067
  %1069 = vmatmul.f32.gmra.mxu0 %v636
  %v1070 = vpop.f32.mrf.mxu0
  %v1071 = vadd.f32 %v1042, %v1070
  %1072 = vmatmul.f32.gmra.mxu0 %v639
  %v1073 = vpop.f32.mrf.mxu0
  %v1074 = vadd.f32 %v1045, %v1073
  %1075 = vdwg.mxu0
  %1076 = vmatpush.msra.mxu0 %v157
  %1077 = vmatpush.msra.mxu0 %v149
  %1078 = vmatpush.msra.mxu0 %v141
  %1079 = vmatpush.msra.mxu0 %v133
  %1080 = vmatpush.msra.mxu0 %v125
  %1081 = vmatpush.msra.mxu0 %v117
  %1082 = vmatpush.msra.mxu0 %v109
  %1083 = vmatpush.msra.mxu0 %v101
  %1084 = vmatpush.msra.mxu0 %v93
  %1085 = vmatpush.msra.mxu0 %v85
  %1086 = vmatpush.msra.mxu0 %v77
  %1087 = vmatpush.msra.mxu0 %v69
  %1088 = vmatpush.msra.mxu0 %v61
  %1089 = vmatpush.msra.mxu0 %v53
  %1090 = vmatpush.msra.mxu0 %v45
  %1091 = vmatpush.msra.mxu0 %v37
  %1092 = vmatmul.f32.gmra.mxu0 %v14
  %v1093 = vpop.f32.mrf.mxu0
  %v1094 = vadd.f32 %v615, %v1093
  %1095 = vmatmul.f32.gmra.mxu0 %v19
  %v1096 = vpop.f32.mrf.mxu0
  %v1097 = vadd.f32 %v615, %v1096
  %1098 = vmatmul.f32.gmra.mxu0 %v24
  %v1099 = vpop.f32.mrf.mxu0
  %v1100 = vadd.f32 %v615, %v1099
  %1101 = vmatmul.f32.gmra.mxu0 %v29
  %v1102 = vpop.f32.mrf.mxu0
  %v1103 = vadd.f32 %v615, %v1102
  %1104 = vdwg.mxu0
  %1105 = vmatpush.msra.mxu0 %v285
  %1106 = vmatpush.msra.mxu0 %v277
  %1107 = vmatpush.msra.mxu0 %v269
  %1108 = vmatpush.msra.mxu0 %v261
  %1109 = vmatpush.msra.mxu0 %v253
  %1110 = vmatpush.msra.mxu0 %v245
  %1111 = vmatpush.msra.mxu0 %v237
  %1112 = vmatpush.msra.mxu0 %v229
  %1113 = vmatpush.msra.mxu0 %v221
  %1114 = vmatpush.msra.mxu0 %v213
  %1115 = vmatpush.msra.mxu0 %v205
  %1116 = vmatpush.msra.mxu0 %v197
  %1117 = vmatpush.msra.mxu0 %v189
  %1118 = vmatpush.msra.mxu0 %v181
  %1119 = vmatpush.msra.mxu0 %v173
  %1120 = vmatpush.msra.mxu0 %v165
  %1121 = vmatmul.f32.gmra.mxu0 %v15
  %v1122 = vpop.f32.mrf.mxu0
  %v1123 = vadd.f32 %v1094, %v1122
  %1124 = vmatmul.f32.gmra.mxu0 %v20
  %v1125 = vpop.f32.mrf.mxu0
  %v1126 = vadd.f32 %v1097, %v1125
  %1127 = vmatmul.f32.gmra.mxu0 %v25
  %v1128 = vpop.f32.mrf.mxu0
  %v1129 = vadd.f32 %v1100, %v1128
  %1130 = vmatmul.f32.gmra.mxu0 %v30
  %v1131 = vpop.f32.mrf.mxu0
  %v1132 = vadd.f32 %v1103, %v1131
  %1133 = vdwg.mxu0
  %1134 = vmatpush.msra.mxu0 %v413
  %1135 = vmatpush.msra.mxu0 %v405
  %1136 = vmatpush.msra.mxu0 %v397
  %1137 = vmatpush.msra.mxu0 %v389
  %1138 = vmatpush.msra.mxu0 %v381
  %1139 = vmatpush.msra.mxu0 %v373
  %1140 = vmatpush.msra.mxu0 %v365
  %1141 = vmatpush.msra.mxu0 %v357
  %1142 = vmatpush.msra.mxu0 %v349
  %1143 = vmatpush.msra.mxu0 %v341
  %1144 = vmatpush.msra.mxu0 %v333
  %1145 = vmatpush.msra.mxu0 %v325
  %1146 = vmatpush.msra.mxu0 %v317
  %1147 = vmatpush.msra.mxu0 %v309
  %1148 = vmatpush.msra.mxu0 %v301
  %1149 = vmatpush.msra.mxu0 %v293
  %1150 = vmatmul.f32.gmra.mxu0 %v16
  %v1151 = vpop.f32.mrf.mxu0
  %v1152 = vadd.f32 %v1123, %v1151
  %1153 = vmatmul.f32.gmra.mxu0 %v21
  %v1154 = vpop.f32.mrf.mxu0
  %v1155 = vadd.f32 %v1126, %v1154
  %1156 = vmatmul.f32.gmra.mxu0 %v26
  %v1157 = vpop.f32.mrf.mxu0
  %v1158 = vadd.f32 %v1129, %v1157
  %1159 = vmatmul.f32.gmra.mxu0 %v31
  %v1160 = vpop.f32.mrf.mxu0
  %v1161 = vadd.f32 %v1132, %v1160
  %1162 = vdwg.mxu0
  %1163 = vmatpush.msra.mxu0 %v541
  %1164 = vmatpush.msra.mxu0 %v533
  %1165 = vmatpush.msra.mxu0 %v525
  %1166 = vmatpush.msra.mxu0 %v517
  %1167 = vmatpush.msra.mxu0 %v509
  %1168 = vmatpush.msra.mxu0 %v501
  %1169 = vmatpush.msra.mxu0 %v493
  %1170 = vmatpush.msra.mxu0 %v485
  %1171 = vmatpush.msra.mxu0 %v477
  %1172 = vmatpush.msra.mxu0 %v469
  %1173 = vmatpush.msra.mxu0 %v461
  %1174 = vmatpush.msra.mxu0 %v453
  %1175 = vmatpush.msra.mxu0 %v445
  %1176 = vmatpush.msra.mxu0 %v437
  %1177 = vmatpush.msra.mxu0 %v429
  %1178 = vmatpush.msra.mxu0 %v421
  %1179 = vmatmul.f32.gmra.mxu0 %v17
  %v1180 = vpop.f32.mrf.mxu0
  %v1181 = vadd.f32 %v1152, %v1180
  %1182 = vmatmul.f32.gmra.mxu0 %v22
  %v1183 = vpop.f32.mrf.mxu0
  %v1184 = vadd.f32 %v1155, %v1183
  %1185 = vmatmul.f32.gmra.mxu0 %v27
  %v1186 = vpop.f32.mrf.mxu0
  %v1187 = vadd.f32 %v1158, %v1186
  %1188 = vmatmul.f32.gmra.mxu0 %v32
  %v1189 = vpop.f32.mrf.mxu0
  %v1190 = vadd.f32 %v1161, %v1189
  %1191 = vdwg.mxu0
  %1192 = vmatpush.msra.mxu0 0.0
  %1193 = vmatpush.msra.mxu0 0.0
  %1194 = vmatpush.msra.mxu0 0.0
  %1195 = vmatpush.msra.mxu0 0.0
  %1196 = vmatpush.msra.mxu0 0.0
  %1197 = vmatpush.msra.mxu0 0.0
  %1198 = vmatpush.msra.mxu0 0.0
  %1199 = vmatpush.msra.mxu0 0.0
  %1200 = vmatpush.msra.mxu0 %v605
  %1201 = vmatpush.msra.mxu0 %v597
  %1202 = vmatpush.msra.mxu0 %v589
  %1203 = vmatpush.msra.mxu0 %v581
  %1204 = vmatpush.msra.mxu0 %v573
  %1205 = vmatpush.msra.mxu0 %v565
  %1206 = vmatpush.msra.mxu0 %v557
  %1207 = vmatpush.msra.mxu0 %v549
  %1208 = vmatmul.f32.gmra.mxu0 %v630
  %v1209 = vpop.f32.mrf.mxu0
  %v1210 = vadd.f32 %v1181, %v1209
  %1211 = vmatmul.f32.gmra.mxu0 %v633
  %v1212 = vpop.f32.mrf.mxu0
  %v1213 = vadd.f32 %v1184, %v1212
  %1214 = vmatmul.f32.gmra.mxu0 %v636
  %v1215 = vpop.f32.mrf.mxu0
  %v1216 = vadd.f32 %v1187, %v1215
  %1217 = vmatmul.f32.gmra.mxu0 %v639
  %v1218 = vpop.f32.mrf.mxu0
  %v1219 = vadd.f32 %v1190, %v1218
  %1220 = vdwg.mxu0
  %1221 = vmatpush.msra.mxu0 %v158
  %1222 = vmatpush.msra.mxu0 %v150
  %1223 = vmatpush.msra.mxu0 %v142
  %1224 = vmatpush.msra.mxu0 %v134
  %1225 = vmatpush.msra.mxu0 %v126
  %1226 = vmatpush.msra.mxu0 %v118
  %1227 = vmatpush.msra.mxu0 %v110
  %1228 = vmatpush.msra.mxu0 %v102
  %1229 = vmatpush.msra.mxu0 %v94
  %1230 = vmatpush.msra.mxu0 %v86
  %1231 = vmatpush.msra.mxu0 %v78
  %1232 = vmatpush.msra.mxu0 %v70
  %1233 = vmatpush.msra.mxu0 %v62
  %1234 = vmatpush.msra.mxu0 %v54
  %1235 = vmatpush.msra.mxu0 %v46
  %1236 = vmatpush.msra.mxu0 %v38
  %1237 = vmatmul.f32.gmra.mxu0 %v14
  %v1238 = vpop.f32.mrf.mxu0
  %v1239 = vadd.f32 %v616, %v1238
  %1240 = vmatmul.f32.gmra.mxu0 %v19
  %v1241 = vpop.f32.mrf.mxu0
  %v1242 = vadd.f32 %v616, %v1241
  %1243 = vmatmul.f32.gmra.mxu0 %v24
  %v1244 = vpop.f32.mrf.mxu0
  %v1245 = vadd.f32 %v616, %v1244
  %1246 = vmatmul.f32.gmra.mxu0 %v29
  %v1247 = vpop.f32.mrf.mxu0
  %v1248 = vadd.f32 %v616, %v1247
  %1249 = vdwg.mxu0
  %1250 = vmatpush.msra.mxu0 %v286
  %1251 = vmatpush.msra.mxu0 %v278
  %1252 = vmatpush.msra.mxu0 %v270
  %1253 = vmatpush.msra.mxu0 %v262
  %1254 = vmatpush.msra.mxu0 %v254
  %1255 = vmatpush.msra.mxu0 %v246
  %1256 = vmatpush.msra.mxu0 %v238
  %1257 = vmatpush.msra.mxu0 %v230
  %1258 = vmatpush.msra.mxu0 %v222
  %1259 = vmatpush.msra.mxu0 %v214
  %1260 = vmatpush.msra.mxu0 %v206
  %1261 = vmatpush.msra.mxu0 %v198
  %1262 = vmatpush.msra.mxu0 %v190
  %1263 = vmatpush.msra.mxu0 %v182
  %1264 = vmatpush.msra.mxu0 %v174
  %1265 = vmatpush.msra.mxu0 %v166
  %1266 = vmatmul.f32.gmra.mxu0 %v15
  %v1267 = vpop.f32.mrf.mxu0
  %v1268 = vadd.f32 %v1239, %v1267
  %1269 = vmatmul.f32.gmra.mxu0 %v20
  %v1270 = vpop.f32.mrf.mxu0
  %v1271 = vadd.f32 %v1242, %v1270
  %1272 = vmatmul.f32.gmra.mxu0 %v25
  %v1273 = vpop.f32.mrf.mxu0
  %v1274 = vadd.f32 %v1245, %v1273
  %1275 = vmatmul.f32.gmra.mxu0 %v30
  %v1276 = vpop.f32.mrf.mxu0
  %v1277 = vadd.f32 %v1248, %v1276
  %1278 = vdwg.mxu0
  %1279 = vmatpush.msra.mxu0 %v414
  %1280 = vmatpush.msra.mxu0 %v406
  %1281 = vmatpush.msra.mxu0 %v398
  %1282 = vmatpush.msra.mxu0 %v390
  %1283 = vmatpush.msra.mxu0 %v382
  %1284 = vmatpush.msra.mxu0 %v374
  %1285 = vmatpush.msra.mxu0 %v366
  %1286 = vmatpush.msra.mxu0 %v358
  %1287 = vmatpush.msra.mxu0 %v350
  %1288 = vmatpush.msra.mxu0 %v342
  %1289 = vmatpush.msra.mxu0 %v334
  %1290 = vmatpush.msra.mxu0 %v326
  %1291 = vmatpush.msra.mxu0 %v318
  %1292 = vmatpush.msra.mxu0 %v310
  %1293 = vmatpush.msra.mxu0 %v302
  %1294 = vmatpush.msra.mxu0 %v294
  %1295 = vmatmul.f32.gmra.mxu0 %v16
  %v1296 = vpop.f32.mrf.mxu0
  %v1297 = vadd.f32 %v1268, %v1296
  %1298 = vmatmul.f32.gmra.mxu0 %v21
  %v1299 = vpop.f32.mrf.mxu0
  %v1300 = vadd.f32 %v1271, %v1299
  %1301 = vmatmul.f32.gmra.mxu0 %v26
  %v1302 = vpop.f32.mrf.mxu0
  %v1303 = vadd.f32 %v1274, %v1302
  %1304 = vmatmul.f32.gmra.mxu0 %v31
  %v1305 = vpop.f32.mrf.mxu0
  %v1306 = vadd.f32 %v1277, %v1305
  %1307 = vdwg.mxu0
  %1308 = vmatpush.msra.mxu0 %v542
  %1309 = vmatpush.msra.mxu0 %v534
  %1310 = vmatpush.msra.mxu0 %v526
  %1311 = vmatpush.msra.mxu0 %v518
  %1312 = vmatpush.msra.mxu0 %v510
  %1313 = vmatpush.msra.mxu0 %v502
  %1314 = vmatpush.msra.mxu0 %v494
  %1315 = vmatpush.msra.mxu0 %v486
  %1316 = vmatpush.msra.mxu0 %v478
  %1317 = vmatpush.msra.mxu0 %v470
  %1318 = vmatpush.msra.mxu0 %v462
  %1319 = vmatpush.msra.mxu0 %v454
  %1320 = vmatpush.msra.mxu0 %v446
  %1321 = vmatpush.msra.mxu0 %v438
  %1322 = vmatpush.msra.mxu0 %v430
  %1323 = vmatpush.msra.mxu0 %v422
  %1324 = vmatmul.f32.gmra.mxu0 %v17
  %v1325 = vpop.f32.mrf.mxu0
  %v1326 = vadd.f32 %v1297, %v1325
  %1327 = vmatmul.f32.gmra.mxu0 %v22
  %v1328 = vpop.f32.mrf.mxu0
  %v1329 = vadd.f32 %v1300, %v1328
  %1330 = vmatmul.f32.gmra.mxu0 %v27
  %v1331 = vpop.f32.mrf.mxu0
  %v1332 = vadd.f32 %v1303, %v1331
  %1333 = vmatmul.f32.gmra.mxu0 %v32
  %v1334 = vpop.f32.mrf.mxu0
  %v1335 = vadd.f32 %v1306, %v1334
  %1336 = vdwg.mxu0
  %1337 = vmatpush.msra.mxu0 0.0
  %1338 = vmatpush.msra.mxu0 0.0
  %1339 = vmatpush.msra.mxu0 0.0
  %1340 = vmatpush.msra.mxu0 0.0
  %1341 = vmatpush.msra.mxu0 0.0
  %1342 = vmatpush.msra.mxu0 0.0
  %1343 = vmatpush.msra.mxu0 0.0
  %1344 = vmatpush.msra.mxu0 0.0
  %1345 = vmatpush.msra.mxu0 %v606
  %1346 = vmatpush.msra.mxu0 %v598
  %1347 = vmatpush.msra.mxu0 %v590
  %1348 = vmatpush.msra.mxu0 %v582
  %1349 = vmatpush.msra.mxu0 %v574
  %1350 = vmatpush.msra.mxu0 %v566
  %1351 = vmatpush.msra.mxu0 %v558
  %1352 = vmatpush.msra.mxu0 %v550
  %1353 = vmatmul.f32.gmra.mxu0 %v630
  %v1354 = vpop.f32.mrf.mxu0
  %v1355 = vadd.f32 %v1326, %v1354
  %1356 = vmatmul.f32.gmra.mxu0 %v633
  %v1357 = vpop.f32.mrf.mxu0
  %v1358 = vadd.f32 %v1329, %v1357
  %1359 = vmatmul.f32.gmra.mxu0 %v636
  %v1360 = vpop.f32.mrf.mxu0
  %v1361 = vadd.f32 %v1332, %v1360
  %1362 = vmatmul.f32.gmra.mxu0 %v639
  %v1363 = vpop.f32.mrf.mxu0
  %v1364 = vadd.f32 %v1335, %v1363
  %1365 = vdwg.mxu0
  %1366 = vmatpush.msra.mxu0 %v159
  %1367 = vmatpush.msra.mxu0 %v151
  %1368 = vmatpush.msra.mxu0 %v143
  %1369 = vmatpush.msra.mxu0 %v135
  %1370 = vmatpush.msra.mxu0 %v127
  %1371 = vmatpush.msra.mxu0 %v119
  %1372 = vmatpush.msra.mxu0 %v111
  %1373 = vmatpush.msra.mxu0 %v103
  %1374 = vmatpush.msra.mxu0 %v95
  %1375 = vmatpush.msra.mxu0 %v87
  %1376 = vmatpush.msra.mxu0 %v79
  %1377 = vmatpush.msra.mxu0 %v71
  %1378 = vmatpush.msra.mxu0 %v63
  %1379 = vmatpush.msra.mxu0 %v55
  %1380 = vmatpush.msra.mxu0 %v47
  %1381 = vmatpush.msra.mxu0 %v39
  %1382 = vmatmul.f32.gmra.mxu0 %v14
  %v1383 = vpop.f32.mrf.mxu0
  %v1384 = vadd.f32 %v617, %v1383
  %1385 = vmatmul.f32.gmra.mxu0 %v19
  %v1386 = vpop.f32.mrf.mxu0
  %v1387 = vadd.f32 %v617, %v1386
  %1388 = vmatmul.f32.gmra.mxu0 %v24
  %v1389 = vpop.f32.mrf.mxu0
  %v1390 = vadd.f32 %v617, %v1389
  %1391 = vmatmul.f32.gmra.mxu0 %v29
  %v1392 = vpop.f32.mrf.mxu0
  %v1393 = vadd.f32 %v617, %v1392
  %1394 = vdwg.mxu0
  %1395 = vmatpush.msra.mxu0 %v287
  %1396 = vmatpush.msra.mxu0 %v279
  %1397 = vmatpush.msra.mxu0 %v271
  %1398 = vmatpush.msra.mxu0 %v263
  %1399 = vmatpush.msra.mxu0 %v255
  %1400 = vmatpush.msra.mxu0 %v247
  %1401 = vmatpush.msra.mxu0 %v239
  %1402 = vmatpush.msra.mxu0 %v231
  %1403 = vmatpush.msra.mxu0 %v223
  %1404 = vmatpush.msra.mxu0 %v215
  %1405 = vmatpush.msra.mxu0 %v207
  %1406 = vmatpush.msra.mxu0 %v199
  %1407 = vmatpush.msra.mxu0 %v191
  %1408 = vmatpush.msra.mxu0 %v183
  %1409 = vmatpush.msra.mxu0 %v175
  %1410 = vmatpush.msra.mxu0 %v167
  %1411 = vmatmul.f32.gmra.mxu0 %v15
  %v1412 = vpop.f32.mrf.mxu0
  %v1413 = vadd.f32 %v1384, %v1412
  %1414 = vmatmul.f32.gmra.mxu0 %v20
  %v1415 = vpop.f32.mrf.mxu0
  %v1416 = vadd.f32 %v1387, %v1415
  %1417 = vmatmul.f32.gmra.mxu0 %v25
  %v1418 = vpop.f32.mrf.mxu0
  %v1419 = vadd.f32 %v1390, %v1418
  %1420 = vmatmul.f32.gmra.mxu0 %v30
  %v1421 = vpop.f32.mrf.mxu0
  %v1422 = vadd.f32 %v1393, %v1421
  %1423 = vdwg.mxu0
  %1424 = vmatpush.msra.mxu0 %v415
  %1425 = vmatpush.msra.mxu0 %v407
  %1426 = vmatpush.msra.mxu0 %v399
  %1427 = vmatpush.msra.mxu0 %v391
  %1428 = vmatpush.msra.mxu0 %v383
  %1429 = vmatpush.msra.mxu0 %v375
  %1430 = vmatpush.msra.mxu0 %v367
  %1431 = vmatpush.msra.mxu0 %v359
  %1432 = vmatpush.msra.mxu0 %v351
  %1433 = vmatpush.msra.mxu0 %v343
  %1434 = vmatpush.msra.mxu0 %v335
  %1435 = vmatpush.msra.mxu0 %v327
  %1436 = vmatpush.msra.mxu0 %v319
  %1437 = vmatpush.msra.mxu0 %v311
  %1438 = vmatpush.msra.mxu0 %v303
  %1439 = vmatpush.msra.mxu0 %v295
  %1440 = vmatmul.f32.gmra.mxu0 %v16
  %v1441 = vpop.f32.mrf.mxu0
  %v1442 = vadd.f32 %v1413, %v1441
  %1443 = vmatmul.f32.gmra.mxu0 %v21
  %v1444 = vpop.f32.mrf.mxu0
  %v1445 = vadd.f32 %v1416, %v1444
  %1446 = vmatmul.f32.gmra.mxu0 %v26
  %v1447 = vpop.f32.mrf.mxu0
  %v1448 = vadd.f32 %v1419, %v1447
  %1449 = vmatmul.f32.gmra.mxu0 %v31
  %v1450 = vpop.f32.mrf.mxu0
  %v1451 = vadd.f32 %v1422, %v1450
  %1452 = vdwg.mxu0
  %1453 = vmatpush.msra.mxu0 %v543
  %1454 = vmatpush.msra.mxu0 %v535
  %1455 = vmatpush.msra.mxu0 %v527
  %1456 = vmatpush.msra.mxu0 %v519
  %1457 = vmatpush.msra.mxu0 %v511
  %1458 = vmatpush.msra.mxu0 %v503
  %1459 = vmatpush.msra.mxu0 %v495
  %1460 = vmatpush.msra.mxu0 %v487
  %1461 = vmatpush.msra.mxu0 %v479
  %1462 = vmatpush.msra.mxu0 %v471
  %1463 = vmatpush.msra.mxu0 %v463
  %1464 = vmatpush.msra.mxu0 %v455
  %1465 = vmatpush.msra.mxu0 %v447
  %1466 = vmatpush.msra.mxu0 %v439
  %1467 = vmatpush.msra.mxu0 %v431
  %1468 = vmatpush.msra.mxu0 %v423
  %1469 = vmatmul.f32.gmra.mxu0 %v17
  %v1470 = vpop.f32.mrf.mxu0
  %v1471 = vadd.f32 %v1442, %v1470
  %1472 = vmatmul.f32.gmra.mxu0 %v22
  %v1473 = vpop.f32.mrf.mxu0
  %v1474 = vadd.f32 %v1445, %v1473
  %1475 = vmatmul.f32.gmra.mxu0 %v27
  %v1476 = vpop.f32.mrf.mxu0
  %v1477 = vadd.f32 %v1448, %v1476
  %1478 = vmatmul.f32.gmra.mxu0 %v32
  %v1479 = vpop.f32.mrf.mxu0
  %v1480 = vadd.f32 %v1451, %v1479
  %1481 = vdwg.mxu0
  %1482 = vmatpush.msra.mxu0 0.0
  %1483 = vmatpush.msra.mxu0 0.0
  %1484 = vmatpush.msra.mxu0 0.0
  %1485 = vmatpush.msra.mxu0 0.0
  %1486 = vmatpush.msra.mxu0 0.0
  %1487 = vmatpush.msra.mxu0 0.0
  %1488 = vmatpush.msra.mxu0 0.0
  %1489 = vmatpush.msra.mxu0 0.0
  %1490 = vmatpush.msra.mxu0 %v607
  %1491 = vmatpush.msra.mxu0 %v599
  %1492 = vmatpush.msra.mxu0 %v591
  %1493 = vmatpush.msra.mxu0 %v583
  %1494 = vmatpush.msra.mxu0 %v575
  %1495 = vmatpush.msra.mxu0 %v567
  %1496 = vmatpush.msra.mxu0 %v559
  %1497 = vmatpush.msra.mxu0 %v551
  %1498 = vmatmul.f32.gmra.mxu0 %v630
  %v1499 = vpop.f32.mrf.mxu0
  %v1500 = vadd.f32 %v1471, %v1499
  %1501 = vmatmul.f32.gmra.mxu0 %v633
  %v1502 = vpop.f32.mrf.mxu0
  %v1503 = vadd.f32 %v1474, %v1502
  %1504 = vmatmul.f32.gmra.mxu0 %v636
  %v1505 = vpop.f32.mrf.mxu0
  %v1506 = vadd.f32 %v1477, %v1505
  %1507 = vmatmul.f32.gmra.mxu0 %v639
  %v1508 = vpop.f32.mrf.mxu0
  %v1509 = vadd.f32 %v1480, %v1508
  %1510 = vdwg.mxu0
  %1511 = vmatpush.msra.mxu0 %v160
  %1512 = vmatpush.msra.mxu0 %v152
  %1513 = vmatpush.msra.mxu0 %v144
  %1514 = vmatpush.msra.mxu0 %v136
  %1515 = vmatpush.msra.mxu0 %v128
  %1516 = vmatpush.msra.mxu0 %v120
  %1517 = vmatpush.msra.mxu0 %v112
  %1518 = vmatpush.msra.mxu0 %v104
  %1519 = vmatpush.msra.mxu0 %v96
  %1520 = vmatpush.msra.mxu0 %v88
  %1521 = vmatpush.msra.mxu0 %v80
  %1522 = vmatpush.msra.mxu0 %v72
  %1523 = vmatpush.msra.mxu0 %v64
  %1524 = vmatpush.msra.mxu0 %v56
  %1525 = vmatpush.msra.mxu0 %v48
  %1526 = vmatpush.msra.mxu0 %v40
  %1527 = vmatmul.f32.gmra.mxu0 %v14
  %v1528 = vpop.f32.mrf.mxu0
  %v1529 = vadd.f32 %v618, %v1528
  %1530 = vmatmul.f32.gmra.mxu0 %v19
  %v1531 = vpop.f32.mrf.mxu0
  %v1532 = vadd.f32 %v618, %v1531
  %1533 = vmatmul.f32.gmra.mxu0 %v24
  %v1534 = vpop.f32.mrf.mxu0
  %v1535 = vadd.f32 %v618, %v1534
  %1536 = vmatmul.f32.gmra.mxu0 %v29
  %v1537 = vpop.f32.mrf.mxu0
  %v1538 = vadd.f32 %v618, %v1537
  %1539 = vdwg.mxu0
  %1540 = vmatpush.msra.mxu0 %v288
  %1541 = vmatpush.msra.mxu0 %v280
  %1542 = vmatpush.msra.mxu0 %v272
  %1543 = vmatpush.msra.mxu0 %v264
  %1544 = vmatpush.msra.mxu0 %v256
  %1545 = vmatpush.msra.mxu0 %v248
  %1546 = vmatpush.msra.mxu0 %v240
  %1547 = vmatpush.msra.mxu0 %v232
  %1548 = vmatpush.msra.mxu0 %v224
  %1549 = vmatpush.msra.mxu0 %v216
  %1550 = vmatpush.msra.mxu0 %v208
  %1551 = vmatpush.msra.mxu0 %v200
  %1552 = vmatpush.msra.mxu0 %v192
  %1553 = vmatpush.msra.mxu0 %v184
  %1554 = vmatpush.msra.mxu0 %v176
  %1555 = vmatpush.msra.mxu0 %v168
  %1556 = vmatmul.f32.gmra.mxu0 %v15
  %v1557 = vpop.f32.mrf.mxu0
  %v1558 = vadd.f32 %v1529, %v1557
  %1559 = vmatmul.f32.gmra.mxu0 %v20
  %v1560 = vpop.f32.mrf.mxu0
  %v1561 = vadd.f32 %v1532, %v1560
  %1562 = vmatmul.f32.gmra.mxu0 %v25
  %v1563 = vpop.f32.mrf.mxu0
  %v1564 = vadd.f32 %v1535, %v1563
  %1565 = vmatmul.f32.gmra.mxu0 %v30
  %v1566 = vpop.f32.mrf.mxu0
  %v1567 = vadd.f32 %v1538, %v1566
  %1568 = vdwg.mxu0
  %1569 = vmatpush.msra.mxu0 %v416
  %1570 = vmatpush.msra.mxu0 %v408
  %1571 = vmatpush.msra.mxu0 %v400
  %1572 = vmatpush.msra.mxu0 %v392
  %1573 = vmatpush.msra.mxu0 %v384
  %1574 = vmatpush.msra.mxu0 %v376
  %1575 = vmatpush.msra.mxu0 %v368
  %1576 = vmatpush.msra.mxu0 %v360
  %1577 = vmatpush.msra.mxu0 %v352
  %1578 = vmatpush.msra.mxu0 %v344
  %1579 = vmatpush.msra.mxu0 %v336
  %1580 = vmatpush.msra.mxu0 %v328
  %1581 = vmatpush.msra.mxu0 %v320
  %1582 = vmatpush.msra.mxu0 %v312
  %1583 = vmatpush.msra.mxu0 %v304
  %1584 = vmatpush.msra.mxu0 %v296
  %1585 = vmatmul.f32.gmra.mxu0 %v16
  %v1586 = vpop.f32.mrf.mxu0
  %v1587 = vadd.f32 %v1558, %v1586
  %1588 = vmatmul.f32.gmra.mxu0 %v21
  %v1589 = vpop.f32.mrf.mxu0
  %v1590 = vadd.f32 %v1561, %v1589
  %1591 = vmatmul.f32.gmra.mxu0 %v26
  %v1592 = vpop.f32.mrf.mxu0
  %v1593 = vadd.f32 %v1564, %v1592
  %1594 = vmatmul.f32.gmra.mxu0 %v31
  %v1595 = vpop.f32.mrf.mxu0
  %v1596 = vadd.f32 %v1567, %v1595
  %1597 = vdwg.mxu0
  %1598 = vmatpush.msra.mxu0 %v544
  %1599 = vmatpush.msra.mxu0 %v536
  %1600 = vmatpush.msra.mxu0 %v528
  %1601 = vmatpush.msra.mxu0 %v520
  %1602 = vmatpush.msra.mxu0 %v512
  %1603 = vmatpush.msra.mxu0 %v504
  %1604 = vmatpush.msra.mxu0 %v496
  %1605 = vmatpush.msra.mxu0 %v488
  %1606 = vmatpush.msra.mxu0 %v480
  %1607 = vmatpush.msra.mxu0 %v472
  %1608 = vmatpush.msra.mxu0 %v464
  %1609 = vmatpush.msra.mxu0 %v456
  %1610 = vmatpush.msra.mxu0 %v448
  %1611 = vmatpush.msra.mxu0 %v440
  %1612 = vmatpush.msra.mxu0 %v432
  %1613 = vmatpush.msra.mxu0 %v424
  %1614 = vmatmul.f32.gmra.mxu0 %v17
  %v1615 = vpop.f32.mrf.mxu0
  %v1616 = vadd.f32 %v1587, %v1615
  %1617 = vmatmul.f32.gmra.mxu0 %v22
  %v1618 = vpop.f32.mrf.mxu0
  %v1619 = vadd.f32 %v1590, %v1618
  %1620 = vmatmul.f32.gmra.mxu0 %v27
  %v1621 = vpop.f32.mrf.mxu0
  %v1622 = vadd.f32 %v1593, %v1621
  %1623 = vmatmul.f32.gmra.mxu0 %v32
  %v1624 = vpop.f32.mrf.mxu0
  %v1625 = vadd.f32 %v1596, %v1624
  %1626 = vdwg.mxu0
  %1627 = vmatpush.msra.mxu0 0.0
  %1628 = vmatpush.msra.mxu0 0.0
  %1629 = vmatpush.msra.mxu0 0.0
  %1630 = vmatpush.msra.mxu0 0.0
  %1631 = vmatpush.msra.mxu0 0.0
  %1632 = vmatpush.msra.mxu0 0.0
  %1633 = vmatpush.msra.mxu0 0.0
  %1634 = vmatpush.msra.mxu0 0.0
  %1635 = vmatpush.msra.mxu0 %v608
  %1636 = vmatpush.msra.mxu0 %v600
  %1637 = vmatpush.msra.mxu0 %v592
  %1638 = vmatpush.msra.mxu0 %v584
  %1639 = vmatpush.msra.mxu0 %v576
  %1640 = vmatpush.msra.mxu0 %v568
  %1641 = vmatpush.msra.mxu0 %v560
  %1642 = vmatpush.msra.mxu0 %v552
  %1643 = vmatmul.f32.gmra.mxu0 %v630
  %v1644 = vpop.f32.mrf.mxu0
  %v1645 = vadd.f32 %v1616, %v1644
  %1646 = vmatmul.f32.gmra.mxu0 %v633
  %v1647 = vpop.f32.mrf.mxu0
  %v1648 = vadd.f32 %v1619, %v1647
  %1649 = vmatmul.f32.gmra.mxu0 %v636
  %v1650 = vpop.f32.mrf.mxu0
  %v1651 = vadd.f32 %v1622, %v1650
  %1652 = vmatmul.f32.gmra.mxu0 %v639
  %v1653 = vpop.f32.mrf.mxu0
  %v1654 = vadd.f32 %v1625, %v1653
  %1655 = vdwg.mxu0
  %1656 = vmatpush.msra.mxu0 %v161
  %1657 = vmatpush.msra.mxu0 %v153
  %1658 = vmatpush.msra.mxu0 %v145
  %1659 = vmatpush.msra.mxu0 %v137
  %1660 = vmatpush.msra.mxu0 %v129
  %1661 = vmatpush.msra.mxu0 %v121
  %1662 = vmatpush.msra.mxu0 %v113
  %1663 = vmatpush.msra.mxu0 %v105
  %1664 = vmatpush.msra.mxu0 %v97
  %1665 = vmatpush.msra.mxu0 %v89
  %1666 = vmatpush.msra.mxu0 %v81
  %1667 = vmatpush.msra.mxu0 %v73
  %1668 = vmatpush.msra.mxu0 %v65
  %1669 = vmatpush.msra.mxu0 %v57
  %1670 = vmatpush.msra.mxu0 %v49
  %1671 = vmatpush.msra.mxu0 %v41
  %1672 = vmatmul.f32.gmra.mxu0 %v14
  %v1673 = vpop.f32.mrf.mxu0
  %v1674 = vadd.f32 %v619, %v1673
  %1675 = vmatmul.f32.gmra.mxu0 %v19
  %v1676 = vpop.f32.mrf.mxu0
  %v1677 = vadd.f32 %v619, %v1676
  %1678 = vmatmul.f32.gmra.mxu0 %v24
  %v1679 = vpop.f32.mrf.mxu0
  %v1680 = vadd.f32 %v619, %v1679
  %1681 = vmatmul.f32.gmra.mxu0 %v29
  %v1682 = vpop.f32.mrf.mxu0
  %v1683 = vadd.f32 %v619, %v1682
  %1684 = vdwg.mxu0
  %1685 = vmatpush.msra.mxu0 %v289
  %1686 = vmatpush.msra.mxu0 %v281
  %1687 = vmatpush.msra.mxu0 %v273
  %1688 = vmatpush.msra.mxu0 %v265
  %1689 = vmatpush.msra.mxu0 %v257
  %1690 = vmatpush.msra.mxu0 %v249
  %1691 = vmatpush.msra.mxu0 %v241
  %1692 = vmatpush.msra.mxu0 %v233
  %1693 = vmatpush.msra.mxu0 %v225
  %1694 = vmatpush.msra.mxu0 %v217
  %1695 = vmatpush.msra.mxu0 %v209
  %1696 = vmatpush.msra.mxu0 %v201
  %1697 = vmatpush.msra.mxu0 %v193
  %1698 = vmatpush.msra.mxu0 %v185
  %1699 = vmatpush.msra.mxu0 %v177
  %1700 = vmatpush.msra.mxu0 %v169
  %1701 = vmatmul.f32.gmra.mxu0 %v15
  %v1702 = vpop.f32.mrf.mxu0
  %v1703 = vadd.f32 %v1674, %v1702
  %1704 = vmatmul.f32.gmra.mxu0 %v20
  %v1705 = vpop.f32.mrf.mxu0
  %v1706 = vadd.f32 %v1677, %v1705
  %1707 = vmatmul.f32.gmra.mxu0 %v25
  %v1708 = vpop.f32.mrf.mxu0
  %v1709 = vadd.f32 %v1680, %v1708
  %1710 = vmatmul.f32.gmra.mxu0 %v30
  %v1711 = vpop.f32.mrf.mxu0
  %v1712 = vadd.f32 %v1683, %v1711
  %1713 = vdwg.mxu0
  %1714 = vmatpush.msra.mxu0 %v417
  %1715 = vmatpush.msra.mxu0 %v409
  %1716 = vmatpush.msra.mxu0 %v401
  %1717 = vmatpush.msra.mxu0 %v393
  %1718 = vmatpush.msra.mxu0 %v385
  %1719 = vmatpush.msra.mxu0 %v377
  %1720 = vmatpush.msra.mxu0 %v369
  %1721 = vmatpush.msra.mxu0 %v361
  %1722 = vmatpush.msra.mxu0 %v353
  %1723 = vmatpush.msra.mxu0 %v345
  %1724 = vmatpush.msra.mxu0 %v337
  %1725 = vmatpush.msra.mxu0 %v329
  %1726 = vmatpush.msra.mxu0 %v321
  %1727 = vmatpush.msra.mxu0 %v313
  %1728 = vmatpush.msra.mxu0 %v305
  %1729 = vmatpush.msra.mxu0 %v297
  %1730 = vmatmul.f32.gmra.mxu0 %v16
  %v1731 = vpop.f32.mrf.mxu0
  %v1732 = vadd.f32 %v1703, %v1731
  %1733 = vmatmul.f32.gmra.mxu0 %v21
  %v1734 = vpop.f32.mrf.mxu0
  %v1735 = vadd.f32 %v1706, %v1734
  %1736 = vmatmul.f32.gmra.mxu0 %v26
  %v1737 = vpop.f32.mrf.mxu0
  %v1738 = vadd.f32 %v1709, %v1737
  %1739 = vmatmul.f32.gmra.mxu0 %v31
  %v1740 = vpop.f32.mrf.mxu0
  %v1741 = vadd.f32 %v1712, %v1740
  %1742 = vdwg.mxu0
  %1743 = vmatpush.msra.mxu0 %v545
  %1744 = vmatpush.msra.mxu0 %v537
  %1745 = vmatpush.msra.mxu0 %v529
  %1746 = vmatpush.msra.mxu0 %v521
  %1747 = vmatpush.msra.mxu0 %v513
  %1748 = vmatpush.msra.mxu0 %v505
  %1749 = vmatpush.msra.mxu0 %v497
  %1750 = vmatpush.msra.mxu0 %v489
  %1751 = vmatpush.msra.mxu0 %v481
  %1752 = vmatpush.msra.mxu0 %v473
  %1753 = vmatpush.msra.mxu0 %v465
  %1754 = vmatpush.msra.mxu0 %v457
  %1755 = vmatpush.msra.mxu0 %v449
  %1756 = vmatpush.msra.mxu0 %v441
  %1757 = vmatpush.msra.mxu0 %v433
  %1758 = vmatpush.msra.mxu0 %v425
  %1759 = vmatmul.f32.gmra.mxu0 %v17
  %v1760 = vpop.f32.mrf.mxu0
  %v1761 = vadd.f32 %v1732, %v1760
  %1762 = vmatmul.f32.gmra.mxu0 %v22
  %v1763 = vpop.f32.mrf.mxu0
  %v1764 = vadd.f32 %v1735, %v1763
  %1765 = vmatmul.f32.gmra.mxu0 %v27
  %v1766 = vpop.f32.mrf.mxu0
  %v1767 = vadd.f32 %v1738, %v1766
  %1768 = vmatmul.f32.gmra.mxu0 %v32
  %v1769 = vpop.f32.mrf.mxu0
  %v1770 = vadd.f32 %v1741, %v1769
  %1771 = vdwg.mxu0
  %1772 = vmatpush.msra.mxu0 0.0
  %1773 = vmatpush.msra.mxu0 0.0
  %1774 = vmatpush.msra.mxu0 0.0
  %1775 = vmatpush.msra.mxu0 0.0
  %1776 = vmatpush.msra.mxu0 0.0
  %1777 = vmatpush.msra.mxu0 0.0
  %1778 = vmatpush.msra.mxu0 0.0
  %1779 = vmatpush.msra.mxu0 0.0
  %1780 = vmatpush.msra.mxu0 %v609
  %1781 = vmatpush.msra.mxu0 %v601
  %1782 = vmatpush.msra.mxu0 %v593
  %1783 = vmatpush.msra.mxu0 %v585
  %1784 = vmatpush.msra.mxu0 %v577
  %1785 = vmatpush.msra.mxu0 %v569
  %1786 = vmatpush.msra.mxu0 %v561
  %1787 = vmatpush.msra.mxu0 %v553
  %1788 = vmatmul.f32.gmra.mxu0 %v630
  %v1789 = vpop.f32.mrf.mxu0
  %v1790 = vadd.f32 %v1761, %v1789
  %1791 = vmatmul.f32.gmra.mxu0 %v633
  %v1792 = vpop.f32.mrf.mxu0
  %v1793 = vadd.f32 %v1764, %v1792
  %1794 = vmatmul.f32.gmra.mxu0 %v636
  %v1795 = vpop.f32.mrf.mxu0
  %v1796 = vadd.f32 %v1767, %v1795
  %1797 = vmatmul.f32.gmra.mxu0 %v639
  %v1798 = vpop.f32.mrf.mxu0
  %v1799 = vadd.f32 %v1770, %v1798
  %1800 = vdwg.mxu0
  %v1801 = vmax.f32 %v775, 0.0
  %v1802 = vmax.f32 %v920, 0.0
  %v1803 = vmax.f32 %v1065, 0.0
  %v1804 = vmax.f32 %v1210, 0.0
  %v1805 = vmax.f32 %v1355, 0.0
  %v1806 = vmax.f32 %v1500, 0.0
  %v1807 = vmax.f32 %v1645, 0.0
  %v1808 = vmax.f32 %v1790, 0.0
  %v1809 = vmax.f32 %v778, 0.0
  %v1810 = vmax.f32 %v923, 0.0
  %v1811 = vmax.f32 %v1068, 0.0
  %v1812 = vmax.f32 %v1213, 0.0
  %v1813 = vmax.f32 %v1358, 0.0
  %v1814 = vmax.f32 %v1503, 0.0
  %v1815 = vmax.f32 %v1648, 0.0
  %v1816 = vmax.f32 %v1793, 0.0
  %v1817 = vmax.f32 %v781, 0.0
  %v1818 = vmax.f32 %v926, 0.0
  %v1819 = vmax.f32 %v1071, 0.0
  %v1820 = vmax.f32 %v1216, 0.0
  %v1821 = vmax.f32 %v1361, 0.0
  %v1822 = vmax.f32 %v1506, 0.0
  %v1823 = vmax.f32 %v1651, 0.0
  %v1824 = vmax.f32 %v1796, 0.0
  %v1825 = vmax.f32 %v784, 0.0
  %v1826 = vmax.f32 %v929, 0.0
  %v1827 = vmax.f32 %v1074, 0.0
  %v1828 = vmax.f32 %v1219, 0.0
  %v1829 = vmax.f32 %v1364, 0.0
  %v1830 = vmax.f32 %v1509, 0.0
  %v1831 = vmax.f32 %v1654, 0.0
  %v1832 = vmax.f32 %v1799, 0.0
  %1833 = vst [vmem:[%s3] sm:$0xff] %v1801
  %1834 = vst [vmem:[%s3 + $0x8] sm:$0xff] %v1802
  %1835 = vst [vmem:[%s3 + $0x10] sm:$0xff] %v1803
  %1836 = vst [vmem:[%s3 + $0x18] sm:$0xff] %v1804
  %1837 = vst [vmem:[%s3 + $0x20] sm:$0xff] %v1805
  %1838 = vst [vmem:[%s3 + $0x28] sm:$0xff] %v1806
  %1839 = vst [vmem:[%s3 + $0x30] sm:$0xff] %v1807
  %1840 = vst [vmem:[%s3 + $0x38] sm:$0xff] %v1808
  %1841 = vst [vmem:[%s3 + $0x40] sm:$0xff] %v1809
  %1842 = vst [vmem:[%s3 + $0x48] sm:$0xff] %v1810
  %1843 = vst [vmem:[%s3 + $0x50] sm:$0xff] %v1811
  %1844 = vst [vmem:[%s3 + $0x58] sm:$0xff] %v1812
  %1845 = vst [vmem:[%s3 + $0x60] sm:$0xff] %v1813
  %1846 = vst [vmem:[%s3 + $0x68] sm:$0xff] %v1814
  %1847 = vst [vmem:[%s3 + $0x70] sm:$0xff] %v1815
  %1848 = vst [vmem:[%s3 + $0x78] sm:$0xff] %v1816
  %1849 = vst [vmem:[%s3 + $0x80] sm:$0xff] %v1817
  %1850 = vst [vmem:[%s3 + $0x88] sm:$0xff] %v1818
  %1851 = vst [vmem:[%s3 + $0x90] sm:$0xff] %v1819
  %1852 = vst [vmem:[%s3 + $0x98] sm:$0xff] %v1820
  %1853 = vst [vmem:[%s3 + $0xa0] sm:$0xff] %v1821
  %1854 = vst [vmem:[%s3 + $0xa8] sm:$0xff] %v1822
  %1855 = vst [vmem:[%s3 + $0xb0] sm:$0xff] %v1823
  %1856 = vst [vmem:[%s3 + $0xb8] sm:$0xff] %v1824
  %1857 = vst [vmem:[%s3 + $0xc0] sm:$0xff] %v1825
  %1858 = vst [vmem:[%s3 + $0xc8] sm:$0xff] %v1826
  %1859 = vst [vmem:[%s3 + $0xd0] sm:$0xff] %v1827
  %1860 = vst [vmem:[%s3 + $0xd8] sm:$0xff] %v1828
  %1861 = vst [vmem:[%s3 + $0xe0] sm:$0xff] %v1829
  %1862 = vst [vmem:[%s3 + $0xe8] sm:$0xff] %v1830
  %1863 = vst [vmem:[%s3 + $0xf0] sm:$0xff] %v1831
  %1864 = vst [vmem:[%s3 + $0xf8] sm:$0xff] %v1832
  // Predicated region
  $region14: #{model_forward.8} parent=0 // pred_check
    _
  $region15: #{model_forward.8} parent=0 // pred_check_branch
    %1866 = sbr.rel (0) target = $region17
  $region16: #{model_forward.8} parent=0 // pred_region
    _
  $region17: #{model_forward.8} parent=0 // pred_fallthru
    _
  // Predicated region
  $region18: #{model_forward.8} parent=0 // pred_check
    _
  $region19: #{model_forward.8} parent=0 // pred_check_branch
    %1868 = sbr.rel (0) target = $region21
  $region20: #{model_forward.8} parent=0 // pred_region
    _
  $region21: #{model_forward.8} parent=0 // pred_fallthru
    _

// kernel: model_forward.9
$region0: #{model_forward.9}
  #allocation0 [shape = 'u32[]', space=smem, size = 0x4, offset = 0x4, fixed_abs, tag = 'smem constant byte address 0x4 - core index']
  #allocation1 [shape = 'u32[72,128]{1,0:T(1,128)}', space=vmem, size = 0x9000, scoped, tag = 'internal scratch']
  %s0 = inlined_call_operand.vmem [shape: f32[8,4096], index: 0, kind: input, shape index: {}]
  %s1 = inlined_call_operand.vmem [shape: f32[4096,128], index: 1, kind: input, shape index: {}]
  %s2 = inlined_call_operand.vmem [shape: f32[1,128], index: 2, kind: input, shape index: {}]
  %s3 = inlined_call_operand.vmem [shape: f32[128,128], index: 3, kind: input, shape index: {}]
  %s4 = inlined_call_operand.vmem [shape: f32[128,64], index: 4, kind: input, shape index: {}]
  %s5 = inlined_call_operand.vmem [shape: f32[1,64], index: 5, kind: input, shape index: {}]
  %s6 = inlined_call_operand.vmem [shape: f32[64,32], index: 6, kind: input, shape index: {}]
  %s7 = inlined_call_operand.vmem [shape: f32[1,32], index: 7, kind: input, shape index: {}]
  %s8 = inlined_call_operand.vmem [shape: f32[32,10], index: 8, kind: input, shape index: {}]
  %s9 = inlined_call_operand.vmem [shape: f32[1,10], index: 9, kind: input, shape index: {}]
  %s10 = inlined_call_operand.hbm [shape: f32[2,10], index: 10, kind: output, shape index: {}]
  %s11 = sld [smem:[#allocation0]]
  $region50: #{model_forward.9} parent=0
    _
  %s13 = ssub.s32 1, %s11
  %s14 = scalar_select 0, %s13, %s11
  $region1: #{model_forward.9} parent=0
    #allocation2 [shape = 'u8[1024]{0}', space=vmem, size = 0x400, scoped, tag = 'output window, operand 0, single buffered']
    #allocation3 [shape = 's32[1]{0}', space=sflag, size = 0x4, scoped, tag = 'scoped memory for model_forward.9']
    %15 = vsyncpa [#allocation3], 0
    // Predicated region
    $region2: #{model_forward.9} parent=1 // pred_check
      _
    $region3: #{model_forward.9} parent=1 // pred_check_branch
      %17 = sbr.rel (0) target = $region5
    $region4: #{model_forward.9} parent=1 // pred_region
      _
    $region5: #{model_forward.9} parent=1 // pred_fallthru
      _
    // Predicated region
    $region6: #{model_forward.9} parent=1 // pred_check
      _
    $region7: #{model_forward.9} parent=1 // pred_check_branch
      %19 = sbr.rel (0) target = $region9
    $region8: #{model_forward.9} parent=1 // pred_region
      _
    $region9: #{model_forward.9} parent=1 // pred_fallthru
      _
    // Predicated region
    $region10: #{model_forward.9} parent=1 // pred_check
      _
    $region11: #{model_forward.9} parent=1 // pred_check_branch
      %21 = sbr.rel (0) target = $region13
    $region12: #{model_forward.9} parent=1 // pred_region
      _
    $region13: #{model_forward.9} parent=1 // pred_fallthru
      _
    // Predicated region
    $region14: #{model_forward.9} parent=1 // pred_check
      _
    $region15: #{model_forward.9} parent=1 // pred_check_branch
      %23 = sbr.rel (0) target = $region17
    $region16: #{model_forward.9} parent=1 // pred_region
      _
    $region17: #{model_forward.9} parent=1 // pred_fallthru
      _
    // Predicated region
    $region18: #{model_forward.9} parent=1 // pred_check
      _
    $region19: #{model_forward.9} parent=1 // pred_check_branch
      %25 = sbr.rel (0) target = $region21
    $region20: #{model_forward.9} parent=1 // pred_region
      _
    $region21: #{model_forward.9} parent=1 // pred_fallthru
      _
    // Predicated region
    $region22: #{model_forward.9} parent=1 // pred_check
      _
    $region23: #{model_forward.9} parent=1 // pred_check_branch
      %27 = sbr.rel (0) target = $region25
    $region24: #{model_forward.9} parent=1 // pred_region
      _
    $region25: #{model_forward.9} parent=1 // pred_fallthru
      _
    // Predicated region
    $region26: #{model_forward.9} parent=1 // pred_check
      _
    $region27: #{model_forward.9} parent=1 // pred_check_branch
      %29 = sbr.rel (0) target = $region29
    $region28: #{model_forward.9} parent=1 // pred_region
      _
    $region29: #{model_forward.9} parent=1 // pred_fallthru
      _
    // Predicated region
    $region30: #{model_forward.9} parent=1 // pred_check
      _
    $region31: #{model_forward.9} parent=1 // pred_check_branch
      %31 = sbr.rel (0) target = $region33
    $region32: #{model_forward.9} parent=1 // pred_region
      _
    $region33: #{model_forward.9} parent=1 // pred_fallthru
      _
    // Predicated region
    $region34: #{model_forward.9} parent=1 // pred_check
      _
    $region35: #{model_forward.9} parent=1 // pred_check_branch
      %33 = sbr.rel (0) target = $region37
    $region36: #{model_forward.9} parent=1 // pred_region
      _
    $region37: #{model_forward.9} parent=1 // pred_fallthru
      _
    // Predicated region
    $region38: #{model_forward.9} parent=1 // pred_check
      _
    $region39: #{model_forward.9} parent=1 // pred_check_branch
      %35 = sbr.rel (0) target = $region41
    $region40: #{model_forward.9} parent=1 // pred_region
      _
    $region41: #{model_forward.9} parent=1 // pred_fallthru
      _
    %v36 = vld [vmem:[%s0] sm:$0xff]
    %v37 = vld [vmem:[%s0 + $0x8] sm:$0xff]
    %v38 = vld [vmem:[%s0 + $0x10] sm:$0xff]
    %v39 = vld [vmem:[%s0 + $0x18] sm:$0xff]
    %v40 = vld [vmem:[%s0 + $0x20] sm:$0xff]
    %v41 = vld [vmem:[%s0 + $0x28] sm:$0xff]
    %v42 = vld [vmem:[%s0 + $0x30] sm:$0xff]
    %v43 = vld [vmem:[%s0 + $0x38] sm:$0xff]
    %v44 = vld [vmem:[%s0 + $0x40] sm:$0xff]
    %v45 = vld [vmem:[%s0 + $0x48] sm:$0xff]
    %v46 = vld [vmem:[%s0 + $0x50] sm:$0xff]
    %v47 = vld [vmem:[%s0 + $0x58] sm:$0xff]
    %v48 = vld [vmem:[%s0 + $0x60] sm:$0xff]
    %v49 = vld [vmem:[%s0 + $0x68] sm:$0xff]
    %v50 = vld [vmem:[%s0 + $0x70] sm:$0xff]
    %v51 = vld [vmem:[%s0 + $0x78] sm:$0xff]
    %v52 = vld [vmem:[%s0 + $0x80] sm:$0xff]
    %v53 = vld [vmem:[%s0 + $0x88] sm:$0xff]
    %v54 = vld [vmem:[%s0 + $0x90] sm:$0xff]
    %v55 = vld [vmem:[%s0 + $0x98] sm:$0xff]
    %v56 = vld [vmem:[%s0 + $0xa0] sm:$0xff]
    %v57 = vld [vmem:[%s0 + $0xa8] sm:$0xff]
    %v58 = vld [vmem:[%s0 + $0xb0] sm:$0xff]
    %v59 = vld [vmem:[%s0 + $0xb8] sm:$0xff]
    %v60 = vld [vmem:[%s0 + $0xc0] sm:$0xff]
    %v61 = vld [vmem:[%s0 + $0xc8] sm:$0xff]
    %v62 = vld [vmem:[%s0 + $0xd0] sm:$0xff]
    %v63 = vld [vmem:[%s0 + $0xd8] sm:$0xff]
    %v64 = vld [vmem:[%s0 + $0xe0] sm:$0xff]
    %v65 = vld [vmem:[%s0 + $0xe8] sm:$0xff]
    %v66 = vld [vmem:[%s0 + $0xf0] sm:$0xff]
    %v67 = vld [vmem:[%s0 + $0xf8] sm:$0xff]
    %v68 = vld [vmem:[%s1] sm:$0xff]
    %v69 = vld [vmem:[%s1 + $0x8] sm:$0xff]
    %v70 = vld [vmem:[%s1 + $0x10] sm:$0xff]
    %v71 = vld [vmem:[%s1 + $0x18] sm:$0xff]
    %v72 = vld [vmem:[%s1 + $0x20] sm:$0xff]
    %v73 = vld [vmem:[%s1 + $0x28] sm:$0xff]
    %v74 = vld [vmem:[%s1 + $0x30] sm:$0xff]
    %v75 = vld [vmem:[%s1 + $0x38] sm:$0xff]
    %v76 = vld [vmem:[%s1 + $0x40] sm:$0xff]
    %v77 = vld [vmem:[%s1 + $0x48] sm:$0xff]
    %v78 = vld [vmem:[%s1 + $0x50] sm:$0xff]
    %v79 = vld [vmem:[%s1 + $0x58] sm:$0xff]
    %v80 = vld [vmem:[%s1 + $0x60] sm:$0xff]
    %v81 = vld [vmem:[%s1 + $0x68] sm:$0xff]
    %v82 = vld [vmem:[%s1 + $0x70] sm:$0xff]
    %v83 = vld [vmem:[%s1 + $0x78] sm:$0xff]
    %v84 = vld [vmem:[%s1 + $0x80] sm:$0xff]
    %v85 = vld [vmem:[%s1 + $0x88] sm:$0xff]
    %v86 = vld [vmem:[%s1 + $0x90] sm:$0xff]
    %v87 = vld [vmem:[%s1 + $0x98] sm:$0xff]
    %v88 = vld [vmem:[%s1 + $0xa0] sm:$0xff]
    %v89 = vld [vmem:[%s1 + $0xa8] sm:$0xff]
    %v90 = vld [vmem:[%s1 + $0xb0] sm:$0xff]
    %v91 = vld [vmem:[%s1 + $0xb8] sm:$0xff]
    %v92 = vld [vmem:[%s1 + $0xc0] sm:$0xff]
    %v93 = vld [vmem:[%s1 + $0xc8] sm:$0xff]
    %v94 = vld [vmem:[%s1 + $0xd0] sm:$0xff]
    %v95 = vld [vmem:[%s1 + $0xd8] sm:$0xff]
    %v96 = vld [vmem:[%s1 + $0xe0] sm:$0xff]
    %v97 = vld [vmem:[%s1 + $0xe8] sm:$0xff]
    %v98 = vld [vmem:[%s1 + $0xf0] sm:$0xff]
    %v99 = vld [vmem:[%s1 + $0xf8] sm:$0xff]
    %v100 = vld [vmem:[%s1 + $0x100] sm:$0xff]
    %v101 = vld [vmem:[%s1 + $0x108] sm:$0xff]
    %v102 = vld [vmem:[%s1 + $0x110] sm:$0xff]
    %v103 = vld [vmem:[%s1 + $0x118] sm:$0xff]
    %v104 = vld [vmem:[%s1 + $0x120] sm:$0xff]
    %v105 = vld [vmem:[%s1 + $0x128] sm:$0xff]
    %v106 = vld [vmem:[%s1 + $0x130] sm:$0xff]
    %v107 = vld [vmem:[%s1 + $0x138] sm:$0xff]
    %v108 = vld [vmem:[%s1 + $0x140] sm:$0xff]
    %v109 = vld [vmem:[%s1 + $0x148] sm:$0xff]
    %v110 = vld [vmem:[%s1 + $0x150] sm:$0xff]
    %v111 = vld [vmem:[%s1 + $0x158] sm:$0xff]
    %v112 = vld [vmem:[%s1 + $0x160] sm:$0xff]
    %v113 = vld [vmem:[%s1 + $0x168] sm:$0xff]
    %v114 = vld [vmem:[%s1 + $0x170] sm:$0xff]
    %v115 = vld [vmem:[%s1 + $0x178] sm:$0xff]
    %v116 = vld [vmem:[%s1 + $0x180] sm:$0xff]
    %v117 = vld [vmem:[%s1 + $0x188] sm:$0xff]
    %v118 = vld [vmem:[%s1 + $0x190] sm:$0xff]
    %v119 = vld [vmem:[%s1 + $0x198] sm:$0xff]
    %v120 = vld [vmem:[%s1 + $0x1a0] sm:$0xff]
    %v121 = vld [vmem:[%s1 + $0x1a8] sm:$0xff]
    %v122 = vld [vmem:[%s1 + $0x1b0] sm:$0xff]
    %v123 = vld [vmem:[%s1 + $0x1b8] sm:$0xff]
    %v124 = vld [vmem:[%s1 + $0x1c0] sm:$0xff]
    %v125 = vld [vmem:[%s1 + $0x1c8] sm:$0xff]
    %v126 = vld [vmem:[%s1 + $0x1d0] sm:$0xff]
    %v127 = vld [vmem:[%s1 + $0x1d8] sm:$0xff]
    %v128 = vld [vmem:[%s1 + $0x1e0] sm:$0xff]
    %v129 = vld [vmem:[%s1 + $0x1e8] sm:$0xff]
    %v130 = vld [vmem:[%s1 + $0x1f0] sm:$0xff]
    %v131 = vld [vmem:[%s1 + $0x1f8] sm:$0xff]
    %v132 = vld [vmem:[%s1 + $0x200] sm:$0xff]
    %v133 = vld [vmem:[%s1 + $0x208] sm:$0xff]
    %v134 = vld [vmem:[%s1 + $0x210] sm:$0xff]
    %v135 = vld [vmem:[%s1 + $0x218] sm:$0xff]
    %v136 = vld [vmem:[%s1 + $0x220] sm:$0xff]
    %v137 = vld [vmem:[%s1 + $0x228] sm:$0xff]
    %v138 = vld [vmem:[%s1 + $0x230] sm:$0xff]
    %v139 = vld [vmem:[%s1 + $0x238] sm:$0xff]
    %v140 = vld [vmem:[%s1 + $0x240] sm:$0xff]
    %v141 = vld [vmem:[%s1 + $0x248] sm:$0xff]
    %v142 = vld [vmem:[%s1 + $0x250] sm:$0xff]
    %v143 = vld [vmem:[%s1 + $0x258] sm:$0xff]
    %v144 = vld [vmem:[%s1 + $0x260] sm:$0xff]
    %v145 = vld [vmem:[%s1 + $0x268] sm:$0xff]
    %v146 = vld [vmem:[%s1 + $0x270] sm:$0xff]
    %v147 = vld [vmem:[%s1 + $0x278] sm:$0xff]
    %v148 = vld [vmem:[%s1 + $0x280] sm:$0xff]
    %v149 = vld [vmem:[%s1 + $0x288] sm:$0xff]
    %v150 = vld [vmem:[%s1 + $0x290] sm:$0xff]
    %v151 = vld [vmem:[%s1 + $0x298] sm:$0xff]
    %v152 = vld [vmem:[%s1 + $0x2a0] sm:$0xff]
    %v153 = vld [vmem:[%s1 + $0x2a8] sm:$0xff]
    %v154 = vld [vmem:[%s1 + $0x2b0] sm:$0xff]
    %v155 = vld [vmem:[%s1 + $0x2b8] sm:$0xff]
    %v156 = vld [vmem:[%s1 + $0x2c0] sm:$0xff]
    %v157 = vld [vmem:[%s1 + $0x2c8] sm:$0xff]
    %v158 = vld [vmem:[%s1 + $0x2d0] sm:$0xff]
    %v159 = vld [vmem:[%s1 + $0x2d8] sm:$0xff]
    %v160 = vld [vmem:[%s1 + $0x2e0] sm:$0xff]
    %v161 = vld [vmem:[%s1 + $0x2e8] sm:$0xff]
    %v162 = vld [vmem:[%s1 + $0x2f0] sm:$0xff]
    %v163 = vld [vmem:[%s1 + $0x2f8] sm:$0xff]
    %v164 = vld [vmem:[%s1 + $0x300] sm:$0xff]
    %v165 = vld [vmem:[%s1 + $0x308] sm:$0xff]
    %v166 = vld [vmem:[%s1 + $0x310] sm:$0xff]
    %v167 = vld [vmem:[%s1 + $0x318] sm:$0xff]
    %v168 = vld [vmem:[%s1 + $0x320] sm:$0xff]
    %v169 = vld [vmem:[%s1 + $0x328] sm:$0xff]
    %v170 = vld [vmem:[%s1 + $0x330] sm:$0xff]
    %v171 = vld [vmem:[%s1 + $0x338] sm:$0xff]
    %v172 = vld [vmem:[%s1 + $0x340] sm:$0xff]
    %v173 = vld [vmem:[%s1 + $0x348] sm:$0xff]
    %v174 = vld [vmem:[%s1 + $0x350] sm:$0xff]
    %v175 = vld [vmem:[%s1 + $0x358] sm:$0xff]
    %v176 = vld [vmem:[%s1 + $0x360] sm:$0xff]
    %v177 = vld [vmem:[%s1 + $0x368] sm:$0xff]
    %v178 = vld [vmem:[%s1 + $0x370] sm:$0xff]
    %v179 = vld [vmem:[%s1 + $0x378] sm:$0xff]
    %v180 = vld [vmem:[%s1 + $0x380] sm:$0xff]
    %v181 = vld [vmem:[%s1 + $0x388] sm:$0xff]
    %v182 = vld [vmem:[%s1 + $0x390] sm:$0xff]
    %v183 = vld [vmem:[%s1 + $0x398] sm:$0xff]
    %v184 = vld [vmem:[%s1 + $0x3a0] sm:$0xff]
    %v185 = vld [vmem:[%s1 + $0x3a8] sm:$0xff]
    %v186 = vld [vmem:[%s1 + $0x3b0] sm:$0xff]
    %v187 = vld [vmem:[%s1 + $0x3b8] sm:$0xff]
    %v188 = vld [vmem:[%s1 + $0x3c0] sm:$0xff]
    %v189 = vld [vmem:[%s1 + $0x3c8] sm:$0xff]
    %v190 = vld [vmem:[%s1 + $0x3d0] sm:$0xff]
    %v191 = vld [vmem:[%s1 + $0x3d8] sm:$0xff]
    %v192 = vld [vmem:[%s1 + $0x3e0] sm:$0xff]
    %v193 = vld [vmem:[%s1 + $0x3e8] sm:$0xff]
    %v194 = vld [vmem:[%s1 + $0x3f0] sm:$0xff]
    %v195 = vld [vmem:[%s1 + $0x3f8] sm:$0xff]
    %v196 = vld [vmem:[%s1 + $0x400] sm:$0xff]
    %v197 = vld [vmem:[%s1 + $0x408] sm:$0xff]
    %v198 = vld [vmem:[%s1 + $0x410] sm:$0xff]
    %v199 = vld [vmem:[%s1 + $0x418] sm:$0xff]
    %v200 = vld [vmem:[%s1 + $0x420] sm:$0xff]
    %v201 = vld [vmem:[%s1 + $0x428] sm:$0xff]
    %v202 = vld [vmem:[%s1 + $0x430] sm:$0xff]
    %v203 = vld [vmem:[%s1 + $0x438] sm:$0xff]
    %v204 = vld [vmem:[%s1 + $0x440] sm:$0xff]
    %v205 = vld [vmem:[%s1 + $0x448] sm:$0xff]
    %v206 = vld [vmem:[%s1 + $0x450] sm:$0xff]
    %v207 = vld [vmem:[%s1 + $0x458] sm:$0xff]
    %v208 = vld [vmem:[%s1 + $0x460] sm:$0xff]
    %v209 = vld [vmem:[%s1 + $0x468] sm:$0xff]
    %v210 = vld [vmem:[%s1 + $0x470] sm:$0xff]
    %v211 = vld [vmem:[%s1 + $0x478] sm:$0xff]
    %v212 = vld [vmem:[%s1 + $0x480] sm:$0xff]
    %v213 = vld [vmem:[%s1 + $0x488] sm:$0xff]
    %v214 = vld [vmem:[%s1 + $0x490] sm:$0xff]
    %v215 = vld [vmem:[%s1 + $0x498] sm:$0xff]
    %v216 = vld [vmem:[%s1 + $0x4a0] sm:$0xff]
    %v217 = vld [vmem:[%s1 + $0x4a8] sm:$0xff]
    %v218 = vld [vmem:[%s1 + $0x4b0] sm:$0xff]
    %v219 = vld [vmem:[%s1 + $0x4b8] sm:$0xff]
    %v220 = vld [vmem:[%s1 + $0x4c0] sm:$0xff]
    %v221 = vld [vmem:[%s1 + $0x4c8] sm:$0xff]
    %v222 = vld [vmem:[%s1 + $0x4d0] sm:$0xff]
    %v223 = vld [vmem:[%s1 + $0x4d8] sm:$0xff]
    %v224 = vld [vmem:[%s1 + $0x4e0] sm:$0xff]
    %v225 = vld [vmem:[%s1 + $0x4e8] sm:$0xff]
    %v226 = vld [vmem:[%s1 + $0x4f0] sm:$0xff]
    %v227 = vld [vmem:[%s1 + $0x4f8] sm:$0xff]
    %v228 = vld [vmem:[%s1 + $0x500] sm:$0xff]
    %v229 = vld [vmem:[%s1 + $0x508] sm:$0xff]
    %v230 = vld [vmem:[%s1 + $0x510] sm:$0xff]
    %v231 = vld [vmem:[%s1 + $0x518] sm:$0xff]
    %v232 = vld [vmem:[%s1 + $0x520] sm:$0xff]
    %v233 = vld [vmem:[%s1 + $0x528] sm:$0xff]
    %v234 = vld [vmem:[%s1 + $0x530] sm:$0xff]
    %v235 = vld [vmem:[%s1 + $0x538] sm:$0xff]
    %v236 = vld [vmem:[%s1 + $0x540] sm:$0xff]
    %v237 = vld [vmem:[%s1 + $0x548] sm:$0xff]
    %v238 = vld [vmem:[%s1 + $0x550] sm:$0xff]
    %v239 = vld [vmem:[%s1 + $0x558] sm:$0xff]
    %v240 = vld [vmem:[%s1 + $0x560] sm:$0xff]
    %v241 = vld [vmem:[%s1 + $0x568] sm:$0xff]
    %v242 = vld [vmem:[%s1 + $0x570] sm:$0xff]
    %v243 = vld [vmem:[%s1 + $0x578] sm:$0xff]
    %v244 = vld [vmem:[%s1 + $0x580] sm:$0xff]
    %v245 = vld [vmem:[%s1 + $0x588] sm:$0xff]
    %v246 = vld [vmem:[%s1 + $0x590] sm:$0xff]
    %v247 = vld [vmem:[%s1 + $0x598] sm:$0xff]
    %v248 = vld [vmem:[%s1 + $0x5a0] sm:$0xff]
    %v249 = vld [vmem:[%s1 + $0x5a8] sm:$0xff]
    %v250 = vld [vmem:[%s1 + $0x5b0] sm:$0xff]
    %v251 = vld [vmem:[%s1 + $0x5b8] sm:$0xff]
    %v252 = vld [vmem:[%s1 + $0x5c0] sm:$0xff]
    %v253 = vld [vmem:[%s1 + $0x5c8] sm:$0xff]
    %v254 = vld [vmem:[%s1 + $0x5d0] sm:$0xff]
    %v255 = vld [vmem:[%s1 + $0x5d8] sm:$0xff]
    %v256 = vld [vmem:[%s1 + $0x5e0] sm:$0xff]
    %v257 = vld [vmem:[%s1 + $0x5e8] sm:$0xff]
    %v258 = vld [vmem:[%s1 + $0x5f0] sm:$0xff]
    %v259 = vld [vmem:[%s1 + $0x5f8] sm:$0xff]
    %v260 = vld [vmem:[%s1 + $0x600] sm:$0xff]
    %v261 = vld [vmem:[%s1 + $0x608] sm:$0xff]
    %v262 = vld [vmem:[%s1 + $0x610] sm:$0xff]
    %v263 = vld [vmem:[%s1 + $0x618] sm:$0xff]
    %v264 = vld [vmem:[%s1 + $0x620] sm:$0xff]
    %v265 = vld [vmem:[%s1 + $0x628] sm:$0xff]
    %v266 = vld [vmem:[%s1 + $0x630] sm:$0xff]
    %v267 = vld [vmem:[%s1 + $0x638] sm:$0xff]
    %v268 = vld [vmem:[%s1 + $0x640] sm:$0xff]
    %v269 = vld [vmem:[%s1 + $0x648] sm:$0xff]
    %v270 = vld [vmem:[%s1 + $0x650] sm:$0xff]
    %v271 = vld [vmem:[%s1 + $0x658] sm:$0xff]
    %v272 = vld [vmem:[%s1 + $0x660] sm:$0xff]
    %v273 = vld [vmem:[%s1 + $0x668] sm:$0xff]
    %v274 = vld [vmem:[%s1 + $0x670] sm:$0xff]
    %v275 = vld [vmem:[%s1 + $0x678] sm:$0xff]
    %v276 = vld [vmem:[%s1 + $0x680] sm:$0xff]
    %v277 = vld [vmem:[%s1 + $0x688] sm:$0xff]
    %v278 = vld [vmem:[%s1 + $0x690] sm:$0xff]
    %v279 = vld [vmem:[%s1 + $0x698] sm:$0xff]
    %v280 = vld [vmem:[%s1 + $0x6a0] sm:$0xff]
    %v281 = vld [vmem:[%s1 + $0x6a8] sm:$0xff]
    %v282 = vld [vmem:[%s1 + $0x6b0] sm:$0xff]
    %v283 = vld [vmem:[%s1 + $0x6b8] sm:$0xff]
    %v284 = vld [vmem:[%s1 + $0x6c0] sm:$0xff]
    %v285 = vld [vmem:[%s1 + $0x6c8] sm:$0xff]
    %v286 = vld [vmem:[%s1 + $0x6d0] sm:$0xff]
    %v287 = vld [vmem:[%s1 + $0x6d8] sm:$0xff]
    %v288 = vld [vmem:[%s1 + $0x6e0] sm:$0xff]
    %v289 = vld [vmem:[%s1 + $0x6e8] sm:$0xff]
    %v290 = vld [vmem:[%s1 + $0x6f0] sm:$0xff]
    %v291 = vld [vmem:[%s1 + $0x6f8] sm:$0xff]
    %v292 = vld [vmem:[%s1 + $0x700] sm:$0xff]
    %v293 = vld [vmem:[%s1 + $0x708] sm:$0xff]
    %v294 = vld [vmem:[%s1 + $0x710] sm:$0xff]
    %v295 = vld [vmem:[%s1 + $0x718] sm:$0xff]
    %v296 = vld [vmem:[%s1 + $0x720] sm:$0xff]
    %v297 = vld [vmem:[%s1 + $0x728] sm:$0xff]
    %v298 = vld [vmem:[%s1 + $0x730] sm:$0xff]
    %v299 = vld [vmem:[%s1 + $0x738] sm:$0xff]
    %v300 = vld [vmem:[%s1 + $0x740] sm:$0xff]
    %v301 = vld [vmem:[%s1 + $0x748] sm:$0xff]
    %v302 = vld [vmem:[%s1 + $0x750] sm:$0xff]
    %v303 = vld [vmem:[%s1 + $0x758] sm:$0xff]
    %v304 = vld [vmem:[%s1 + $0x760] sm:$0xff]
    %v305 = vld [vmem:[%s1 + $0x768] sm:$0xff]
    %v306 = vld [vmem:[%s1 + $0x770] sm:$0xff]
    %v307 = vld [vmem:[%s1 + $0x778] sm:$0xff]
    %v308 = vld [vmem:[%s1 + $0x780] sm:$0xff]
    %v309 = vld [vmem:[%s1 + $0x788] sm:$0xff]
    %v310 = vld [vmem:[%s1 + $0x790] sm:$0xff]
    %v311 = vld [vmem:[%s1 + $0x798] sm:$0xff]
    %v312 = vld [vmem:[%s1 + $0x7a0] sm:$0xff]
    %v313 = vld [vmem:[%s1 + $0x7a8] sm:$0xff]
    %v314 = vld [vmem:[%s1 + $0x7b0] sm:$0xff]
    %v315 = vld [vmem:[%s1 + $0x7b8] sm:$0xff]
    %v316 = vld [vmem:[%s1 + $0x7c0] sm:$0xff]
    %v317 = vld [vmem:[%s1 + $0x7c8] sm:$0xff]
    %v318 = vld [vmem:[%s1 + $0x7d0] sm:$0xff]
    %v319 = vld [vmem:[%s1 + $0x7d8] sm:$0xff]
    %v320 = vld [vmem:[%s1 + $0x7e0] sm:$0xff]
    %v321 = vld [vmem:[%s1 + $0x7e8] sm:$0xff]
    %v322 = vld [vmem:[%s1 + $0x7f0] sm:$0xff]
    %v323 = vld [vmem:[%s1 + $0x7f8] sm:$0xff]
    %v324 = vld [vmem:[%s1 + $0x800] sm:$0xff]
    %v325 = vld [vmem:[%s1 + $0x808] sm:$0xff]
    %v326 = vld [vmem:[%s1 + $0x810] sm:$0xff]
    %v327 = vld [vmem:[%s1 + $0x818] sm:$0xff]
    %v328 = vld [vmem:[%s1 + $0x820] sm:$0xff]
    %v329 = vld [vmem:[%s1 + $0x828] sm:$0xff]
    %v330 = vld [vmem:[%s1 + $0x830] sm:$0xff]
    %v331 = vld [vmem:[%s1 + $0x838] sm:$0xff]
    %v332 = vld [vmem:[%s1 + $0x840] sm:$0xff]
    %v333 = vld [vmem:[%s1 + $0x848] sm:$0xff]
    %v334 = vld [vmem:[%s1 + $0x850] sm:$0xff]
    %v335 = vld [vmem:[%s1 + $0x858] sm:$0xff]
    %v336 = vld [vmem:[%s1 + $0x860] sm:$0xff]
    %v337 = vld [vmem:[%s1 + $0x868] sm:$0xff]
    %v338 = vld [vmem:[%s1 + $0x870] sm:$0xff]
    %v339 = vld [vmem:[%s1 + $0x878] sm:$0xff]
    %v340 = vld [vmem:[%s1 + $0x880] sm:$0xff]
    %v341 = vld [vmem:[%s1 + $0x888] sm:$0xff]
    %v342 = vld [vmem:[%s1 + $0x890] sm:$0xff]
    %v343 = vld [vmem:[%s1 + $0x898] sm:$0xff]
    %v344 = vld [vmem:[%s1 + $0x8a0] sm:$0xff]
    %v345 = vld [vmem:[%s1 + $0x8a8] sm:$0xff]
    %v346 = vld [vmem:[%s1 + $0x8b0] sm:$0xff]
    %v347 = vld [vmem:[%s1 + $0x8b8] sm:$0xff]
    %v348 = vld [vmem:[%s1 + $0x8c0] sm:$0xff]
    %v349 = vld [vmem:[%s1 + $0x8c8] sm:$0xff]
    %v350 = vld [vmem:[%s1 + $0x8d0] sm:$0xff]
    %v351 = vld [vmem:[%s1 + $0x8d8] sm:$0xff]
    %v352 = vld [vmem:[%s1 + $0x8e0] sm:$0xff]
    %v353 = vld [vmem:[%s1 + $0x8e8] sm:$0xff]
    %v354 = vld [vmem:[%s1 + $0x8f0] sm:$0xff]
    %v355 = vld [vmem:[%s1 + $0x8f8] sm:$0xff]
    %v356 = vld [vmem:[%s1 + $0x900] sm:$0xff]
    %v357 = vld [vmem:[%s1 + $0x908] sm:$0xff]
    %v358 = vld [vmem:[%s1 + $0x910] sm:$0xff]
    %v359 = vld [vmem:[%s1 + $0x918] sm:$0xff]
    %v360 = vld [vmem:[%s1 + $0x920] sm:$0xff]
    %v361 = vld [vmem:[%s1 + $0x928] sm:$0xff]
    %v362 = vld [vmem:[%s1 + $0x930] sm:$0xff]
    %v363 = vld [vmem:[%s1 + $0x938] sm:$0xff]
    %v364 = vld [vmem:[%s1 + $0x940] sm:$0xff]
    %v365 = vld [vmem:[%s1 + $0x948] sm:$0xff]
    %v366 = vld [vmem:[%s1 + $0x950] sm:$0xff]
    %v367 = vld [vmem:[%s1 + $0x958] sm:$0xff]
    %v368 = vld [vmem:[%s1 + $0x960] sm:$0xff]
    %v369 = vld [vmem:[%s1 + $0x968] sm:$0xff]
    %v370 = vld [vmem:[%s1 + $0x970] sm:$0xff]
    %v371 = vld [vmem:[%s1 + $0x978] sm:$0xff]
    %v372 = vld [vmem:[%s1 + $0x980] sm:$0xff]
    %v373 = vld [vmem:[%s1 + $0x988] sm:$0xff]
    %v374 = vld [vmem:[%s1 + $0x990] sm:$0xff]
    %v375 = vld [vmem:[%s1 + $0x998] sm:$0xff]
    %v376 = vld [vmem:[%s1 + $0x9a0] sm:$0xff]
    %v377 = vld [vmem:[%s1 + $0x9a8] sm:$0xff]
    %v378 = vld [vmem:[%s1 + $0x9b0] sm:$0xff]
    %v379 = vld [vmem:[%s1 + $0x9b8] sm:$0xff]
    %v380 = vld [vmem:[%s1 + $0x9c0] sm:$0xff]
    %v381 = vld [vmem:[%s1 + $0x9c8] sm:$0xff]
    %v382 = vld [vmem:[%s1 + $0x9d0] sm:$0xff]
    %v383 = vld [vmem:[%s1 + $0x9d8] sm:$0xff]
    %v384 = vld [vmem:[%s1 + $0x9e0] sm:$0xff]
    %v385 = vld [vmem:[%s1 + $0x9e8] sm:$0xff]
    %v386 = vld [vmem:[%s1 + $0x9f0] sm:$0xff]
    %v387 = vld [vmem:[%s1 + $0x9f8] sm:$0xff]
    %v388 = vld [vmem:[%s1 + $0xa00] sm:$0xff]
    %v389 = vld [vmem:[%s1 + $0xa08] sm:$0xff]
    %v390 = vld [vmem:[%s1 + $0xa10] sm:$0xff]
    %v391 = vld [vmem:[%s1 + $0xa18] sm:$0xff]
    %v392 = vld [vmem:[%s1 + $0xa20] sm:$0xff]
    %v393 = vld [vmem:[%s1 + $0xa28] sm:$0xff]
    %v394 = vld [vmem:[%s1 + $0xa30] sm:$0xff]
    %v395 = vld [vmem:[%s1 + $0xa38] sm:$0xff]
    %v396 = vld [vmem:[%s1 + $0xa40] sm:$0xff]
    %v397 = vld [vmem:[%s1 + $0xa48] sm:$0xff]
    %v398 = vld [vmem:[%s1 + $0xa50] sm:$0xff]
    %v399 = vld [vmem:[%s1 + $0xa58] sm:$0xff]
    %v400 = vld [vmem:[%s1 + $0xa60] sm:$0xff]
    %v401 = vld [vmem:[%s1 + $0xa68] sm:$0xff]
    %v402 = vld [vmem:[%s1 + $0xa70] sm:$0xff]
    %v403 = vld [vmem:[%s1 + $0xa78] sm:$0xff]
    %v404 = vld [vmem:[%s1 + $0xa80] sm:$0xff]
    %v405 = vld [vmem:[%s1 + $0xa88] sm:$0xff]
    %v406 = vld [vmem:[%s1 + $0xa90] sm:$0xff]
    %v407 = vld [vmem:[%s1 + $0xa98] sm:$0xff]
    %v408 = vld [vmem:[%s1 + $0xaa0] sm:$0xff]
    %v409 = vld [vmem:[%s1 + $0xaa8] sm:$0xff]
    %v410 = vld [vmem:[%s1 + $0xab0] sm:$0xff]
    %v411 = vld [vmem:[%s1 + $0xab8] sm:$0xff]
    %v412 = vld [vmem:[%s1 + $0xac0] sm:$0xff]
    %v413 = vld [vmem:[%s1 + $0xac8] sm:$0xff]
    %v414 = vld [vmem:[%s1 + $0xad0] sm:$0xff]
    %v415 = vld [vmem:[%s1 + $0xad8] sm:$0xff]
    %v416 = vld [vmem:[%s1 + $0xae0] sm:$0xff]
    %v417 = vld [vmem:[%s1 + $0xae8] sm:$0xff]
    %v418 = vld [vmem:[%s1 + $0xaf0] sm:$0xff]
    %v419 = vld [vmem:[%s1 + $0xaf8] sm:$0xff]
    %v420 = vld [vmem:[%s1 + $0xb00] sm:$0xff]
    %v421 = vld [vmem:[%s1 + $0xb08] sm:$0xff]
    %v422 = vld [vmem:[%s1 + $0xb10] sm:$0xff]
    %v423 = vld [vmem:[%s1 + $0xb18] sm:$0xff]
    %v424 = vld [vmem:[%s1 + $0xb20] sm:$0xff]
    %v425 = vld [vmem:[%s1 + $0xb28] sm:$0xff]
    %v426 = vld [vmem:[%s1 + $0xb30] sm:$0xff]
    %v427 = vld [vmem:[%s1 + $0xb38] sm:$0xff]
    %v428 = vld [vmem:[%s1 + $0xb40] sm:$0xff]
    %v429 = vld [vmem:[%s1 + $0xb48] sm:$0xff]
    %v430 = vld [vmem:[%s1 + $0xb50] sm:$0xff]
    %v431 = vld [vmem:[%s1 + $0xb58] sm:$0xff]
    %v432 = vld [vmem:[%s1 + $0xb60] sm:$0xff]
    %v433 = vld [vmem:[%s1 + $0xb68] sm:$0xff]
    %v434 = vld [vmem:[%s1 + $0xb70] sm:$0xff]
    %v435 = vld [vmem:[%s1 + $0xb78] sm:$0xff]
    %v436 = vld [vmem:[%s1 + $0xb80] sm:$0xff]
    %v437 = vld [vmem:[%s1 + $0xb88] sm:$0xff]
    %v438 = vld [vmem:[%s1 + $0xb90] sm:$0xff]
    %v439 = vld [vmem:[%s1 + $0xb98] sm:$0xff]
    %v440 = vld [vmem:[%s1 + $0xba0] sm:$0xff]
    %v441 = vld [vmem:[%s1 + $0xba8] sm:$0xff]
    %v442 = vld [vmem:[%s1 + $0xbb0] sm:$0xff]
    %v443 = vld [vmem:[%s1 + $0xbb8] sm:$0xff]
    %v444 = vld [vmem:[%s1 + $0xbc0] sm:$0xff]
    %v445 = vld [vmem:[%s1 + $0xbc8] sm:$0xff]
    %v446 = vld [vmem:[%s1 + $0xbd0] sm:$0xff]
    %v447 = vld [vmem:[%s1 + $0xbd8] sm:$0xff]
    %v448 = vld [vmem:[%s1 + $0xbe0] sm:$0xff]
    %v449 = vld [vmem:[%s1 + $0xbe8] sm:$0xff]
    %v450 = vld [vmem:[%s1 + $0xbf0] sm:$0xff]
    %v451 = vld [vmem:[%s1 + $0xbf8] sm:$0xff]
    %v452 = vld [vmem:[%s1 + $0xc00] sm:$0xff]
    %v453 = vld [vmem:[%s1 + $0xc08] sm:$0xff]
    %v454 = vld [vmem:[%s1 + $0xc10] sm:$0xff]
    %v455 = vld [vmem:[%s1 + $0xc18] sm:$0xff]
    %v456 = vld [vmem:[%s1 + $0xc20] sm:$0xff]
    %v457 = vld [vmem:[%s1 + $0xc28] sm:$0xff]
    %v458 = vld [vmem:[%s1 + $0xc30] sm:$0xff]
    %v459 = vld [vmem:[%s1 + $0xc38] sm:$0xff]
    %v460 = vld [vmem:[%s1 + $0xc40] sm:$0xff]
    %v461 = vld [vmem:[%s1 + $0xc48] sm:$0xff]
    %v462 = vld [vmem:[%s1 + $0xc50] sm:$0xff]
    %v463 = vld [vmem:[%s1 + $0xc58] sm:$0xff]
    %v464 = vld [vmem:[%s1 + $0xc60] sm:$0xff]
    %v465 = vld [vmem:[%s1 + $0xc68] sm:$0xff]
    %v466 = vld [vmem:[%s1 + $0xc70] sm:$0xff]
    %v467 = vld [vmem:[%s1 + $0xc78] sm:$0xff]
    %v468 = vld [vmem:[%s1 + $0xc80] sm:$0xff]
    %v469 = vld [vmem:[%s1 + $0xc88] sm:$0xff]
    %v470 = vld [vmem:[%s1 + $0xc90] sm:$0xff]
    %v471 = vld [vmem:[%s1 + $0xc98] sm:$0xff]
    %v472 = vld [vmem:[%s1 + $0xca0] sm:$0xff]
    %v473 = vld [vmem:[%s1 + $0xca8] sm:$0xff]
    %v474 = vld [vmem:[%s1 + $0xcb0] sm:$0xff]
    %v475 = vld [vmem:[%s1 + $0xcb8] sm:$0xff]
    %v476 = vld [vmem:[%s1 + $0xcc0] sm:$0xff]
    %v477 = vld [vmem:[%s1 + $0xcc8] sm:$0xff]
    %v478 = vld [vmem:[%s1 + $0xcd0] sm:$0xff]
    %v479 = vld [vmem:[%s1 + $0xcd8] sm:$0xff]
    %v480 = vld [vmem:[%s1 + $0xce0] sm:$0xff]
    %v481 = vld [vmem:[%s1 + $0xce8] sm:$0xff]
    %v482 = vld [vmem:[%s1 + $0xcf0] sm:$0xff]
    %v483 = vld [vmem:[%s1 + $0xcf8] sm:$0xff]
    %v484 = vld [vmem:[%s1 + $0xd00] sm:$0xff]
    %v485 = vld [vmem:[%s1 + $0xd08] sm:$0xff]
    %v486 = vld [vmem:[%s1 + $0xd10] sm:$0xff]
    %v487 = vld [vmem:[%s1 + $0xd18] sm:$0xff]
    %v488 = vld [vmem:[%s1 + $0xd20] sm:$0xff]
    %v489 = vld [vmem:[%s1 + $0xd28] sm:$0xff]
    %v490 = vld [vmem:[%s1 + $0xd30] sm:$0xff]
    %v491 = vld [vmem:[%s1 + $0xd38] sm:$0xff]
    %v492 = vld [vmem:[%s1 + $0xd40] sm:$0xff]
    %v493 = vld [vmem:[%s1 + $0xd48] sm:$0xff]
    %v494 = vld [vmem:[%s1 + $0xd50] sm:$0xff]
    %v495 = vld [vmem:[%s1 + $0xd58] sm:$0xff]
    %v496 = vld [vmem:[%s1 + $0xd60] sm:$0xff]
    %v497 = vld [vmem:[%s1 + $0xd68] sm:$0xff]
    %v498 = vld [vmem:[%s1 + $0xd70] sm:$0xff]
    %v499 = vld [vmem:[%s1 + $0xd78] sm:$0xff]
    %v500 = vld [vmem:[%s1 + $0xd80] sm:$0xff]
    %v501 = vld [vmem:[%s1 + $0xd88] sm:$0xff]
    %v502 = vld [vmem:[%s1 + $0xd90] sm:$0xff]
    %v503 = vld [vmem:[%s1 + $0xd98] sm:$0xff]
    %v504 = vld [vmem:[%s1 + $0xda0] sm:$0xff]
    %v505 = vld [vmem:[%s1 + $0xda8] sm:$0xff]
    %v506 = vld [vmem:[%s1 + $0xdb0] sm:$0xff]
    %v507 = vld [vmem:[%s1 + $0xdb8] sm:$0xff]
    %v508 = vld [vmem:[%s1 + $0xdc0] sm:$0xff]
    %v509 = vld [vmem:[%s1 + $0xdc8] sm:$0xff]
    %v510 = vld [vmem:[%s1 + $0xdd0] sm:$0xff]
    %v511 = vld [vmem:[%s1 + $0xdd8] sm:$0xff]
    %v512 = vld [vmem:[%s1 + $0xde0] sm:$0xff]
    %v513 = vld [vmem:[%s1 + $0xde8] sm:$0xff]
    %v514 = vld [vmem:[%s1 + $0xdf0] sm:$0xff]
    %v515 = vld [vmem:[%s1 + $0xdf8] sm:$0xff]
    %v516 = vld [vmem:[%s1 + $0xe00] sm:$0xff]
    %v517 = vld [vmem:[%s1 + $0xe08] sm:$0xff]
    %v518 = vld [vmem:[%s1 + $0xe10] sm:$0xff]
    %v519 = vld [vmem:[%s1 + $0xe18] sm:$0xff]
    %v520 = vld [vmem:[%s1 + $0xe20] sm:$0xff]
    %v521 = vld [vmem:[%s1 + $0xe28] sm:$0xff]
    %v522 = vld [vmem:[%s1 + $0xe30] sm:$0xff]
    %v523 = vld [vmem:[%s1 + $0xe38] sm:$0xff]
    %v524 = vld [vmem:[%s1 + $0xe40] sm:$0xff]
    %v525 = vld [vmem:[%s1 + $0xe48] sm:$0xff]
    %v526 = vld [vmem:[%s1 + $0xe50] sm:$0xff]
    %v527 = vld [vmem:[%s1 + $0xe58] sm:$0xff]
    %v528 = vld [vmem:[%s1 + $0xe60] sm:$0xff]
    %v529 = vld [vmem:[%s1 + $0xe68] sm:$0xff]
    %v530 = vld [vmem:[%s1 + $0xe70] sm:$0xff]
    %v531 = vld [vmem:[%s1 + $0xe78] sm:$0xff]
    %v532 = vld [vmem:[%s1 + $0xe80] sm:$0xff]
    %v533 = vld [vmem:[%s1 + $0xe88] sm:$0xff]
    %v534 = vld [vmem:[%s1 + $0xe90] sm:$0xff]
    %v535 = vld [vmem:[%s1 + $0xe98] sm:$0xff]
    %v536 = vld [vmem:[%s1 + $0xea0] sm:$0xff]
    %v537 = vld [vmem:[%s1 + $0xea8] sm:$0xff]
    %v538 = vld [vmem:[%s1 + $0xeb0] sm:$0xff]
    %v539 = vld [vmem:[%s1 + $0xeb8] sm:$0xff]
    %v540 = vld [vmem:[%s1 + $0xec0] sm:$0xff]
    %v541 = vld [vmem:[%s1 + $0xec8] sm:$0xff]
    %v542 = vld [vmem:[%s1 + $0xed0] sm:$0xff]
    %v543 = vld [vmem:[%s1 + $0xed8] sm:$0xff]
    %v544 = vld [vmem:[%s1 + $0xee0] sm:$0xff]
    %v545 = vld [vmem:[%s1 + $0xee8] sm:$0xff]
    %v546 = vld [vmem:[%s1 + $0xef0] sm:$0xff]
    %v547 = vld [vmem:[%s1 + $0xef8] sm:$0xff]
    %v548 = vld [vmem:[%s1 + $0xf00] sm:$0xff]
    %v549 = vld [vmem:[%s1 + $0xf08] sm:$0xff]
    %v550 = vld [vmem:[%s1 + $0xf10] sm:$0xff]
    %v551 = vld [vmem:[%s1 + $0xf18] sm:$0xff]
    %v552 = vld [vmem:[%s1 + $0xf20] sm:$0xff]
    %v553 = vld [vmem:[%s1 + $0xf28] sm:$0xff]
    %v554 = vld [vmem:[%s1 + $0xf30] sm:$0xff]
    %v555 = vld [vmem:[%s1 + $0xf38] sm:$0xff]
    %v556 = vld [vmem:[%s1 + $0xf40] sm:$0xff]
    %v557 = vld [vmem:[%s1 + $0xf48] sm:$0xff]
    %v558 = vld [vmem:[%s1 + $0xf50] sm:$0xff]
    %v559 = vld [vmem:[%s1 + $0xf58] sm:$0xff]
    %v560 = vld [vmem:[%s1 + $0xf60] sm:$0xff]
    %v561 = vld [vmem:[%s1 + $0xf68] sm:$0xff]
    %v562 = vld [vmem:[%s1 + $0xf70] sm:$0xff]
    %v563 = vld [vmem:[%s1 + $0xf78] sm:$0xff]
    %v564 = vld [vmem:[%s1 + $0xf80] sm:$0xff]
    %v565 = vld [vmem:[%s1 + $0xf88] sm:$0xff]
    %v566 = vld [vmem:[%s1 + $0xf90] sm:$0xff]
    %v567 = vld [vmem:[%s1 + $0xf98] sm:$0xff]
    %v568 = vld [vmem:[%s1 + $0xfa0] sm:$0xff]
    %v569 = vld [vmem:[%s1 + $0xfa8] sm:$0xff]
    %v570 = vld [vmem:[%s1 + $0xfb0] sm:$0xff]
    %v571 = vld [vmem:[%s1 + $0xfb8] sm:$0xff]
    %v572 = vld [vmem:[%s1 + $0xfc0] sm:$0xff]
    %v573 = vld [vmem:[%s1 + $0xfc8] sm:$0xff]
    %v574 = vld [vmem:[%s1 + $0xfd0] sm:$0xff]
    %v575 = vld [vmem:[%s1 + $0xfd8] sm:$0xff]
    %v576 = vld [vmem:[%s1 + $0xfe0] sm:$0xff]
    %v577 = vld [vmem:[%s1 + $0xfe8] sm:$0xff]
    %v578 = vld [vmem:[%s1 + $0xff0] sm:$0xff]
    %v579 = vld [vmem:[%s1 + $0xff8] sm:$0xff]
    %v580 = vld [vmem:[%s2] sm:$0x1]
    %v582 = vperm.slane %v580, 0
    %584 = vmatpush.msra.mxu0 %v83
    %585 = vmatpush.msra.mxu0 %v82
    %586 = vmatpush.msra.mxu0 %v81
    %587 = vmatpush.msra.mxu0 %v80
    %588 = vmatpush.msra.mxu0 %v79
    %589 = vmatpush.msra.mxu0 %v78
    %590 = vmatpush.msra.mxu0 %v77
    %591 = vmatpush.msra.mxu0 %v76
    %592 = vmatpush.msra.mxu0 %v75
    %593 = vmatpush.msra.mxu0 %v74
    %594 = vmatpush.msra.mxu0 %v73
    %595 = vmatpush.msra.mxu0 %v72
    %596 = vmatpush.msra.mxu0 %v71
    %597 = vmatpush.msra.mxu0 %v70
    %598 = vmatpush.msra.mxu0 %v69
    %599 = vmatpush.msra.mxu0 %v68
    %600 = vmatmul.f32.gmra.mxu0 %v36
    %v601 = vpop.f32.mrf.mxu0
    %v602 = vadd.f32 %v582, %v601
    %603 = vdwg.mxu0
    %604 = vmatpush.msra.mxu0 %v99
    %605 = vmatpush.msra.mxu0 %v98
    %606 = vmatpush.msra.mxu0 %v97
    %607 = vmatpush.msra.mxu0 %v96
    %608 = vmatpush.msra.mxu0 %v95
    %609 = vmatpush.msra.mxu0 %v94
    %610 = vmatpush.msra.mxu0 %v93
    %611 = vmatpush.msra.mxu0 %v92
    %612 = vmatpush.msra.mxu0 %v91
    %613 = vmatpush.msra.mxu0 %v90
    %614 = vmatpush.msra.mxu0 %v89
    %615 = vmatpush.msra.mxu0 %v88
    %616 = vmatpush.msra.mxu0 %v87
    %617 = vmatpush.msra.mxu0 %v86
    %618 = vmatpush.msra.mxu0 %v85
    %619 = vmatpush.msra.mxu0 %v84
    %620 = vmatmul.f32.gmra.mxu0 %v37
    %v621 = vpop.f32.mrf.mxu0
    %v622 = vadd.f32 %v602, %v621
    %623 = vdwg.mxu0
    %624 = vmatpush.msra.mxu0 %v115
    %625 = vmatpush.msra.mxu0 %v114
    %626 = vmatpush.msra.mxu0 %v113
    %627 = vmatpush.msra.mxu0 %v112
    %628 = vmatpush.msra.mxu0 %v111
    %629 = vmatpush.msra.mxu0 %v110
    %630 = vmatpush.msra.mxu0 %v109
    %631 = vmatpush.msra.mxu0 %v108
    %632 = vmatpush.msra.mxu0 %v107
    %633 = vmatpush.msra.mxu0 %v106
    %634 = vmatpush.msra.mxu0 %v105
    %635 = vmatpush.msra.mxu0 %v104
    %636 = vmatpush.msra.mxu0 %v103
    %637 = vmatpush.msra.mxu0 %v102
    %638 = vmatpush.msra.mxu0 %v101
    %639 = vmatpush.msra.mxu0 %v100
    %640 = vmatmul.f32.gmra.mxu0 %v38
    %v641 = vpop.f32.mrf.mxu0
    %v642 = vadd.f32 %v622, %v641
    %643 = vdwg.mxu0
    %644 = vmatpush.msra.mxu0 %v131
    %645 = vmatpush.msra.mxu0 %v130
    %646 = vmatpush.msra.mxu0 %v129
    %647 = vmatpush.msra.mxu0 %v128
    %648 = vmatpush.msra.mxu0 %v127
    %649 = vmatpush.msra.mxu0 %v126
    %650 = vmatpush.msra.mxu0 %v125
    %651 = vmatpush.msra.mxu0 %v124
    %652 = vmatpush.msra.mxu0 %v123
    %653 = vmatpush.msra.mxu0 %v122
    %654 = vmatpush.msra.mxu0 %v121
    %655 = vmatpush.msra.mxu0 %v120
    %656 = vmatpush.msra.mxu0 %v119
    %657 = vmatpush.msra.mxu0 %v118
    %658 = vmatpush.msra.mxu0 %v117
    %659 = vmatpush.msra.mxu0 %v116
    %660 = vmatmul.f32.gmra.mxu0 %v39
    %v661 = vpop.f32.mrf.mxu0
    %v662 = vadd.f32 %v642, %v661
    %663 = vdwg.mxu0
    %664 = vmatpush.msra.mxu0 %v147
    %665 = vmatpush.msra.mxu0 %v146
    %666 = vmatpush.msra.mxu0 %v145
    %667 = vmatpush.msra.mxu0 %v144
    %668 = vmatpush.msra.mxu0 %v143
    %669 = vmatpush.msra.mxu0 %v142
    %670 = vmatpush.msra.mxu0 %v141
    %671 = vmatpush.msra.mxu0 %v140
    %672 = vmatpush.msra.mxu0 %v139
    %673 = vmatpush.msra.mxu0 %v138
    %674 = vmatpush.msra.mxu0 %v137
    %675 = vmatpush.msra.mxu0 %v136
    %676 = vmatpush.msra.mxu0 %v135
    %677 = vmatpush.msra.mxu0 %v134
    %678 = vmatpush.msra.mxu0 %v133
    %679 = vmatpush.msra.mxu0 %v132
    %680 = vmatmul.f32.gmra.mxu0 %v40
    %v681 = vpop.f32.mrf.mxu0
    %v682 = vadd.f32 %v662, %v681
    %683 = vdwg.mxu0
    %684 = vmatpush.msra.mxu0 %v163
    %685 = vmatpush.msra.mxu0 %v162
    %686 = vmatpush.msra.mxu0 %v161
    %687 = vmatpush.msra.mxu0 %v160
    %688 = vmatpush.msra.mxu0 %v159
    %689 = vmatpush.msra.mxu0 %v158
    %690 = vmatpush.msra.mxu0 %v157
    %691 = vmatpush.msra.mxu0 %v156
    %692 = vmatpush.msra.mxu0 %v155
    %693 = vmatpush.msra.mxu0 %v154
    %694 = vmatpush.msra.mxu0 %v153
    %695 = vmatpush.msra.mxu0 %v152
    %696 = vmatpush.msra.mxu0 %v151
    %697 = vmatpush.msra.mxu0 %v150
    %698 = vmatpush.msra.mxu0 %v149
    %699 = vmatpush.msra.mxu0 %v148
    %700 = vmatmul.f32.gmra.mxu0 %v41
    %v701 = vpop.f32.mrf.mxu0
    %v702 = vadd.f32 %v682, %v701
    %703 = vdwg.mxu0
    %704 = vmatpush.msra.mxu0 %v179
    %705 = vmatpush.msra.mxu0 %v178
    %706 = vmatpush.msra.mxu0 %v177
    %707 = vmatpush.msra.mxu0 %v176
    %708 = vmatpush.msra.mxu0 %v175
    %709 = vmatpush.msra.mxu0 %v174
    %710 = vmatpush.msra.mxu0 %v173
    %711 = vmatpush.msra.mxu0 %v172
    %712 = vmatpush.msra.mxu0 %v171
    %713 = vmatpush.msra.mxu0 %v170
    %714 = vmatpush.msra.mxu0 %v169
    %715 = vmatpush.msra.mxu0 %v168
    %716 = vmatpush.msra.mxu0 %v167
    %717 = vmatpush.msra.mxu0 %v166
    %718 = vmatpush.msra.mxu0 %v165
    %719 = vmatpush.msra.mxu0 %v164
    %720 = vmatmul.f32.gmra.mxu0 %v42
    %v721 = vpop.f32.mrf.mxu0
    %v722 = vadd.f32 %v702, %v721
    %723 = vdwg.mxu0
    %724 = vmatpush.msra.mxu0 %v195
    %725 = vmatpush.msra.mxu0 %v194
    %726 = vmatpush.msra.mxu0 %v193
    %727 = vmatpush.msra.mxu0 %v192
    %728 = vmatpush.msra.mxu0 %v191
    %729 = vmatpush.msra.mxu0 %v190
    %730 = vmatpush.msra.mxu0 %v189
    %731 = vmatpush.msra.mxu0 %v188
    %732 = vmatpush.msra.mxu0 %v187
    %733 = vmatpush.msra.mxu0 %v186
    %734 = vmatpush.msra.mxu0 %v185
    %735 = vmatpush.msra.mxu0 %v184
    %736 = vmatpush.msra.mxu0 %v183
    %737 = vmatpush.msra.mxu0 %v182
    %738 = vmatpush.msra.mxu0 %v181
    %739 = vmatpush.msra.mxu0 %v180
    %740 = vmatmul.f32.gmra.mxu0 %v43
    %v741 = vpop.f32.mrf.mxu0
    %v742 = vadd.f32 %v722, %v741
    %743 = vdwg.mxu0
    %744 = vmatpush.msra.mxu0 %v211
    %745 = vmatpush.msra.mxu0 %v210
    %746 = vmatpush.msra.mxu0 %v209
    %747 = vmatpush.msra.mxu0 %v208
    %748 = vmatpush.msra.mxu0 %v207
    %749 = vmatpush.msra.mxu0 %v206
    %750 = vmatpush.msra.mxu0 %v205
    %751 = vmatpush.msra.mxu0 %v204
    %752 = vmatpush.msra.mxu0 %v203
    %753 = vmatpush.msra.mxu0 %v202
    %754 = vmatpush.msra.mxu0 %v201
    %755 = vmatpush.msra.mxu0 %v200
    %756 = vmatpush.msra.mxu0 %v199
    %757 = vmatpush.msra.mxu0 %v198
    %758 = vmatpush.msra.mxu0 %v197
    %759 = vmatpush.msra.mxu0 %v196
    %760 = vmatmul.f32.gmra.mxu0 %v44
    %v761 = vpop.f32.mrf.mxu0
    %v762 = vadd.f32 %v742, %v761
    %763 = vdwg.mxu0
    %764 = vmatpush.msra.mxu0 %v227
    %765 = vmatpush.msra.mxu0 %v226
    %766 = vmatpush.msra.mxu0 %v225
    %767 = vmatpush.msra.mxu0 %v224
    %768 = vmatpush.msra.mxu0 %v223
    %769 = vmatpush.msra.mxu0 %v222
    %770 = vmatpush.msra.mxu0 %v221
    %771 = vmatpush.msra.mxu0 %v220
    %772 = vmatpush.msra.mxu0 %v219
    %773 = vmatpush.msra.mxu0 %v218
    %774 = vmatpush.msra.mxu0 %v217
    %775 = vmatpush.msra.mxu0 %v216
    %776 = vmatpush.msra.mxu0 %v215
    %777 = vmatpush.msra.mxu0 %v214
    %778 = vmatpush.msra.mxu0 %v213
    %779 = vmatpush.msra.mxu0 %v212
    %780 = vmatmul.f32.gmra.mxu0 %v45
    %v781 = vpop.f32.mrf.mxu0
    %v782 = vadd.f32 %v762, %v781
    %783 = vdwg.mxu0
    %784 = vmatpush.msra.mxu0 %v243
    %785 = vmatpush.msra.mxu0 %v242
    %786 = vmatpush.msra.mxu0 %v241
    %787 = vmatpush.msra.mxu0 %v240
    %788 = vmatpush.msra.mxu0 %v239
    %789 = vmatpush.msra.mxu0 %v238
    %790 = vmatpush.msra.mxu0 %v237
    %791 = vmatpush.msra.mxu0 %v236
    %792 = vmatpush.msra.mxu0 %v235
    %793 = vmatpush.msra.mxu0 %v234
    %794 = vmatpush.msra.mxu0 %v233
    %795 = vmatpush.msra.mxu0 %v232
    %796 = vmatpush.msra.mxu0 %v231
    %797 = vmatpush.msra.mxu0 %v230
    %798 = vmatpush.msra.mxu0 %v229
    %799 = vmatpush.msra.mxu0 %v228
    %800 = vmatmul.f32.gmra.mxu0 %v46
    %v801 = vpop.f32.mrf.mxu0
    %v802 = vadd.f32 %v782, %v801
    %803 = vdwg.mxu0
    %804 = vmatpush.msra.mxu0 %v259
    %805 = vmatpush.msra.mxu0 %v258
    %806 = vmatpush.msra.mxu0 %v257
    %807 = vmatpush.msra.mxu0 %v256
    %808 = vmatpush.msra.mxu0 %v255
    %809 = vmatpush.msra.mxu0 %v254
    %810 = vmatpush.msra.mxu0 %v253
    %811 = vmatpush.msra.mxu0 %v252
    %812 = vmatpush.msra.mxu0 %v251
    %813 = vmatpush.msra.mxu0 %v250
    %814 = vmatpush.msra.mxu0 %v249
    %815 = vmatpush.msra.mxu0 %v248
    %816 = vmatpush.msra.mxu0 %v247
    %817 = vmatpush.msra.mxu0 %v246
    %818 = vmatpush.msra.mxu0 %v245
    %819 = vmatpush.msra.mxu0 %v244
    %820 = vmatmul.f32.gmra.mxu0 %v47
    %v821 = vpop.f32.mrf.mxu0
    %v822 = vadd.f32 %v802, %v821
    %823 = vdwg.mxu0
    %824 = vmatpush.msra.mxu0 %v275
    %825 = vmatpush.msra.mxu0 %v274
    %826 = vmatpush.msra.mxu0 %v273
    %827 = vmatpush.msra.mxu0 %v272
    %828 = vmatpush.msra.mxu0 %v271
    %829 = vmatpush.msra.mxu0 %v270
    %830 = vmatpush.msra.mxu0 %v269
    %831 = vmatpush.msra.mxu0 %v268
    %832 = vmatpush.msra.mxu0 %v267
    %833 = vmatpush.msra.mxu0 %v266
    %834 = vmatpush.msra.mxu0 %v265
    %835 = vmatpush.msra.mxu0 %v264
    %836 = vmatpush.msra.mxu0 %v263
    %837 = vmatpush.msra.mxu0 %v262
    %838 = vmatpush.msra.mxu0 %v261
    %839 = vmatpush.msra.mxu0 %v260
    %840 = vmatmul.f32.gmra.mxu0 %v48
    %v841 = vpop.f32.mrf.mxu0
    %v842 = vadd.f32 %v822, %v841
    %843 = vdwg.mxu0
    %844 = vmatpush.msra.mxu0 %v291
    %845 = vmatpush.msra.mxu0 %v290
    %846 = vmatpush.msra.mxu0 %v289
    %847 = vmatpush.msra.mxu0 %v288
    %848 = vmatpush.msra.mxu0 %v287
    %849 = vmatpush.msra.mxu0 %v286
    %850 = vmatpush.msra.mxu0 %v285
    %851 = vmatpush.msra.mxu0 %v284
    %852 = vmatpush.msra.mxu0 %v283
    %853 = vmatpush.msra.mxu0 %v282
    %854 = vmatpush.msra.mxu0 %v281
    %855 = vmatpush.msra.mxu0 %v280
    %856 = vmatpush.msra.mxu0 %v279
    %857 = vmatpush.msra.mxu0 %v278
    %858 = vmatpush.msra.mxu0 %v277
    %859 = vmatpush.msra.mxu0 %v276
    %860 = vmatmul.f32.gmra.mxu0 %v49
    %v861 = vpop.f32.mrf.mxu0
    %v862 = vadd.f32 %v842, %v861
    %863 = vdwg.mxu0
    %864 = vmatpush.msra.mxu0 %v307
    %865 = vmatpush.msra.mxu0 %v306
    %866 = vmatpush.msra.mxu0 %v305
    %867 = vmatpush.msra.mxu0 %v304
    %868 = vmatpush.msra.mxu0 %v303
    %869 = vmatpush.msra.mxu0 %v302
    %870 = vmatpush.msra.mxu0 %v301
    %871 = vmatpush.msra.mxu0 %v300
    %872 = vmatpush.msra.mxu0 %v299
    %873 = vmatpush.msra.mxu0 %v298
    %874 = vmatpush.msra.mxu0 %v297
    %875 = vmatpush.msra.mxu0 %v296
    %876 = vmatpush.msra.mxu0 %v295
    %877 = vmatpush.msra.mxu0 %v294
    %878 = vmatpush.msra.mxu0 %v293
    %879 = vmatpush.msra.mxu0 %v292
    %880 = vmatmul.f32.gmra.mxu0 %v50
    %v881 = vpop.f32.mrf.mxu0
    %v882 = vadd.f32 %v862, %v881
    %883 = vdwg.mxu0
    %884 = vmatpush.msra.mxu0 %v323
    %885 = vmatpush.msra.mxu0 %v322
    %886 = vmatpush.msra.mxu0 %v321
    %887 = vmatpush.msra.mxu0 %v320
    %888 = vmatpush.msra.mxu0 %v319
    %889 = vmatpush.msra.mxu0 %v318
    %890 = vmatpush.msra.mxu0 %v317
    %891 = vmatpush.msra.mxu0 %v316
    %892 = vmatpush.msra.mxu0 %v315
    %893 = vmatpush.msra.mxu0 %v314
    %894 = vmatpush.msra.mxu0 %v313
    %895 = vmatpush.msra.mxu0 %v312
    %896 = vmatpush.msra.mxu0 %v311
    %897 = vmatpush.msra.mxu0 %v310
    %898 = vmatpush.msra.mxu0 %v309
    %899 = vmatpush.msra.mxu0 %v308
    %900 = vmatmul.f32.gmra.mxu0 %v51
    %v901 = vpop.f32.mrf.mxu0
    %v902 = vadd.f32 %v882, %v901
    %903 = vdwg.mxu0
    %904 = vmatpush.msra.mxu0 %v339
    %905 = vmatpush.msra.mxu0 %v338
    %906 = vmatpush.msra.mxu0 %v337
    %907 = vmatpush.msra.mxu0 %v336
    %908 = vmatpush.msra.mxu0 %v335
    %909 = vmatpush.msra.mxu0 %v334
    %910 = vmatpush.msra.mxu0 %v333
    %911 = vmatpush.msra.mxu0 %v332
    %912 = vmatpush.msra.mxu0 %v331
    %913 = vmatpush.msra.mxu0 %v330
    %914 = vmatpush.msra.mxu0 %v329
    %915 = vmatpush.msra.mxu0 %v328
    %916 = vmatpush.msra.mxu0 %v327
    %917 = vmatpush.msra.mxu0 %v326
    %918 = vmatpush.msra.mxu0 %v325
    %919 = vmatpush.msra.mxu0 %v324
    %920 = vmatmul.f32.gmra.mxu0 %v52
    %v921 = vpop.f32.mrf.mxu0
    %v922 = vadd.f32 %v902, %v921
    %923 = vdwg.mxu0
    %924 = vmatpush.msra.mxu0 %v355
    %925 = vmatpush.msra.mxu0 %v354
    %926 = vmatpush.msra.mxu0 %v353
    %927 = vmatpush.msra.mxu0 %v352
    %928 = vmatpush.msra.mxu0 %v351
    %929 = vmatpush.msra.mxu0 %v350
    %930 = vmatpush.msra.mxu0 %v349
    %931 = vmatpush.msra.mxu0 %v348
    %932 = vmatpush.msra.mxu0 %v347
    %933 = vmatpush.msra.mxu0 %v346
    %934 = vmatpush.msra.mxu0 %v345
    %935 = vmatpush.msra.mxu0 %v344
    %936 = vmatpush.msra.mxu0 %v343
    %937 = vmatpush.msra.mxu0 %v342
    %938 = vmatpush.msra.mxu0 %v341
    %939 = vmatpush.msra.mxu0 %v340
    %940 = vmatmul.f32.gmra.mxu0 %v53
    %v941 = vpop.f32.mrf.mxu0
    %v942 = vadd.f32 %v922, %v941
    %943 = vdwg.mxu0
    %944 = vmatpush.msra.mxu0 %v371
    %945 = vmatpush.msra.mxu0 %v370
    %946 = vmatpush.msra.mxu0 %v369
    %947 = vmatpush.msra.mxu0 %v368
    %948 = vmatpush.msra.mxu0 %v367
    %949 = vmatpush.msra.mxu0 %v366
    %950 = vmatpush.msra.mxu0 %v365
    %951 = vmatpush.msra.mxu0 %v364
    %952 = vmatpush.msra.mxu0 %v363
    %953 = vmatpush.msra.mxu0 %v362
    %954 = vmatpush.msra.mxu0 %v361
    %955 = vmatpush.msra.mxu0 %v360
    %956 = vmatpush.msra.mxu0 %v359
    %957 = vmatpush.msra.mxu0 %v358
    %958 = vmatpush.msra.mxu0 %v357
    %959 = vmatpush.msra.mxu0 %v356
    %960 = vmatmul.f32.gmra.mxu0 %v54
    %v961 = vpop.f32.mrf.mxu0
    %v962 = vadd.f32 %v942, %v961
    %963 = vdwg.mxu0
    %964 = vmatpush.msra.mxu0 %v387
    %965 = vmatpush.msra.mxu0 %v386
    %966 = vmatpush.msra.mxu0 %v385
    %967 = vmatpush.msra.mxu0 %v384
    %968 = vmatpush.msra.mxu0 %v383
    %969 = vmatpush.msra.mxu0 %v382
    %970 = vmatpush.msra.mxu0 %v381
    %971 = vmatpush.msra.mxu0 %v380
    %972 = vmatpush.msra.mxu0 %v379
    %973 = vmatpush.msra.mxu0 %v378
    %974 = vmatpush.msra.mxu0 %v377
    %975 = vmatpush.msra.mxu0 %v376
    %976 = vmatpush.msra.mxu0 %v375
    %977 = vmatpush.msra.mxu0 %v374
    %978 = vmatpush.msra.mxu0 %v373
    %979 = vmatpush.msra.mxu0 %v372
    %980 = vmatmul.f32.gmra.mxu0 %v55
    %v981 = vpop.f32.mrf.mxu0
    %v982 = vadd.f32 %v962, %v981
    %983 = vdwg.mxu0
    %984 = vmatpush.msra.mxu0 %v403
    %985 = vmatpush.msra.mxu0 %v402
    %986 = vmatpush.msra.mxu0 %v401
    %987 = vmatpush.msra.mxu0 %v400
    %988 = vmatpush.msra.mxu0 %v399
    %989 = vmatpush.msra.mxu0 %v398
    %990 = vmatpush.msra.mxu0 %v397
    %991 = vmatpush.msra.mxu0 %v396
    %992 = vmatpush.msra.mxu0 %v395
    %993 = vmatpush.msra.mxu0 %v394
    %994 = vmatpush.msra.mxu0 %v393
    %995 = vmatpush.msra.mxu0 %v392
    %996 = vmatpush.msra.mxu0 %v391
    %997 = vmatpush.msra.mxu0 %v390
    %998 = vmatpush.msra.mxu0 %v389
    %999 = vmatpush.msra.mxu0 %v388
    %1000 = vmatmul.f32.gmra.mxu0 %v56
    %v1001 = vpop.f32.mrf.mxu0
    %v1002 = vadd.f32 %v982, %v1001
    %1003 = vdwg.mxu0
    %1004 = vmatpush.msra.mxu0 %v419
    %1005 = vmatpush.msra.mxu0 %v418
    %1006 = vmatpush.msra.mxu0 %v417
    %1007 = vmatpush.msra.mxu0 %v416
    %1008 = vmatpush.msra.mxu0 %v415
    %1009 = vmatpush.msra.mxu0 %v414
    %1010 = vmatpush.msra.mxu0 %v413
    %1011 = vmatpush.msra.mxu0 %v412
    %1012 = vmatpush.msra.mxu0 %v411
    %1013 = vmatpush.msra.mxu0 %v410
    %1014 = vmatpush.msra.mxu0 %v409
    %1015 = vmatpush.msra.mxu0 %v408
    %1016 = vmatpush.msra.mxu0 %v407
    %1017 = vmatpush.msra.mxu0 %v406
    %1018 = vmatpush.msra.mxu0 %v405
    %1019 = vmatpush.msra.mxu0 %v404
    %1020 = vmatmul.f32.gmra.mxu0 %v57
    %v1021 = vpop.f32.mrf.mxu0
    %v1022 = vadd.f32 %v1002, %v1021
    %1023 = vdwg.mxu0
    %1024 = vmatpush.msra.mxu0 %v435
    %1025 = vmatpush.msra.mxu0 %v434
    %1026 = vmatpush.msra.mxu0 %v433
    %1027 = vmatpush.msra.mxu0 %v432
    %1028 = vmatpush.msra.mxu0 %v431
    %1029 = vmatpush.msra.mxu0 %v430
    %1030 = vmatpush.msra.mxu0 %v429
    %1031 = vmatpush.msra.mxu0 %v428
    %1032 = vmatpush.msra.mxu0 %v427
    %1033 = vmatpush.msra.mxu0 %v426
    %1034 = vmatpush.msra.mxu0 %v425
    %1035 = vmatpush.msra.mxu0 %v424
    %1036 = vmatpush.msra.mxu0 %v423
    %1037 = vmatpush.msra.mxu0 %v422
    %1038 = vmatpush.msra.mxu0 %v421
    %1039 = vmatpush.msra.mxu0 %v420
    %1040 = vmatmul.f32.gmra.mxu0 %v58
    %v1041 = vpop.f32.mrf.mxu0
    %v1042 = vadd.f32 %v1022, %v1041
    %1043 = vdwg.mxu0
    %1044 = vmatpush.msra.mxu0 %v451
    %1045 = vmatpush.msra.mxu0 %v450
    %1046 = vmatpush.msra.mxu0 %v449
    %1047 = vmatpush.msra.mxu0 %v448
    %1048 = vmatpush.msra.mxu0 %v447
    %1049 = vmatpush.msra.mxu0 %v446
    %1050 = vmatpush.msra.mxu0 %v445
    %1051 = vmatpush.msra.mxu0 %v444
    %1052 = vmatpush.msra.mxu0 %v443
    %1053 = vmatpush.msra.mxu0 %v442
    %1054 = vmatpush.msra.mxu0 %v441
    %1055 = vmatpush.msra.mxu0 %v440
    %1056 = vmatpush.msra.mxu0 %v439
    %1057 = vmatpush.msra.mxu0 %v438
    %1058 = vmatpush.msra.mxu0 %v437
    %1059 = vmatpush.msra.mxu0 %v436
    %1060 = vmatmul.f32.gmra.mxu0 %v59
    %v1061 = vpop.f32.mrf.mxu0
    %v1062 = vadd.f32 %v1042, %v1061
    %1063 = vdwg.mxu0
    %1064 = vmatpush.msra.mxu0 %v467
    %1065 = vmatpush.msra.mxu0 %v466
    %1066 = vmatpush.msra.mxu0 %v465
    %1067 = vmatpush.msra.mxu0 %v464
    %1068 = vmatpush.msra.mxu0 %v463
    %1069 = vmatpush.msra.mxu0 %v462
    %1070 = vmatpush.msra.mxu0 %v461
    %1071 = vmatpush.msra.mxu0 %v460
    %1072 = vmatpush.msra.mxu0 %v459
    %1073 = vmatpush.msra.mxu0 %v458
    %1074 = vmatpush.msra.mxu0 %v457
    %1075 = vmatpush.msra.mxu0 %v456
    %1076 = vmatpush.msra.mxu0 %v455
    %1077 = vmatpush.msra.mxu0 %v454
    %1078 = vmatpush.msra.mxu0 %v453
    %1079 = vmatpush.msra.mxu0 %v452
    %1080 = vmatmul.f32.gmra.mxu0 %v60
    %v1081 = vpop.f32.mrf.mxu0
    %v1082 = vadd.f32 %v1062, %v1081
    %1083 = vdwg.mxu0
    %1084 = vmatpush.msra.mxu0 %v483
    %1085 = vmatpush.msra.mxu0 %v482
    %1086 = vmatpush.msra.mxu0 %v481
    %1087 = vmatpush.msra.mxu0 %v480
    %1088 = vmatpush.msra.mxu0 %v479
    %1089 = vmatpush.msra.mxu0 %v478
    %1090 = vmatpush.msra.mxu0 %v477
    %1091 = vmatpush.msra.mxu0 %v476
    %1092 = vmatpush.msra.mxu0 %v475
    %1093 = vmatpush.msra.mxu0 %v474
    %1094 = vmatpush.msra.mxu0 %v473
    %1095 = vmatpush.msra.mxu0 %v472
    %1096 = vmatpush.msra.mxu0 %v471
    %1097 = vmatpush.msra.mxu0 %v470
    %1098 = vmatpush.msra.mxu0 %v469
    %1099 = vmatpush.msra.mxu0 %v468
    %1100 = vmatmul.f32.gmra.mxu0 %v61
    %v1101 = vpop.f32.mrf.mxu0
    %v1102 = vadd.f32 %v1082, %v1101
    %1103 = vdwg.mxu0
    %1104 = vmatpush.msra.mxu0 %v499
    %1105 = vmatpush.msra.mxu0 %v498
    %1106 = vmatpush.msra.mxu0 %v497
    %1107 = vmatpush.msra.mxu0 %v496
    %1108 = vmatpush.msra.mxu0 %v495
    %1109 = vmatpush.msra.mxu0 %v494
    %1110 = vmatpush.msra.mxu0 %v493
    %1111 = vmatpush.msra.mxu0 %v492
    %1112 = vmatpush.msra.mxu0 %v491
    %1113 = vmatpush.msra.mxu0 %v490
    %1114 = vmatpush.msra.mxu0 %v489
    %1115 = vmatpush.msra.mxu0 %v488
    %1116 = vmatpush.msra.mxu0 %v487
    %1117 = vmatpush.msra.mxu0 %v486
    %1118 = vmatpush.msra.mxu0 %v485
    %1119 = vmatpush.msra.mxu0 %v484
    %1120 = vmatmul.f32.gmra.mxu0 %v62
    %v1121 = vpop.f32.mrf.mxu0
    %v1122 = vadd.f32 %v1102, %v1121
    %1123 = vdwg.mxu0
    %1124 = vmatpush.msra.mxu0 %v515
    %1125 = vmatpush.msra.mxu0 %v514
    %1126 = vmatpush.msra.mxu0 %v513
    %1127 = vmatpush.msra.mxu0 %v512
    %1128 = vmatpush.msra.mxu0 %v511
    %1129 = vmatpush.msra.mxu0 %v510
    %1130 = vmatpush.msra.mxu0 %v509
    %1131 = vmatpush.msra.mxu0 %v508
    %1132 = vmatpush.msra.mxu0 %v507
    %1133 = vmatpush.msra.mxu0 %v506
    %1134 = vmatpush.msra.mxu0 %v505
    %1135 = vmatpush.msra.mxu0 %v504
    %1136 = vmatpush.msra.mxu0 %v503
    %1137 = vmatpush.msra.mxu0 %v502
    %1138 = vmatpush.msra.mxu0 %v501
    %1139 = vmatpush.msra.mxu0 %v500
    %1140 = vmatmul.f32.gmra.mxu0 %v63
    %v1141 = vpop.f32.mrf.mxu0
    %v1142 = vadd.f32 %v1122, %v1141
    %1143 = vdwg.mxu0
    %1144 = vmatpush.msra.mxu0 %v531
    %1145 = vmatpush.msra.mxu0 %v530
    %1146 = vmatpush.msra.mxu0 %v529
    %1147 = vmatpush.msra.mxu0 %v528
    %1148 = vmatpush.msra.mxu0 %v527
    %1149 = vmatpush.msra.mxu0 %v526
    %1150 = vmatpush.msra.mxu0 %v525
    %1151 = vmatpush.msra.mxu0 %v524
    %1152 = vmatpush.msra.mxu0 %v523
    %1153 = vmatpush.msra.mxu0 %v522
    %1154 = vmatpush.msra.mxu0 %v521
    %1155 = vmatpush.msra.mxu0 %v520
    %1156 = vmatpush.msra.mxu0 %v519
    %1157 = vmatpush.msra.mxu0 %v518
    %1158 = vmatpush.msra.mxu0 %v517
    %1159 = vmatpush.msra.mxu0 %v516
    %1160 = vmatmul.f32.gmra.mxu0 %v64
    %v1161 = vpop.f32.mrf.mxu0
    %v1162 = vadd.f32 %v1142, %v1161
    %1163 = vdwg.mxu0
    %1164 = vmatpush.msra.mxu0 %v547
    %1165 = vmatpush.msra.mxu0 %v546
    %1166 = vmatpush.msra.mxu0 %v545
    %1167 = vmatpush.msra.mxu0 %v544
    %1168 = vmatpush.msra.mxu0 %v543
    %1169 = vmatpush.msra.mxu0 %v542
    %1170 = vmatpush.msra.mxu0 %v541
    %1171 = vmatpush.msra.mxu0 %v540
    %1172 = vmatpush.msra.mxu0 %v539
    %1173 = vmatpush.msra.mxu0 %v538
    %1174 = vmatpush.msra.mxu0 %v537
    %1175 = vmatpush.msra.mxu0 %v536
    %1176 = vmatpush.msra.mxu0 %v535
    %1177 = vmatpush.msra.mxu0 %v534
    %1178 = vmatpush.msra.mxu0 %v533
    %1179 = vmatpush.msra.mxu0 %v532
    %1180 = vmatmul.f32.gmra.mxu0 %v65
    %v1181 = vpop.f32.mrf.mxu0
    %v1182 = vadd.f32 %v1162, %v1181
    %1183 = vdwg.mxu0
    %1184 = vmatpush.msra.mxu0 %v563
    %1185 = vmatpush.msra.mxu0 %v562
    %1186 = vmatpush.msra.mxu0 %v561
    %1187 = vmatpush.msra.mxu0 %v560
    %1188 = vmatpush.msra.mxu0 %v559
    %1189 = vmatpush.msra.mxu0 %v558
    %1190 = vmatpush.msra.mxu0 %v557
    %1191 = vmatpush.msra.mxu0 %v556
    %1192 = vmatpush.msra.mxu0 %v555
    %1193 = vmatpush.msra.mxu0 %v554
    %1194 = vmatpush.msra.mxu0 %v553
    %1195 = vmatpush.msra.mxu0 %v552
    %1196 = vmatpush.msra.mxu0 %v551
    %1197 = vmatpush.msra.mxu0 %v550
    %1198 = vmatpush.msra.mxu0 %v549
    %1199 = vmatpush.msra.mxu0 %v548
    %1200 = vmatmul.f32.gmra.mxu0 %v66
    %v1201 = vpop.f32.mrf.mxu0
    %v1202 = vadd.f32 %v1182, %v1201
    %1203 = vdwg.mxu0
    %1204 = vmatpush.msra.mxu0 %v579
    %1205 = vmatpush.msra.mxu0 %v578
    %1206 = vmatpush.msra.mxu0 %v577
    %1207 = vmatpush.msra.mxu0 %v576
    %1208 = vmatpush.msra.mxu0 %v575
    %1209 = vmatpush.msra.mxu0 %v574
    %1210 = vmatpush.msra.mxu0 %v573
    %1211 = vmatpush.msra.mxu0 %v572
    %1212 = vmatpush.msra.mxu0 %v571
    %1213 = vmatpush.msra.mxu0 %v570
    %1214 = vmatpush.msra.mxu0 %v569
    %1215 = vmatpush.msra.mxu0 %v568
    %1216 = vmatpush.msra.mxu0 %v567
    %1217 = vmatpush.msra.mxu0 %v566
    %1218 = vmatpush.msra.mxu0 %v565
    %1219 = vmatpush.msra.mxu0 %v564
    %1220 = vmatmul.f32.gmra.mxu0 %v67
    %v1221 = vpop.f32.mrf.mxu0
    %v1222 = vadd.f32 %v1202, %v1221
    %1223 = vdwg.mxu0
    %v1224 = vld [vmem:[%s3] sm:$0xff]
    %v1225 = vld [vmem:[%s3 + $0x8] sm:$0xff]
    %v1226 = vld [vmem:[%s3 + $0x10] sm:$0xff]
    %v1227 = vld [vmem:[%s3 + $0x18] sm:$0xff]
    %v1228 = vld [vmem:[%s3 + $0x20] sm:$0xff]
    %v1229 = vld [vmem:[%s3 + $0x28] sm:$0xff]
    %v1230 = vld [vmem:[%s3 + $0x30] sm:$0xff]
    %v1231 = vld [vmem:[%s3 + $0x38] sm:$0xff]
    %v1232 = vld [vmem:[%s3 + $0x40] sm:$0xff]
    %v1233 = vld [vmem:[%s3 + $0x48] sm:$0xff]
    %v1234 = vld [vmem:[%s3 + $0x50] sm:$0xff]
    %v1235 = vld [vmem:[%s3 + $0x58] sm:$0xff]
    %v1236 = vld [vmem:[%s3 + $0x60] sm:$0xff]
    %v1237 = vld [vmem:[%s3 + $0x68] sm:$0xff]
    %v1238 = vld [vmem:[%s3 + $0x70] sm:$0xff]
    %v1239 = vld [vmem:[%s3 + $0x78] sm:$0xff]
    %v1240 = vtanh.pop %v1222
    %1241 = vmatpush.msra.mxu0 %v1239
    %1242 = vmatpush.msra.mxu0 %v1238
    %1243 = vmatpush.msra.mxu0 %v1237
    %1244 = vmatpush.msra.mxu0 %v1236
    %1245 = vmatpush.msra.mxu0 %v1235
    %1246 = vmatpush.msra.mxu0 %v1234
    %1247 = vmatpush.msra.mxu0 %v1233
    %1248 = vmatpush.msra.mxu0 %v1232
    %1249 = vmatpush.msra.mxu0 %v1231
    %1250 = vmatpush.msra.mxu0 %v1230
    %1251 = vmatpush.msra.mxu0 %v1229
    %1252 = vmatpush.msra.mxu0 %v1228
    %1253 = vmatpush.msra.mxu0 %v1227
    %1254 = vmatpush.msra.mxu0 %v1226
    %1255 = vmatpush.msra.mxu0 %v1225
    %1256 = vmatpush.msra.mxu0 %v1224
    %1257 = vmatmul.f32.gmra.mxu0 %v1240
    %v1258 = vpop.f32.mrf.mxu0
    %v1259 = vadd.f32 0.0, %v1258
    %1260 = vdwg.mxu0
    %v1262 = vrot.slane %v1259, 6
    %v1264 = vadd.f32 %v1222, %v1262
    %v1265 = vtanh.pop %v1264
    %v1267 = vrot.slane %v1265, 2
    %1269 = vmatpush.msra.mxu0 %v1239
    %1270 = vmatpush.msra.mxu0 %v1238
    %1271 = vmatpush.msra.mxu0 %v1237
    %1272 = vmatpush.msra.mxu0 %v1236
    %1273 = vmatpush.msra.mxu0 %v1235
    %1274 = vmatpush.msra.mxu0 %v1234
    %1275 = vmatpush.msra.mxu0 %v1233
    %1276 = vmatpush.msra.mxu0 %v1232
    %1277 = vmatpush.msra.mxu0 %v1231
    %1278 = vmatpush.msra.mxu0 %v1230
    %1279 = vmatpush.msra.mxu0 %v1229
    %1280 = vmatpush.msra.mxu0 %v1228
    %1281 = vmatpush.msra.mxu0 %v1227
    %1282 = vmatpush.msra.mxu0 %v1226
    %1283 = vmatpush.msra.mxu0 %v1225
    %1284 = vmatpush.msra.mxu0 %v1224
    %1285 = vmatmul.f32.gmra.mxu0 %v1267
    %v1286 = vpop.f32.mrf.mxu0
    %v1287 = vadd.f32 0.0, %v1286
    %1288 = vdwg.mxu0
    %v1290 = vrot.slane %v1287, 4
    %v1292 = vadd.f32 %v1222, %v1290
    %v1293 = vtanh.pop %v1292
    %v1295 = vrot.slane %v1293, 4
    %1297 = vmatpush.msra.mxu0 %v1239
    %1298 = vmatpush.msra.mxu0 %v1238
    %1299 = vmatpush.msra.mxu0 %v1237
    %1300 = vmatpush.msra.mxu0 %v1236
    %1301 = vmatpush.msra.mxu0 %v1235
    %1302 = vmatpush.msra.mxu0 %v1234
    %1303 = vmatpush.msra.mxu0 %v1233
    %1304 = vmatpush.msra.mxu0 %v1232
    %1305 = vmatpush.msra.mxu0 %v1231
    %1306 = vmatpush.msra.mxu0 %v1230
    %1307 = vmatpush.msra.mxu0 %v1229
    %1308 = vmatpush.msra.mxu0 %v1228
    %1309 = vmatpush.msra.mxu0 %v1227
    %1310 = vmatpush.msra.mxu0 %v1226
    %1311 = vmatpush.msra.mxu0 %v1225
    %1312 = vmatpush.msra.mxu0 %v1224
    %1313 = vmatmul.f32.gmra.mxu0 %v1295
    %v1314 = vpop.f32.mrf.mxu0
    %v1315 = vadd.f32 0.0, %v1314
    %1316 = vdwg.mxu0
    %v1318 = vrot.slane %v1315, 2
    %v1320 = vadd.f32 %v1222, %v1318
    %v1321 = vtanh.pop %v1320
    %v1322 = vld [vmem:[%s4] sm:$0xff]
    %v1323 = vld [vmem:[%s4 + $0x8] sm:$0xff]
    %v1324 = vld [vmem:[%s4 + $0x10] sm:$0xff]
    %v1325 = vld [vmem:[%s4 + $0x18] sm:$0xff]
    %v1326 = vld [vmem:[%s4 + $0x20] sm:$0xff]
    %v1327 = vld [vmem:[%s4 + $0x28] sm:$0xff]
    %v1328 = vld [vmem:[%s4 + $0x30] sm:$0xff]
    %v1329 = vld [vmem:[%s4 + $0x38] sm:$0xff]
    %v1330 = vld [vmem:[%s4 + $0x40] sm:$0xff]
    %v1331 = vld [vmem:[%s4 + $0x48] sm:$0xff]
    %v1332 = vld [vmem:[%s4 + $0x50] sm:$0xff]
    %v1333 = vld [vmem:[%s4 + $0x58] sm:$0xff]
    %v1334 = vld [vmem:[%s4 + $0x60] sm:$0xff]
    %v1335 = vld [vmem:[%s4 + $0x68] sm:$0xff]
    %v1336 = vld [vmem:[%s4 + $0x70] sm:$0xff]
    %v1337 = vld [vmem:[%s4 + $0x78] sm:$0xff]
    %v1338 = vld [vmem:[%s5] sm:$0x1]
    %v1340 = vperm.slane %v1338, 0
    %v1343 = vrot.slane %v1321, 6
    %1345 = vmatpush.msra.mxu0 %v1337
    %1346 = vmatpush.msra.mxu0 %v1336
    %1347 = vmatpush.msra.mxu0 %v1335
    %1348 = vmatpush.msra.mxu0 %v1334
    %1349 = vmatpush.msra.mxu0 %v1333
    %1350 = vmatpush.msra.mxu0 %v1332
    %1351 = vmatpush.msra.mxu0 %v1331
    %1352 = vmatpush.msra.mxu0 %v1330
    %1353 = vmatpush.msra.mxu0 %v1329
    %1354 = vmatpush.msra.mxu0 %v1328
    %1355 = vmatpush.msra.mxu0 %v1327
    %1356 = vmatpush.msra.mxu0 %v1326
    %1357 = vmatpush.msra.mxu0 %v1325
    %1358 = vmatpush.msra.mxu0 %v1324
    %1359 = vmatpush.msra.mxu0 %v1323
    %1360 = vmatpush.msra.mxu0 %v1322
    %1361 = vmatmul.f32.gmra.mxu0 %v1343
    %v1362 = vpop.f32.mrf.mxu0
    %v1363 = vadd.f32 %v1340, %v1362
    %1364 = vdwg.mxu0
    %v1365 = vmax.f32 %v1363, 0.0
    %v1366 = vld [vmem:[%s6] sm:$0xff]
    %v1367 = vld [vmem:[%s6 + $0x8] sm:$0xff]
    %v1368 = vld [vmem:[%s6 + $0x10] sm:$0xff]
    %v1369 = vld [vmem:[%s6 + $0x18] sm:$0xff]
    %v1370 = vld [vmem:[%s6 + $0x20] sm:$0xff]
    %v1371 = vld [vmem:[%s6 + $0x28] sm:$0xff]
    %v1372 = vld [vmem:[%s6 + $0x30] sm:$0xff]
    %v1373 = vld [vmem:[%s6 + $0x38] sm:$0xff]
    %v1374 = vld [vmem:[%s7] sm:$0x1]
    %v1376 = vperm.slane %v1374, 0
    %vm1378 = vcmask 523264
    %v1380 = vsel %vm1378, %v1365, 0
    %1382 = vmatpush.msra.mxu0 0.0
    %1383 = vmatpush.msra.mxu0 0.0
    %1384 = vmatpush.msra.mxu0 0.0
    %1385 = vmatpush.msra.mxu0 0.0
    %1386 = vmatpush.msra.mxu0 0.0
    %1387 = vmatpush.msra.mxu0 0.0
    %1388 = vmatpush.msra.mxu0 0.0
    %1389 = vmatpush.msra.mxu0 0.0
    %1390 = vmatpush.msra.mxu0 %v1373
    %1391 = vmatpush.msra.mxu0 %v1372
    %1392 = vmatpush.msra.mxu0 %v1371
    %1393 = vmatpush.msra.mxu0 %v1370
    %1394 = vmatpush.msra.mxu0 %v1369
    %1395 = vmatpush.msra.mxu0 %v1368
    %1396 = vmatpush.msra.mxu0 %v1367
    %1397 = vmatpush.msra.mxu0 %v1366
    %1398 = vmatmul.f32.gmra.mxu0 %v1380
    %v1399 = vpop.f32.mrf.mxu0
    %v1400 = vadd.f32 %v1376, %v1399
    %1401 = vdwg.mxu0
    %v1402 = vmax.f32 %v1400, 0.0
    %v1403 = vld [vmem:[%s8] sm:$0xff]
    %v1404 = vld [vmem:[%s8 + $0x8] sm:$0xff]
    %v1405 = vld [vmem:[%s8 + $0x10] sm:$0xff]
    %v1406 = vld [vmem:[%s8 + $0x18] sm:$0xff]
    %v1407 = vld [vmem:[%s9] sm:$0x1]
    %v1409 = vperm.slane %v1407, 0
    %vm1411 = vcmask 261120
    %v1413 = vsel %vm1411, %v1402, 0
    %1415 = vmatpush.msra.mxu0 0.0
    %1416 = vmatpush.msra.mxu0 0.0
    %1417 = vmatpush.msra.mxu0 0.0
    %1418 = vmatpush.msra.mxu0 0.0
    %1419 = vmatpush.msra.mxu0 0.0
    %1420 = vmatpush.msra.mxu0 0.0
    %1421 = vmatpush.msra.mxu0 0.0
    %1422 = vmatpush.msra.mxu0 0.0
    %1423 = vmatpush.msra.mxu0 0.0
    %1424 = vmatpush.msra.mxu0 0.0
    %1425 = vmatpush.msra.mxu0 0.0
    %1426 = vmatpush.msra.mxu0 0.0
    %1427 = vmatpush.msra.mxu0 %v1406
    %1428 = vmatpush.msra.mxu0 %v1405
    %1429 = vmatpush.msra.mxu0 %v1404
    %1430 = vmatpush.msra.mxu0 %v1403
    %1431 = vmatmul.f32.gmra.mxu0 %v1413
    %v1432 = vpop.f32.mrf.mxu0
    %v1433 = vadd.f32 %v1409, %v1432
    %1434 = vdwg.mxu0
    %vm1435 = vcmask 74752
    %1436 = vst.msk [vmem:[#allocation2] sm:$0x3] %vm1435, %v1433
    // Predicated region
    $region42: #{model_forward.9} parent=1 // pred_check
      _
    $region43: #{model_forward.9} parent=1 // pred_check_branch
      %1438 = sbr.rel (0) target = $region45
    $region44: #{model_forward.9} parent=1 // pred_region
      %1440 = vsyncadd [#allocation3], 0
      %s1442 = sshll.u32 [#allocation2], 4
      %s1443 = int_to_ptr.vmem [resolvable:$true] %s1442
      %s1444 = sshll.u32 %s10, 4
      %s1445 = int_to_ptr.hbm [resolvable:$true] %s1444
      %1447 = dma.vmem_to_hbm [thread:$0]  %s1443, 32, %s1445, [#allocation3]
    $region45: #{model_forward.9} parent=1 // pred_fallthru
      _
    // Predicated region
    $region46: #{model_forward.9} parent=1 // pred_check
      _
    $region47: #{model_forward.9} parent=1 // pred_check_branch
      %1449 = sbr.rel (0) target = $region49
    $region48: #{model_forward.9} parent=1 // pred_region
      %1451 = dma.done [#allocation3], 32
    $region49: #{model_forward.9} parent=1 // pred_fallthru
      _
    %1452 = vsyncpa [#allocation3], 1

</llo_original>
